<compile_context>
chip_gen: v7x
topology: tpu7x:2x2x1
jax: 0.10.0
libtpu: 0.0.40
codegen_flags: <defaults>
</compile_context>

<pallas_src>
import functools

import jax
import jax.numpy as jnp
from jax.experimental import pallas as pl
from jax.experimental.pallas import tpu as pltpu

SLOPE = 0.5   # nn.LeakyReLU(0.5)
LPAD = 8      # W-axis halo width of the VMEM staging buffers; 8 keeps the
              # f32 interior stores sublane-aligned (no masked partial stores).


# ------------------------------ fused kernel --------------------------------

def _ex_net_kernel(x_ref, w1_ref, b1_ref, w2_ref, b2_ref, w3_ref, b3_ref,
                   o_ref,
                   xh_ref, h1_ref, vm_ref, h2_ref,
                   *, slope, compute_dtype):
    # x_ref : (H, W, Cin)   unpadded input image (batch dim squeezed)
    # wK_ref: (9, CinK, CoutK) bf16 repacked weights, bK_ref: (1, CoutK) f32
    # o_ref : (H//2, W//2, C3)
    # xh_ref: (H+2,  W+2*LPAD,    Cin) VMEM halo buffer for conv1's input
    # h1_ref: (H+2,  W+2*LPAD,    C1)  VMEM halo buffer for conv2's input
    # vm_ref: (H//2, W,           C2)  VMEM buffer holding the vertical pool max
    # h2_ref: (H//2+2, W//2+2*LPAD, C2) VMEM halo buffer for conv3's input
    H, W, _ = x_ref.shape
    Hh, Wh = H // 2, W // 2
    C1 = w1_ref.shape[-1]
    C2 = w2_ref.shape[-1]
    C3 = w3_ref.shape[-1]

    def lrelu(v):
        return jnp.where(v >= 0, v, slope * v)

    def conv3x3(src_ref, w_ref, b_ref, h, w, col0):
        # 3x3 / stride 1 / pad 1 conv over a zero-padded halo ref whose valid
        # data starts at row 1, column `col0`.  Accumulates 9 shifted
        # (h*w, Cin) x (Cin, Cout) MXU matmuls in f32, then bias + LeakyReLU.
        cin = src_ref.shape[-1]
        cout = w_ref.shape[-1]
        acc = jnp.zeros((h * w, cout), jnp.float32)
        for kh in range(3):
            for kw in range(3):
                c0 = col0 - 1 + kw
                tap = src_ref[kh:kh + h, c0:c0 + w, :]            # (h, w, cin)
                lhs = tap.reshape(h * w, cin).astype(compute_dtype)
                acc = acc + jnp.dot(lhs, w_ref[kh * 3 + kw],
                                    preferred_element_type=jnp.float32)
        return lrelu(acc + b_ref[...])                            # (h*w, cout)

    # ---- fused "pad": stage the input into a zero halo buffer --------------
    # Re-zero every step: under "parallel" megacore partitioning each core owns
    # its own scratch and may never run program_id==0, so zero-once is unsafe.
    xh_ref[...] = jnp.zeros(xh_ref.shape, xh_ref.dtype)
    xh_ref[1:H + 1, LPAD:LPAD + W, :] = x_ref[...]

    # ---- conv1 + LeakyReLU ----
    a1 = conv3x3(xh_ref, w1_ref, b1_ref, H, W, col0=LPAD)         # (H*W, C1)

    # stage conv1 output into its zero halo buffer (aligned interior store)
    h1_ref[...] = jnp.zeros(h1_ref.shape, h1_ref.dtype)
    h1_ref[1:H + 1, LPAD:LPAD + W, :] = a1.reshape(H, W, C1)

    # ---- conv2 + LeakyReLU ----
    a2 = conv3x3(h1_ref, w2_ref, b2_ref, H, W, col0=LPAD)         # (H*W, C2)

    # ---- fused 2x2 max-pool + LeakyReLU (VMEM resident) ----
    # vertical: rows 2*r and 2*r+1 are the two aligned W-wide halves of row r
    # after a layout-preserving leading-dim reshape (2*W is a multiple of 8).
    a2r = a2.reshape(Hh, 2 * W, C2)
    vm_ref[...] = jnp.maximum(a2r[:, :W, :], a2r[:, W:, :])       # (Hh, W, C2)
    # horizontal: stride-2 sublane reads (even / odd column phases).
    even = vm_ref[:, pl.ds(0, Wh, stride=2), :]
    odd = vm_ref[:, pl.ds(1, Wh, stride=2), :]
    pooled = lrelu(jnp.maximum(even, odd))                        # (Hh, Wh, C2)

    # stage pooled activations into the conv3 halo buffer
    h2_ref[...] = jnp.zeros(h2_ref.shape, h2_ref.dtype)
    h2_ref[1:Hh + 1, LPAD:LPAD + Wh, :] = pooled

    # ---- conv3 + LeakyReLU ----
    a3 = conv3x3(h2_ref, w3_ref, b3_ref, Hh, Wh, col0=LPAD)       # (Hh*Wh, C3)
    o_ref[...] = a3.reshape(Hh, Wh, C3)                           # lane-dense


# ------------------------------ wrappers -------------------------------------

def prepare_params(params, compute_dtype=jnp.bfloat16):
    """One-time weight repack: (Cout,Cin,3,3) -> (9,Cin,Cout) in MXU dtype."""
    def repack_w(w):
        cout, cin = w.shape[0], w.shape[1]
        return jnp.transpose(w, (2, 3, 1, 0)).reshape(9, cin, cout).astype(compute_dtype)

    def repack_b(b):
        return b.reshape(1, -1).astype(jnp.float32)

    return {"w1": repack_w(params["w1"]), "b1": repack_b(params["b1"]),
            "w2": repack_w(params["w2"]), "b2": repack_b(params["b2"]),
            "w3": repack_w(params["w3"]), "b3": repack_b(params["b3"])}


def ex_net_forward(x_nchw, prep, *, slope=SLOPE, compute_dtype=jnp.bfloat16):
    N, Cin, H, W = x_nchw.shape
    assert H % 2 == 0 and W % 2 == 0, "MaxPool2d(2,2) path assumes even H, W"
    Hh, Wh = H // 2, W // 2
    C1 = prep["w1"].shape[-1]
    C2 = prep["w2"].shape[-1]
    C3 = prep["w3"].shape[-1]

    x = jnp.transpose(x_nchw, (0, 2, 3, 1)).astype(jnp.float32)   # NCHW -> NHWC

    kern = functools.partial(_ex_net_kernel, slope=slope,
                             compute_dtype=compute_dtype)

    out_nhwc = pl.pallas_call(
        kern,
        out_shape=jax.ShapeDtypeStruct((N, Hh, Wh, C3), jnp.float32),
        grid_spec=pltpu.PrefetchScalarGridSpec(
            num_scalar_prefetch=0,
            grid=(N,),                                            # one image / step
            in_specs=[
                pl.BlockSpec((None, H, W, Cin), lambda i: (i, 0, 0, 0)),
                pl.BlockSpec((9, Cin, C1), lambda i: (0, 0, 0)),
                pl.BlockSpec((1, C1), lambda i: (0, 0)),
                pl.BlockSpec((9, C1, C2), lambda i: (0, 0, 0)),
                pl.BlockSpec((1, C2), lambda i: (0, 0)),
                pl.BlockSpec((9, C2, C3), lambda i: (0, 0, 0)),
                pl.BlockSpec((1, C3), lambda i: (0, 0)),
            ],
            out_specs=pl.BlockSpec((None, Hh, Wh, C3), lambda i: (i, 0, 0, 0)),
            scratch_shapes=[
                pltpu.VMEM((H + 2, W + 2 * LPAD, Cin), jnp.float32),   # input halo
                pltpu.VMEM((H + 2, W + 2 * LPAD, C1), jnp.float32),    # conv1 halo
                pltpu.VMEM((Hh, W, C2), jnp.float32),                  # vertical max
                pltpu.VMEM((Hh + 2, Wh + 2 * LPAD, C2), jnp.float32),  # pooled halo
            ],
        ),
        compiler_params=pltpu.CompilerParams(
            dimension_semantics=("parallel",),    # shard images across TCs (v7x)
        ),
    )(x, prep["w1"], prep["b1"], prep["w2"], prep["b2"],
      prep["w3"], prep["b3"])

    return jnp.transpose(out_nhwc, (0, 3, 1, 2))                  # NHWC -> NCHW


# --------------------------- deterministic init ------------------------------

def init_params(key, channl):
    def conv_init(key, cout, cin, k=3):
        kw, kb = jax.random.split(key)
        bound = 1.0 / (cin * k * k) ** 0.5                        # PyTorch default-ish
        w = jax.random.uniform(kw, (cout, cin, k, k), jnp.float32, -bound, bound)
        b = jax.random.uniform(kb, (cout,), jnp.float32, -bound, bound)
        return w, b

    k1, k2, k3 = jax.random.split(key, 3)
    w1, b1 = conv_init(k1, 64, channl)
    w2, b2 = conv_init(k2, 64, 64)
    w3, b3 = conv_init(k3, 128, 64)
    return {"w1": w1, "b1": b1, "w2": w2, "b2": b2, "w3": w3, "b3": b3}


# --------------------------- pure-JAX reference ------------------------------

def ex_net_reference(x_nchw, params):
    def conv(x, w, b):
        y = jax.lax.conv_general_dilated(
            x, w, window_strides=(1, 1), padding=((1, 1), (1, 1)),
            dimension_numbers=("NCHW", "OIHW", "NCHW"))
        return y + b.reshape(1, -1, 1, 1)

    def lrelu(x):
        return jnp.where(x >= 0, x, SLOPE * x)

    out = lrelu(conv(x_nchw, params["w1"], params["b1"]))
    out = lrelu(conv(out, params["w2"], params["b2"]))
    out = jax.lax.reduce_window(out, -jnp.inf, jax.lax.max,
                                (1, 1, 2, 2), (1, 1, 2, 2), "VALID")
    out = lrelu(out)
    out = lrelu(conv(out, params["w3"], params["b3"]))
    return out


# --------------------------------- main --------------------------------------

if __name__ == "__main__":
    key = jax.random.PRNGKey(0)
    k_x, k_p = jax.random.split(key)

    N, C, H, W = 2, 4, 16, 16                 # small NCHW input (channl=4)
    x = jax.random.normal(k_x, (N, C, H, W), jnp.float32)
    params = init_params(k_p, C)
    prep = prepare_params(params)             # one-time repack + bf16 cast

    fwd = jax.jit(ex_net_forward)
    out = jax.block_until_ready(fwd(x, prep))
    assert out.shape == (N, 128, H // 2, W // 2), out.shape

    ref = jax.block_until_ready(ex_net_reference(x, params))
    max_err = float(jnp.max(jnp.abs(out - ref)))
    # bf16 MXU inputs (f32 accumulation/epilogue) -> ~1e-2 level error vs f32 ref
    assert jnp.allclose(out, ref, rtol=3e-2, atol=3e-2), max_err

    print("KERNEL_OK")
</pallas_src>

<mosaic_0001>
module attributes {stable_mosaic.version = 11 : i64} {
  func.func @_ex_net_kernel(%arg0: i32, %arg1: memref<1x16x16x4xf32, #tpu.memory_space<vmem>>, %arg2: memref<9x4x64xbf16, #tpu.memory_space<vmem>>, %arg3: memref<1x64xf32, #tpu.memory_space<vmem>>, %arg4: memref<9x64x64xbf16, #tpu.memory_space<vmem>>, %arg5: memref<1x64xf32, #tpu.memory_space<vmem>>, %arg6: memref<9x64x128xbf16, #tpu.memory_space<vmem>>, %arg7: memref<1x128xf32, #tpu.memory_space<vmem>>, %arg8: memref<1x8x8x128xf32, #tpu.memory_space<vmem>>, %arg9: memref<18x32x4xf32, #tpu.memory_space<vmem>>, %arg10: memref<18x32x64xf32, #tpu.memory_space<vmem>>, %arg11: memref<8x16x64xf32, #tpu.memory_space<vmem>>, %arg12: memref<10x24x64xf32, #tpu.memory_space<vmem>>) attributes {dimension_semantics = [#tpu.dimension_semantics<parallel>], iteration_bounds = array<i64: 2>, scalar_prefetch = 0 : i64, scratch_operands = 4 : i64, tpu.core_type = #tpu.core_type<tc>, window_params = [{transform_indices = @transform_0, window_bounds = array<i64: 1, 16, 16, 4>}, {pipeline_mode = #tpu.pipeline_mode<synchronous>, transform_indices = @transform_1, window_bounds = array<i64: 9, 4, 64>}, {pipeline_mode = #tpu.pipeline_mode<synchronous>, transform_indices = @transform_2, window_bounds = array<i64: 1, 64>}, {pipeline_mode = #tpu.pipeline_mode<synchronous>, transform_indices = @transform_3, window_bounds = array<i64: 9, 64, 64>}, {pipeline_mode = #tpu.pipeline_mode<synchronous>, transform_indices = @transform_4, window_bounds = array<i64: 1, 64>}, {pipeline_mode = #tpu.pipeline_mode<synchronous>, transform_indices = @transform_5, window_bounds = array<i64: 9, 64, 128>}, {pipeline_mode = #tpu.pipeline_mode<synchronous>, transform_indices = @transform_6, window_bounds = array<i64: 1, 128>}, {transform_indices = @transform_7, window_bounds = array<i64: 1, 8, 8, 128>}]} {
    %cst = arith.constant 0.000000e+00 : f32
    %0 = vector.broadcast %cst : f32 to vector<18x32x4xf32>
    %c0 = arith.constant 0 : index
    %c0_0 = arith.constant 0 : index
    %c0_1 = arith.constant 0 : index
    %1 = vector.load %arg9[%c0, %c0_0, %c0_1] : memref<18x32x4xf32, #tpu.memory_space<vmem>>, vector<18x32x4xf32>
    tpu.vector_store %arg9[%c0, %c0_0, %c0_1], %0 {strides = array<i32>} : memref<18x32x4xf32, #tpu.memory_space<vmem>>, vector<18x32x4xf32>,
    %c0_2 = arith.constant 0 : index
    %c0_3 = arith.constant 0 : index
    %c0_4 = arith.constant 0 : index
    %c0_5 = arith.constant 0 : index
    %2 = vector.load %arg1[%c0_2, %c0_3, %c0_4, %c0_5] : memref<1x16x16x4xf32, #tpu.memory_space<vmem>>, vector<1x16x16x4xf32>
    %3 = vector.shape_cast %2 : vector<1x16x16x4xf32> to vector<16x16x4xf32>
    %c1 = arith.constant 1 : index
    %c8 = arith.constant 8 : index
    %c0_6 = arith.constant 0 : index
    %4 = vector.load %arg9[%c1, %c8, %c0_6] : memref<18x32x4xf32, #tpu.memory_space<vmem>>, vector<16x16x4xf32>
    tpu.vector_store %arg9[%c1, %c8, %c0_6], %3 {strides = array<i32>} : memref<18x32x4xf32, #tpu.memory_space<vmem>>, vector<16x16x4xf32>,
    %cst_7 = arith.constant 0.000000e+00 : f32
    %5 = vector.broadcast %cst_7 : f32 to vector<256x64xf32>
    %c0_8 = arith.constant 0 : index
    %c7 = arith.constant 7 : index
    %c0_9 = arith.constant 0 : index
    %6 = vector.load %arg9[%c0_8, %c7, %c0_9] : memref<18x32x4xf32, #tpu.memory_space<vmem>>, vector<16x16x4xf32>
    %7 = vector.shape_cast %6 : vector<16x16x4xf32> to vector<256x4xf32>
    %8 = arith.truncf %7 : vector<256x4xf32> to vector<256x4xbf16>
    %c0_10 = arith.constant 0 : index
    %c0_11 = arith.constant 0 : index
    %c0_12 = arith.constant 0 : index
    %9 = vector.load %arg2[%c0_10, %c0_11, %c0_12] : memref<9x4x64xbf16, #tpu.memory_space<vmem>>, vector<1x4x64xbf16>
    %10 = vector.shape_cast %9 : vector<1x4x64xbf16> to vector<4x64xbf16>
    %cst_13 = arith.constant dense<0.000000e+00> : vector<256x64xf32>
    %11 = tpu.matmul %8, %10, %cst_13 {dimension_numbers = #tpu.dot_dimension_numbers<[1], [0], [0], [1], [0, 0, 1, 1], [], []>} : vector<256x4xbf16>, vector<4x64xbf16>, vector<256x64xf32> -> vector<256x64xf32>
    %12 = arith.addf %5, %11 : vector<256x64xf32>
    %c0_14 = arith.constant 0 : index
    %c8_15 = arith.constant 8 : index
    %c0_16 = arith.constant 0 : index
    %13 = vector.load %arg9[%c0_14, %c8_15, %c0_16] : memref<18x32x4xf32, #tpu.memory_space<vmem>>, vector<16x16x4xf32>
    %14 = vector.shape_cast %13 : vector<16x16x4xf32> to vector<256x4xf32>
    %15 = arith.truncf %14 : vector<256x4xf32> to vector<256x4xbf16>
    %c1_17 = arith.constant 1 : index
    %c0_18 = arith.constant 0 : index
    %c0_19 = arith.constant 0 : index
    %16 = vector.load %arg2[%c1_17, %c0_18, %c0_19] : memref<9x4x64xbf16, #tpu.memory_space<vmem>>, vector<1x4x64xbf16>
    %17 = vector.shape_cast %16 : vector<1x4x64xbf16> to vector<4x64xbf16>
    %cst_20 = arith.constant dense<0.000000e+00> : vector<256x64xf32>
    %18 = tpu.matmul %15, %17, %cst_20 {dimension_numbers = #tpu.dot_dimension_numbers<[1], [0], [0], [1], [0, 0, 1, 1], [], []>} : vector<256x4xbf16>, vector<4x64xbf16>, vector<256x64xf32> -> vector<256x64xf32>
    %19 = arith.addf %12, %18 : vector<256x64xf32>
    %c0_21 = arith.constant 0 : index
    %c9 = arith.constant 9 : index
    %c0_22 = arith.constant 0 : index
    %20 = vector.load %arg9[%c0_21, %c9, %c0_22] : memref<18x32x4xf32, #tpu.memory_space<vmem>>, vector<16x16x4xf32>
    %21 = vector.shape_cast %20 : vector<16x16x4xf32> to vector<256x4xf32>
    %22 = arith.truncf %21 : vector<256x4xf32> to vector<256x4xbf16>
    %c2 = arith.constant 2 : index
    %c0_23 = arith.constant 0 : index
    %c0_24 = arith.constant 0 : index
    %23 = vector.load %arg2[%c2, %c0_23, %c0_24] : memref<9x4x64xbf16, #tpu.memory_space<vmem>>, vector<1x4x64xbf16>
    %24 = vector.shape_cast %23 : vector<1x4x64xbf16> to vector<4x64xbf16>
    %cst_25 = arith.constant dense<0.000000e+00> : vector<256x64xf32>
    %25 = tpu.matmul %22, %24, %cst_25 {dimension_numbers = #tpu.dot_dimension_numbers<[1], [0], [0], [1], [0, 0, 1, 1], [], []>} : vector<256x4xbf16>, vector<4x64xbf16>, vector<256x64xf32> -> vector<256x64xf32>
    %26 = arith.addf %19, %25 : vector<256x64xf32>
    %c1_26 = arith.constant 1 : index
    %c7_27 = arith.constant 7 : index
    %c0_28 = arith.constant 0 : index
    %27 = vector.load %arg9[%c1_26, %c7_27, %c0_28] : memref<18x32x4xf32, #tpu.memory_space<vmem>>, vector<16x16x4xf32>
    %28 = vector.shape_cast %27 : vector<16x16x4xf32> to vector<256x4xf32>
    %29 = arith.truncf %28 : vector<256x4xf32> to vector<256x4xbf16>
    %c3 = arith.constant 3 : index
    %c0_29 = arith.constant 0 : index
    %c0_30 = arith.constant 0 : index
    %30 = vector.load %arg2[%c3, %c0_29, %c0_30] : memref<9x4x64xbf16, #tpu.memory_space<vmem>>, vector<1x4x64xbf16>
    %31 = vector.shape_cast %30 : vector<1x4x64xbf16> to vector<4x64xbf16>
    %cst_31 = arith.constant dense<0.000000e+00> : vector<256x64xf32>
    %32 = tpu.matmul %29, %31, %cst_31 {dimension_numbers = #tpu.dot_dimension_numbers<[1], [0], [0], [1], [0, 0, 1, 1], [], []>} : vector<256x4xbf16>, vector<4x64xbf16>, vector<256x64xf32> -> vector<256x64xf32>
    %33 = arith.addf %26, %32 : vector<256x64xf32>
    %c1_32 = arith.constant 1 : index
    %c8_33 = arith.constant 8 : index
    %c0_34 = arith.constant 0 : index
    %34 = vector.load %arg9[%c1_32, %c8_33, %c0_34] : memref<18x32x4xf32, #tpu.memory_space<vmem>>, vector<16x16x4xf32>
    %35 = vector.shape_cast %34 : vector<16x16x4xf32> to vector<256x4xf32>
    %36 = arith.truncf %35 : vector<256x4xf32> to vector<256x4xbf16>
    %c4 = arith.constant 4 : index
    %c0_35 = arith.constant 0 : index
    %c0_36 = arith.constant 0 : index
    %37 = vector.load %arg2[%c4, %c0_35, %c0_36] : memref<9x4x64xbf16, #tpu.memory_space<vmem>>, vector<1x4x64xbf16>
    %38 = vector.shape_cast %37 : vector<1x4x64xbf16> to vector<4x64xbf16>
    %cst_37 = arith.constant dense<0.000000e+00> : vector<256x64xf32>
    %39 = tpu.matmul %36, %38, %cst_37 {dimension_numbers = #tpu.dot_dimension_numbers<[1], [0], [0], [1], [0, 0, 1, 1], [], []>} : vector<256x4xbf16>, vector<4x64xbf16>, vector<256x64xf32> -> vector<256x64xf32>
    %40 = arith.addf %33, %39 : vector<256x64xf32>
    %c1_38 = arith.constant 1 : index
    %c9_39 = arith.constant 9 : index
    %c0_40 = arith.constant 0 : index
    %41 = vector.load %arg9[%c1_38, %c9_39, %c0_40] : memref<18x32x4xf32, #tpu.memory_space<vmem>>, vector<16x16x4xf32>
    %42 = vector.shape_cast %41 : vector<16x16x4xf32> to vector<256x4xf32>
    %43 = arith.truncf %42 : vector<256x4xf32> to vector<256x4xbf16>
    %c5 = arith.constant 5 : index
    %c0_41 = arith.constant 0 : index
    %c0_42 = arith.constant 0 : index
    %44 = vector.load %arg2[%c5, %c0_41, %c0_42] : memref<9x4x64xbf16, #tpu.memory_space<vmem>>, vector<1x4x64xbf16>
    %45 = vector.shape_cast %44 : vector<1x4x64xbf16> to vector<4x64xbf16>
    %cst_43 = arith.constant dense<0.000000e+00> : vector<256x64xf32>
    %46 = tpu.matmul %43, %45, %cst_43 {dimension_numbers = #tpu.dot_dimension_numbers<[1], [0], [0], [1], [0, 0, 1, 1], [], []>} : vector<256x4xbf16>, vector<4x64xbf16>, vector<256x64xf32> -> vector<256x64xf32>
    %47 = arith.addf %40, %46 : vector<256x64xf32>
    %c2_44 = arith.constant 2 : index
    %c7_45 = arith.constant 7 : index
    %c0_46 = arith.constant 0 : index
    %48 = vector.load %arg9[%c2_44, %c7_45, %c0_46] : memref<18x32x4xf32, #tpu.memory_space<vmem>>, vector<16x16x4xf32>
    %49 = vector.shape_cast %48 : vector<16x16x4xf32> to vector<256x4xf32>
    %50 = arith.truncf %49 : vector<256x4xf32> to vector<256x4xbf16>
    %c6 = arith.constant 6 : index
    %c0_47 = arith.constant 0 : index
    %c0_48 = arith.constant 0 : index
    %51 = vector.load %arg2[%c6, %c0_47, %c0_48] : memref<9x4x64xbf16, #tpu.memory_space<vmem>>, vector<1x4x64xbf16>
    %52 = vector.shape_cast %51 : vector<1x4x64xbf16> to vector<4x64xbf16>
    %cst_49 = arith.constant dense<0.000000e+00> : vector<256x64xf32>
    %53 = tpu.matmul %50, %52, %cst_49 {dimension_numbers = #tpu.dot_dimension_numbers<[1], [0], [0], [1], [0, 0, 1, 1], [], []>} : vector<256x4xbf16>, vector<4x64xbf16>, vector<256x64xf32> -> vector<256x64xf32>
    %54 = arith.addf %47, %53 : vector<256x64xf32>
    %c2_50 = arith.constant 2 : index
    %c8_51 = arith.constant 8 : index
    %c0_52 = arith.constant 0 : index
    %55 = vector.load %arg9[%c2_50, %c8_51, %c0_52] : memref<18x32x4xf32, #tpu.memory_space<vmem>>, vector<16x16x4xf32>
    %56 = vector.shape_cast %55 : vector<16x16x4xf32> to vector<256x4xf32>
    %57 = arith.truncf %56 : vector<256x4xf32> to vector<256x4xbf16>
    %c7_53 = arith.constant 7 : index
    %c0_54 = arith.constant 0 : index
    %c0_55 = arith.constant 0 : index
    %58 = vector.load %arg2[%c7_53, %c0_54, %c0_55] : memref<9x4x64xbf16, #tpu.memory_space<vmem>>, vector<1x4x64xbf16>
    %59 = vector.shape_cast %58 : vector<1x4x64xbf16> to vector<4x64xbf16>
    %cst_56 = arith.constant dense<0.000000e+00> : vector<256x64xf32>
    %60 = tpu.matmul %57, %59, %cst_56 {dimension_numbers = #tpu.dot_dimension_numbers<[1], [0], [0], [1], [0, 0, 1, 1], [], []>} : vector<256x4xbf16>, vector<4x64xbf16>, vector<256x64xf32> -> vector<256x64xf32>
    %61 = arith.addf %54, %60 : vector<256x64xf32>
    %c2_57 = arith.constant 2 : index
    %c9_58 = arith.constant 9 : index
    %c0_59 = arith.constant 0 : index
    %62 = vector.load %arg9[%c2_57, %c9_58, %c0_59] : memref<18x32x4xf32, #tpu.memory_space<vmem>>, vector<16x16x4xf32>
    %63 = vector.shape_cast %62 : vector<16x16x4xf32> to vector<256x4xf32>
    %64 = arith.truncf %63 : vector<256x4xf32> to vector<256x4xbf16>
    %c8_60 = arith.constant 8 : index
    %c0_61 = arith.constant 0 : index
    %c0_62 = arith.constant 0 : index
    %65 = vector.load %arg2[%c8_60, %c0_61, %c0_62] : memref<9x4x64xbf16, #tpu.memory_space<vmem>>, vector<1x4x64xbf16>
    %66 = vector.shape_cast %65 : vector<1x4x64xbf16> to vector<4x64xbf16>
    %cst_63 = arith.constant dense<0.000000e+00> : vector<256x64xf32>
    %67 = tpu.matmul %64, %66, %cst_63 {dimension_numbers = #tpu.dot_dimension_numbers<[1], [0], [0], [1], [0, 0, 1, 1], [], []>} : vector<256x4xbf16>, vector<4x64xbf16>, vector<256x64xf32> -> vector<256x64xf32>
    %68 = arith.addf %61, %67 : vector<256x64xf32>
    %c0_64 = arith.constant 0 : index
    %c0_65 = arith.constant 0 : index
    %69 = vector.load %arg3[%c0_64, %c0_65] : memref<1x64xf32, #tpu.memory_space<vmem>>, vector<1x64xf32>
    %70 = vector.broadcast %69 : vector<1x64xf32> to vector<256x64xf32>
    %71 = arith.addf %68, %70 : vector<256x64xf32>
    %cst_66 = arith.constant 0.000000e+00 : f32
    %72 = vector.broadcast %cst_66 : f32 to vector<256x64xf32>
    %73 = arith.cmpf oge, %71, %72 : vector<256x64xf32>
    %cst_67 = arith.constant 5.000000e-01 : f32
    %74 = vector.broadcast %cst_67 : f32 to vector<256x64xf32>
    %75 = arith.mulf %74, %71 : vector<256x64xf32>
    %76 = arith.select %73, %71, %75 : vector<256x64xi1>, vector<256x64xf32>
    %cst_68 = arith.constant 0.000000e+00 : f32
    %77 = vector.broadcast %cst_68 : f32 to vector<18x32x64xf32>
    %c0_69 = arith.constant 0 : index
    %c0_70 = arith.constant 0 : index
    %c0_71 = arith.constant 0 : index
    %78 = vector.load %arg10[%c0_69, %c0_70, %c0_71] : memref<18x32x64xf32, #tpu.memory_space<vmem>>, vector<18x32x64xf32>
    tpu.vector_store %arg10[%c0_69, %c0_70, %c0_71], %77 {strides = array<i32>} : memref<18x32x64xf32, #tpu.memory_space<vmem>>, vector<18x32x64xf32>,
    %79 = vector.shape_cast %76 : vector<256x64xf32> to vector<16x16x64xf32>
    %c1_72 = arith.constant 1 : index
    %c8_73 = arith.constant 8 : index
    %c0_74 = arith.constant 0 : index
    %80 = vector.load %arg10[%c1_72, %c8_73, %c0_74] : memref<18x32x64xf32, #tpu.memory_space<vmem>>, vector<16x16x64xf32>
    tpu.vector_store %arg10[%c1_72, %c8_73, %c0_74], %79 {strides = array<i32>} : memref<18x32x64xf32, #tpu.memory_space<vmem>>, vector<16x16x64xf32>,
    %cst_75 = arith.constant 0.000000e+00 : f32
    %81 = vector.broadcast %cst_75 : f32 to vector<256x64xf32>
    %c0_76 = arith.constant 0 : index
    %c7_77 = arith.constant 7 : index
    %c0_78 = arith.constant 0 : index
    %82 = vector.load %arg10[%c0_76, %c7_77, %c0_78] : memref<18x32x64xf32, #tpu.memory_space<vmem>>, vector<16x16x64xf32>
    %83 = vector.shape_cast %82 : vector<16x16x64xf32> to vector<256x64xf32>
    %84 = arith.truncf %83 : vector<256x64xf32> to vector<256x64xbf16>
    %c0_79 = arith.constant 0 : index
    %c0_80 = arith.constant 0 : index
    %c0_81 = arith.constant 0 : index
    %85 = vector.load %arg4[%c0_79, %c0_80, %c0_81] : memref<9x64x64xbf16, #tpu.memory_space<vmem>>, vector<1x64x64xbf16>
    %86 = vector.shape_cast %85 : vector<1x64x64xbf16> to vector<64x64xbf16>
    %cst_82 = arith.constant dense<0.000000e+00> : vector<256x64xf32>
    %87 = tpu.matmul %84, %86, %cst_82 {dimension_numbers = #tpu.dot_dimension_numbers<[1], [0], [0], [1], [0, 0, 1, 1], [], []>} : vector<256x64xbf16>, vector<64x64xbf16>, vector<256x64xf32> -> vector<256x64xf32>
    %88 = arith.addf %81, %87 : vector<256x64xf32>
    %c0_83 = arith.constant 0 : index
    %c8_84 = arith.constant 8 : index
    %c0_85 = arith.constant 0 : index
    %89 = vector.load %arg10[%c0_83, %c8_84, %c0_85] : memref<18x32x64xf32, #tpu.memory_space<vmem>>, vector<16x16x64xf32>
    %90 = vector.shape_cast %89 : vector<16x16x64xf32> to vector<256x64xf32>
    %91 = arith.truncf %90 : vector<256x64xf32> to vector<256x64xbf16>
    %c1_86 = arith.constant 1 : index
    %c0_87 = arith.constant 0 : index
    %c0_88 = arith.constant 0 : index
    %92 = vector.load %arg4[%c1_86, %c0_87, %c0_88] : memref<9x64x64xbf16, #tpu.memory_space<vmem>>, vector<1x64x64xbf16>
    %93 = vector.shape_cast %92 : vector<1x64x64xbf16> to vector<64x64xbf16>
    %cst_89 = arith.constant dense<0.000000e+00> : vector<256x64xf32>
    %94 = tpu.matmul %91, %93, %cst_89 {dimension_numbers = #tpu.dot_dimension_numbers<[1], [0], [0], [1], [0, 0, 1, 1], [], []>} : vector<256x64xbf16>, vector<64x64xbf16>, vector<256x64xf32> -> vector<256x64xf32>
    %95 = arith.addf %88, %94 : vector<256x64xf32>
    %c0_90 = arith.constant 0 : index
    %c9_91 = arith.constant 9 : index
    %c0_92 = arith.constant 0 : index
    %96 = vector.load %arg10[%c0_90, %c9_91, %c0_92] : memref<18x32x64xf32, #tpu.memory_space<vmem>>, vector<16x16x64xf32>
    %97 = vector.shape_cast %96 : vector<16x16x64xf32> to vector<256x64xf32>
    %98 = arith.truncf %97 : vector<256x64xf32> to vector<256x64xbf16>
    %c2_93 = arith.constant 2 : index
    %c0_94 = arith.constant 0 : index
    %c0_95 = arith.constant 0 : index
    %99 = vector.load %arg4[%c2_93, %c0_94, %c0_95] : memref<9x64x64xbf16, #tpu.memory_space<vmem>>, vector<1x64x64xbf16>
    %100 = vector.shape_cast %99 : vector<1x64x64xbf16> to vector<64x64xbf16>
    %cst_96 = arith.constant dense<0.000000e+00> : vector<256x64xf32>
    %101 = tpu.matmul %98, %100, %cst_96 {dimension_numbers = #tpu.dot_dimension_numbers<[1], [0], [0], [1], [0, 0, 1, 1], [], []>} : vector<256x64xbf16>, vector<64x64xbf16>, vector<256x64xf32> -> vector<256x64xf32>
    %102 = arith.addf %95, %101 : vector<256x64xf32>
    %c1_97 = arith.constant 1 : index
    %c7_98 = arith.constant 7 : index
    %c0_99 = arith.constant 0 : index
    %103 = vector.load %arg10[%c1_97, %c7_98, %c0_99] : memref<18x32x64xf32, #tpu.memory_space<vmem>>, vector<16x16x64xf32>
    %104 = vector.shape_cast %103 : vector<16x16x64xf32> to vector<256x64xf32>
    %105 = arith.truncf %104 : vector<256x64xf32> to vector<256x64xbf16>
    %c3_100 = arith.constant 3 : index
    %c0_101 = arith.constant 0 : index
    %c0_102 = arith.constant 0 : index
    %106 = vector.load %arg4[%c3_100, %c0_101, %c0_102] : memref<9x64x64xbf16, #tpu.memory_space<vmem>>, vector<1x64x64xbf16>
    %107 = vector.shape_cast %106 : vector<1x64x64xbf16> to vector<64x64xbf16>
    %cst_103 = arith.constant dense<0.000000e+00> : vector<256x64xf32>
    %108 = tpu.matmul %105, %107, %cst_103 {dimension_numbers = #tpu.dot_dimension_numbers<[1], [0], [0], [1], [0, 0, 1, 1], [], []>} : vector<256x64xbf16>, vector<64x64xbf16>, vector<256x64xf32> -> vector<256x64xf32>
    %109 = arith.addf %102, %108 : vector<256x64xf32>
    %c1_104 = arith.constant 1 : index
    %c8_105 = arith.constant 8 : index
    %c0_106 = arith.constant 0 : index
    %110 = vector.load %arg10[%c1_104, %c8_105, %c0_106] : memref<18x32x64xf32, #tpu.memory_space<vmem>>, vector<16x16x64xf32>
    %111 = vector.shape_cast %110 : vector<16x16x64xf32> to vector<256x64xf32>
    %112 = arith.truncf %111 : vector<256x64xf32> to vector<256x64xbf16>
    %c4_107 = arith.constant 4 : index
    %c0_108 = arith.constant 0 : index
    %c0_109 = arith.constant 0 : index
    %113 = vector.load %arg4[%c4_107, %c0_108, %c0_109] : memref<9x64x64xbf16, #tpu.memory_space<vmem>>, vector<1x64x64xbf16>
    %114 = vector.shape_cast %113 : vector<1x64x64xbf16> to vector<64x64xbf16>
    %cst_110 = arith.constant dense<0.000000e+00> : vector<256x64xf32>
    %115 = tpu.matmul %112, %114, %cst_110 {dimension_numbers = #tpu.dot_dimension_numbers<[1], [0], [0], [1], [0, 0, 1, 1], [], []>} : vector<256x64xbf16>, vector<64x64xbf16>, vector<256x64xf32> -> vector<256x64xf32>
    %116 = arith.addf %109, %115 : vector<256x64xf32>
    %c1_111 = arith.constant 1 : index
    %c9_112 = arith.constant 9 : index
    %c0_113 = arith.constant 0 : index
    %117 = vector.load %arg10[%c1_111, %c9_112, %c0_113] : memref<18x32x64xf32, #tpu.memory_space<vmem>>, vector<16x16x64xf32>
    %118 = vector.shape_cast %117 : vector<16x16x64xf32> to vector<256x64xf32>
    %119 = arith.truncf %118 : vector<256x64xf32> to vector<256x64xbf16>
    %c5_114 = arith.constant 5 : index
    %c0_115 = arith.constant 0 : index
    %c0_116 = arith.constant 0 : index
    %120 = vector.load %arg4[%c5_114, %c0_115, %c0_116] : memref<9x64x64xbf16, #tpu.memory_space<vmem>>, vector<1x64x64xbf16>
    %121 = vector.shape_cast %120 : vector<1x64x64xbf16> to vector<64x64xbf16>
    %cst_117 = arith.constant dense<0.000000e+00> : vector<256x64xf32>
    %122 = tpu.matmul %119, %121, %cst_117 {dimension_numbers = #tpu.dot_dimension_numbers<[1], [0], [0], [1], [0, 0, 1, 1], [], []>} : vector<256x64xbf16>, vector<64x64xbf16>, vector<256x64xf32> -> vector<256x64xf32>
    %123 = arith.addf %116, %122 : vector<256x64xf32>
    %c2_118 = arith.constant 2 : index
    %c7_119 = arith.constant 7 : index
    %c0_120 = arith.constant 0 : index
    %124 = vector.load %arg10[%c2_118, %c7_119, %c0_120] : memref<18x32x64xf32, #tpu.memory_space<vmem>>, vector<16x16x64xf32>
    %125 = vector.shape_cast %124 : vector<16x16x64xf32> to vector<256x64xf32>
    %126 = arith.truncf %125 : vector<256x64xf32> to vector<256x64xbf16>
    %c6_121 = arith.constant 6 : index
    %c0_122 = arith.constant 0 : index
    %c0_123 = arith.constant 0 : index
    %127 = vector.load %arg4[%c6_121, %c0_122, %c0_123] : memref<9x64x64xbf16, #tpu.memory_space<vmem>>, vector<1x64x64xbf16>
    %128 = vector.shape_cast %127 : vector<1x64x64xbf16> to vector<64x64xbf16>
    %cst_124 = arith.constant dense<0.000000e+00> : vector<256x64xf32>
    %129 = tpu.matmul %126, %128, %cst_124 {dimension_numbers = #tpu.dot_dimension_numbers<[1], [0], [0], [1], [0, 0, 1, 1], [], []>} : vector<256x64xbf16>, vector<64x64xbf16>, vector<256x64xf32> -> vector<256x64xf32>
    %130 = arith.addf %123, %129 : vector<256x64xf32>
    %c2_125 = arith.constant 2 : index
    %c8_126 = arith.constant 8 : index
    %c0_127 = arith.constant 0 : index
    %131 = vector.load %arg10[%c2_125, %c8_126, %c0_127] : memref<18x32x64xf32, #tpu.memory_space<vmem>>, vector<16x16x64xf32>
    %132 = vector.shape_cast %131 : vector<16x16x64xf32> to vector<256x64xf32>
    %133 = arith.truncf %132 : vector<256x64xf32> to vector<256x64xbf16>
    %c7_128 = arith.constant 7 : index
    %c0_129 = arith.constant 0 : index
    %c0_130 = arith.constant 0 : index
    %134 = vector.load %arg4[%c7_128, %c0_129, %c0_130] : memref<9x64x64xbf16, #tpu.memory_space<vmem>>, vector<1x64x64xbf16>
    %135 = vector.shape_cast %134 : vector<1x64x64xbf16> to vector<64x64xbf16>
    %cst_131 = arith.constant dense<0.000000e+00> : vector<256x64xf32>
    %136 = tpu.matmul %133, %135, %cst_131 {dimension_numbers = #tpu.dot_dimension_numbers<[1], [0], [0], [1], [0, 0, 1, 1], [], []>} : vector<256x64xbf16>, vector<64x64xbf16>, vector<256x64xf32> -> vector<256x64xf32>
    %137 = arith.addf %130, %136 : vector<256x64xf32>
    %c2_132 = arith.constant 2 : index
    %c9_133 = arith.constant 9 : index
    %c0_134 = arith.constant 0 : index
    %138 = vector.load %arg10[%c2_132, %c9_133, %c0_134] : memref<18x32x64xf32, #tpu.memory_space<vmem>>, vector<16x16x64xf32>
    %139 = vector.shape_cast %138 : vector<16x16x64xf32> to vector<256x64xf32>
    %140 = arith.truncf %139 : vector<256x64xf32> to vector<256x64xbf16>
    %c8_135 = arith.constant 8 : index
    %c0_136 = arith.constant 0 : index
    %c0_137 = arith.constant 0 : index
    %141 = vector.load %arg4[%c8_135, %c0_136, %c0_137] : memref<9x64x64xbf16, #tpu.memory_space<vmem>>, vector<1x64x64xbf16>
    %142 = vector.shape_cast %141 : vector<1x64x64xbf16> to vector<64x64xbf16>
    %cst_138 = arith.constant dense<0.000000e+00> : vector<256x64xf32>
    %143 = tpu.matmul %140, %142, %cst_138 {dimension_numbers = #tpu.dot_dimension_numbers<[1], [0], [0], [1], [0, 0, 1, 1], [], []>} : vector<256x64xbf16>, vector<64x64xbf16>, vector<256x64xf32> -> vector<256x64xf32>
    %144 = arith.addf %137, %143 : vector<256x64xf32>
    %c0_139 = arith.constant 0 : index
    %c0_140 = arith.constant 0 : index
    %145 = vector.load %arg5[%c0_139, %c0_140] : memref<1x64xf32, #tpu.memory_space<vmem>>, vector<1x64xf32>
    %146 = vector.broadcast %145 : vector<1x64xf32> to vector<256x64xf32>
    %147 = arith.addf %144, %146 : vector<256x64xf32>
    %cst_141 = arith.constant 0.000000e+00 : f32
    %148 = vector.broadcast %cst_141 : f32 to vector<256x64xf32>
    %149 = arith.cmpf oge, %147, %148 : vector<256x64xf32>
    %cst_142 = arith.constant 5.000000e-01 : f32
    %150 = vector.broadcast %cst_142 : f32 to vector<256x64xf32>
    %151 = arith.mulf %150, %147 : vector<256x64xf32>
    %152 = arith.select %149, %147, %151 : vector<256x64xi1>, vector<256x64xf32>
    %153 = vector.shape_cast %152 : vector<256x64xf32> to vector<8x32x64xf32>
    %154 = vector.extract_strided_slice %153 {offsets = [0, 0, 0], sizes = [8, 16, 64], strides = [1, 1, 1]} : vector<8x32x64xf32> to vector<8x16x64xf32>
    %155 = vector.extract_strided_slice %153 {offsets = [0, 16, 0], sizes = [8, 16, 64], strides = [1, 1, 1]} : vector<8x32x64xf32> to vector<8x16x64xf32>
    %156 = arith.maximumf %154, %155 : vector<8x16x64xf32>
    %c0_143 = arith.constant 0 : index
    %c0_144 = arith.constant 0 : index
    %c0_145 = arith.constant 0 : index
    %157 = vector.load %arg11[%c0_143, %c0_144, %c0_145] : memref<8x16x64xf32, #tpu.memory_space<vmem>>, vector<8x16x64xf32>
    tpu.vector_store %arg11[%c0_143, %c0_144, %c0_145], %156 {strides = array<i32>} : memref<8x16x64xf32, #tpu.memory_space<vmem>>, vector<8x16x64xf32>,
    %c0_146 = arith.constant 0 : index
    %c0_147 = arith.constant 0 : index
    %c0_148 = arith.constant 0 : index
    %158 = tpu.strided_load %arg11[%c0_146, %c0_147, %c0_148] {strides = array<i32: 1, 2, 1>} : memref<8x16x64xf32, #tpu.memory_space<vmem>>, vector<8x8x64xf32>
    %c0_149 = arith.constant 0 : index
    %c1_150 = arith.constant 1 : index
    %c0_151 = arith.constant 0 : index
    %159 = tpu.strided_load %arg11[%c0_149, %c1_150, %c0_151] {strides = array<i32: 1, 2, 1>} : memref<8x16x64xf32, #tpu.memory_space<vmem>>, vector<8x8x64xf32>
    %160 = arith.maximumf %158, %159 : vector<8x8x64xf32>
    %cst_152 = arith.constant 0.000000e+00 : f32
    %161 = vector.broadcast %cst_152 : f32 to vector<8x8x64xf32>
    %162 = arith.cmpf oge, %160, %161 : vector<8x8x64xf32>
    %cst_153 = arith.constant 5.000000e-01 : f32
    %163 = vector.broadcast %cst_153 : f32 to vector<8x8x64xf32>
    %164 = arith.mulf %163, %160 : vector<8x8x64xf32>
    %165 = arith.select %162, %160, %164 : vector<8x8x64xi1>, vector<8x8x64xf32>
    %cst_154 = arith.constant 0.000000e+00 : f32
    %166 = vector.broadcast %cst_154 : f32 to vector<10x24x64xf32>
    %c0_155 = arith.constant 0 : index
    %c0_156 = arith.constant 0 : index
    %c0_157 = arith.constant 0 : index
    %167 = vector.load %arg12[%c0_155, %c0_156, %c0_157] : memref<10x24x64xf32, #tpu.memory_space<vmem>>, vector<10x24x64xf32>
    tpu.vector_store %arg12[%c0_155, %c0_156, %c0_157], %166 {strides = array<i32>} : memref<10x24x64xf32, #tpu.memory_space<vmem>>, vector<10x24x64xf32>,
    %c1_158 = arith.constant 1 : index
    %c8_159 = arith.constant 8 : index
    %c0_160 = arith.constant 0 : index
    %168 = vector.load %arg12[%c1_158, %c8_159, %c0_160] : memref<10x24x64xf32, #tpu.memory_space<vmem>>, vector<8x8x64xf32>
    tpu.vector_store %arg12[%c1_158, %c8_159, %c0_160], %165 {strides = array<i32>} : memref<10x24x64xf32, #tpu.memory_space<vmem>>, vector<8x8x64xf32>,
    %cst_161 = arith.constant 0.000000e+00 : f32
    %169 = vector.broadcast %cst_161 : f32 to vector<64x128xf32>
    %c0_162 = arith.constant 0 : index
    %c7_163 = arith.constant 7 : index
    %c0_164 = arith.constant 0 : index
    %170 = vector.load %arg12[%c0_162, %c7_163, %c0_164] : memref<10x24x64xf32, #tpu.memory_space<vmem>>, vector<8x8x64xf32>
    %171 = vector.shape_cast %170 : vector<8x8x64xf32> to vector<64x64xf32>
    %172 = arith.truncf %171 : vector<64x64xf32> to vector<64x64xbf16>
    %c0_165 = arith.constant 0 : index
    %c0_166 = arith.constant 0 : index
    %c0_167 = arith.constant 0 : index
    %173 = vector.load %arg6[%c0_165, %c0_166, %c0_167] : memref<9x64x128xbf16, #tpu.memory_space<vmem>>, vector<1x64x128xbf16>
    %174 = vector.shape_cast %173 : vector<1x64x128xbf16> to vector<64x128xbf16>
    %cst_168 = arith.constant dense<0.000000e+00> : vector<64x128xf32>
    %175 = tpu.matmul %172, %174, %cst_168 {dimension_numbers = #tpu.dot_dimension_numbers<[1], [0], [0], [1], [0, 0, 1, 1], [], []>} : vector<64x64xbf16>, vector<64x128xbf16>, vector<64x128xf32> -> vector<64x128xf32>
    %176 = arith.addf %169, %175 : vector<64x128xf32>
    %c0_169 = arith.constant 0 : index
    %c8_170 = arith.constant 8 : index
    %c0_171 = arith.constant 0 : index
    %177 = vector.load %arg12[%c0_169, %c8_170, %c0_171] : memref<10x24x64xf32, #tpu.memory_space<vmem>>, vector<8x8x64xf32>
    %178 = vector.shape_cast %177 : vector<8x8x64xf32> to vector<64x64xf32>
    %179 = arith.truncf %178 : vector<64x64xf32> to vector<64x64xbf16>
    %c1_172 = arith.constant 1 : index
    %c0_173 = arith.constant 0 : index
    %c0_174 = arith.constant 0 : index
    %180 = vector.load %arg6[%c1_172, %c0_173, %c0_174] : memref<9x64x128xbf16, #tpu.memory_space<vmem>>, vector<1x64x128xbf16>
    %181 = vector.shape_cast %180 : vector<1x64x128xbf16> to vector<64x128xbf16>
    %cst_175 = arith.constant dense<0.000000e+00> : vector<64x128xf32>
    %182 = tpu.matmul %179, %181, %cst_175 {dimension_numbers = #tpu.dot_dimension_numbers<[1], [0], [0], [1], [0, 0, 1, 1], [], []>} : vector<64x64xbf16>, vector<64x128xbf16>, vector<64x128xf32> -> vector<64x128xf32>
    %183 = arith.addf %176, %182 : vector<64x128xf32>
    %c0_176 = arith.constant 0 : index
    %c9_177 = arith.constant 9 : index
    %c0_178 = arith.constant 0 : index
    %184 = vector.load %arg12[%c0_176, %c9_177, %c0_178] : memref<10x24x64xf32, #tpu.memory_space<vmem>>, vector<8x8x64xf32>
    %185 = vector.shape_cast %184 : vector<8x8x64xf32> to vector<64x64xf32>
    %186 = arith.truncf %185 : vector<64x64xf32> to vector<64x64xbf16>
    %c2_179 = arith.constant 2 : index
    %c0_180 = arith.constant 0 : index
    %c0_181 = arith.constant 0 : index
    %187 = vector.load %arg6[%c2_179, %c0_180, %c0_181] : memref<9x64x128xbf16, #tpu.memory_space<vmem>>, vector<1x64x128xbf16>
    %188 = vector.shape_cast %187 : vector<1x64x128xbf16> to vector<64x128xbf16>
    %cst_182 = arith.constant dense<0.000000e+00> : vector<64x128xf32>
    %189 = tpu.matmul %186, %188, %cst_182 {dimension_numbers = #tpu.dot_dimension_numbers<[1], [0], [0], [1], [0, 0, 1, 1], [], []>} : vector<64x64xbf16>, vector<64x128xbf16>, vector<64x128xf32> -> vector<64x128xf32>
    %190 = arith.addf %183, %189 : vector<64x128xf32>
    %c1_183 = arith.constant 1 : index
    %c7_184 = arith.constant 7 : index
    %c0_185 = arith.constant 0 : index
    %191 = vector.load %arg12[%c1_183, %c7_184, %c0_185] : memref<10x24x64xf32, #tpu.memory_space<vmem>>, vector<8x8x64xf32>
    %192 = vector.shape_cast %191 : vector<8x8x64xf32> to vector<64x64xf32>
    %193 = arith.truncf %192 : vector<64x64xf32> to vector<64x64xbf16>
    %c3_186 = arith.constant 3 : index
    %c0_187 = arith.constant 0 : index
    %c0_188 = arith.constant 0 : index
    %194 = vector.load %arg6[%c3_186, %c0_187, %c0_188] : memref<9x64x128xbf16, #tpu.memory_space<vmem>>, vector<1x64x128xbf16>
    %195 = vector.shape_cast %194 : vector<1x64x128xbf16> to vector<64x128xbf16>
    %cst_189 = arith.constant dense<0.000000e+00> : vector<64x128xf32>
    %196 = tpu.matmul %193, %195, %cst_189 {dimension_numbers = #tpu.dot_dimension_numbers<[1], [0], [0], [1], [0, 0, 1, 1], [], []>} : vector<64x64xbf16>, vector<64x128xbf16>, vector<64x128xf32> -> vector<64x128xf32>
    %197 = arith.addf %190, %196 : vector<64x128xf32>
    %c1_190 = arith.constant 1 : index
    %c8_191 = arith.constant 8 : index
    %c0_192 = arith.constant 0 : index
    %198 = vector.load %arg12[%c1_190, %c8_191, %c0_192] : memref<10x24x64xf32, #tpu.memory_space<vmem>>, vector<8x8x64xf32>
    %199 = vector.shape_cast %198 : vector<8x8x64xf32> to vector<64x64xf32>
    %200 = arith.truncf %199 : vector<64x64xf32> to vector<64x64xbf16>
    %c4_193 = arith.constant 4 : index
    %c0_194 = arith.constant 0 : index
    %c0_195 = arith.constant 0 : index
    %201 = vector.load %arg6[%c4_193, %c0_194, %c0_195] : memref<9x64x128xbf16, #tpu.memory_space<vmem>>, vector<1x64x128xbf16>
    %202 = vector.shape_cast %201 : vector<1x64x128xbf16> to vector<64x128xbf16>
    %cst_196 = arith.constant dense<0.000000e+00> : vector<64x128xf32>
    %203 = tpu.matmul %200, %202, %cst_196 {dimension_numbers = #tpu.dot_dimension_numbers<[1], [0], [0], [1], [0, 0, 1, 1], [], []>} : vector<64x64xbf16>, vector<64x128xbf16>, vector<64x128xf32> -> vector<64x128xf32>
    %204 = arith.addf %197, %203 : vector<64x128xf32>
    %c1_197 = arith.constant 1 : index
    %c9_198 = arith.constant 9 : index
    %c0_199 = arith.constant 0 : index
    %205 = vector.load %arg12[%c1_197, %c9_198, %c0_199] : memref<10x24x64xf32, #tpu.memory_space<vmem>>, vector<8x8x64xf32>
    %206 = vector.shape_cast %205 : vector<8x8x64xf32> to vector<64x64xf32>
    %207 = arith.truncf %206 : vector<64x64xf32> to vector<64x64xbf16>
    %c5_200 = arith.constant 5 : index
    %c0_201 = arith.constant 0 : index
    %c0_202 = arith.constant 0 : index
    %208 = vector.load %arg6[%c5_200, %c0_201, %c0_202] : memref<9x64x128xbf16, #tpu.memory_space<vmem>>, vector<1x64x128xbf16>
    %209 = vector.shape_cast %208 : vector<1x64x128xbf16> to vector<64x128xbf16>
    %cst_203 = arith.constant dense<0.000000e+00> : vector<64x128xf32>
    %210 = tpu.matmul %207, %209, %cst_203 {dimension_numbers = #tpu.dot_dimension_numbers<[1], [0], [0], [1], [0, 0, 1, 1], [], []>} : vector<64x64xbf16>, vector<64x128xbf16>, vector<64x128xf32> -> vector<64x128xf32>
    %211 = arith.addf %204, %210 : vector<64x128xf32>
    %c2_204 = arith.constant 2 : index
    %c7_205 = arith.constant 7 : index
    %c0_206 = arith.constant 0 : index
    %212 = vector.load %arg12[%c2_204, %c7_205, %c0_206] : memref<10x24x64xf32, #tpu.memory_space<vmem>>, vector<8x8x64xf32>
    %213 = vector.shape_cast %212 : vector<8x8x64xf32> to vector<64x64xf32>
    %214 = arith.truncf %213 : vector<64x64xf32> to vector<64x64xbf16>
    %c6_207 = arith.constant 6 : index
    %c0_208 = arith.constant 0 : index
    %c0_209 = arith.constant 0 : index
    %215 = vector.load %arg6[%c6_207, %c0_208, %c0_209] : memref<9x64x128xbf16, #tpu.memory_space<vmem>>, vector<1x64x128xbf16>
    %216 = vector.shape_cast %215 : vector<1x64x128xbf16> to vector<64x128xbf16>
    %cst_210 = arith.constant dense<0.000000e+00> : vector<64x128xf32>
    %217 = tpu.matmul %214, %216, %cst_210 {dimension_numbers = #tpu.dot_dimension_numbers<[1], [0], [0], [1], [0, 0, 1, 1], [], []>} : vector<64x64xbf16>, vector<64x128xbf16>, vector<64x128xf32> -> vector<64x128xf32>
    %218 = arith.addf %211, %217 : vector<64x128xf32>
    %c2_211 = arith.constant 2 : index
    %c8_212 = arith.constant 8 : index
    %c0_213 = arith.constant 0 : index
    %219 = vector.load %arg12[%c2_211, %c8_212, %c0_213] : memref<10x24x64xf32, #tpu.memory_space<vmem>>, vector<8x8x64xf32>
    %220 = vector.shape_cast %219 : vector<8x8x64xf32> to vector<64x64xf32>
    %221 = arith.truncf %220 : vector<64x64xf32> to vector<64x64xbf16>
    %c7_214 = arith.constant 7 : index
    %c0_215 = arith.constant 0 : index
    %c0_216 = arith.constant 0 : index
    %222 = vector.load %arg6[%c7_214, %c0_215, %c0_216] : memref<9x64x128xbf16, #tpu.memory_space<vmem>>, vector<1x64x128xbf16>
    %223 = vector.shape_cast %222 : vector<1x64x128xbf16> to vector<64x128xbf16>
    %cst_217 = arith.constant dense<0.000000e+00> : vector<64x128xf32>
    %224 = tpu.matmul %221, %223, %cst_217 {dimension_numbers = #tpu.dot_dimension_numbers<[1], [0], [0], [1], [0, 0, 1, 1], [], []>} : vector<64x64xbf16>, vector<64x128xbf16>, vector<64x128xf32> -> vector<64x128xf32>
    %225 = arith.addf %218, %224 : vector<64x128xf32>
    %c2_218 = arith.constant 2 : index
    %c9_219 = arith.constant 9 : index
    %c0_220 = arith.constant 0 : index
    %226 = vector.load %arg12[%c2_218, %c9_219, %c0_220] : memref<10x24x64xf32, #tpu.memory_space<vmem>>, vector<8x8x64xf32>
    %227 = vector.shape_cast %226 : vector<8x8x64xf32> to vector<64x64xf32>
    %228 = arith.truncf %227 : vector<64x64xf32> to vector<64x64xbf16>
    %c8_221 = arith.constant 8 : index
    %c0_222 = arith.constant 0 : index
    %c0_223 = arith.constant 0 : index
    %229 = vector.load %arg6[%c8_221, %c0_222, %c0_223] : memref<9x64x128xbf16, #tpu.memory_space<vmem>>, vector<1x64x128xbf16>
    %230 = vector.shape_cast %229 : vector<1x64x128xbf16> to vector<64x128xbf16>
    %cst_224 = arith.constant dense<0.000000e+00> : vector<64x128xf32>
    %231 = tpu.matmul %228, %230, %cst_224 {dimension_numbers = #tpu.dot_dimension_numbers<[1], [0], [0], [1], [0, 0, 1, 1], [], []>} : vector<64x64xbf16>, vector<64x128xbf16>, vector<64x128xf32> -> vector<64x128xf32>
    %232 = arith.addf %225, %231 : vector<64x128xf32>
    %c0_225 = arith.constant 0 : index
    %c0_226 = arith.constant 0 : index
    %233 = vector.load %arg7[%c0_225, %c0_226] : memref<1x128xf32, #tpu.memory_space<vmem>>, vector<1x128xf32>
    %234 = vector.broadcast %233 : vector<1x128xf32> to vector<64x128xf32>
    %235 = arith.addf %232, %234 : vector<64x128xf32>
    %cst_227 = arith.constant 0.000000e+00 : f32
    %236 = vector.broadcast %cst_227 : f32 to vector<64x128xf32>
    %237 = arith.cmpf oge, %235, %236 : vector<64x128xf32>
    %cst_228 = arith.constant 5.000000e-01 : f32
    %238 = vector.broadcast %cst_228 : f32 to vector<64x128xf32>
    %239 = arith.mulf %238, %235 : vector<64x128xf32>
    %240 = arith.select %237, %235, %239 : vector<64x128xi1>, vector<64x128xf32>
    %241 = vector.shape_cast %240 : vector<64x128xf32> to vector<8x8x128xf32>
    %c0_229 = arith.constant 0 : index
    %c0_230 = arith.constant 0 : index
    %c0_231 = arith.constant 0 : index
    %c0_232 = arith.constant 0 : index
    %242 = vector.load %arg8[%c0_229, %c0_230, %c0_231, %c0_232] : memref<1x8x8x128xf32, #tpu.memory_space<vmem>>, vector<1x8x8x128xf32>
    %243 = vector.shape_cast %242 : vector<1x8x8x128xf32> to vector<8x8x128xf32>
    %244 = vector.shape_cast %241 : vector<8x8x128xf32> to vector<1x8x8x128xf32>
    tpu.vector_store %arg8[%c0_229, %c0_230, %c0_231, %c0_232], %244 {strides = array<i32>} : memref<1x8x8x128xf32, #tpu.memory_space<vmem>>, vector<1x8x8x128xf32>,
    return
  }
  func.func @transform_0(%arg0: i32) -> (i32, i32, i32, i32) {
    %c0_i32 = arith.constant 0 : i32
    %c0_i32_0 = arith.constant 0 : i32
    %c0_i32_1 = arith.constant 0 : i32
    %c0_i32_2 = arith.constant 0 : i32
    return %arg0, %c0_i32, %c0_i32_0, %c0_i32_1 : i32, i32, i32, i32
  }
  func.func @transform_1(%arg0: i32) -> (i32, i32, i32) {
    %c0_i32 = arith.constant 0 : i32
    %c0_i32_0 = arith.constant 0 : i32
    %c0_i32_1 = arith.constant 0 : i32
    %c0_i32_2 = arith.constant 0 : i32
    return %c0_i32, %c0_i32_0, %c0_i32_1 : i32, i32, i32
  }
  func.func @transform_2(%arg0: i32) -> (i32, i32) {
    %c0_i32 = arith.constant 0 : i32
    %c0_i32_0 = arith.constant 0 : i32
    %c0_i32_1 = arith.constant 0 : i32
    return %c0_i32, %c0_i32_0 : i32, i32
  }
  func.func @transform_3(%arg0: i32) -> (i32, i32, i32) {
    %c0_i32 = arith.constant 0 : i32
    %c0_i32_0 = arith.constant 0 : i32
    %c0_i32_1 = arith.constant 0 : i32
    %c0_i32_2 = arith.constant 0 : i32
    return %c0_i32, %c0_i32_0, %c0_i32_1 : i32, i32, i32
  }
  func.func @transform_4(%arg0: i32) -> (i32, i32) {
    %c0_i32 = arith.constant 0 : i32
    %c0_i32_0 = arith.constant 0 : i32
    %c0_i32_1 = arith.constant 0 : i32
    return %c0_i32, %c0_i32_0 : i32, i32
  }
  func.func @transform_5(%arg0: i32) -> (i32, i32, i32) {
    %c0_i32 = arith.constant 0 : i32
    %c0_i32_0 = arith.constant 0 : i32
    %c0_i32_1 = arith.constant 0 : i32
    %c0_i32_2 = arith.constant 0 : i32
    return %c0_i32, %c0_i32_0, %c0_i32_1 : i32, i32, i32
  }
  func.func @transform_6(%arg0: i32) -> (i32, i32) {
    %c0_i32 = arith.constant 0 : i32
    %c0_i32_0 = arith.constant 0 : i32
    %c0_i32_1 = arith.constant 0 : i32
    return %c0_i32, %c0_i32_0 : i32, i32
  }
  func.func @transform_7(%arg0: i32) -> (i32, i32, i32, i32) {
    %c0_i32 = arith.constant 0 : i32
    %c0_i32_0 = arith.constant 0 : i32
    %c0_i32_1 = arith.constant 0 : i32
    %c0_i32_2 = arith.constant 0 : i32
    return %arg0, %c0_i32, %c0_i32_0, %c0_i32_1 : i32, i32, i32, i32
  }
}

</mosaic_0001>

<llo_original>
// kernel: ex_net_forward.1
$region0: #{ex_net_forward.1}
  #allocation0 [shape = 'u32[]', space=smem, size = 0x4, offset = 0x4, fixed_abs, tag = 'smem constant byte address 0x4 - core index']
  #allocation1 [shape = 'u32[144,128]{1,0:T(1,128)}', space=vmem, size = 0x12000, scoped, tag = 'internal scratch']
  #allocation2 [shape = 'f32[18,32,4]{2,1,0:T(8,128)}', space=vmem, size = 0x48000, scoped, tag = 'scratch operand']
  #allocation3 [shape = 'f32[18,32,64]{2,1,0:T(8,128)}', space=vmem, size = 0x48000, scoped, tag = 'scratch operand']
  #allocation4 [shape = 'f32[8,16,64]{2,1,0:T(8,128)}', space=vmem, size = 0x10000, scoped, tag = 'scratch operand']
  #allocation5 [shape = 'f32[10,24,64]{2,1,0:T(8,128)}', space=vmem, size = 0x1e000, scoped, tag = 'scratch operand']
  %s0 = inlined_call_operand.vmem [shape: f32[2,16,16,4], index: 0, kind: input, shape index: {}]
  %s1 = inlined_call_operand.vmem [shape: bf16[9,4,64], index: 1, kind: input, shape index: {}]
  %s2 = inlined_call_operand.vmem [shape: f32[1,64], index: 2, kind: input, shape index: {}]
  %s3 = inlined_call_operand.vmem [shape: bf16[9,64,64], index: 3, kind: input, shape index: {}]
  %s4 = inlined_call_operand.vmem [shape: f32[1,64], index: 4, kind: input, shape index: {}]
  %s5 = inlined_call_operand.vmem [shape: bf16[9,64,128], index: 5, kind: input, shape index: {}]
  %s6 = inlined_call_operand.vmem [shape: f32[1,128], index: 6, kind: input, shape index: {}]
  %s7 = inlined_call_operand.hbm [shape: f32[2,8,8,128], index: 7, kind: output, shape index: {}]
  %s8 = sld [smem:[#allocation0]]
  $region61: #{ex_net_forward.1} parent=0
    _
  %s10 = ssub.s32 1, %s8
  %s11 = scalar_select 0, %s10, %s8
  $region1: #{ex_net_forward.1} parent=0
    #allocation6 [shape = 'u8[65536]{0}', space=vmem, size = 0x10000, scoped, tag = 'output window, operand 0']
    #allocation7 [shape = 's32[2]{0}', space=sflag, size = 0x8, scoped, tag = 'scoped memory for ex_net_forward.1']
    %12 = vsyncpa [#allocation7], 0
    %s13 = scalar_lea.sflag [#allocation7], 1
    %14 = vsyncpa %s13, 0
    loop: start=0, step=1, limit=4
    $region2: #{ex_net_forward.1} parent=1 // loop_pre_header
      _
    $region3: #{ex_net_forward.1} parent=1 // loop_header
      %s16 = sphi 0, %s20
      %p17 = scmp.ge.s32.totalorder %s16, 4
      %s26 = sphi 0, %s28
      %s29 = sphi 0, %s26
      %s30 = sphi 0, %s29
      %s46 = sphi 0, %s30
      %s50 = sphi 0, %s50
      %s52 = sphi 0, %s50
      %s53 = sphi 0, %s52
      %s67 = sphi 0, %s53
      %s71 = sphi 0, %s71
      %s73 = sphi 0, %s71
      %s74 = sphi 0, %s73
      %s88 = sphi 0, %s74
      %s92 = sphi 0, %s92
      %s94 = sphi 0, %s92
      %s95 = sphi 0, %s94
      %s109 = sphi 0, %s95
      %s113 = sphi 0, %s113
      %s115 = sphi 0, %s113
      %s116 = sphi 0, %s115
      %s130 = sphi 0, %s116
      %s134 = sphi 0, %s134
      %s136 = sphi 0, %s134
      %s137 = sphi 0, %s136
      %s151 = sphi 0, %s137
      %s155 = sphi 0, %s155
      %s157 = sphi 0, %s155
      %s158 = sphi 0, %s157
      %s172 = sphi 0, %s158
      %s178 = sphi 0, %s180
      %s181 = sphi 0, %s178
      %s182 = sphi 0, %s181
      %s198 = sphi 0, %s182
    $region4: #{ex_net_forward.1} parent=1 // loop_header_branch
      %19 = sbr.rel (%p17) target = $region8
    $region5: #{ex_net_forward.1} parent=1 // loop_body
      %s21 = ssub.s32 %s16, 1
      %s22 = ssub.s32 %s16, 2
      %s23 = sadd.s32 %s16, 1
      %s24 = ssub.s32 %s16, %s23
      %p25 = scmp.eq.s32.totalorder %s24, 0
      %s27 = sadd.s32 %s26, 1
      %s28 = scalar_select %p25, %s26, %s27
      %p31 = pneg %p25
      %p32 = scmp.eq.s32.totalorder %s16, 1
      %p33 = por %p31, %p32
      %p34 = scmp.ne.s32.totalorder %s26, %s29
      %p35 = scmp.eq.s32.totalorder %s16, 0
      %p36 = por %p34, %p35
      %p37 = scmp.ne.s32.totalorder %s26, %s29
      %p38 = scmp.eq.s32.totalorder %s21, 1
      %p39 = por %p37, %p38
      %p40 = scmp.ne.s32.totalorder %s29, %s30
      %p41 = scmp.eq.s32.totalorder %s21, 0
      %p42 = por %p40, %p41
      %p43 = scmp.ne.s32.totalorder %s29, %s30
      %p44 = scmp.eq.s32.totalorder %s22, 1
      %p45 = por %p43, %p44
      %p47 = scmp.ne.s32.totalorder %s30, %s46
      %p48 = scmp.eq.s32.totalorder %s22, 0
      %p49 = por %p47, %p48
      %s51 = sadd.s32 %s50, 1
      %p54 = scmp.eq.s32.totalorder %s16, 1
      %p55 = scmp.ne.s32.totalorder %s50, %s52
      %p56 = scmp.eq.s32.totalorder %s16, 0
      %p57 = por %p55, %p56
      %p58 = scmp.ne.s32.totalorder %s50, %s52
      %p59 = scmp.eq.s32.totalorder %s21, 1
      %p60 = por %p58, %p59
      %p61 = scmp.ne.s32.totalorder %s52, %s53
      %p62 = scmp.eq.s32.totalorder %s21, 0
      %p63 = por %p61, %p62
      %p64 = scmp.ne.s32.totalorder %s52, %s53
      %p65 = scmp.eq.s32.totalorder %s22, 1
      %p66 = por %p64, %p65
      %p68 = scmp.ne.s32.totalorder %s53, %s67
      %p69 = scmp.eq.s32.totalorder %s22, 0
      %p70 = por %p68, %p69
      %s72 = sadd.s32 %s71, 1
      %p75 = scmp.eq.s32.totalorder %s16, 1
      %p76 = scmp.ne.s32.totalorder %s71, %s73
      %p77 = scmp.eq.s32.totalorder %s16, 0
      %p78 = por %p76, %p77
      %p79 = scmp.ne.s32.totalorder %s71, %s73
      %p80 = scmp.eq.s32.totalorder %s21, 1
      %p81 = por %p79, %p80
      %p82 = scmp.ne.s32.totalorder %s73, %s74
      %p83 = scmp.eq.s32.totalorder %s21, 0
      %p84 = por %p82, %p83
      %p85 = scmp.ne.s32.totalorder %s73, %s74
      %p86 = scmp.eq.s32.totalorder %s22, 1
      %p87 = por %p85, %p86
      %p89 = scmp.ne.s32.totalorder %s74, %s88
      %p90 = scmp.eq.s32.totalorder %s22, 0
      %p91 = por %p89, %p90
      %s93 = sadd.s32 %s92, 1
      %p96 = scmp.eq.s32.totalorder %s16, 1
      %p97 = scmp.ne.s32.totalorder %s92, %s94
      %p98 = scmp.eq.s32.totalorder %s16, 0
      %p99 = por %p97, %p98
      %p100 = scmp.ne.s32.totalorder %s92, %s94
      %p101 = scmp.eq.s32.totalorder %s21, 1
      %p102 = por %p100, %p101
      %p103 = scmp.ne.s32.totalorder %s94, %s95
      %p104 = scmp.eq.s32.totalorder %s21, 0
      %p105 = por %p103, %p104
      %p106 = scmp.ne.s32.totalorder %s94, %s95
      %p107 = scmp.eq.s32.totalorder %s22, 1
      %p108 = por %p106, %p107
      %p110 = scmp.ne.s32.totalorder %s95, %s109
      %p111 = scmp.eq.s32.totalorder %s22, 0
      %p112 = por %p110, %p111
      %s114 = sadd.s32 %s113, 1
      %p117 = scmp.eq.s32.totalorder %s16, 1
      %p118 = scmp.ne.s32.totalorder %s113, %s115
      %p119 = scmp.eq.s32.totalorder %s16, 0
      %p120 = por %p118, %p119
      %p121 = scmp.ne.s32.totalorder %s113, %s115
      %p122 = scmp.eq.s32.totalorder %s21, 1
      %p123 = por %p121, %p122
      %p124 = scmp.ne.s32.totalorder %s115, %s116
      %p125 = scmp.eq.s32.totalorder %s21, 0
      %p126 = por %p124, %p125
      %p127 = scmp.ne.s32.totalorder %s115, %s116
      %p128 = scmp.eq.s32.totalorder %s22, 1
      %p129 = por %p127, %p128
      %p131 = scmp.ne.s32.totalorder %s116, %s130
      %p132 = scmp.eq.s32.totalorder %s22, 0
      %p133 = por %p131, %p132
      %s135 = sadd.s32 %s134, 1
      %p138 = scmp.eq.s32.totalorder %s16, 1
      %p139 = scmp.ne.s32.totalorder %s134, %s136
      %p140 = scmp.eq.s32.totalorder %s16, 0
      %p141 = por %p139, %p140
      %p142 = scmp.ne.s32.totalorder %s134, %s136
      %p143 = scmp.eq.s32.totalorder %s21, 1
      %p144 = por %p142, %p143
      %p145 = scmp.ne.s32.totalorder %s136, %s137
      %p146 = scmp.eq.s32.totalorder %s21, 0
      %p147 = por %p145, %p146
      %p148 = scmp.ne.s32.totalorder %s136, %s137
      %p149 = scmp.eq.s32.totalorder %s22, 1
      %p150 = por %p148, %p149
      %p152 = scmp.ne.s32.totalorder %s137, %s151
      %p153 = scmp.eq.s32.totalorder %s22, 0
      %p154 = por %p152, %p153
      %s156 = sadd.s32 %s155, 1
      %p159 = scmp.eq.s32.totalorder %s16, 1
      %p160 = scmp.ne.s32.totalorder %s155, %s157
      %p161 = scmp.eq.s32.totalorder %s16, 0
      %p162 = por %p160, %p161
      %p163 = scmp.ne.s32.totalorder %s155, %s157
      %p164 = scmp.eq.s32.totalorder %s21, 1
      %p165 = por %p163, %p164
      %p166 = scmp.ne.s32.totalorder %s157, %s158
      %p167 = scmp.eq.s32.totalorder %s21, 0
      %p168 = por %p166, %p167
      %p169 = scmp.ne.s32.totalorder %s157, %s158
      %p170 = scmp.eq.s32.totalorder %s22, 1
      %p171 = por %p169, %p170
      %p173 = scmp.ne.s32.totalorder %s158, %s172
      %p174 = scmp.eq.s32.totalorder %s22, 0
      %p175 = por %p173, %p174
      %s176 = ssub.s32 %s16, %s23
      %p177 = scmp.eq.s32.totalorder %s176, 0
      %s179 = sadd.s32 %s178, 1
      %s180 = scalar_select %p177, %s178, %s179
      %p183 = pneg %p177
      %p184 = scmp.eq.s32.totalorder %s16, 1
      %p185 = por %p183, %p184
      %p186 = scmp.ne.s32.totalorder %s178, %s181
      %p187 = scmp.eq.s32.totalorder %s16, 0
      %p188 = por %p186, %p187
      %p189 = scmp.ne.s32.totalorder %s178, %s181
      %p190 = scmp.eq.s32.totalorder %s21, 1
      %p191 = por %p189, %p190
      %p192 = scmp.ne.s32.totalorder %s181, %s182
      %p193 = scmp.eq.s32.totalorder %s21, 0
      %p194 = por %p192, %p193
      %p195 = scmp.ne.s32.totalorder %s181, %s182
      %p196 = scmp.eq.s32.totalorder %s22, 1
      %p197 = por %p195, %p196
      %p199 = scmp.ne.s32.totalorder %s182, %s198
      %p200 = scmp.eq.s32.totalorder %s22, 0
      %p201 = por %p199, %p200
      %p202 = scmp.le.s32.totalorder 1, %s16
      %p203 = scmp.lt.s32.totalorder %s16, 3
      %p204 = pnand %p202, %p203
      %p205 = pneg %p204
      // Predicated region
      $region9: #{ex_net_forward.1} parent=5 // pred_check
        _
      $region10: #{ex_net_forward.1} parent=5 // pred_check_branch
        %207 = sbr.rel (%p204) target = $region12
      $region11: #{ex_net_forward.1} parent=5 // pred_region
        %s208 = ssub.s32 %s16, 1
        // Predicated region
        $region13: #{ex_net_forward.1} parent=11 // pred_check
          %p209 = pneg %p63
        $region14: #{ex_net_forward.1} parent=11 // pred_check_branch
          %211 = sbr.rel (%p209) target = $region16
        $region15: #{ex_net_forward.1} parent=11 // pred_region
          _
        $region16: #{ex_net_forward.1} parent=11 // pred_fallthru
          _
        // Predicated region
        $region17: #{ex_net_forward.1} parent=11 // pred_check
          %p212 = pneg %p84
        $region18: #{ex_net_forward.1} parent=11 // pred_check_branch
          %214 = sbr.rel (%p212) target = $region20
        $region19: #{ex_net_forward.1} parent=11 // pred_region
          _
        $region20: #{ex_net_forward.1} parent=11 // pred_fallthru
          _
        // Predicated region
        $region21: #{ex_net_forward.1} parent=11 // pred_check
          %p215 = pneg %p105
        $region22: #{ex_net_forward.1} parent=11 // pred_check_branch
          %217 = sbr.rel (%p215) target = $region24
        $region23: #{ex_net_forward.1} parent=11 // pred_region
          _
        $region24: #{ex_net_forward.1} parent=11 // pred_fallthru
          _
        // Predicated region
        $region25: #{ex_net_forward.1} parent=11 // pred_check
          %p218 = pneg %p126
        $region26: #{ex_net_forward.1} parent=11 // pred_check_branch
          %220 = sbr.rel (%p218) target = $region28
        $region27: #{ex_net_forward.1} parent=11 // pred_region
          _
        $region28: #{ex_net_forward.1} parent=11 // pred_fallthru
          _
        // Predicated region
        $region29: #{ex_net_forward.1} parent=11 // pred_check
          %p221 = pneg %p147
        $region30: #{ex_net_forward.1} parent=11 // pred_check_branch
          %223 = sbr.rel (%p221) target = $region32
        $region31: #{ex_net_forward.1} parent=11 // pred_region
          _
        $region32: #{ex_net_forward.1} parent=11 // pred_fallthru
          _
        // Predicated region
        $region33: #{ex_net_forward.1} parent=11 // pred_check
          %p224 = pneg %p168
        $region34: #{ex_net_forward.1} parent=11 // pred_check_branch
          %226 = sbr.rel (%p224) target = $region36
        $region35: #{ex_net_forward.1} parent=11 // pred_region
          _
        $region36: #{ex_net_forward.1} parent=11 // pred_fallthru
          _
      $region12: #{ex_net_forward.1} parent=5 // pred_fallthru
        _
      %p227 = scmp.lt.s32.totalorder %s16, 2
      // Predicated region
      $region37: #{ex_net_forward.1} parent=5 // pred_check
        %p228 = pneg %p227
      $region38: #{ex_net_forward.1} parent=5 // pred_check_branch
        %230 = sbr.rel (%p228) target = $region40
      $region39: #{ex_net_forward.1} parent=5 // pred_region
        // Predicated region
        $region41: #{ex_net_forward.1} parent=39 // pred_check
          %p231 = pneg %p36
        $region42: #{ex_net_forward.1} parent=39 // pred_check_branch
          %233 = sbr.rel (%p231) target = $region44
        $region43: #{ex_net_forward.1} parent=39 // pred_region
          %p234 = scmp.lt.s32.totalorder %s16, 1
          %s235 = scalar_select %p234, %s16, 1
          %s236 = smul.addr %s235, 32
          %s237 = smul.addr %s236, 8
          %s238 = scalar_lea.vmem %s0, %s237
        $region44: #{ex_net_forward.1} parent=39 // pred_fallthru
          _
      $region40: #{ex_net_forward.1} parent=5 // pred_fallthru
        _
      %p239 = scmp.le.s32.totalorder 1, %s16
      %p240 = scmp.lt.s32.totalorder %s16, 3
      %p241 = pnand %p239, %p240
      %p242 = pneg %p241
      // Predicated region
      $region45: #{ex_net_forward.1} parent=5 // pred_check
        _
      $region46: #{ex_net_forward.1} parent=5 // pred_check_branch
        %244 = sbr.rel (%p241) target = $region48
      $region47: #{ex_net_forward.1} parent=5 // pred_region
        %s245 = ssub.s32 %s16, 1
        %p246 = scmp.lt.s32.totalorder %s21, 1
        %s247 = scalar_select %p246, %s21, 1
        %s248 = smul.addr %s247, 32
        %s249 = smul.addr %s248, 8
        %s250 = scalar_lea.vmem %s0, %s249
        %p251 = pneg %p42
        %p252 = pneg %p39
        %p253 = pneg %p63
        %p254 = pneg %p60
        %p255 = pneg %p84
        %p256 = pneg %p81
        %p257 = pneg %p105
        %p258 = pneg %p102
        %p259 = pneg %p126
        %p260 = pneg %p123
        %p261 = pneg %p147
        %p262 = pneg %p144
        %p263 = pneg %p168
        %p264 = pneg %p165
        %p265 = pneg %p194
        %p266 = pneg %p191
        %s267 = sand.u32 %s181, 1
        %s268 = scalar_lea.sflag [#allocation7], %s267
        %s269 = sand.u32 %s181, 1
        %s270 = smul.addr %s269, 64
        %s271 = scalar_lea.vmem [#allocation6], %s270
        %p272 = scmp.lt.s32.totalorder %s21, 1
        %s273 = scalar_select %p272, %s21, 1
        %s274 = smul.addr %s273, 32
        %s275 = smul.addr %s274, 8
        %s276 = scalar_lea.vmem %s0, %s275
        %vm278 = vcmask 31744
        %279 = vst.msk [vmem:[#allocation2] sm:$0xff] %vm278, 0.0
        %280 = vst.msk [vmem:[#allocation2 + $0x8] sm:$0xff] %vm278, 0.0
        %281 = vst.msk [vmem:[#allocation2 + $0x10] sm:$0xff] %vm278, 0.0
        %282 = vst.msk [vmem:[#allocation2 + $0x18] sm:$0xff] %vm278, 0.0
        %283 = vst.msk [vmem:[#allocation2 + $0x20] sm:$0xff] %vm278, 0.0
        %284 = vst.msk [vmem:[#allocation2 + $0x28] sm:$0xff] %vm278, 0.0
        %285 = vst.msk [vmem:[#allocation2 + $0x30] sm:$0xff] %vm278, 0.0
        %286 = vst.msk [vmem:[#allocation2 + $0x38] sm:$0xff] %vm278, 0.0
        %287 = vst.msk [vmem:[#allocation2 + $0x40] sm:$0xff] %vm278, 0.0
        %288 = vst.msk [vmem:[#allocation2 + $0x48] sm:$0xff] %vm278, 0.0
        %289 = vst.msk [vmem:[#allocation2 + $0x50] sm:$0xff] %vm278, 0.0
        %290 = vst.msk [vmem:[#allocation2 + $0x58] sm:$0xff] %vm278, 0.0
        %291 = vst.msk [vmem:[#allocation2 + $0x60] sm:$0xff] %vm278, 0.0
        %292 = vst.msk [vmem:[#allocation2 + $0x68] sm:$0xff] %vm278, 0.0
        %293 = vst.msk [vmem:[#allocation2 + $0x70] sm:$0xff] %vm278, 0.0
        %294 = vst.msk [vmem:[#allocation2 + $0x78] sm:$0xff] %vm278, 0.0
        %295 = vst.msk [vmem:[#allocation2 + $0x80] sm:$0xff] %vm278, 0.0
        %296 = vst.msk [vmem:[#allocation2 + $0x88] sm:$0xff] %vm278, 0.0
        %297 = vst.msk [vmem:[#allocation2 + $0x90] sm:$0xff] %vm278, 0.0
        %298 = vst.msk [vmem:[#allocation2 + $0x98] sm:$0xff] %vm278, 0.0
        %299 = vst.msk [vmem:[#allocation2 + $0xa0] sm:$0xff] %vm278, 0.0
        %300 = vst.msk [vmem:[#allocation2 + $0xa8] sm:$0xff] %vm278, 0.0
        %301 = vst.msk [vmem:[#allocation2 + $0xb0] sm:$0xff] %vm278, 0.0
        %302 = vst.msk [vmem:[#allocation2 + $0xb8] sm:$0xff] %vm278, 0.0
        %303 = vst.msk [vmem:[#allocation2 + $0xc0] sm:$0xff] %vm278, 0.0
        %304 = vst.msk [vmem:[#allocation2 + $0xc8] sm:$0xff] %vm278, 0.0
        %305 = vst.msk [vmem:[#allocation2 + $0xd0] sm:$0xff] %vm278, 0.0
        %306 = vst.msk [vmem:[#allocation2 + $0xd8] sm:$0xff] %vm278, 0.0
        %307 = vst.msk [vmem:[#allocation2 + $0xe0] sm:$0xff] %vm278, 0.0
        %308 = vst.msk [vmem:[#allocation2 + $0xe8] sm:$0xff] %vm278, 0.0
        %309 = vst.msk [vmem:[#allocation2 + $0xf0] sm:$0xff] %vm278, 0.0
        %310 = vst.msk [vmem:[#allocation2 + $0xf8] sm:$0xff] %vm278, 0.0
        %311 = vst.msk [vmem:[#allocation2 + $0x100] sm:$0xff] %vm278, 0.0
        %312 = vst.msk [vmem:[#allocation2 + $0x108] sm:$0xff] %vm278, 0.0
        %313 = vst.msk [vmem:[#allocation2 + $0x110] sm:$0xff] %vm278, 0.0
        %314 = vst.msk [vmem:[#allocation2 + $0x118] sm:$0xff] %vm278, 0.0
        %315 = vst.msk [vmem:[#allocation2 + $0x120] sm:$0xff] %vm278, 0.0
        %316 = vst.msk [vmem:[#allocation2 + $0x128] sm:$0xff] %vm278, 0.0
        %317 = vst.msk [vmem:[#allocation2 + $0x130] sm:$0xff] %vm278, 0.0
        %318 = vst.msk [vmem:[#allocation2 + $0x138] sm:$0xff] %vm278, 0.0
        %319 = vst.msk [vmem:[#allocation2 + $0x140] sm:$0xff] %vm278, 0.0
        %320 = vst.msk [vmem:[#allocation2 + $0x148] sm:$0xff] %vm278, 0.0
        %321 = vst.msk [vmem:[#allocation2 + $0x150] sm:$0xff] %vm278, 0.0
        %322 = vst.msk [vmem:[#allocation2 + $0x158] sm:$0xff] %vm278, 0.0
        %323 = vst.msk [vmem:[#allocation2 + $0x160] sm:$0xff] %vm278, 0.0
        %324 = vst.msk [vmem:[#allocation2 + $0x168] sm:$0xff] %vm278, 0.0
        %325 = vst.msk [vmem:[#allocation2 + $0x170] sm:$0xff] %vm278, 0.0
        %326 = vst.msk [vmem:[#allocation2 + $0x178] sm:$0xff] %vm278, 0.0
        %327 = vst.msk [vmem:[#allocation2 + $0x180] sm:$0xff] %vm278, 0.0
        %328 = vst.msk [vmem:[#allocation2 + $0x188] sm:$0xff] %vm278, 0.0
        %329 = vst.msk [vmem:[#allocation2 + $0x190] sm:$0xff] %vm278, 0.0
        %330 = vst.msk [vmem:[#allocation2 + $0x198] sm:$0xff] %vm278, 0.0
        %331 = vst.msk [vmem:[#allocation2 + $0x1a0] sm:$0xff] %vm278, 0.0
        %332 = vst.msk [vmem:[#allocation2 + $0x1a8] sm:$0xff] %vm278, 0.0
        %333 = vst.msk [vmem:[#allocation2 + $0x1b0] sm:$0xff] %vm278, 0.0
        %334 = vst.msk [vmem:[#allocation2 + $0x1b8] sm:$0xff] %vm278, 0.0
        %335 = vst.msk [vmem:[#allocation2 + $0x1c0] sm:$0xff] %vm278, 0.0
        %336 = vst.msk [vmem:[#allocation2 + $0x1c8] sm:$0xff] %vm278, 0.0
        %337 = vst.msk [vmem:[#allocation2 + $0x1d0] sm:$0xff] %vm278, 0.0
        %338 = vst.msk [vmem:[#allocation2 + $0x1d8] sm:$0xff] %vm278, 0.0
        %339 = vst.msk [vmem:[#allocation2 + $0x1e0] sm:$0xff] %vm278, 0.0
        %340 = vst.msk [vmem:[#allocation2 + $0x1e8] sm:$0xff] %vm278, 0.0
        %341 = vst.msk [vmem:[#allocation2 + $0x1f0] sm:$0xff] %vm278, 0.0
        %342 = vst.msk [vmem:[#allocation2 + $0x1f8] sm:$0xff] %vm278, 0.0
        %343 = vst.msk [vmem:[#allocation2 + $0x200] sm:$0xff] %vm278, 0.0
        %344 = vst.msk [vmem:[#allocation2 + $0x208] sm:$0xff] %vm278, 0.0
        %345 = vst.msk [vmem:[#allocation2 + $0x210] sm:$0xff] %vm278, 0.0
        %346 = vst.msk [vmem:[#allocation2 + $0x218] sm:$0xff] %vm278, 0.0
        %347 = vst.msk [vmem:[#allocation2 + $0x220] sm:$0xff] %vm278, 0.0
        %348 = vst.msk [vmem:[#allocation2 + $0x228] sm:$0xff] %vm278, 0.0
        %349 = vst.msk [vmem:[#allocation2 + $0x230] sm:$0xff] %vm278, 0.0
        %350 = vst.msk [vmem:[#allocation2 + $0x238] sm:$0xff] %vm278, 0.0
        %v351 = vld [vmem:[%s276] sm:$0xff]
        %v352 = vld [vmem:[%s276 + $0x8] sm:$0xff]
        %v353 = vld [vmem:[%s276 + $0x10] sm:$0xff]
        %v354 = vld [vmem:[%s276 + $0x18] sm:$0xff]
        %v355 = vld [vmem:[%s276 + $0x20] sm:$0xff]
        %v356 = vld [vmem:[%s276 + $0x28] sm:$0xff]
        %v357 = vld [vmem:[%s276 + $0x30] sm:$0xff]
        %v358 = vld [vmem:[%s276 + $0x38] sm:$0xff]
        %v359 = vld [vmem:[%s276 + $0x40] sm:$0xff]
        %v360 = vld [vmem:[%s276 + $0x48] sm:$0xff]
        %v361 = vld [vmem:[%s276 + $0x50] sm:$0xff]
        %v362 = vld [vmem:[%s276 + $0x58] sm:$0xff]
        %v363 = vld [vmem:[%s276 + $0x60] sm:$0xff]
        %v364 = vld [vmem:[%s276 + $0x68] sm:$0xff]
        %v365 = vld [vmem:[%s276 + $0x70] sm:$0xff]
        %v366 = vld [vmem:[%s276 + $0x78] sm:$0xff]
        %v367 = vld [vmem:[%s276 + $0x80] sm:$0xff]
        %v368 = vld [vmem:[%s276 + $0x88] sm:$0xff]
        %v369 = vld [vmem:[%s276 + $0x90] sm:$0xff]
        %v370 = vld [vmem:[%s276 + $0x98] sm:$0xff]
        %v371 = vld [vmem:[%s276 + $0xa0] sm:$0xff]
        %v372 = vld [vmem:[%s276 + $0xa8] sm:$0xff]
        %v373 = vld [vmem:[%s276 + $0xb0] sm:$0xff]
        %v374 = vld [vmem:[%s276 + $0xb8] sm:$0xff]
        %v375 = vld [vmem:[%s276 + $0xc0] sm:$0xff]
        %v376 = vld [vmem:[%s276 + $0xc8] sm:$0xff]
        %v377 = vld [vmem:[%s276 + $0xd0] sm:$0xff]
        %v378 = vld [vmem:[%s276 + $0xd8] sm:$0xff]
        %v379 = vld [vmem:[%s276 + $0xe0] sm:$0xff]
        %v380 = vld [vmem:[%s276 + $0xe8] sm:$0xff]
        %v381 = vld [vmem:[%s276 + $0xf0] sm:$0xff]
        %v382 = vld [vmem:[%s276 + $0xf8] sm:$0xff]
        %s383 = scalar_lea.vmem [#allocation2], 32
        %384 = vst.msk [vmem:[%s383 + $0x8] sm:$0xff] %vm278, %v351
        %385 = vst.msk [vmem:[%s383 + $0x10] sm:$0xff] %vm278, %v352
        %386 = vst.msk [vmem:[%s383 + $0x28] sm:$0xff] %vm278, %v353
        %387 = vst.msk [vmem:[%s383 + $0x30] sm:$0xff] %vm278, %v354
        %388 = vst.msk [vmem:[%s383 + $0x48] sm:$0xff] %vm278, %v355
        %389 = vst.msk [vmem:[%s383 + $0x50] sm:$0xff] %vm278, %v356
        %390 = vst.msk [vmem:[%s383 + $0x68] sm:$0xff] %vm278, %v357
        %391 = vst.msk [vmem:[%s383 + $0x70] sm:$0xff] %vm278, %v358
        %392 = vst.msk [vmem:[%s383 + $0x88] sm:$0xff] %vm278, %v359
        %393 = vst.msk [vmem:[%s383 + $0x90] sm:$0xff] %vm278, %v360
        %394 = vst.msk [vmem:[%s383 + $0xa8] sm:$0xff] %vm278, %v361
        %395 = vst.msk [vmem:[%s383 + $0xb0] sm:$0xff] %vm278, %v362
        %396 = vst.msk [vmem:[%s383 + $0xc8] sm:$0xff] %vm278, %v363
        %397 = vst.msk [vmem:[%s383 + $0xd0] sm:$0xff] %vm278, %v364
        %398 = vst.msk [vmem:[%s383 + $0xe8] sm:$0xff] %vm278, %v365
        %399 = vst.msk [vmem:[%s383 + $0xf0] sm:$0xff] %vm278, %v366
        %400 = vst.msk [vmem:[%s383 + $0x108] sm:$0xff] %vm278, %v367
        %401 = vst.msk [vmem:[%s383 + $0x110] sm:$0xff] %vm278, %v368
        %402 = vst.msk [vmem:[%s383 + $0x128] sm:$0xff] %vm278, %v369
        %403 = vst.msk [vmem:[%s383 + $0x130] sm:$0xff] %vm278, %v370
        %404 = vst.msk [vmem:[%s383 + $0x148] sm:$0xff] %vm278, %v371
        %405 = vst.msk [vmem:[%s383 + $0x150] sm:$0xff] %vm278, %v372
        %406 = vst.msk [vmem:[%s383 + $0x168] sm:$0xff] %vm278, %v373
        %407 = vst.msk [vmem:[%s383 + $0x170] sm:$0xff] %vm278, %v374
        %408 = vst.msk [vmem:[%s383 + $0x188] sm:$0xff] %vm278, %v375
        %409 = vst.msk [vmem:[%s383 + $0x190] sm:$0xff] %vm278, %v376
        %410 = vst.msk [vmem:[%s383 + $0x1a8] sm:$0xff] %vm278, %v377
        %411 = vst.msk [vmem:[%s383 + $0x1b0] sm:$0xff] %vm278, %v378
        %412 = vst.msk [vmem:[%s383 + $0x1c8] sm:$0xff] %vm278, %v379
        %413 = vst.msk [vmem:[%s383 + $0x1d0] sm:$0xff] %vm278, %v380
        %414 = vst.msk [vmem:[%s383 + $0x1e8] sm:$0xff] %vm278, %v381
        %415 = vst.msk [vmem:[%s383 + $0x1f0] sm:$0xff] %vm278, %v382
        %v416 = vld [vmem:[#allocation2 + $0x7] sm:$0xff]
        %v417 = vld [vmem:[#allocation2 + $0xf] sm:$0xff]
        %v418 = vld [vmem:[#allocation2 + $0x27] sm:$0xff]
        %v419 = vld [vmem:[#allocation2 + $0x2f] sm:$0xff]
        %v420 = vld [vmem:[#allocation2 + $0x47] sm:$0xff]
        %v421 = vld [vmem:[#allocation2 + $0x4f] sm:$0xff]
        %v422 = vld [vmem:[#allocation2 + $0x67] sm:$0xff]
        %v423 = vld [vmem:[#allocation2 + $0x6f] sm:$0xff]
        %v424 = vld [vmem:[#allocation2 + $0x87] sm:$0xff]
        %v425 = vld [vmem:[#allocation2 + $0x8f] sm:$0xff]
        %v426 = vld [vmem:[#allocation2 + $0xa7] sm:$0xff]
        %v427 = vld [vmem:[#allocation2 + $0xaf] sm:$0xff]
        %v428 = vld [vmem:[#allocation2 + $0xc7] sm:$0xff]
        %v429 = vld [vmem:[#allocation2 + $0xcf] sm:$0xff]
        %v430 = vld [vmem:[#allocation2 + $0xe7] sm:$0xff]
        %v431 = vld [vmem:[#allocation2 + $0xef] sm:$0xff]
        %v432 = vld [vmem:[#allocation2 + $0x107] sm:$0xff]
        %v433 = vld [vmem:[#allocation2 + $0x10f] sm:$0xff]
        %v434 = vld [vmem:[#allocation2 + $0x127] sm:$0xff]
        %v435 = vld [vmem:[#allocation2 + $0x12f] sm:$0xff]
        %v436 = vld [vmem:[#allocation2 + $0x147] sm:$0xff]
        %v437 = vld [vmem:[#allocation2 + $0x14f] sm:$0xff]
        %v438 = vld [vmem:[#allocation2 + $0x167] sm:$0xff]
        %v439 = vld [vmem:[#allocation2 + $0x16f] sm:$0xff]
        %v440 = vld [vmem:[#allocation2 + $0x187] sm:$0xff]
        %v441 = vld [vmem:[#allocation2 + $0x18f] sm:$0xff]
        %v442 = vld [vmem:[#allocation2 + $0x1a7] sm:$0xff]
        %v443 = vld [vmem:[#allocation2 + $0x1af] sm:$0xff]
        %v444 = vld [vmem:[#allocation2 + $0x1c7] sm:$0xff]
        %v445 = vld [vmem:[#allocation2 + $0x1cf] sm:$0xff]
        %v446 = vld [vmem:[#allocation2 + $0x1e7] sm:$0xff]
        %v447 = vld [vmem:[#allocation2 + $0x1ef] sm:$0xff]
        %v448 = vpack.c.bf16 %v417, %v416
        %v449 = vpack.c.bf16 %v419, %v418
        %v450 = vpack.c.bf16 %v421, %v420
        %v451 = vpack.c.bf16 %v423, %v422
        %v452 = vpack.c.bf16 %v425, %v424
        %v453 = vpack.c.bf16 %v427, %v426
        %v454 = vpack.c.bf16 %v429, %v428
        %v455 = vpack.c.bf16 %v431, %v430
        %v456 = vpack.c.bf16 %v433, %v432
        %v457 = vpack.c.bf16 %v435, %v434
        %v458 = vpack.c.bf16 %v437, %v436
        %v459 = vpack.c.bf16 %v439, %v438
        %v460 = vpack.c.bf16 %v441, %v440
        %v461 = vpack.c.bf16 %v443, %v442
        %v462 = vpack.c.bf16 %v445, %v444
        %v463 = vpack.c.bf16 %v447, %v446
        %v464 = vld [vmem:[%s1] sm:$0x3]
        %v465 = vld [vmem:[#allocation2 + $0x8] sm:$0xff]
        %v466 = vld [vmem:[#allocation2 + $0x10] sm:$0xff]
        %v467 = vld [vmem:[#allocation2 + $0x28] sm:$0xff]
        %v468 = vld [vmem:[#allocation2 + $0x30] sm:$0xff]
        %v469 = vld [vmem:[#allocation2 + $0x48] sm:$0xff]
        %v470 = vld [vmem:[#allocation2 + $0x50] sm:$0xff]
        %v471 = vld [vmem:[#allocation2 + $0x68] sm:$0xff]
        %v472 = vld [vmem:[#allocation2 + $0x70] sm:$0xff]
        %v473 = vld [vmem:[#allocation2 + $0x88] sm:$0xff]
        %v474 = vld [vmem:[#allocation2 + $0x90] sm:$0xff]
        %v475 = vld [vmem:[#allocation2 + $0xa8] sm:$0xff]
        %v476 = vld [vmem:[#allocation2 + $0xb0] sm:$0xff]
        %v477 = vld [vmem:[#allocation2 + $0xc8] sm:$0xff]
        %v478 = vld [vmem:[#allocation2 + $0xd0] sm:$0xff]
        %v479 = vld [vmem:[#allocation2 + $0xe8] sm:$0xff]
        %v480 = vld [vmem:[#allocation2 + $0xf0] sm:$0xff]
        %v481 = vld [vmem:[#allocation2 + $0x108] sm:$0xff]
        %v482 = vld [vmem:[#allocation2 + $0x110] sm:$0xff]
        %v483 = vld [vmem:[#allocation2 + $0x128] sm:$0xff]
        %v484 = vld [vmem:[#allocation2 + $0x130] sm:$0xff]
        %v485 = vld [vmem:[#allocation2 + $0x148] sm:$0xff]
        %v486 = vld [vmem:[#allocation2 + $0x150] sm:$0xff]
        %v487 = vld [vmem:[#allocation2 + $0x168] sm:$0xff]
        %v488 = vld [vmem:[#allocation2 + $0x170] sm:$0xff]
        %v489 = vld [vmem:[#allocation2 + $0x188] sm:$0xff]
        %v490 = vld [vmem:[#allocation2 + $0x190] sm:$0xff]
        %v491 = vld [vmem:[#allocation2 + $0x1a8] sm:$0xff]
        %v492 = vld [vmem:[#allocation2 + $0x1b0] sm:$0xff]
        %v493 = vld [vmem:[#allocation2 + $0x1c8] sm:$0xff]
        %v494 = vld [vmem:[#allocation2 + $0x1d0] sm:$0xff]
        %v495 = vld [vmem:[#allocation2 + $0x1e8] sm:$0xff]
        %v496 = vld [vmem:[#allocation2 + $0x1f0] sm:$0xff]
        %v497 = vpack.c.bf16 %v466, %v465
        %v498 = vpack.c.bf16 %v468, %v467
        %v499 = vpack.c.bf16 %v470, %v469
        %v500 = vpack.c.bf16 %v472, %v471
        %v501 = vpack.c.bf16 %v474, %v473
        %v502 = vpack.c.bf16 %v476, %v475
        %v503 = vpack.c.bf16 %v478, %v477
        %v504 = vpack.c.bf16 %v480, %v479
        %v505 = vpack.c.bf16 %v482, %v481
        %v506 = vpack.c.bf16 %v484, %v483
        %v507 = vpack.c.bf16 %v486, %v485
        %v508 = vpack.c.bf16 %v488, %v487
        %v509 = vpack.c.bf16 %v490, %v489
        %v510 = vpack.c.bf16 %v492, %v491
        %v511 = vpack.c.bf16 %v494, %v493
        %v512 = vpack.c.bf16 %v496, %v495
        %s513 = scalar_lea.vmem %s1, 2
        %v514 = vld [vmem:[%s513] sm:$0x3]
        %v516 = vsel %vm278, %v497, 0
        %v519 = vsel %vm278, %v498, 0
        %v522 = vsel %vm278, %v499, 0
        %v525 = vsel %vm278, %v500, 0
        %v528 = vsel %vm278, %v501, 0
        %v531 = vsel %vm278, %v502, 0
        %v534 = vsel %vm278, %v503, 0
        %v537 = vsel %vm278, %v504, 0
        %v540 = vsel %vm278, %v505, 0
        %v543 = vsel %vm278, %v506, 0
        %v546 = vsel %vm278, %v507, 0
        %v549 = vsel %vm278, %v508, 0
        %v552 = vsel %vm278, %v509, 0
        %v555 = vsel %vm278, %v510, 0
        %v558 = vsel %vm278, %v511, 0
        %v561 = vsel %vm278, %v512, 0
        %vm563 = vcmask 1041408
        %v565 = vsel %vm563, %v514, 0
        %567 = vmatprep.subr.bf16.mxu0 0
        %568 = vmatpush1.bf16.msra.mxu0 %v565
        %569 = vmatprep.subr.bf16.mxu0 0
        %570 = vmatpush1.bf16.msra.mxu0 0
        %571 = vmatprep.subr.bf16.mxu0 0
        %572 = vmatpush1.bf16.msra.mxu0 0
        %573 = vmatprep.subr.bf16.mxu0 0
        %574 = vmatpush1.bf16.msra.mxu0 0
        %575 = vmatprep.subr.bf16.mxu0 0
        %576 = vmatpush1.bf16.msra.mxu0 0
        %577 = vmatprep.subr.bf16.mxu0 0
        %578 = vmatpush1.bf16.msra.mxu0 0
        %579 = vmatprep.subr.bf16.mxu0 0
        %580 = vmatpush1.bf16.msra.mxu0 0
        %581 = vmatprep.subr.bf16.mxu0 0
        %582 = vmatpush1.bf16.msra.mxu0 0
        %583 = vmatprep.subr.bf16.mxu0 0
        %584 = vmatpush1.bf16.msra.mxu0 0
        %585 = vmatprep.subr.bf16.mxu0 0
        %586 = vmatpush1.bf16.msra.mxu0 0
        %587 = vmatprep.subr.bf16.mxu0 0
        %588 = vmatpush1.bf16.msra.mxu0 0
        %589 = vmatprep.subr.bf16.mxu0 0
        %590 = vmatpush1.bf16.msra.mxu0 0
        %591 = vmatprep.subr.bf16.mxu0 0
        %592 = vmatpush1.bf16.msra.mxu0 0
        %593 = vmatprep.subr.bf16.mxu0 0
        %594 = vmatpush1.bf16.msra.mxu0 0
        %595 = vmatprep.subr.bf16.mxu0 0
        %596 = vmatpush1.bf16.msra.mxu0 0
        %597 = vmatprep.subr.bf16.mxu0 0
        %598 = vmatpush1.bf16.msra.mxu0 0
        %599 = vmatprep.mubr.bf16.mxu0 0
        %600 = vmatmul.mubr.bf16.gmra.mrb[0].mxu0 %v516
        %v601 = vpop.f32.mrb[0].mxu0
        %v602 = vadd.f32 0.0, %v601
        %v603 = vpop.f32.mrb[0].mxu0
        %v604 = vpop.f32.mrb[0].mxu0
        %v605 = vadd.f32 0.0, %v604
        %v606 = vpop.f32.mrb[0].mxu0
        %607 = vmatprep.mubr.bf16.mxu0 0
        %608 = vmatmul.mubr.bf16.gmra.mrb[0].mxu0 %v519
        %v609 = vpop.f32.mrb[0].mxu0
        %v610 = vadd.f32 0.0, %v609
        %v611 = vpop.f32.mrb[0].mxu0
        %v612 = vpop.f32.mrb[0].mxu0
        %v613 = vadd.f32 0.0, %v612
        %v614 = vpop.f32.mrb[0].mxu0
        %615 = vmatprep.mubr.bf16.mxu0 0
        %616 = vmatmul.mubr.bf16.gmra.mrb[0].mxu0 %v522
        %v617 = vpop.f32.mrb[0].mxu0
        %v618 = vadd.f32 0.0, %v617
        %v619 = vpop.f32.mrb[0].mxu0
        %v620 = vpop.f32.mrb[0].mxu0
        %v621 = vadd.f32 0.0, %v620
        %v622 = vpop.f32.mrb[0].mxu0
        %623 = vmatprep.mubr.bf16.mxu0 0
        %624 = vmatmul.mubr.bf16.gmra.mrb[0].mxu0 %v525
        %v625 = vpop.f32.mrb[0].mxu0
        %v626 = vadd.f32 0.0, %v625
        %v627 = vpop.f32.mrb[0].mxu0
        %v628 = vpop.f32.mrb[0].mxu0
        %v629 = vadd.f32 0.0, %v628
        %v630 = vpop.f32.mrb[0].mxu0
        %631 = vmatprep.mubr.bf16.mxu0 0
        %632 = vmatmul.mubr.bf16.gmra.mrb[0].mxu0 %v528
        %v633 = vpop.f32.mrb[0].mxu0
        %v634 = vadd.f32 0.0, %v633
        %v635 = vpop.f32.mrb[0].mxu0
        %v636 = vpop.f32.mrb[0].mxu0
        %v637 = vadd.f32 0.0, %v636
        %v638 = vpop.f32.mrb[0].mxu0
        %639 = vmatprep.mubr.bf16.mxu0 0
        %640 = vmatmul.mubr.bf16.gmra.mrb[0].mxu0 %v531
        %v641 = vpop.f32.mrb[0].mxu0
        %v642 = vadd.f32 0.0, %v641
        %v643 = vpop.f32.mrb[0].mxu0
        %v644 = vpop.f32.mrb[0].mxu0
        %v645 = vadd.f32 0.0, %v644
        %v646 = vpop.f32.mrb[0].mxu0
        %647 = vmatprep.mubr.bf16.mxu0 0
        %648 = vmatmul.mubr.bf16.gmra.mrb[0].mxu0 %v534
        %v649 = vpop.f32.mrb[0].mxu0
        %v650 = vadd.f32 0.0, %v649
        %v651 = vpop.f32.mrb[0].mxu0
        %v652 = vpop.f32.mrb[0].mxu0
        %v653 = vadd.f32 0.0, %v652
        %v654 = vpop.f32.mrb[0].mxu0
        %655 = vmatprep.mubr.bf16.mxu0 0
        %656 = vmatmul.mubr.bf16.gmra.mrb[0].mxu0 %v537
        %v657 = vpop.f32.mrb[0].mxu0
        %v658 = vadd.f32 0.0, %v657
        %v659 = vpop.f32.mrb[0].mxu0
        %v660 = vpop.f32.mrb[0].mxu0
        %v661 = vadd.f32 0.0, %v660
        %v662 = vpop.f32.mrb[0].mxu0
        %663 = vmatprep.mubr.bf16.mxu0 0
        %664 = vmatmul.mubr.bf16.gmra.mrb[0].mxu0 %v540
        %v665 = vpop.f32.mrb[0].mxu0
        %v666 = vadd.f32 0.0, %v665
        %v667 = vpop.f32.mrb[0].mxu0
        %v668 = vpop.f32.mrb[0].mxu0
        %v669 = vadd.f32 0.0, %v668
        %v670 = vpop.f32.mrb[0].mxu0
        %671 = vmatprep.mubr.bf16.mxu0 0
        %672 = vmatmul.mubr.bf16.gmra.mrb[0].mxu0 %v543
        %v673 = vpop.f32.mrb[0].mxu0
        %v674 = vadd.f32 0.0, %v673
        %v675 = vpop.f32.mrb[0].mxu0
        %v676 = vpop.f32.mrb[0].mxu0
        %v677 = vadd.f32 0.0, %v676
        %v678 = vpop.f32.mrb[0].mxu0
        %679 = vmatprep.mubr.bf16.mxu0 0
        %680 = vmatmul.mubr.bf16.gmra.mrb[0].mxu0 %v546
        %v681 = vpop.f32.mrb[0].mxu0
        %v682 = vadd.f32 0.0, %v681
        %v683 = vpop.f32.mrb[0].mxu0
        %v684 = vpop.f32.mrb[0].mxu0
        %v685 = vadd.f32 0.0, %v684
        %v686 = vpop.f32.mrb[0].mxu0
        %687 = vmatprep.mubr.bf16.mxu0 0
        %688 = vmatmul.mubr.bf16.gmra.mrb[0].mxu0 %v549
        %v689 = vpop.f32.mrb[0].mxu0
        %v690 = vadd.f32 0.0, %v689
        %v691 = vpop.f32.mrb[0].mxu0
        %v692 = vpop.f32.mrb[0].mxu0
        %v693 = vadd.f32 0.0, %v692
        %v694 = vpop.f32.mrb[0].mxu0
        %695 = vmatprep.mubr.bf16.mxu0 0
        %696 = vmatmul.mubr.bf16.gmra.mrb[0].mxu0 %v552
        %v697 = vpop.f32.mrb[0].mxu0
        %v698 = vadd.f32 0.0, %v697
        %v699 = vpop.f32.mrb[0].mxu0
        %v700 = vpop.f32.mrb[0].mxu0
        %v701 = vadd.f32 0.0, %v700
        %v702 = vpop.f32.mrb[0].mxu0
        %703 = vmatprep.mubr.bf16.mxu0 0
        %704 = vmatmul.mubr.bf16.gmra.mrb[0].mxu0 %v555
        %v705 = vpop.f32.mrb[0].mxu0
        %v706 = vadd.f32 0.0, %v705
        %v707 = vpop.f32.mrb[0].mxu0
        %v708 = vpop.f32.mrb[0].mxu0
        %v709 = vadd.f32 0.0, %v708
        %v710 = vpop.f32.mrb[0].mxu0
        %711 = vmatprep.mubr.bf16.mxu0 0
        %712 = vmatmul.mubr.bf16.gmra.mrb[0].mxu0 %v558
        %v713 = vpop.f32.mrb[0].mxu0
        %v714 = vadd.f32 0.0, %v713
        %v715 = vpop.f32.mrb[0].mxu0
        %v716 = vpop.f32.mrb[0].mxu0
        %v717 = vadd.f32 0.0, %v716
        %v718 = vpop.f32.mrb[0].mxu0
        %719 = vmatprep.mubr.bf16.mxu0 0
        %720 = vmatmul.mubr.bf16.gmra.mrb[0].mxu0 %v561
        %v721 = vpop.f32.mrb[0].mxu0
        %v722 = vadd.f32 0.0, %v721
        %v723 = vpop.f32.mrb[0].mxu0
        %v724 = vpop.f32.mrb[0].mxu0
        %v725 = vadd.f32 0.0, %v724
        %v726 = vpop.f32.mrb[0].mxu0
        %727 = vdwg.mxu0
        %v729 = vsel %vm278, %v448, 0
        %v732 = vsel %vm278, %v449, 0
        %v735 = vsel %vm278, %v450, 0
        %v738 = vsel %vm278, %v451, 0
        %v741 = vsel %vm278, %v452, 0
        %v744 = vsel %vm278, %v453, 0
        %v747 = vsel %vm278, %v454, 0
        %v750 = vsel %vm278, %v455, 0
        %v753 = vsel %vm278, %v456, 0
        %v756 = vsel %vm278, %v457, 0
        %v759 = vsel %vm278, %v458, 0
        %v762 = vsel %vm278, %v459, 0
        %v765 = vsel %vm278, %v460, 0
        %v768 = vsel %vm278, %v461, 0
        %v771 = vsel %vm278, %v462, 0
        %v774 = vsel %vm278, %v463, 0
        %v777 = vsel %vm563, %v464, 0
        %779 = vmatprep.subr.bf16.mxu0 0
        %780 = vmatpush1.bf16.msra.mxu0 %v777
        %781 = vmatprep.subr.bf16.mxu0 0
        %782 = vmatpush1.bf16.msra.mxu0 0
        %783 = vmatprep.subr.bf16.mxu0 0
        %784 = vmatpush1.bf16.msra.mxu0 0
        %785 = vmatprep.subr.bf16.mxu0 0
        %786 = vmatpush1.bf16.msra.mxu0 0
        %787 = vmatprep.subr.bf16.mxu0 0
        %788 = vmatpush1.bf16.msra.mxu0 0
        %789 = vmatprep.subr.bf16.mxu0 0
        %790 = vmatpush1.bf16.msra.mxu0 0
        %791 = vmatprep.subr.bf16.mxu0 0
        %792 = vmatpush1.bf16.msra.mxu0 0
        %793 = vmatprep.subr.bf16.mxu0 0
        %794 = vmatpush1.bf16.msra.mxu0 0
        %795 = vmatprep.subr.bf16.mxu0 0
        %796 = vmatpush1.bf16.msra.mxu0 0
        %797 = vmatprep.subr.bf16.mxu0 0
        %798 = vmatpush1.bf16.msra.mxu0 0
        %799 = vmatprep.subr.bf16.mxu0 0
        %800 = vmatpush1.bf16.msra.mxu0 0
        %801 = vmatprep.subr.bf16.mxu0 0
        %802 = vmatpush1.bf16.msra.mxu0 0
        %803 = vmatprep.subr.bf16.mxu0 0
        %804 = vmatpush1.bf16.msra.mxu0 0
        %805 = vmatprep.subr.bf16.mxu0 0
        %806 = vmatpush1.bf16.msra.mxu0 0
        %807 = vmatprep.subr.bf16.mxu0 0
        %808 = vmatpush1.bf16.msra.mxu0 0
        %809 = vmatprep.subr.bf16.mxu0 0
        %810 = vmatpush1.bf16.msra.mxu0 0
        %811 = vmatprep.mubr.bf16.mxu0 0
        %812 = vmatmul.mubr.bf16.gmra.mrb[0].mxu0 %v729
        %v813 = vpop.f32.mrb[0].mxu0
        %v814 = vadd.f32 %v602, %v813
        %v815 = vpop.f32.mrb[0].mxu0
        %v816 = vpop.f32.mrb[0].mxu0
        %v817 = vadd.f32 %v605, %v816
        %v818 = vpop.f32.mrb[0].mxu0
        %819 = vmatprep.mubr.bf16.mxu0 0
        %820 = vmatmul.mubr.bf16.gmra.mrb[0].mxu0 %v732
        %v821 = vpop.f32.mrb[0].mxu0
        %v822 = vadd.f32 %v610, %v821
        %v823 = vpop.f32.mrb[0].mxu0
        %v824 = vpop.f32.mrb[0].mxu0
        %v825 = vadd.f32 %v613, %v824
        %v826 = vpop.f32.mrb[0].mxu0
        %827 = vmatprep.mubr.bf16.mxu0 0
        %828 = vmatmul.mubr.bf16.gmra.mrb[0].mxu0 %v735
        %v829 = vpop.f32.mrb[0].mxu0
        %v830 = vadd.f32 %v618, %v829
        %v831 = vpop.f32.mrb[0].mxu0
        %v832 = vpop.f32.mrb[0].mxu0
        %v833 = vadd.f32 %v621, %v832
        %v834 = vpop.f32.mrb[0].mxu0
        %835 = vmatprep.mubr.bf16.mxu0 0
        %836 = vmatmul.mubr.bf16.gmra.mrb[0].mxu0 %v738
        %v837 = vpop.f32.mrb[0].mxu0
        %v838 = vadd.f32 %v626, %v837
        %v839 = vpop.f32.mrb[0].mxu0
        %v840 = vpop.f32.mrb[0].mxu0
        %v841 = vadd.f32 %v629, %v840
        %v842 = vpop.f32.mrb[0].mxu0
        %843 = vmatprep.mubr.bf16.mxu0 0
        %844 = vmatmul.mubr.bf16.gmra.mrb[0].mxu0 %v741
        %v845 = vpop.f32.mrb[0].mxu0
        %v846 = vadd.f32 %v634, %v845
        %v847 = vpop.f32.mrb[0].mxu0
        %v848 = vpop.f32.mrb[0].mxu0
        %v849 = vadd.f32 %v637, %v848
        %v850 = vpop.f32.mrb[0].mxu0
        %851 = vmatprep.mubr.bf16.mxu0 0
        %852 = vmatmul.mubr.bf16.gmra.mrb[0].mxu0 %v744
        %v853 = vpop.f32.mrb[0].mxu0
        %v854 = vadd.f32 %v642, %v853
        %v855 = vpop.f32.mrb[0].mxu0
        %v856 = vpop.f32.mrb[0].mxu0
        %v857 = vadd.f32 %v645, %v856
        %v858 = vpop.f32.mrb[0].mxu0
        %859 = vmatprep.mubr.bf16.mxu0 0
        %860 = vmatmul.mubr.bf16.gmra.mrb[0].mxu0 %v747
        %v861 = vpop.f32.mrb[0].mxu0
        %v862 = vadd.f32 %v650, %v861
        %v863 = vpop.f32.mrb[0].mxu0
        %v864 = vpop.f32.mrb[0].mxu0
        %v865 = vadd.f32 %v653, %v864
        %v866 = vpop.f32.mrb[0].mxu0
        %867 = vmatprep.mubr.bf16.mxu0 0
        %868 = vmatmul.mubr.bf16.gmra.mrb[0].mxu0 %v750
        %v869 = vpop.f32.mrb[0].mxu0
        %v870 = vadd.f32 %v658, %v869
        %v871 = vpop.f32.mrb[0].mxu0
        %v872 = vpop.f32.mrb[0].mxu0
        %v873 = vadd.f32 %v661, %v872
        %v874 = vpop.f32.mrb[0].mxu0
        %875 = vmatprep.mubr.bf16.mxu0 0
        %876 = vmatmul.mubr.bf16.gmra.mrb[0].mxu0 %v753
        %v877 = vpop.f32.mrb[0].mxu0
        %v878 = vadd.f32 %v666, %v877
        %v879 = vpop.f32.mrb[0].mxu0
        %v880 = vpop.f32.mrb[0].mxu0
        %v881 = vadd.f32 %v669, %v880
        %v882 = vpop.f32.mrb[0].mxu0
        %883 = vmatprep.mubr.bf16.mxu0 0
        %884 = vmatmul.mubr.bf16.gmra.mrb[0].mxu0 %v756
        %v885 = vpop.f32.mrb[0].mxu0
        %v886 = vadd.f32 %v674, %v885
        %v887 = vpop.f32.mrb[0].mxu0
        %v888 = vpop.f32.mrb[0].mxu0
        %v889 = vadd.f32 %v677, %v888
        %v890 = vpop.f32.mrb[0].mxu0
        %891 = vmatprep.mubr.bf16.mxu0 0
        %892 = vmatmul.mubr.bf16.gmra.mrb[0].mxu0 %v759
        %v893 = vpop.f32.mrb[0].mxu0
        %v894 = vadd.f32 %v682, %v893
        %v895 = vpop.f32.mrb[0].mxu0
        %v896 = vpop.f32.mrb[0].mxu0
        %v897 = vadd.f32 %v685, %v896
        %v898 = vpop.f32.mrb[0].mxu0
        %899 = vmatprep.mubr.bf16.mxu0 0
        %900 = vmatmul.mubr.bf16.gmra.mrb[0].mxu0 %v762
        %v901 = vpop.f32.mrb[0].mxu0
        %v902 = vadd.f32 %v690, %v901
        %v903 = vpop.f32.mrb[0].mxu0
        %v904 = vpop.f32.mrb[0].mxu0
        %v905 = vadd.f32 %v693, %v904
        %v906 = vpop.f32.mrb[0].mxu0
        %907 = vmatprep.mubr.bf16.mxu0 0
        %908 = vmatmul.mubr.bf16.gmra.mrb[0].mxu0 %v765
        %v909 = vpop.f32.mrb[0].mxu0
        %v910 = vadd.f32 %v698, %v909
        %v911 = vpop.f32.mrb[0].mxu0
        %v912 = vpop.f32.mrb[0].mxu0
        %v913 = vadd.f32 %v701, %v912
        %v914 = vpop.f32.mrb[0].mxu0
        %915 = vmatprep.mubr.bf16.mxu0 0
        %916 = vmatmul.mubr.bf16.gmra.mrb[0].mxu0 %v768
        %v917 = vpop.f32.mrb[0].mxu0
        %v918 = vadd.f32 %v706, %v917
        %v919 = vpop.f32.mrb[0].mxu0
        %v920 = vpop.f32.mrb[0].mxu0
        %v921 = vadd.f32 %v709, %v920
        %v922 = vpop.f32.mrb[0].mxu0
        %923 = vmatprep.mubr.bf16.mxu0 0
        %924 = vmatmul.mubr.bf16.gmra.mrb[0].mxu0 %v771
        %v925 = vpop.f32.mrb[0].mxu0
        %v926 = vadd.f32 %v714, %v925
        %v927 = vpop.f32.mrb[0].mxu0
        %v928 = vpop.f32.mrb[0].mxu0
        %v929 = vadd.f32 %v717, %v928
        %v930 = vpop.f32.mrb[0].mxu0
        %931 = vmatprep.mubr.bf16.mxu0 0
        %932 = vmatmul.mubr.bf16.gmra.mrb[0].mxu0 %v774
        %v933 = vpop.f32.mrb[0].mxu0
        %v934 = vadd.f32 %v722, %v933
        %v935 = vpop.f32.mrb[0].mxu0
        %v936 = vpop.f32.mrb[0].mxu0
        %v937 = vadd.f32 %v725, %v936
        %v938 = vpop.f32.mrb[0].mxu0
        %939 = vdwg.mxu0
        %v940 = vld [vmem:[#allocation2 + $0x9] sm:$0xff]
        %v941 = vld [vmem:[#allocation2 + $0x11] sm:$0xff]
        %v942 = vld [vmem:[#allocation2 + $0x29] sm:$0xff]
        %v943 = vld [vmem:[#allocation2 + $0x31] sm:$0xff]
        %v944 = vld [vmem:[#allocation2 + $0x49] sm:$0xff]
        %v945 = vld [vmem:[#allocation2 + $0x51] sm:$0xff]
        %v946 = vld [vmem:[#allocation2 + $0x69] sm:$0xff]
        %v947 = vld [vmem:[#allocation2 + $0x71] sm:$0xff]
        %v948 = vld [vmem:[#allocation2 + $0x89] sm:$0xff]
        %v949 = vld [vmem:[#allocation2 + $0x91] sm:$0xff]
        %v950 = vld [vmem:[#allocation2 + $0xa9] sm:$0xff]
        %v951 = vld [vmem:[#allocation2 + $0xb1] sm:$0xff]
        %v952 = vld [vmem:[#allocation2 + $0xc9] sm:$0xff]
        %v953 = vld [vmem:[#allocation2 + $0xd1] sm:$0xff]
        %v954 = vld [vmem:[#allocation2 + $0xe9] sm:$0xff]
        %v955 = vld [vmem:[#allocation2 + $0xf1] sm:$0xff]
        %v956 = vld [vmem:[#allocation2 + $0x109] sm:$0xff]
        %v957 = vld [vmem:[#allocation2 + $0x111] sm:$0xff]
        %v958 = vld [vmem:[#allocation2 + $0x129] sm:$0xff]
        %v959 = vld [vmem:[#allocation2 + $0x131] sm:$0xff]
        %v960 = vld [vmem:[#allocation2 + $0x149] sm:$0xff]
        %v961 = vld [vmem:[#allocation2 + $0x151] sm:$0xff]
        %v962 = vld [vmem:[#allocation2 + $0x169] sm:$0xff]
        %v963 = vld [vmem:[#allocation2 + $0x171] sm:$0xff]
        %v964 = vld [vmem:[#allocation2 + $0x189] sm:$0xff]
        %v965 = vld [vmem:[#allocation2 + $0x191] sm:$0xff]
        %v966 = vld [vmem:[#allocation2 + $0x1a9] sm:$0xff]
        %v967 = vld [vmem:[#allocation2 + $0x1b1] sm:$0xff]
        %v968 = vld [vmem:[#allocation2 + $0x1c9] sm:$0xff]
        %v969 = vld [vmem:[#allocation2 + $0x1d1] sm:$0xff]
        %v970 = vld [vmem:[#allocation2 + $0x1e9] sm:$0xff]
        %v971 = vld [vmem:[#allocation2 + $0x1f1] sm:$0xff]
        %v972 = vpack.c.bf16 %v941, %v940
        %v973 = vpack.c.bf16 %v943, %v942
        %v974 = vpack.c.bf16 %v945, %v944
        %v975 = vpack.c.bf16 %v947, %v946
        %v976 = vpack.c.bf16 %v949, %v948
        %v977 = vpack.c.bf16 %v951, %v950
        %v978 = vpack.c.bf16 %v953, %v952
        %v979 = vpack.c.bf16 %v955, %v954
        %v980 = vpack.c.bf16 %v957, %v956
        %v981 = vpack.c.bf16 %v959, %v958
        %v982 = vpack.c.bf16 %v961, %v960
        %v983 = vpack.c.bf16 %v963, %v962
        %v984 = vpack.c.bf16 %v965, %v964
        %v985 = vpack.c.bf16 %v967, %v966
        %v986 = vpack.c.bf16 %v969, %v968
        %v987 = vpack.c.bf16 %v971, %v970
        %s988 = scalar_lea.vmem %s1, 4
        %v989 = vld [vmem:[%s988] sm:$0x3]
        %v991 = vsel %vm278, %v972, 0
        %v994 = vsel %vm278, %v973, 0
        %v997 = vsel %vm278, %v974, 0
        %v1000 = vsel %vm278, %v975, 0
        %v1003 = vsel %vm278, %v976, 0
        %v1006 = vsel %vm278, %v977, 0
        %v1009 = vsel %vm278, %v978, 0
        %v1012 = vsel %vm278, %v979, 0
        %v1015 = vsel %vm278, %v980, 0
        %v1018 = vsel %vm278, %v981, 0
        %v1021 = vsel %vm278, %v982, 0
        %v1024 = vsel %vm278, %v983, 0
        %v1027 = vsel %vm278, %v984, 0
        %v1030 = vsel %vm278, %v985, 0
        %v1033 = vsel %vm278, %v986, 0
        %v1036 = vsel %vm278, %v987, 0
        %v1039 = vsel %vm563, %v989, 0
        %1041 = vmatprep.subr.bf16.mxu0 0
        %1042 = vmatpush1.bf16.msra.mxu0 %v1039
        %1043 = vmatprep.subr.bf16.mxu0 0
        %1044 = vmatpush1.bf16.msra.mxu0 0
        %1045 = vmatprep.subr.bf16.mxu0 0
        %1046 = vmatpush1.bf16.msra.mxu0 0
        %1047 = vmatprep.subr.bf16.mxu0 0
        %1048 = vmatpush1.bf16.msra.mxu0 0
        %1049 = vmatprep.subr.bf16.mxu0 0
        %1050 = vmatpush1.bf16.msra.mxu0 0
        %1051 = vmatprep.subr.bf16.mxu0 0
        %1052 = vmatpush1.bf16.msra.mxu0 0
        %1053 = vmatprep.subr.bf16.mxu0 0
        %1054 = vmatpush1.bf16.msra.mxu0 0
        %1055 = vmatprep.subr.bf16.mxu0 0
        %1056 = vmatpush1.bf16.msra.mxu0 0
        %1057 = vmatprep.subr.bf16.mxu0 0
        %1058 = vmatpush1.bf16.msra.mxu0 0
        %1059 = vmatprep.subr.bf16.mxu0 0
        %1060 = vmatpush1.bf16.msra.mxu0 0
        %1061 = vmatprep.subr.bf16.mxu0 0
        %1062 = vmatpush1.bf16.msra.mxu0 0
        %1063 = vmatprep.subr.bf16.mxu0 0
        %1064 = vmatpush1.bf16.msra.mxu0 0
        %1065 = vmatprep.subr.bf16.mxu0 0
        %1066 = vmatpush1.bf16.msra.mxu0 0
        %1067 = vmatprep.subr.bf16.mxu0 0
        %1068 = vmatpush1.bf16.msra.mxu0 0
        %1069 = vmatprep.subr.bf16.mxu0 0
        %1070 = vmatpush1.bf16.msra.mxu0 0
        %1071 = vmatprep.subr.bf16.mxu0 0
        %1072 = vmatpush1.bf16.msra.mxu0 0
        %1073 = vmatprep.mubr.bf16.mxu0 0
        %1074 = vmatmul.mubr.bf16.gmra.mrb[0].mxu0 %v991
        %v1075 = vpop.f32.mrb[0].mxu0
        %v1076 = vadd.f32 0.0, %v1075
        %v1077 = vpop.f32.mrb[0].mxu0
        %v1078 = vpop.f32.mrb[0].mxu0
        %v1079 = vadd.f32 0.0, %v1078
        %v1080 = vpop.f32.mrb[0].mxu0
        %1081 = vmatprep.mubr.bf16.mxu0 0
        %1082 = vmatmul.mubr.bf16.gmra.mrb[0].mxu0 %v994
        %v1083 = vpop.f32.mrb[0].mxu0
        %v1084 = vadd.f32 0.0, %v1083
        %v1085 = vpop.f32.mrb[0].mxu0
        %v1086 = vpop.f32.mrb[0].mxu0
        %v1087 = vadd.f32 0.0, %v1086
        %v1088 = vpop.f32.mrb[0].mxu0
        %1089 = vmatprep.mubr.bf16.mxu0 0
        %1090 = vmatmul.mubr.bf16.gmra.mrb[0].mxu0 %v997
        %v1091 = vpop.f32.mrb[0].mxu0
        %v1092 = vadd.f32 0.0, %v1091
        %v1093 = vpop.f32.mrb[0].mxu0
        %v1094 = vpop.f32.mrb[0].mxu0
        %v1095 = vadd.f32 0.0, %v1094
        %v1096 = vpop.f32.mrb[0].mxu0
        %1097 = vmatprep.mubr.bf16.mxu0 0
        %1098 = vmatmul.mubr.bf16.gmra.mrb[0].mxu0 %v1000
        %v1099 = vpop.f32.mrb[0].mxu0
        %v1100 = vadd.f32 0.0, %v1099
        %v1101 = vpop.f32.mrb[0].mxu0
        %v1102 = vpop.f32.mrb[0].mxu0
        %v1103 = vadd.f32 0.0, %v1102
        %v1104 = vpop.f32.mrb[0].mxu0
        %1105 = vmatprep.mubr.bf16.mxu0 0
        %1106 = vmatmul.mubr.bf16.gmra.mrb[0].mxu0 %v1003
        %v1107 = vpop.f32.mrb[0].mxu0
        %v1108 = vadd.f32 0.0, %v1107
        %v1109 = vpop.f32.mrb[0].mxu0
        %v1110 = vpop.f32.mrb[0].mxu0
        %v1111 = vadd.f32 0.0, %v1110
        %v1112 = vpop.f32.mrb[0].mxu0
        %1113 = vmatprep.mubr.bf16.mxu0 0
        %1114 = vmatmul.mubr.bf16.gmra.mrb[0].mxu0 %v1006
        %v1115 = vpop.f32.mrb[0].mxu0
        %v1116 = vadd.f32 0.0, %v1115
        %v1117 = vpop.f32.mrb[0].mxu0
        %v1118 = vpop.f32.mrb[0].mxu0
        %v1119 = vadd.f32 0.0, %v1118
        %v1120 = vpop.f32.mrb[0].mxu0
        %1121 = vmatprep.mubr.bf16.mxu0 0
        %1122 = vmatmul.mubr.bf16.gmra.mrb[0].mxu0 %v1009
        %v1123 = vpop.f32.mrb[0].mxu0
        %v1124 = vadd.f32 0.0, %v1123
        %v1125 = vpop.f32.mrb[0].mxu0
        %v1126 = vpop.f32.mrb[0].mxu0
        %v1127 = vadd.f32 0.0, %v1126
        %v1128 = vpop.f32.mrb[0].mxu0
        %1129 = vmatprep.mubr.bf16.mxu0 0
        %1130 = vmatmul.mubr.bf16.gmra.mrb[0].mxu0 %v1012
        %v1131 = vpop.f32.mrb[0].mxu0
        %v1132 = vadd.f32 0.0, %v1131
        %v1133 = vpop.f32.mrb[0].mxu0
        %v1134 = vpop.f32.mrb[0].mxu0
        %v1135 = vadd.f32 0.0, %v1134
        %v1136 = vpop.f32.mrb[0].mxu0
        %1137 = vmatprep.mubr.bf16.mxu0 0
        %1138 = vmatmul.mubr.bf16.gmra.mrb[0].mxu0 %v1015
        %v1139 = vpop.f32.mrb[0].mxu0
        %v1140 = vadd.f32 0.0, %v1139
        %v1141 = vpop.f32.mrb[0].mxu0
        %v1142 = vpop.f32.mrb[0].mxu0
        %v1143 = vadd.f32 0.0, %v1142
        %v1144 = vpop.f32.mrb[0].mxu0
        %1145 = vmatprep.mubr.bf16.mxu0 0
        %1146 = vmatmul.mubr.bf16.gmra.mrb[0].mxu0 %v1018
        %v1147 = vpop.f32.mrb[0].mxu0
        %v1148 = vadd.f32 0.0, %v1147
        %v1149 = vpop.f32.mrb[0].mxu0
        %v1150 = vpop.f32.mrb[0].mxu0
        %v1151 = vadd.f32 0.0, %v1150
        %v1152 = vpop.f32.mrb[0].mxu0
        %1153 = vmatprep.mubr.bf16.mxu0 0
        %1154 = vmatmul.mubr.bf16.gmra.mrb[0].mxu0 %v1021
        %v1155 = vpop.f32.mrb[0].mxu0
        %v1156 = vadd.f32 0.0, %v1155
        %v1157 = vpop.f32.mrb[0].mxu0
        %v1158 = vpop.f32.mrb[0].mxu0
        %v1159 = vadd.f32 0.0, %v1158
        %v1160 = vpop.f32.mrb[0].mxu0
        %1161 = vmatprep.mubr.bf16.mxu0 0
        %1162 = vmatmul.mubr.bf16.gmra.mrb[0].mxu0 %v1024
        %v1163 = vpop.f32.mrb[0].mxu0
        %v1164 = vadd.f32 0.0, %v1163
        %v1165 = vpop.f32.mrb[0].mxu0
        %v1166 = vpop.f32.mrb[0].mxu0
        %v1167 = vadd.f32 0.0, %v1166
        %v1168 = vpop.f32.mrb[0].mxu0
        %1169 = vmatprep.mubr.bf16.mxu0 0
        %1170 = vmatmul.mubr.bf16.gmra.mrb[0].mxu0 %v1027
        %v1171 = vpop.f32.mrb[0].mxu0
        %v1172 = vadd.f32 0.0, %v1171
        %v1173 = vpop.f32.mrb[0].mxu0
        %v1174 = vpop.f32.mrb[0].mxu0
        %v1175 = vadd.f32 0.0, %v1174
        %v1176 = vpop.f32.mrb[0].mxu0
        %1177 = vmatprep.mubr.bf16.mxu0 0
        %1178 = vmatmul.mubr.bf16.gmra.mrb[0].mxu0 %v1030
        %v1179 = vpop.f32.mrb[0].mxu0
        %v1180 = vadd.f32 0.0, %v1179
        %v1181 = vpop.f32.mrb[0].mxu0
        %v1182 = vpop.f32.mrb[0].mxu0
        %v1183 = vadd.f32 0.0, %v1182
        %v1184 = vpop.f32.mrb[0].mxu0
        %1185 = vmatprep.mubr.bf16.mxu0 0
        %1186 = vmatmul.mubr.bf16.gmra.mrb[0].mxu0 %v1033
        %v1187 = vpop.f32.mrb[0].mxu0
        %v1188 = vadd.f32 0.0, %v1187
        %v1189 = vpop.f32.mrb[0].mxu0
        %v1190 = vpop.f32.mrb[0].mxu0
        %v1191 = vadd.f32 0.0, %v1190
        %v1192 = vpop.f32.mrb[0].mxu0
        %1193 = vmatprep.mubr.bf16.mxu0 0
        %1194 = vmatmul.mubr.bf16.gmra.mrb[0].mxu0 %v1036
        %v1195 = vpop.f32.mrb[0].mxu0
        %v1196 = vadd.f32 0.0, %v1195
        %v1197 = vpop.f32.mrb[0].mxu0
        %v1198 = vpop.f32.mrb[0].mxu0
        %v1199 = vadd.f32 0.0, %v1198
        %v1200 = vpop.f32.mrb[0].mxu0
        %1201 = vdwg.mxu0
        %v1202 = vadd.f32 %v814, %v1076
        %v1203 = vadd.f32 %v817, %v1079
        %v1204 = vadd.f32 %v822, %v1084
        %v1205 = vadd.f32 %v825, %v1087
        %v1206 = vadd.f32 %v830, %v1092
        %v1207 = vadd.f32 %v833, %v1095
        %v1208 = vadd.f32 %v838, %v1100
        %v1209 = vadd.f32 %v841, %v1103
        %v1210 = vadd.f32 %v846, %v1108
        %v1211 = vadd.f32 %v849, %v1111
        %v1212 = vadd.f32 %v854, %v1116
        %v1213 = vadd.f32 %v857, %v1119
        %v1214 = vadd.f32 %v862, %v1124
        %v1215 = vadd.f32 %v865, %v1127
        %v1216 = vadd.f32 %v870, %v1132
        %v1217 = vadd.f32 %v873, %v1135
        %v1218 = vadd.f32 %v878, %v1140
        %v1219 = vadd.f32 %v881, %v1143
        %v1220 = vadd.f32 %v886, %v1148
        %v1221 = vadd.f32 %v889, %v1151
        %v1222 = vadd.f32 %v894, %v1156
        %v1223 = vadd.f32 %v897, %v1159
        %v1224 = vadd.f32 %v902, %v1164
        %v1225 = vadd.f32 %v905, %v1167
        %v1226 = vadd.f32 %v910, %v1172
        %v1227 = vadd.f32 %v913, %v1175
        %v1228 = vadd.f32 %v918, %v1180
        %v1229 = vadd.f32 %v921, %v1183
        %v1230 = vadd.f32 %v926, %v1188
        %v1231 = vadd.f32 %v929, %v1191
        %v1232 = vadd.f32 %v934, %v1196
        %v1233 = vadd.f32 %v937, %v1199
        %v1234 = vld [vmem:[%s383 + $0x7] sm:$0xff]
        %v1235 = vld [vmem:[%s383 + $0xf] sm:$0xff]
        %v1236 = vld [vmem:[%s383 + $0x27] sm:$0xff]
        %v1237 = vld [vmem:[%s383 + $0x2f] sm:$0xff]
        %v1238 = vld [vmem:[%s383 + $0x47] sm:$0xff]
        %v1239 = vld [vmem:[%s383 + $0x4f] sm:$0xff]
        %v1240 = vld [vmem:[%s383 + $0x67] sm:$0xff]
        %v1241 = vld [vmem:[%s383 + $0x6f] sm:$0xff]
        %v1242 = vld [vmem:[%s383 + $0x87] sm:$0xff]
        %v1243 = vld [vmem:[%s383 + $0x8f] sm:$0xff]
        %v1244 = vld [vmem:[%s383 + $0xa7] sm:$0xff]
        %v1245 = vld [vmem:[%s383 + $0xaf] sm:$0xff]
        %v1246 = vld [vmem:[%s383 + $0xc7] sm:$0xff]
        %v1247 = vld [vmem:[%s383 + $0xcf] sm:$0xff]
        %v1248 = vld [vmem:[%s383 + $0xe7] sm:$0xff]
        %v1249 = vld [vmem:[%s383 + $0xef] sm:$0xff]
        %v1250 = vld [vmem:[%s383 + $0x107] sm:$0xff]
        %v1251 = vld [vmem:[%s383 + $0x10f] sm:$0xff]
        %v1252 = vld [vmem:[%s383 + $0x127] sm:$0xff]
        %v1253 = vld [vmem:[%s383 + $0x12f] sm:$0xff]
        %v1254 = vld [vmem:[%s383 + $0x147] sm:$0xff]
        %v1255 = vld [vmem:[%s383 + $0x14f] sm:$0xff]
        %v1256 = vld [vmem:[%s383 + $0x167] sm:$0xff]
        %v1257 = vld [vmem:[%s383 + $0x16f] sm:$0xff]
        %v1258 = vld [vmem:[%s383 + $0x187] sm:$0xff]
        %v1259 = vld [vmem:[%s383 + $0x18f] sm:$0xff]
        %v1260 = vld [vmem:[%s383 + $0x1a7] sm:$0xff]
        %v1261 = vld [vmem:[%s383 + $0x1af] sm:$0xff]
        %v1262 = vld [vmem:[%s383 + $0x1c7] sm:$0xff]
        %v1263 = vld [vmem:[%s383 + $0x1cf] sm:$0xff]
        %v1264 = vld [vmem:[%s383 + $0x1e7] sm:$0xff]
        %v1265 = vld [vmem:[%s383 + $0x1ef] sm:$0xff]
        %v1266 = vpack.c.bf16 %v1235, %v1234
        %v1267 = vpack.c.bf16 %v1237, %v1236
        %v1268 = vpack.c.bf16 %v1239, %v1238
        %v1269 = vpack.c.bf16 %v1241, %v1240
        %v1270 = vpack.c.bf16 %v1243, %v1242
        %v1271 = vpack.c.bf16 %v1245, %v1244
        %v1272 = vpack.c.bf16 %v1247, %v1246
        %v1273 = vpack.c.bf16 %v1249, %v1248
        %v1274 = vpack.c.bf16 %v1251, %v1250
        %v1275 = vpack.c.bf16 %v1253, %v1252
        %v1276 = vpack.c.bf16 %v1255, %v1254
        %v1277 = vpack.c.bf16 %v1257, %v1256
        %v1278 = vpack.c.bf16 %v1259, %v1258
        %v1279 = vpack.c.bf16 %v1261, %v1260
        %v1280 = vpack.c.bf16 %v1263, %v1262
        %v1281 = vpack.c.bf16 %v1265, %v1264
        %s1282 = scalar_lea.vmem %s1, 6
        %v1283 = vld [vmem:[%s1282] sm:$0x3]
        %v1285 = vsel %vm278, %v1266, 0
        %v1288 = vsel %vm278, %v1267, 0
        %v1291 = vsel %vm278, %v1268, 0
        %v1294 = vsel %vm278, %v1269, 0
        %v1297 = vsel %vm278, %v1270, 0
        %v1300 = vsel %vm278, %v1271, 0
        %v1303 = vsel %vm278, %v1272, 0
        %v1306 = vsel %vm278, %v1273, 0
        %v1309 = vsel %vm278, %v1274, 0
        %v1312 = vsel %vm278, %v1275, 0
        %v1315 = vsel %vm278, %v1276, 0
        %v1318 = vsel %vm278, %v1277, 0
        %v1321 = vsel %vm278, %v1278, 0
        %v1324 = vsel %vm278, %v1279, 0
        %v1327 = vsel %vm278, %v1280, 0
        %v1330 = vsel %vm278, %v1281, 0
        %v1333 = vsel %vm563, %v1283, 0
        %1335 = vmatprep.subr.bf16.mxu0 0
        %1336 = vmatpush1.bf16.msra.mxu0 %v1333
        %1337 = vmatprep.subr.bf16.mxu0 0
        %1338 = vmatpush1.bf16.msra.mxu0 0
        %1339 = vmatprep.subr.bf16.mxu0 0
        %1340 = vmatpush1.bf16.msra.mxu0 0
        %1341 = vmatprep.subr.bf16.mxu0 0
        %1342 = vmatpush1.bf16.msra.mxu0 0
        %1343 = vmatprep.subr.bf16.mxu0 0
        %1344 = vmatpush1.bf16.msra.mxu0 0
        %1345 = vmatprep.subr.bf16.mxu0 0
        %1346 = vmatpush1.bf16.msra.mxu0 0
        %1347 = vmatprep.subr.bf16.mxu0 0
        %1348 = vmatpush1.bf16.msra.mxu0 0
        %1349 = vmatprep.subr.bf16.mxu0 0
        %1350 = vmatpush1.bf16.msra.mxu0 0
        %1351 = vmatprep.subr.bf16.mxu0 0
        %1352 = vmatpush1.bf16.msra.mxu0 0
        %1353 = vmatprep.subr.bf16.mxu0 0
        %1354 = vmatpush1.bf16.msra.mxu0 0
        %1355 = vmatprep.subr.bf16.mxu0 0
        %1356 = vmatpush1.bf16.msra.mxu0 0
        %1357 = vmatprep.subr.bf16.mxu0 0
        %1358 = vmatpush1.bf16.msra.mxu0 0
        %1359 = vmatprep.subr.bf16.mxu0 0
        %1360 = vmatpush1.bf16.msra.mxu0 0
        %1361 = vmatprep.subr.bf16.mxu0 0
        %1362 = vmatpush1.bf16.msra.mxu0 0
        %1363 = vmatprep.subr.bf16.mxu0 0
        %1364 = vmatpush1.bf16.msra.mxu0 0
        %1365 = vmatprep.subr.bf16.mxu0 0
        %1366 = vmatpush1.bf16.msra.mxu0 0
        %1367 = vmatprep.mubr.bf16.mxu0 0
        %1368 = vmatmul.mubr.bf16.gmra.mrb[0].mxu0 %v1285
        %v1369 = vpop.f32.mrb[0].mxu0
        %v1370 = vadd.f32 0.0, %v1369
        %v1371 = vpop.f32.mrb[0].mxu0
        %v1372 = vpop.f32.mrb[0].mxu0
        %v1373 = vadd.f32 0.0, %v1372
        %v1374 = vpop.f32.mrb[0].mxu0
        %1375 = vmatprep.mubr.bf16.mxu0 0
        %1376 = vmatmul.mubr.bf16.gmra.mrb[0].mxu0 %v1288
        %v1377 = vpop.f32.mrb[0].mxu0
        %v1378 = vadd.f32 0.0, %v1377
        %v1379 = vpop.f32.mrb[0].mxu0
        %v1380 = vpop.f32.mrb[0].mxu0
        %v1381 = vadd.f32 0.0, %v1380
        %v1382 = vpop.f32.mrb[0].mxu0
        %1383 = vmatprep.mubr.bf16.mxu0 0
        %1384 = vmatmul.mubr.bf16.gmra.mrb[0].mxu0 %v1291
        %v1385 = vpop.f32.mrb[0].mxu0
        %v1386 = vadd.f32 0.0, %v1385
        %v1387 = vpop.f32.mrb[0].mxu0
        %v1388 = vpop.f32.mrb[0].mxu0
        %v1389 = vadd.f32 0.0, %v1388
        %v1390 = vpop.f32.mrb[0].mxu0
        %1391 = vmatprep.mubr.bf16.mxu0 0
        %1392 = vmatmul.mubr.bf16.gmra.mrb[0].mxu0 %v1294
        %v1393 = vpop.f32.mrb[0].mxu0
        %v1394 = vadd.f32 0.0, %v1393
        %v1395 = vpop.f32.mrb[0].mxu0
        %v1396 = vpop.f32.mrb[0].mxu0
        %v1397 = vadd.f32 0.0, %v1396
        %v1398 = vpop.f32.mrb[0].mxu0
        %1399 = vmatprep.mubr.bf16.mxu0 0
        %1400 = vmatmul.mubr.bf16.gmra.mrb[0].mxu0 %v1297
        %v1401 = vpop.f32.mrb[0].mxu0
        %v1402 = vadd.f32 0.0, %v1401
        %v1403 = vpop.f32.mrb[0].mxu0
        %v1404 = vpop.f32.mrb[0].mxu0
        %v1405 = vadd.f32 0.0, %v1404
        %v1406 = vpop.f32.mrb[0].mxu0
        %1407 = vmatprep.mubr.bf16.mxu0 0
        %1408 = vmatmul.mubr.bf16.gmra.mrb[0].mxu0 %v1300
        %v1409 = vpop.f32.mrb[0].mxu0
        %v1410 = vadd.f32 0.0, %v1409
        %v1411 = vpop.f32.mrb[0].mxu0
        %v1412 = vpop.f32.mrb[0].mxu0
        %v1413 = vadd.f32 0.0, %v1412
        %v1414 = vpop.f32.mrb[0].mxu0
        %1415 = vmatprep.mubr.bf16.mxu0 0
        %1416 = vmatmul.mubr.bf16.gmra.mrb[0].mxu0 %v1303
        %v1417 = vpop.f32.mrb[0].mxu0
        %v1418 = vadd.f32 0.0, %v1417
        %v1419 = vpop.f32.mrb[0].mxu0
        %v1420 = vpop.f32.mrb[0].mxu0
        %v1421 = vadd.f32 0.0, %v1420
        %v1422 = vpop.f32.mrb[0].mxu0
        %1423 = vmatprep.mubr.bf16.mxu0 0
        %1424 = vmatmul.mubr.bf16.gmra.mrb[0].mxu0 %v1306
        %v1425 = vpop.f32.mrb[0].mxu0
        %v1426 = vadd.f32 0.0, %v1425
        %v1427 = vpop.f32.mrb[0].mxu0
        %v1428 = vpop.f32.mrb[0].mxu0
        %v1429 = vadd.f32 0.0, %v1428
        %v1430 = vpop.f32.mrb[0].mxu0
        %1431 = vmatprep.mubr.bf16.mxu0 0
        %1432 = vmatmul.mubr.bf16.gmra.mrb[0].mxu0 %v1309
        %v1433 = vpop.f32.mrb[0].mxu0
        %v1434 = vadd.f32 0.0, %v1433
        %v1435 = vpop.f32.mrb[0].mxu0
        %v1436 = vpop.f32.mrb[0].mxu0
        %v1437 = vadd.f32 0.0, %v1436
        %v1438 = vpop.f32.mrb[0].mxu0
        %1439 = vmatprep.mubr.bf16.mxu0 0
        %1440 = vmatmul.mubr.bf16.gmra.mrb[0].mxu0 %v1312
        %v1441 = vpop.f32.mrb[0].mxu0
        %v1442 = vadd.f32 0.0, %v1441
        %v1443 = vpop.f32.mrb[0].mxu0
        %v1444 = vpop.f32.mrb[0].mxu0
        %v1445 = vadd.f32 0.0, %v1444
        %v1446 = vpop.f32.mrb[0].mxu0
        %1447 = vmatprep.mubr.bf16.mxu0 0
        %1448 = vmatmul.mubr.bf16.gmra.mrb[0].mxu0 %v1315
        %v1449 = vpop.f32.mrb[0].mxu0
        %v1450 = vadd.f32 0.0, %v1449
        %v1451 = vpop.f32.mrb[0].mxu0
        %v1452 = vpop.f32.mrb[0].mxu0
        %v1453 = vadd.f32 0.0, %v1452
        %v1454 = vpop.f32.mrb[0].mxu0
        %1455 = vmatprep.mubr.bf16.mxu0 0
        %1456 = vmatmul.mubr.bf16.gmra.mrb[0].mxu0 %v1318
        %v1457 = vpop.f32.mrb[0].mxu0
        %v1458 = vadd.f32 0.0, %v1457
        %v1459 = vpop.f32.mrb[0].mxu0
        %v1460 = vpop.f32.mrb[0].mxu0
        %v1461 = vadd.f32 0.0, %v1460
        %v1462 = vpop.f32.mrb[0].mxu0
        %1463 = vmatprep.mubr.bf16.mxu0 0
        %1464 = vmatmul.mubr.bf16.gmra.mrb[0].mxu0 %v1321
        %v1465 = vpop.f32.mrb[0].mxu0
        %v1466 = vadd.f32 0.0, %v1465
        %v1467 = vpop.f32.mrb[0].mxu0
        %v1468 = vpop.f32.mrb[0].mxu0
        %v1469 = vadd.f32 0.0, %v1468
        %v1470 = vpop.f32.mrb[0].mxu0
        %1471 = vmatprep.mubr.bf16.mxu0 0
        %1472 = vmatmul.mubr.bf16.gmra.mrb[0].mxu0 %v1324
        %v1473 = vpop.f32.mrb[0].mxu0
        %v1474 = vadd.f32 0.0, %v1473
        %v1475 = vpop.f32.mrb[0].mxu0
        %v1476 = vpop.f32.mrb[0].mxu0
        %v1477 = vadd.f32 0.0, %v1476
        %v1478 = vpop.f32.mrb[0].mxu0
        %1479 = vmatprep.mubr.bf16.mxu0 0
        %1480 = vmatmul.mubr.bf16.gmra.mrb[0].mxu0 %v1327
        %v1481 = vpop.f32.mrb[0].mxu0
        %v1482 = vadd.f32 0.0, %v1481
        %v1483 = vpop.f32.mrb[0].mxu0
        %v1484 = vpop.f32.mrb[0].mxu0
        %v1485 = vadd.f32 0.0, %v1484
        %v1486 = vpop.f32.mrb[0].mxu0
        %1487 = vmatprep.mubr.bf16.mxu0 0
        %1488 = vmatmul.mubr.bf16.gmra.mrb[0].mxu0 %v1330
        %v1489 = vpop.f32.mrb[0].mxu0
        %v1490 = vadd.f32 0.0, %v1489
        %v1491 = vpop.f32.mrb[0].mxu0
        %v1492 = vpop.f32.mrb[0].mxu0
        %v1493 = vadd.f32 0.0, %v1492
        %v1494 = vpop.f32.mrb[0].mxu0
        %1495 = vdwg.mxu0
        %v1496 = vadd.f32 %v1202, %v1370
        %v1497 = vadd.f32 %v1203, %v1373
        %v1498 = vadd.f32 %v1204, %v1378
        %v1499 = vadd.f32 %v1205, %v1381
        %v1500 = vadd.f32 %v1206, %v1386
        %v1501 = vadd.f32 %v1207, %v1389
        %v1502 = vadd.f32 %v1208, %v1394
        %v1503 = vadd.f32 %v1209, %v1397
        %v1504 = vadd.f32 %v1210, %v1402
        %v1505 = vadd.f32 %v1211, %v1405
        %v1506 = vadd.f32 %v1212, %v1410
        %v1507 = vadd.f32 %v1213, %v1413
        %v1508 = vadd.f32 %v1214, %v1418
        %v1509 = vadd.f32 %v1215, %v1421
        %v1510 = vadd.f32 %v1216, %v1426
        %v1511 = vadd.f32 %v1217, %v1429
        %v1512 = vadd.f32 %v1218, %v1434
        %v1513 = vadd.f32 %v1219, %v1437
        %v1514 = vadd.f32 %v1220, %v1442
        %v1515 = vadd.f32 %v1221, %v1445
        %v1516 = vadd.f32 %v1222, %v1450
        %v1517 = vadd.f32 %v1223, %v1453
        %v1518 = vadd.f32 %v1224, %v1458
        %v1519 = vadd.f32 %v1225, %v1461
        %v1520 = vadd.f32 %v1226, %v1466
        %v1521 = vadd.f32 %v1227, %v1469
        %v1522 = vadd.f32 %v1228, %v1474
        %v1523 = vadd.f32 %v1229, %v1477
        %v1524 = vadd.f32 %v1230, %v1482
        %v1525 = vadd.f32 %v1231, %v1485
        %v1526 = vadd.f32 %v1232, %v1490
        %v1527 = vadd.f32 %v1233, %v1493
        %v1528 = vld [vmem:[%s383 + $0x8] sm:$0xff]
        %v1529 = vld [vmem:[%s383 + $0x10] sm:$0xff]
        %v1530 = vld [vmem:[%s383 + $0x28] sm:$0xff]
        %v1531 = vld [vmem:[%s383 + $0x30] sm:$0xff]
        %v1532 = vld [vmem:[%s383 + $0x48] sm:$0xff]
        %v1533 = vld [vmem:[%s383 + $0x50] sm:$0xff]
        %v1534 = vld [vmem:[%s383 + $0x68] sm:$0xff]
        %v1535 = vld [vmem:[%s383 + $0x70] sm:$0xff]
        %v1536 = vld [vmem:[%s383 + $0x88] sm:$0xff]
        %v1537 = vld [vmem:[%s383 + $0x90] sm:$0xff]
        %v1538 = vld [vmem:[%s383 + $0xa8] sm:$0xff]
        %v1539 = vld [vmem:[%s383 + $0xb0] sm:$0xff]
        %v1540 = vld [vmem:[%s383 + $0xc8] sm:$0xff]
        %v1541 = vld [vmem:[%s383 + $0xd0] sm:$0xff]
        %v1542 = vld [vmem:[%s383 + $0xe8] sm:$0xff]
        %v1543 = vld [vmem:[%s383 + $0xf0] sm:$0xff]
        %v1544 = vld [vmem:[%s383 + $0x108] sm:$0xff]
        %v1545 = vld [vmem:[%s383 + $0x110] sm:$0xff]
        %v1546 = vld [vmem:[%s383 + $0x128] sm:$0xff]
        %v1547 = vld [vmem:[%s383 + $0x130] sm:$0xff]
        %v1548 = vld [vmem:[%s383 + $0x148] sm:$0xff]
        %v1549 = vld [vmem:[%s383 + $0x150] sm:$0xff]
        %v1550 = vld [vmem:[%s383 + $0x168] sm:$0xff]
        %v1551 = vld [vmem:[%s383 + $0x170] sm:$0xff]
        %v1552 = vld [vmem:[%s383 + $0x188] sm:$0xff]
        %v1553 = vld [vmem:[%s383 + $0x190] sm:$0xff]
        %v1554 = vld [vmem:[%s383 + $0x1a8] sm:$0xff]
        %v1555 = vld [vmem:[%s383 + $0x1b0] sm:$0xff]
        %v1556 = vld [vmem:[%s383 + $0x1c8] sm:$0xff]
        %v1557 = vld [vmem:[%s383 + $0x1d0] sm:$0xff]
        %v1558 = vld [vmem:[%s383 + $0x1e8] sm:$0xff]
        %v1559 = vld [vmem:[%s383 + $0x1f0] sm:$0xff]
        %v1560 = vpack.c.bf16 %v1529, %v1528
        %v1561 = vpack.c.bf16 %v1531, %v1530
        %v1562 = vpack.c.bf16 %v1533, %v1532
        %v1563 = vpack.c.bf16 %v1535, %v1534
        %v1564 = vpack.c.bf16 %v1537, %v1536
        %v1565 = vpack.c.bf16 %v1539, %v1538
        %v1566 = vpack.c.bf16 %v1541, %v1540
        %v1567 = vpack.c.bf16 %v1543, %v1542
        %v1568 = vpack.c.bf16 %v1545, %v1544
        %v1569 = vpack.c.bf16 %v1547, %v1546
        %v1570 = vpack.c.bf16 %v1549, %v1548
        %v1571 = vpack.c.bf16 %v1551, %v1550
        %v1572 = vpack.c.bf16 %v1553, %v1552
        %v1573 = vpack.c.bf16 %v1555, %v1554
        %v1574 = vpack.c.bf16 %v1557, %v1556
        %v1575 = vpack.c.bf16 %v1559, %v1558
        %s1576 = scalar_lea.vmem %s1, 8
        %v1577 = vld [vmem:[%s1576] sm:$0x3]
        %v1579 = vsel %vm278, %v1560, 0
        %v1582 = vsel %vm278, %v1561, 0
        %v1585 = vsel %vm278, %v1562, 0
        %v1588 = vsel %vm278, %v1563, 0
        %v1591 = vsel %vm278, %v1564, 0
        %v1594 = vsel %vm278, %v1565, 0
        %v1597 = vsel %vm278, %v1566, 0
        %v1600 = vsel %vm278, %v1567, 0
        %v1603 = vsel %vm278, %v1568, 0
        %v1606 = vsel %vm278, %v1569, 0
        %v1609 = vsel %vm278, %v1570, 0
        %v1612 = vsel %vm278, %v1571, 0
        %v1615 = vsel %vm278, %v1572, 0
        %v1618 = vsel %vm278, %v1573, 0
        %v1621 = vsel %vm278, %v1574, 0
        %v1624 = vsel %vm278, %v1575, 0
        %v1627 = vsel %vm563, %v1577, 0
        %1629 = vmatprep.subr.bf16.mxu0 0
        %1630 = vmatpush1.bf16.msra.mxu0 %v1627
        %1631 = vmatprep.subr.bf16.mxu0 0
        %1632 = vmatpush1.bf16.msra.mxu0 0
        %1633 = vmatprep.subr.bf16.mxu0 0
        %1634 = vmatpush1.bf16.msra.mxu0 0
        %1635 = vmatprep.subr.bf16.mxu0 0
        %1636 = vmatpush1.bf16.msra.mxu0 0
        %1637 = vmatprep.subr.bf16.mxu0 0
        %1638 = vmatpush1.bf16.msra.mxu0 0
        %1639 = vmatprep.subr.bf16.mxu0 0
        %1640 = vmatpush1.bf16.msra.mxu0 0
        %1641 = vmatprep.subr.bf16.mxu0 0
        %1642 = vmatpush1.bf16.msra.mxu0 0
        %1643 = vmatprep.subr.bf16.mxu0 0
        %1644 = vmatpush1.bf16.msra.mxu0 0
        %1645 = vmatprep.subr.bf16.mxu0 0
        %1646 = vmatpush1.bf16.msra.mxu0 0
        %1647 = vmatprep.subr.bf16.mxu0 0
        %1648 = vmatpush1.bf16.msra.mxu0 0
        %1649 = vmatprep.subr.bf16.mxu0 0
        %1650 = vmatpush1.bf16.msra.mxu0 0
        %1651 = vmatprep.subr.bf16.mxu0 0
        %1652 = vmatpush1.bf16.msra.mxu0 0
        %1653 = vmatprep.subr.bf16.mxu0 0
        %1654 = vmatpush1.bf16.msra.mxu0 0
        %1655 = vmatprep.subr.bf16.mxu0 0
        %1656 = vmatpush1.bf16.msra.mxu0 0
        %1657 = vmatprep.subr.bf16.mxu0 0
        %1658 = vmatpush1.bf16.msra.mxu0 0
        %1659 = vmatprep.subr.bf16.mxu0 0
        %1660 = vmatpush1.bf16.msra.mxu0 0
        %1661 = vmatprep.mubr.bf16.mxu0 0
        %1662 = vmatmul.mubr.bf16.gmra.mrb[0].mxu0 %v1579
        %v1663 = vpop.f32.mrb[0].mxu0
        %v1664 = vadd.f32 0.0, %v1663
        %v1665 = vpop.f32.mrb[0].mxu0
        %v1666 = vpop.f32.mrb[0].mxu0
        %v1667 = vadd.f32 0.0, %v1666
        %v1668 = vpop.f32.mrb[0].mxu0
        %1669 = vmatprep.mubr.bf16.mxu0 0
        %1670 = vmatmul.mubr.bf16.gmra.mrb[0].mxu0 %v1582
        %v1671 = vpop.f32.mrb[0].mxu0
        %v1672 = vadd.f32 0.0, %v1671
        %v1673 = vpop.f32.mrb[0].mxu0
        %v1674 = vpop.f32.mrb[0].mxu0
        %v1675 = vadd.f32 0.0, %v1674
        %v1676 = vpop.f32.mrb[0].mxu0
        %1677 = vmatprep.mubr.bf16.mxu0 0
        %1678 = vmatmul.mubr.bf16.gmra.mrb[0].mxu0 %v1585
        %v1679 = vpop.f32.mrb[0].mxu0
        %v1680 = vadd.f32 0.0, %v1679
        %v1681 = vpop.f32.mrb[0].mxu0
        %v1682 = vpop.f32.mrb[0].mxu0
        %v1683 = vadd.f32 0.0, %v1682
        %v1684 = vpop.f32.mrb[0].mxu0
        %1685 = vmatprep.mubr.bf16.mxu0 0
        %1686 = vmatmul.mubr.bf16.gmra.mrb[0].mxu0 %v1588
        %v1687 = vpop.f32.mrb[0].mxu0
        %v1688 = vadd.f32 0.0, %v1687
        %v1689 = vpop.f32.mrb[0].mxu0
        %v1690 = vpop.f32.mrb[0].mxu0
        %v1691 = vadd.f32 0.0, %v1690
        %v1692 = vpop.f32.mrb[0].mxu0
        %1693 = vmatprep.mubr.bf16.mxu0 0
        %1694 = vmatmul.mubr.bf16.gmra.mrb[0].mxu0 %v1591
        %v1695 = vpop.f32.mrb[0].mxu0
        %v1696 = vadd.f32 0.0, %v1695
        %v1697 = vpop.f32.mrb[0].mxu0
        %v1698 = vpop.f32.mrb[0].mxu0
        %v1699 = vadd.f32 0.0, %v1698
        %v1700 = vpop.f32.mrb[0].mxu0
        %1701 = vmatprep.mubr.bf16.mxu0 0
        %1702 = vmatmul.mubr.bf16.gmra.mrb[0].mxu0 %v1594
        %v1703 = vpop.f32.mrb[0].mxu0
        %v1704 = vadd.f32 0.0, %v1703
        %v1705 = vpop.f32.mrb[0].mxu0
        %v1706 = vpop.f32.mrb[0].mxu0
        %v1707 = vadd.f32 0.0, %v1706
        %v1708 = vpop.f32.mrb[0].mxu0
        %1709 = vmatprep.mubr.bf16.mxu0 0
        %1710 = vmatmul.mubr.bf16.gmra.mrb[0].mxu0 %v1597
        %v1711 = vpop.f32.mrb[0].mxu0
        %v1712 = vadd.f32 0.0, %v1711
        %v1713 = vpop.f32.mrb[0].mxu0
        %v1714 = vpop.f32.mrb[0].mxu0
        %v1715 = vadd.f32 0.0, %v1714
        %v1716 = vpop.f32.mrb[0].mxu0
        %1717 = vmatprep.mubr.bf16.mxu0 0
        %1718 = vmatmul.mubr.bf16.gmra.mrb[0].mxu0 %v1600
        %v1719 = vpop.f32.mrb[0].mxu0
        %v1720 = vadd.f32 0.0, %v1719
        %v1721 = vpop.f32.mrb[0].mxu0
        %v1722 = vpop.f32.mrb[0].mxu0
        %v1723 = vadd.f32 0.0, %v1722
        %v1724 = vpop.f32.mrb[0].mxu0
        %1725 = vmatprep.mubr.bf16.mxu0 0
        %1726 = vmatmul.mubr.bf16.gmra.mrb[0].mxu0 %v1603
        %v1727 = vpop.f32.mrb[0].mxu0
        %v1728 = vadd.f32 0.0, %v1727
        %v1729 = vpop.f32.mrb[0].mxu0
        %v1730 = vpop.f32.mrb[0].mxu0
        %v1731 = vadd.f32 0.0, %v1730
        %v1732 = vpop.f32.mrb[0].mxu0
        %1733 = vmatprep.mubr.bf16.mxu0 0
        %1734 = vmatmul.mubr.bf16.gmra.mrb[0].mxu0 %v1606
        %v1735 = vpop.f32.mrb[0].mxu0
        %v1736 = vadd.f32 0.0, %v1735
        %v1737 = vpop.f32.mrb[0].mxu0
        %v1738 = vpop.f32.mrb[0].mxu0
        %v1739 = vadd.f32 0.0, %v1738
        %v1740 = vpop.f32.mrb[0].mxu0
        %1741 = vmatprep.mubr.bf16.mxu0 0
        %1742 = vmatmul.mubr.bf16.gmra.mrb[0].mxu0 %v1609
        %v1743 = vpop.f32.mrb[0].mxu0
        %v1744 = vadd.f32 0.0, %v1743
        %v1745 = vpop.f32.mrb[0].mxu0
        %v1746 = vpop.f32.mrb[0].mxu0
        %v1747 = vadd.f32 0.0, %v1746
        %v1748 = vpop.f32.mrb[0].mxu0
        %1749 = vmatprep.mubr.bf16.mxu0 0
        %1750 = vmatmul.mubr.bf16.gmra.mrb[0].mxu0 %v1612
        %v1751 = vpop.f32.mrb[0].mxu0
        %v1752 = vadd.f32 0.0, %v1751
        %v1753 = vpop.f32.mrb[0].mxu0
        %v1754 = vpop.f32.mrb[0].mxu0
        %v1755 = vadd.f32 0.0, %v1754
        %v1756 = vpop.f32.mrb[0].mxu0
        %1757 = vmatprep.mubr.bf16.mxu0 0
        %1758 = vmatmul.mubr.bf16.gmra.mrb[0].mxu0 %v1615
        %v1759 = vpop.f32.mrb[0].mxu0
        %v1760 = vadd.f32 0.0, %v1759
        %v1761 = vpop.f32.mrb[0].mxu0
        %v1762 = vpop.f32.mrb[0].mxu0
        %v1763 = vadd.f32 0.0, %v1762
        %v1764 = vpop.f32.mrb[0].mxu0
        %1765 = vmatprep.mubr.bf16.mxu0 0
        %1766 = vmatmul.mubr.bf16.gmra.mrb[0].mxu0 %v1618
        %v1767 = vpop.f32.mrb[0].mxu0
        %v1768 = vadd.f32 0.0, %v1767
        %v1769 = vpop.f32.mrb[0].mxu0
        %v1770 = vpop.f32.mrb[0].mxu0
        %v1771 = vadd.f32 0.0, %v1770
        %v1772 = vpop.f32.mrb[0].mxu0
        %1773 = vmatprep.mubr.bf16.mxu0 0
        %1774 = vmatmul.mubr.bf16.gmra.mrb[0].mxu0 %v1621
        %v1775 = vpop.f32.mrb[0].mxu0
        %v1776 = vadd.f32 0.0, %v1775
        %v1777 = vpop.f32.mrb[0].mxu0
        %v1778 = vpop.f32.mrb[0].mxu0
        %v1779 = vadd.f32 0.0, %v1778
        %v1780 = vpop.f32.mrb[0].mxu0
        %1781 = vmatprep.mubr.bf16.mxu0 0
        %1782 = vmatmul.mubr.bf16.gmra.mrb[0].mxu0 %v1624
        %v1783 = vpop.f32.mrb[0].mxu0
        %v1784 = vadd.f32 0.0, %v1783
        %v1785 = vpop.f32.mrb[0].mxu0
        %v1786 = vpop.f32.mrb[0].mxu0
        %v1787 = vadd.f32 0.0, %v1786
        %v1788 = vpop.f32.mrb[0].mxu0
        %1789 = vdwg.mxu0
        %v1790 = vadd.f32 %v1496, %v1664
        %v1791 = vadd.f32 %v1497, %v1667
        %v1792 = vadd.f32 %v1498, %v1672
        %v1793 = vadd.f32 %v1499, %v1675
        %v1794 = vadd.f32 %v1500, %v1680
        %v1795 = vadd.f32 %v1501, %v1683
        %v1796 = vadd.f32 %v1502, %v1688
        %v1797 = vadd.f32 %v1503, %v1691
        %v1798 = vadd.f32 %v1504, %v1696
        %v1799 = vadd.f32 %v1505, %v1699
        %v1800 = vadd.f32 %v1506, %v1704
        %v1801 = vadd.f32 %v1507, %v1707
        %v1802 = vadd.f32 %v1508, %v1712
        %v1803 = vadd.f32 %v1509, %v1715
        %v1804 = vadd.f32 %v1510, %v1720
        %v1805 = vadd.f32 %v1511, %v1723
        %v1806 = vadd.f32 %v1512, %v1728
        %v1807 = vadd.f32 %v1513, %v1731
        %v1808 = vadd.f32 %v1514, %v1736
        %v1809 = vadd.f32 %v1515, %v1739
        %v1810 = vadd.f32 %v1516, %v1744
        %v1811 = vadd.f32 %v1517, %v1747
        %v1812 = vadd.f32 %v1518, %v1752
        %v1813 = vadd.f32 %v1519, %v1755
        %v1814 = vadd.f32 %v1520, %v1760
        %v1815 = vadd.f32 %v1521, %v1763
        %v1816 = vadd.f32 %v1522, %v1768
        %v1817 = vadd.f32 %v1523, %v1771
        %v1818 = vadd.f32 %v1524, %v1776
        %v1819 = vadd.f32 %v1525, %v1779
        %v1820 = vadd.f32 %v1526, %v1784
        %v1821 = vadd.f32 %v1527, %v1787
        %v1822 = vld [vmem:[%s383 + $0x9] sm:$0xff]
        %v1823 = vld [vmem:[%s383 + $0x11] sm:$0xff]
        %v1824 = vld [vmem:[%s383 + $0x29] sm:$0xff]
        %v1825 = vld [vmem:[%s383 + $0x31] sm:$0xff]
        %v1826 = vld [vmem:[%s383 + $0x49] sm:$0xff]
        %v1827 = vld [vmem:[%s383 + $0x51] sm:$0xff]
        %v1828 = vld [vmem:[%s383 + $0x69] sm:$0xff]
        %v1829 = vld [vmem:[%s383 + $0x71] sm:$0xff]
        %v1830 = vld [vmem:[%s383 + $0x89] sm:$0xff]
        %v1831 = vld [vmem:[%s383 + $0x91] sm:$0xff]
        %v1832 = vld [vmem:[%s383 + $0xa9] sm:$0xff]
        %v1833 = vld [vmem:[%s383 + $0xb1] sm:$0xff]
        %v1834 = vld [vmem:[%s383 + $0xc9] sm:$0xff]
        %v1835 = vld [vmem:[%s383 + $0xd1] sm:$0xff]
        %v1836 = vld [vmem:[%s383 + $0xe9] sm:$0xff]
        %v1837 = vld [vmem:[%s383 + $0xf1] sm:$0xff]
        %v1838 = vld [vmem:[%s383 + $0x109] sm:$0xff]
        %v1839 = vld [vmem:[%s383 + $0x111] sm:$0xff]
        %v1840 = vld [vmem:[%s383 + $0x129] sm:$0xff]
        %v1841 = vld [vmem:[%s383 + $0x131] sm:$0xff]
        %v1842 = vld [vmem:[%s383 + $0x149] sm:$0xff]
        %v1843 = vld [vmem:[%s383 + $0x151] sm:$0xff]
        %v1844 = vld [vmem:[%s383 + $0x169] sm:$0xff]
        %v1845 = vld [vmem:[%s383 + $0x171] sm:$0xff]
        %v1846 = vld [vmem:[%s383 + $0x189] sm:$0xff]
        %v1847 = vld [vmem:[%s383 + $0x191] sm:$0xff]
        %v1848 = vld [vmem:[%s383 + $0x1a9] sm:$0xff]
        %v1849 = vld [vmem:[%s383 + $0x1b1] sm:$0xff]
        %v1850 = vld [vmem:[%s383 + $0x1c9] sm:$0xff]
        %v1851 = vld [vmem:[%s383 + $0x1d1] sm:$0xff]
        %v1852 = vld [vmem:[%s383 + $0x1e9] sm:$0xff]
        %v1853 = vld [vmem:[%s383 + $0x1f1] sm:$0xff]
        %v1854 = vpack.c.bf16 %v1823, %v1822
        %v1855 = vpack.c.bf16 %v1825, %v1824
        %v1856 = vpack.c.bf16 %v1827, %v1826
        %v1857 = vpack.c.bf16 %v1829, %v1828
        %v1858 = vpack.c.bf16 %v1831, %v1830
        %v1859 = vpack.c.bf16 %v1833, %v1832
        %v1860 = vpack.c.bf16 %v1835, %v1834
        %v1861 = vpack.c.bf16 %v1837, %v1836
        %v1862 = vpack.c.bf16 %v1839, %v1838
        %v1863 = vpack.c.bf16 %v1841, %v1840
        %v1864 = vpack.c.bf16 %v1843, %v1842
        %v1865 = vpack.c.bf16 %v1845, %v1844
        %v1866 = vpack.c.bf16 %v1847, %v1846
        %v1867 = vpack.c.bf16 %v1849, %v1848
        %v1868 = vpack.c.bf16 %v1851, %v1850
        %v1869 = vpack.c.bf16 %v1853, %v1852
        %s1870 = scalar_lea.vmem %s1, 10
        %v1871 = vld [vmem:[%s1870] sm:$0x3]
        %v1873 = vsel %vm278, %v1854, 0
        %v1876 = vsel %vm278, %v1855, 0
        %v1879 = vsel %vm278, %v1856, 0
        %v1882 = vsel %vm278, %v1857, 0
        %v1885 = vsel %vm278, %v1858, 0
        %v1888 = vsel %vm278, %v1859, 0
        %v1891 = vsel %vm278, %v1860, 0
        %v1894 = vsel %vm278, %v1861, 0
        %v1897 = vsel %vm278, %v1862, 0
        %v1900 = vsel %vm278, %v1863, 0
        %v1903 = vsel %vm278, %v1864, 0
        %v1906 = vsel %vm278, %v1865, 0
        %v1909 = vsel %vm278, %v1866, 0
        %v1912 = vsel %vm278, %v1867, 0
        %v1915 = vsel %vm278, %v1868, 0
        %v1918 = vsel %vm278, %v1869, 0
        %v1921 = vsel %vm563, %v1871, 0
        %1923 = vmatprep.subr.bf16.mxu0 0
        %1924 = vmatpush1.bf16.msra.mxu0 %v1921
        %1925 = vmatprep.subr.bf16.mxu0 0
        %1926 = vmatpush1.bf16.msra.mxu0 0
        %1927 = vmatprep.subr.bf16.mxu0 0
        %1928 = vmatpush1.bf16.msra.mxu0 0
        %1929 = vmatprep.subr.bf16.mxu0 0
        %1930 = vmatpush1.bf16.msra.mxu0 0
        %1931 = vmatprep.subr.bf16.mxu0 0
        %1932 = vmatpush1.bf16.msra.mxu0 0
        %1933 = vmatprep.subr.bf16.mxu0 0
        %1934 = vmatpush1.bf16.msra.mxu0 0
        %1935 = vmatprep.subr.bf16.mxu0 0
        %1936 = vmatpush1.bf16.msra.mxu0 0
        %1937 = vmatprep.subr.bf16.mxu0 0
        %1938 = vmatpush1.bf16.msra.mxu0 0
        %1939 = vmatprep.subr.bf16.mxu0 0
        %1940 = vmatpush1.bf16.msra.mxu0 0
        %1941 = vmatprep.subr.bf16.mxu0 0
        %1942 = vmatpush1.bf16.msra.mxu0 0
        %1943 = vmatprep.subr.bf16.mxu0 0
        %1944 = vmatpush1.bf16.msra.mxu0 0
        %1945 = vmatprep.subr.bf16.mxu0 0
        %1946 = vmatpush1.bf16.msra.mxu0 0
        %1947 = vmatprep.subr.bf16.mxu0 0
        %1948 = vmatpush1.bf16.msra.mxu0 0
        %1949 = vmatprep.subr.bf16.mxu0 0
        %1950 = vmatpush1.bf16.msra.mxu0 0
        %1951 = vmatprep.subr.bf16.mxu0 0
        %1952 = vmatpush1.bf16.msra.mxu0 0
        %1953 = vmatprep.subr.bf16.mxu0 0
        %1954 = vmatpush1.bf16.msra.mxu0 0
        %1955 = vmatprep.mubr.bf16.mxu0 0
        %1956 = vmatmul.mubr.bf16.gmra.mrb[0].mxu0 %v1873
        %v1957 = vpop.f32.mrb[0].mxu0
        %v1958 = vadd.f32 0.0, %v1957
        %v1959 = vpop.f32.mrb[0].mxu0
        %v1960 = vpop.f32.mrb[0].mxu0
        %v1961 = vadd.f32 0.0, %v1960
        %v1962 = vpop.f32.mrb[0].mxu0
        %1963 = vmatprep.mubr.bf16.mxu0 0
        %1964 = vmatmul.mubr.bf16.gmra.mrb[0].mxu0 %v1876
        %v1965 = vpop.f32.mrb[0].mxu0
        %v1966 = vadd.f32 0.0, %v1965
        %v1967 = vpop.f32.mrb[0].mxu0
        %v1968 = vpop.f32.mrb[0].mxu0
        %v1969 = vadd.f32 0.0, %v1968
        %v1970 = vpop.f32.mrb[0].mxu0
        %1971 = vmatprep.mubr.bf16.mxu0 0
        %1972 = vmatmul.mubr.bf16.gmra.mrb[0].mxu0 %v1879
        %v1973 = vpop.f32.mrb[0].mxu0
        %v1974 = vadd.f32 0.0, %v1973
        %v1975 = vpop.f32.mrb[0].mxu0
        %v1976 = vpop.f32.mrb[0].mxu0
        %v1977 = vadd.f32 0.0, %v1976
        %v1978 = vpop.f32.mrb[0].mxu0
        %1979 = vmatprep.mubr.bf16.mxu0 0
        %1980 = vmatmul.mubr.bf16.gmra.mrb[0].mxu0 %v1882
        %v1981 = vpop.f32.mrb[0].mxu0
        %v1982 = vadd.f32 0.0, %v1981
        %v1983 = vpop.f32.mrb[0].mxu0
        %v1984 = vpop.f32.mrb[0].mxu0
        %v1985 = vadd.f32 0.0, %v1984
        %v1986 = vpop.f32.mrb[0].mxu0
        %1987 = vmatprep.mubr.bf16.mxu0 0
        %1988 = vmatmul.mubr.bf16.gmra.mrb[0].mxu0 %v1885
        %v1989 = vpop.f32.mrb[0].mxu0
        %v1990 = vadd.f32 0.0, %v1989
        %v1991 = vpop.f32.mrb[0].mxu0
        %v1992 = vpop.f32.mrb[0].mxu0
        %v1993 = vadd.f32 0.0, %v1992
        %v1994 = vpop.f32.mrb[0].mxu0
        %1995 = vmatprep.mubr.bf16.mxu0 0
        %1996 = vmatmul.mubr.bf16.gmra.mrb[0].mxu0 %v1888
        %v1997 = vpop.f32.mrb[0].mxu0
        %v1998 = vadd.f32 0.0, %v1997
        %v1999 = vpop.f32.mrb[0].mxu0
        %v2000 = vpop.f32.mrb[0].mxu0
        %v2001 = vadd.f32 0.0, %v2000
        %v2002 = vpop.f32.mrb[0].mxu0
        %2003 = vmatprep.mubr.bf16.mxu0 0
        %2004 = vmatmul.mubr.bf16.gmra.mrb[0].mxu0 %v1891
        %v2005 = vpop.f32.mrb[0].mxu0
        %v2006 = vadd.f32 0.0, %v2005
        %v2007 = vpop.f32.mrb[0].mxu0
        %v2008 = vpop.f32.mrb[0].mxu0
        %v2009 = vadd.f32 0.0, %v2008
        %v2010 = vpop.f32.mrb[0].mxu0
        %2011 = vmatprep.mubr.bf16.mxu0 0
        %2012 = vmatmul.mubr.bf16.gmra.mrb[0].mxu0 %v1894
        %v2013 = vpop.f32.mrb[0].mxu0
        %v2014 = vadd.f32 0.0, %v2013
        %v2015 = vpop.f32.mrb[0].mxu0
        %v2016 = vpop.f32.mrb[0].mxu0
        %v2017 = vadd.f32 0.0, %v2016
        %v2018 = vpop.f32.mrb[0].mxu0
        %2019 = vmatprep.mubr.bf16.mxu0 0
        %2020 = vmatmul.mubr.bf16.gmra.mrb[0].mxu0 %v1897
        %v2021 = vpop.f32.mrb[0].mxu0
        %v2022 = vadd.f32 0.0, %v2021
        %v2023 = vpop.f32.mrb[0].mxu0
        %v2024 = vpop.f32.mrb[0].mxu0
        %v2025 = vadd.f32 0.0, %v2024
        %v2026 = vpop.f32.mrb[0].mxu0
        %2027 = vmatprep.mubr.bf16.mxu0 0
        %2028 = vmatmul.mubr.bf16.gmra.mrb[0].mxu0 %v1900
        %v2029 = vpop.f32.mrb[0].mxu0
        %v2030 = vadd.f32 0.0, %v2029
        %v2031 = vpop.f32.mrb[0].mxu0
        %v2032 = vpop.f32.mrb[0].mxu0
        %v2033 = vadd.f32 0.0, %v2032
        %v2034 = vpop.f32.mrb[0].mxu0
        %2035 = vmatprep.mubr.bf16.mxu0 0
        %2036 = vmatmul.mubr.bf16.gmra.mrb[0].mxu0 %v1903
        %v2037 = vpop.f32.mrb[0].mxu0
        %v2038 = vadd.f32 0.0, %v2037
        %v2039 = vpop.f32.mrb[0].mxu0
        %v2040 = vpop.f32.mrb[0].mxu0
        %v2041 = vadd.f32 0.0, %v2040
        %v2042 = vpop.f32.mrb[0].mxu0
        %2043 = vmatprep.mubr.bf16.mxu0 0
        %2044 = vmatmul.mubr.bf16.gmra.mrb[0].mxu0 %v1906
        %v2045 = vpop.f32.mrb[0].mxu0
        %v2046 = vadd.f32 0.0, %v2045
        %v2047 = vpop.f32.mrb[0].mxu0
        %v2048 = vpop.f32.mrb[0].mxu0
        %v2049 = vadd.f32 0.0, %v2048
        %v2050 = vpop.f32.mrb[0].mxu0
        %2051 = vmatprep.mubr.bf16.mxu0 0
        %2052 = vmatmul.mubr.bf16.gmra.mrb[0].mxu0 %v1909
        %v2053 = vpop.f32.mrb[0].mxu0
        %v2054 = vadd.f32 0.0, %v2053
        %v2055 = vpop.f32.mrb[0].mxu0
        %v2056 = vpop.f32.mrb[0].mxu0
        %v2057 = vadd.f32 0.0, %v2056
        %v2058 = vpop.f32.mrb[0].mxu0
        %2059 = vmatprep.mubr.bf16.mxu0 0
        %2060 = vmatmul.mubr.bf16.gmra.mrb[0].mxu0 %v1912
        %v2061 = vpop.f32.mrb[0].mxu0
        %v2062 = vadd.f32 0.0, %v2061
        %v2063 = vpop.f32.mrb[0].mxu0
        %v2064 = vpop.f32.mrb[0].mxu0
        %v2065 = vadd.f32 0.0, %v2064
        %v2066 = vpop.f32.mrb[0].mxu0
        %2067 = vmatprep.mubr.bf16.mxu0 0
        %2068 = vmatmul.mubr.bf16.gmra.mrb[0].mxu0 %v1915
        %v2069 = vpop.f32.mrb[0].mxu0
        %v2070 = vadd.f32 0.0, %v2069
        %v2071 = vpop.f32.mrb[0].mxu0
        %v2072 = vpop.f32.mrb[0].mxu0
        %v2073 = vadd.f32 0.0, %v2072
        %v2074 = vpop.f32.mrb[0].mxu0
        %2075 = vmatprep.mubr.bf16.mxu0 0
        %2076 = vmatmul.mubr.bf16.gmra.mrb[0].mxu0 %v1918
        %v2077 = vpop.f32.mrb[0].mxu0
        %v2078 = vadd.f32 0.0, %v2077
        %v2079 = vpop.f32.mrb[0].mxu0
        %v2080 = vpop.f32.mrb[0].mxu0
        %v2081 = vadd.f32 0.0, %v2080
        %v2082 = vpop.f32.mrb[0].mxu0
        %2083 = vdwg.mxu0
        %v2084 = vadd.f32 %v1790, %v1958
        %v2085 = vadd.f32 %v1791, %v1961
        %v2086 = vadd.f32 %v1792, %v1966
        %v2087 = vadd.f32 %v1793, %v1969
        %v2088 = vadd.f32 %v1794, %v1974
        %v2089 = vadd.f32 %v1795, %v1977
        %v2090 = vadd.f32 %v1796, %v1982
        %v2091 = vadd.f32 %v1797, %v1985
        %v2092 = vadd.f32 %v1798, %v1990
        %v2093 = vadd.f32 %v1799, %v1993
        %v2094 = vadd.f32 %v1800, %v1998
        %v2095 = vadd.f32 %v1801, %v2001
        %v2096 = vadd.f32 %v1802, %v2006
        %v2097 = vadd.f32 %v1803, %v2009
        %v2098 = vadd.f32 %v1804, %v2014
        %v2099 = vadd.f32 %v1805, %v2017
        %v2100 = vadd.f32 %v1806, %v2022
        %v2101 = vadd.f32 %v1807, %v2025
        %v2102 = vadd.f32 %v1808, %v2030
        %v2103 = vadd.f32 %v1809, %v2033
        %v2104 = vadd.f32 %v1810, %v2038
        %v2105 = vadd.f32 %v1811, %v2041
        %v2106 = vadd.f32 %v1812, %v2046
        %v2107 = vadd.f32 %v1813, %v2049
        %v2108 = vadd.f32 %v1814, %v2054
        %v2109 = vadd.f32 %v1815, %v2057
        %v2110 = vadd.f32 %v1816, %v2062
        %v2111 = vadd.f32 %v1817, %v2065
        %v2112 = vadd.f32 %v1818, %v2070
        %v2113 = vadd.f32 %v1819, %v2073
        %v2114 = vadd.f32 %v1820, %v2078
        %v2115 = vadd.f32 %v1821, %v2081
        %s2116 = scalar_lea.vmem [#allocation2], 64
        %v2117 = vld [vmem:[%s2116 + $0x7] sm:$0xff]
        %v2118 = vld [vmem:[%s2116 + $0xf] sm:$0xff]
        %v2119 = vld [vmem:[%s2116 + $0x27] sm:$0xff]
        %v2120 = vld [vmem:[%s2116 + $0x2f] sm:$0xff]
        %v2121 = vld [vmem:[%s2116 + $0x47] sm:$0xff]
        %v2122 = vld [vmem:[%s2116 + $0x4f] sm:$0xff]
        %v2123 = vld [vmem:[%s2116 + $0x67] sm:$0xff]
        %v2124 = vld [vmem:[%s2116 + $0x6f] sm:$0xff]
        %v2125 = vld [vmem:[%s2116 + $0x87] sm:$0xff]
        %v2126 = vld [vmem:[%s2116 + $0x8f] sm:$0xff]
        %v2127 = vld [vmem:[%s2116 + $0xa7] sm:$0xff]
        %v2128 = vld [vmem:[%s2116 + $0xaf] sm:$0xff]
        %v2129 = vld [vmem:[%s2116 + $0xc7] sm:$0xff]
        %v2130 = vld [vmem:[%s2116 + $0xcf] sm:$0xff]
        %v2131 = vld [vmem:[%s2116 + $0xe7] sm:$0xff]
        %v2132 = vld [vmem:[%s2116 + $0xef] sm:$0xff]
        %v2133 = vld [vmem:[%s2116 + $0x107] sm:$0xff]
        %v2134 = vld [vmem:[%s2116 + $0x10f] sm:$0xff]
        %v2135 = vld [vmem:[%s2116 + $0x127] sm:$0xff]
        %v2136 = vld [vmem:[%s2116 + $0x12f] sm:$0xff]
        %v2137 = vld [vmem:[%s2116 + $0x147] sm:$0xff]
        %v2138 = vld [vmem:[%s2116 + $0x14f] sm:$0xff]
        %v2139 = vld [vmem:[%s2116 + $0x167] sm:$0xff]
        %v2140 = vld [vmem:[%s2116 + $0x16f] sm:$0xff]
        %v2141 = vld [vmem:[%s2116 + $0x187] sm:$0xff]
        %v2142 = vld [vmem:[%s2116 + $0x18f] sm:$0xff]
        %v2143 = vld [vmem:[%s2116 + $0x1a7] sm:$0xff]
        %v2144 = vld [vmem:[%s2116 + $0x1af] sm:$0xff]
        %v2145 = vld [vmem:[%s2116 + $0x1c7] sm:$0xff]
        %v2146 = vld [vmem:[%s2116 + $0x1cf] sm:$0xff]
        %v2147 = vld [vmem:[%s2116 + $0x1e7] sm:$0xff]
        %v2148 = vld [vmem:[%s2116 + $0x1ef] sm:$0xff]
        %v2149 = vpack.c.bf16 %v2118, %v2117
        %v2150 = vpack.c.bf16 %v2120, %v2119
        %v2151 = vpack.c.bf16 %v2122, %v2121
        %v2152 = vpack.c.bf16 %v2124, %v2123
        %v2153 = vpack.c.bf16 %v2126, %v2125
        %v2154 = vpack.c.bf16 %v2128, %v2127
        %v2155 = vpack.c.bf16 %v2130, %v2129
        %v2156 = vpack.c.bf16 %v2132, %v2131
        %v2157 = vpack.c.bf16 %v2134, %v2133
        %v2158 = vpack.c.bf16 %v2136, %v2135
        %v2159 = vpack.c.bf16 %v2138, %v2137
        %v2160 = vpack.c.bf16 %v2140, %v2139
        %v2161 = vpack.c.bf16 %v2142, %v2141
        %v2162 = vpack.c.bf16 %v2144, %v2143
        %v2163 = vpack.c.bf16 %v2146, %v2145
        %v2164 = vpack.c.bf16 %v2148, %v2147
        %s2165 = scalar_lea.vmem %s1, 12
        %v2166 = vld [vmem:[%s2165] sm:$0x3]
        %v2168 = vsel %vm278, %v2149, 0
        %v2171 = vsel %vm278, %v2150, 0
        %v2174 = vsel %vm278, %v2151, 0
        %v2177 = vsel %vm278, %v2152, 0
        %v2180 = vsel %vm278, %v2153, 0
        %v2183 = vsel %vm278, %v2154, 0
        %v2186 = vsel %vm278, %v2155, 0
        %v2189 = vsel %vm278, %v2156, 0
        %v2192 = vsel %vm278, %v2157, 0
        %v2195 = vsel %vm278, %v2158, 0
        %v2198 = vsel %vm278, %v2159, 0
        %v2201 = vsel %vm278, %v2160, 0
        %v2204 = vsel %vm278, %v2161, 0
        %v2207 = vsel %vm278, %v2162, 0
        %v2210 = vsel %vm278, %v2163, 0
        %v2213 = vsel %vm278, %v2164, 0
        %v2216 = vsel %vm563, %v2166, 0
        %2218 = vmatprep.subr.bf16.mxu0 0
        %2219 = vmatpush1.bf16.msra.mxu0 %v2216
        %2220 = vmatprep.subr.bf16.mxu0 0
        %2221 = vmatpush1.bf16.msra.mxu0 0
        %2222 = vmatprep.subr.bf16.mxu0 0
        %2223 = vmatpush1.bf16.msra.mxu0 0
        %2224 = vmatprep.subr.bf16.mxu0 0
        %2225 = vmatpush1.bf16.msra.mxu0 0
        %2226 = vmatprep.subr.bf16.mxu0 0
        %2227 = vmatpush1.bf16.msra.mxu0 0
        %2228 = vmatprep.subr.bf16.mxu0 0
        %2229 = vmatpush1.bf16.msra.mxu0 0
        %2230 = vmatprep.subr.bf16.mxu0 0
        %2231 = vmatpush1.bf16.msra.mxu0 0
        %2232 = vmatprep.subr.bf16.mxu0 0
        %2233 = vmatpush1.bf16.msra.mxu0 0
        %2234 = vmatprep.subr.bf16.mxu0 0
        %2235 = vmatpush1.bf16.msra.mxu0 0
        %2236 = vmatprep.subr.bf16.mxu0 0
        %2237 = vmatpush1.bf16.msra.mxu0 0
        %2238 = vmatprep.subr.bf16.mxu0 0
        %2239 = vmatpush1.bf16.msra.mxu0 0
        %2240 = vmatprep.subr.bf16.mxu0 0
        %2241 = vmatpush1.bf16.msra.mxu0 0
        %2242 = vmatprep.subr.bf16.mxu0 0
        %2243 = vmatpush1.bf16.msra.mxu0 0
        %2244 = vmatprep.subr.bf16.mxu0 0
        %2245 = vmatpush1.bf16.msra.mxu0 0
        %2246 = vmatprep.subr.bf16.mxu0 0
        %2247 = vmatpush1.bf16.msra.mxu0 0
        %2248 = vmatprep.subr.bf16.mxu0 0
        %2249 = vmatpush1.bf16.msra.mxu0 0
        %2250 = vmatprep.mubr.bf16.mxu0 0
        %2251 = vmatmul.mubr.bf16.gmra.mrb[0].mxu0 %v2168
        %v2252 = vpop.f32.mrb[0].mxu0
        %v2253 = vadd.f32 0.0, %v2252
        %v2254 = vpop.f32.mrb[0].mxu0
        %v2255 = vpop.f32.mrb[0].mxu0
        %v2256 = vadd.f32 0.0, %v2255
        %v2257 = vpop.f32.mrb[0].mxu0
        %2258 = vmatprep.mubr.bf16.mxu0 0
        %2259 = vmatmul.mubr.bf16.gmra.mrb[0].mxu0 %v2171
        %v2260 = vpop.f32.mrb[0].mxu0
        %v2261 = vadd.f32 0.0, %v2260
        %v2262 = vpop.f32.mrb[0].mxu0
        %v2263 = vpop.f32.mrb[0].mxu0
        %v2264 = vadd.f32 0.0, %v2263
        %v2265 = vpop.f32.mrb[0].mxu0
        %2266 = vmatprep.mubr.bf16.mxu0 0
        %2267 = vmatmul.mubr.bf16.gmra.mrb[0].mxu0 %v2174
        %v2268 = vpop.f32.mrb[0].mxu0
        %v2269 = vadd.f32 0.0, %v2268
        %v2270 = vpop.f32.mrb[0].mxu0
        %v2271 = vpop.f32.mrb[0].mxu0
        %v2272 = vadd.f32 0.0, %v2271
        %v2273 = vpop.f32.mrb[0].mxu0
        %2274 = vmatprep.mubr.bf16.mxu0 0
        %2275 = vmatmul.mubr.bf16.gmra.mrb[0].mxu0 %v2177
        %v2276 = vpop.f32.mrb[0].mxu0
        %v2277 = vadd.f32 0.0, %v2276
        %v2278 = vpop.f32.mrb[0].mxu0
        %v2279 = vpop.f32.mrb[0].mxu0
        %v2280 = vadd.f32 0.0, %v2279
        %v2281 = vpop.f32.mrb[0].mxu0
        %2282 = vmatprep.mubr.bf16.mxu0 0
        %2283 = vmatmul.mubr.bf16.gmra.mrb[0].mxu0 %v2180
        %v2284 = vpop.f32.mrb[0].mxu0
        %v2285 = vadd.f32 0.0, %v2284
        %v2286 = vpop.f32.mrb[0].mxu0
        %v2287 = vpop.f32.mrb[0].mxu0
        %v2288 = vadd.f32 0.0, %v2287
        %v2289 = vpop.f32.mrb[0].mxu0
        %2290 = vmatprep.mubr.bf16.mxu0 0
        %2291 = vmatmul.mubr.bf16.gmra.mrb[0].mxu0 %v2183
        %v2292 = vpop.f32.mrb[0].mxu0
        %v2293 = vadd.f32 0.0, %v2292
        %v2294 = vpop.f32.mrb[0].mxu0
        %v2295 = vpop.f32.mrb[0].mxu0
        %v2296 = vadd.f32 0.0, %v2295
        %v2297 = vpop.f32.mrb[0].mxu0
        %2298 = vmatprep.mubr.bf16.mxu0 0
        %2299 = vmatmul.mubr.bf16.gmra.mrb[0].mxu0 %v2186
        %v2300 = vpop.f32.mrb[0].mxu0
        %v2301 = vadd.f32 0.0, %v2300
        %v2302 = vpop.f32.mrb[0].mxu0
        %v2303 = vpop.f32.mrb[0].mxu0
        %v2304 = vadd.f32 0.0, %v2303
        %v2305 = vpop.f32.mrb[0].mxu0
        %2306 = vmatprep.mubr.bf16.mxu0 0
        %2307 = vmatmul.mubr.bf16.gmra.mrb[0].mxu0 %v2189
        %v2308 = vpop.f32.mrb[0].mxu0
        %v2309 = vadd.f32 0.0, %v2308
        %v2310 = vpop.f32.mrb[0].mxu0
        %v2311 = vpop.f32.mrb[0].mxu0
        %v2312 = vadd.f32 0.0, %v2311
        %v2313 = vpop.f32.mrb[0].mxu0
        %2314 = vmatprep.mubr.bf16.mxu0 0
        %2315 = vmatmul.mubr.bf16.gmra.mrb[0].mxu0 %v2192
        %v2316 = vpop.f32.mrb[0].mxu0
        %v2317 = vadd.f32 0.0, %v2316
        %v2318 = vpop.f32.mrb[0].mxu0
        %v2319 = vpop.f32.mrb[0].mxu0
        %v2320 = vadd.f32 0.0, %v2319
        %v2321 = vpop.f32.mrb[0].mxu0
        %2322 = vmatprep.mubr.bf16.mxu0 0
        %2323 = vmatmul.mubr.bf16.gmra.mrb[0].mxu0 %v2195
        %v2324 = vpop.f32.mrb[0].mxu0
        %v2325 = vadd.f32 0.0, %v2324
        %v2326 = vpop.f32.mrb[0].mxu0
        %v2327 = vpop.f32.mrb[0].mxu0
        %v2328 = vadd.f32 0.0, %v2327
        %v2329 = vpop.f32.mrb[0].mxu0
        %2330 = vmatprep.mubr.bf16.mxu0 0
        %2331 = vmatmul.mubr.bf16.gmra.mrb[0].mxu0 %v2198
        %v2332 = vpop.f32.mrb[0].mxu0
        %v2333 = vadd.f32 0.0, %v2332
        %v2334 = vpop.f32.mrb[0].mxu0
        %v2335 = vpop.f32.mrb[0].mxu0
        %v2336 = vadd.f32 0.0, %v2335
        %v2337 = vpop.f32.mrb[0].mxu0
        %2338 = vmatprep.mubr.bf16.mxu0 0
        %2339 = vmatmul.mubr.bf16.gmra.mrb[0].mxu0 %v2201
        %v2340 = vpop.f32.mrb[0].mxu0
        %v2341 = vadd.f32 0.0, %v2340
        %v2342 = vpop.f32.mrb[0].mxu0
        %v2343 = vpop.f32.mrb[0].mxu0
        %v2344 = vadd.f32 0.0, %v2343
        %v2345 = vpop.f32.mrb[0].mxu0
        %2346 = vmatprep.mubr.bf16.mxu0 0
        %2347 = vmatmul.mubr.bf16.gmra.mrb[0].mxu0 %v2204
        %v2348 = vpop.f32.mrb[0].mxu0
        %v2349 = vadd.f32 0.0, %v2348
        %v2350 = vpop.f32.mrb[0].mxu0
        %v2351 = vpop.f32.mrb[0].mxu0
        %v2352 = vadd.f32 0.0, %v2351
        %v2353 = vpop.f32.mrb[0].mxu0
        %2354 = vmatprep.mubr.bf16.mxu0 0
        %2355 = vmatmul.mubr.bf16.gmra.mrb[0].mxu0 %v2207
        %v2356 = vpop.f32.mrb[0].mxu0
        %v2357 = vadd.f32 0.0, %v2356
        %v2358 = vpop.f32.mrb[0].mxu0
        %v2359 = vpop.f32.mrb[0].mxu0
        %v2360 = vadd.f32 0.0, %v2359
        %v2361 = vpop.f32.mrb[0].mxu0
        %2362 = vmatprep.mubr.bf16.mxu0 0
        %2363 = vmatmul.mubr.bf16.gmra.mrb[0].mxu0 %v2210
        %v2364 = vpop.f32.mrb[0].mxu0
        %v2365 = vadd.f32 0.0, %v2364
        %v2366 = vpop.f32.mrb[0].mxu0
        %v2367 = vpop.f32.mrb[0].mxu0
        %v2368 = vadd.f32 0.0, %v2367
        %v2369 = vpop.f32.mrb[0].mxu0
        %2370 = vmatprep.mubr.bf16.mxu0 0
        %2371 = vmatmul.mubr.bf16.gmra.mrb[0].mxu0 %v2213
        %v2372 = vpop.f32.mrb[0].mxu0
        %v2373 = vadd.f32 0.0, %v2372
        %v2374 = vpop.f32.mrb[0].mxu0
        %v2375 = vpop.f32.mrb[0].mxu0
        %v2376 = vadd.f32 0.0, %v2375
        %v2377 = vpop.f32.mrb[0].mxu0
        %2378 = vdwg.mxu0
        %v2379 = vadd.f32 %v2084, %v2253
        %v2380 = vadd.f32 %v2085, %v2256
        %v2381 = vadd.f32 %v2086, %v2261
        %v2382 = vadd.f32 %v2087, %v2264
        %v2383 = vadd.f32 %v2088, %v2269
        %v2384 = vadd.f32 %v2089, %v2272
        %v2385 = vadd.f32 %v2090, %v2277
        %v2386 = vadd.f32 %v2091, %v2280
        %v2387 = vadd.f32 %v2092, %v2285
        %v2388 = vadd.f32 %v2093, %v2288
        %v2389 = vadd.f32 %v2094, %v2293
        %v2390 = vadd.f32 %v2095, %v2296
        %v2391 = vadd.f32 %v2096, %v2301
        %v2392 = vadd.f32 %v2097, %v2304
        %v2393 = vadd.f32 %v2098, %v2309
        %v2394 = vadd.f32 %v2099, %v2312
        %v2395 = vadd.f32 %v2100, %v2317
        %v2396 = vadd.f32 %v2101, %v2320
        %v2397 = vadd.f32 %v2102, %v2325
        %v2398 = vadd.f32 %v2103, %v2328
        %v2399 = vadd.f32 %v2104, %v2333
        %v2400 = vadd.f32 %v2105, %v2336
        %v2401 = vadd.f32 %v2106, %v2341
        %v2402 = vadd.f32 %v2107, %v2344
        %v2403 = vadd.f32 %v2108, %v2349
        %v2404 = vadd.f32 %v2109, %v2352
        %v2405 = vadd.f32 %v2110, %v2357
        %v2406 = vadd.f32 %v2111, %v2360
        %v2407 = vadd.f32 %v2112, %v2365
        %v2408 = vadd.f32 %v2113, %v2368
        %v2409 = vadd.f32 %v2114, %v2373
        %v2410 = vadd.f32 %v2115, %v2376
        %v2411 = vld [vmem:[%s2116 + $0x8] sm:$0xff]
        %v2412 = vld [vmem:[%s2116 + $0x10] sm:$0xff]
        %v2413 = vld [vmem:[%s2116 + $0x28] sm:$0xff]
        %v2414 = vld [vmem:[%s2116 + $0x30] sm:$0xff]
        %v2415 = vld [vmem:[%s2116 + $0x48] sm:$0xff]
        %v2416 = vld [vmem:[%s2116 + $0x50] sm:$0xff]
        %v2417 = vld [vmem:[%s2116 + $0x68] sm:$0xff]
        %v2418 = vld [vmem:[%s2116 + $0x70] sm:$0xff]
        %v2419 = vld [vmem:[%s2116 + $0x88] sm:$0xff]
        %v2420 = vld [vmem:[%s2116 + $0x90] sm:$0xff]
        %v2421 = vld [vmem:[%s2116 + $0xa8] sm:$0xff]
        %v2422 = vld [vmem:[%s2116 + $0xb0] sm:$0xff]
        %v2423 = vld [vmem:[%s2116 + $0xc8] sm:$0xff]
        %v2424 = vld [vmem:[%s2116 + $0xd0] sm:$0xff]
        %v2425 = vld [vmem:[%s2116 + $0xe8] sm:$0xff]
        %v2426 = vld [vmem:[%s2116 + $0xf0] sm:$0xff]
        %v2427 = vld [vmem:[%s2116 + $0x108] sm:$0xff]
        %v2428 = vld [vmem:[%s2116 + $0x110] sm:$0xff]
        %v2429 = vld [vmem:[%s2116 + $0x128] sm:$0xff]
        %v2430 = vld [vmem:[%s2116 + $0x130] sm:$0xff]
        %v2431 = vld [vmem:[%s2116 + $0x148] sm:$0xff]
        %v2432 = vld [vmem:[%s2116 + $0x150] sm:$0xff]
        %v2433 = vld [vmem:[%s2116 + $0x168] sm:$0xff]
        %v2434 = vld [vmem:[%s2116 + $0x170] sm:$0xff]
        %v2435 = vld [vmem:[%s2116 + $0x188] sm:$0xff]
        %v2436 = vld [vmem:[%s2116 + $0x190] sm:$0xff]
        %v2437 = vld [vmem:[%s2116 + $0x1a8] sm:$0xff]
        %v2438 = vld [vmem:[%s2116 + $0x1b0] sm:$0xff]
        %v2439 = vld [vmem:[%s2116 + $0x1c8] sm:$0xff]
        %v2440 = vld [vmem:[%s2116 + $0x1d0] sm:$0xff]
        %v2441 = vld [vmem:[%s2116 + $0x1e8] sm:$0xff]
        %v2442 = vld [vmem:[%s2116 + $0x1f0] sm:$0xff]
        %v2443 = vpack.c.bf16 %v2412, %v2411
        %v2444 = vpack.c.bf16 %v2414, %v2413
        %v2445 = vpack.c.bf16 %v2416, %v2415
        %v2446 = vpack.c.bf16 %v2418, %v2417
        %v2447 = vpack.c.bf16 %v2420, %v2419
        %v2448 = vpack.c.bf16 %v2422, %v2421
        %v2449 = vpack.c.bf16 %v2424, %v2423
        %v2450 = vpack.c.bf16 %v2426, %v2425
        %v2451 = vpack.c.bf16 %v2428, %v2427
        %v2452 = vpack.c.bf16 %v2430, %v2429
        %v2453 = vpack.c.bf16 %v2432, %v2431
        %v2454 = vpack.c.bf16 %v2434, %v2433
        %v2455 = vpack.c.bf16 %v2436, %v2435
        %v2456 = vpack.c.bf16 %v2438, %v2437
        %v2457 = vpack.c.bf16 %v2440, %v2439
        %v2458 = vpack.c.bf16 %v2442, %v2441
        %s2459 = scalar_lea.vmem %s1, 14
        %v2460 = vld [vmem:[%s2459] sm:$0x3]
        %v2462 = vsel %vm278, %v2443, 0
        %v2465 = vsel %vm278, %v2444, 0
        %v2468 = vsel %vm278, %v2445, 0
        %v2471 = vsel %vm278, %v2446, 0
        %v2474 = vsel %vm278, %v2447, 0
        %v2477 = vsel %vm278, %v2448, 0
        %v2480 = vsel %vm278, %v2449, 0
        %v2483 = vsel %vm278, %v2450, 0
        %v2486 = vsel %vm278, %v2451, 0
        %v2489 = vsel %vm278, %v2452, 0
        %v2492 = vsel %vm278, %v2453, 0
        %v2495 = vsel %vm278, %v2454, 0
        %v2498 = vsel %vm278, %v2455, 0
        %v2501 = vsel %vm278, %v2456, 0
        %v2504 = vsel %vm278, %v2457, 0
        %v2507 = vsel %vm278, %v2458, 0
        %v2510 = vsel %vm563, %v2460, 0
        %2512 = vmatprep.subr.bf16.mxu0 0
        %2513 = vmatpush1.bf16.msra.mxu0 %v2510
        %2514 = vmatprep.subr.bf16.mxu0 0
        %2515 = vmatpush1.bf16.msra.mxu0 0
        %2516 = vmatprep.subr.bf16.mxu0 0
        %2517 = vmatpush1.bf16.msra.mxu0 0
        %2518 = vmatprep.subr.bf16.mxu0 0
        %2519 = vmatpush1.bf16.msra.mxu0 0
        %2520 = vmatprep.subr.bf16.mxu0 0
        %2521 = vmatpush1.bf16.msra.mxu0 0
        %2522 = vmatprep.subr.bf16.mxu0 0
        %2523 = vmatpush1.bf16.msra.mxu0 0
        %2524 = vmatprep.subr.bf16.mxu0 0
        %2525 = vmatpush1.bf16.msra.mxu0 0
        %2526 = vmatprep.subr.bf16.mxu0 0
        %2527 = vmatpush1.bf16.msra.mxu0 0
        %2528 = vmatprep.subr.bf16.mxu0 0
        %2529 = vmatpush1.bf16.msra.mxu0 0
        %2530 = vmatprep.subr.bf16.mxu0 0
        %2531 = vmatpush1.bf16.msra.mxu0 0
        %2532 = vmatprep.subr.bf16.mxu0 0
        %2533 = vmatpush1.bf16.msra.mxu0 0
        %2534 = vmatprep.subr.bf16.mxu0 0
        %2535 = vmatpush1.bf16.msra.mxu0 0
        %2536 = vmatprep.subr.bf16.mxu0 0
        %2537 = vmatpush1.bf16.msra.mxu0 0
        %2538 = vmatprep.subr.bf16.mxu0 0
        %2539 = vmatpush1.bf16.msra.mxu0 0
        %2540 = vmatprep.subr.bf16.mxu0 0
        %2541 = vmatpush1.bf16.msra.mxu0 0
        %2542 = vmatprep.subr.bf16.mxu0 0
        %2543 = vmatpush1.bf16.msra.mxu0 0
        %2544 = vmatprep.mubr.bf16.mxu0 0
        %2545 = vmatmul.mubr.bf16.gmra.mrb[0].mxu0 %v2462
        %v2546 = vpop.f32.mrb[0].mxu0
        %v2547 = vadd.f32 0.0, %v2546
        %v2548 = vpop.f32.mrb[0].mxu0
        %v2549 = vpop.f32.mrb[0].mxu0
        %v2550 = vadd.f32 0.0, %v2549
        %v2551 = vpop.f32.mrb[0].mxu0
        %2552 = vmatprep.mubr.bf16.mxu0 0
        %2553 = vmatmul.mubr.bf16.gmra.mrb[0].mxu0 %v2465
        %v2554 = vpop.f32.mrb[0].mxu0
        %v2555 = vadd.f32 0.0, %v2554
        %v2556 = vpop.f32.mrb[0].mxu0
        %v2557 = vpop.f32.mrb[0].mxu0
        %v2558 = vadd.f32 0.0, %v2557
        %v2559 = vpop.f32.mrb[0].mxu0
        %2560 = vmatprep.mubr.bf16.mxu0 0
        %2561 = vmatmul.mubr.bf16.gmra.mrb[0].mxu0 %v2468
        %v2562 = vpop.f32.mrb[0].mxu0
        %v2563 = vadd.f32 0.0, %v2562
        %v2564 = vpop.f32.mrb[0].mxu0
        %v2565 = vpop.f32.mrb[0].mxu0
        %v2566 = vadd.f32 0.0, %v2565
        %v2567 = vpop.f32.mrb[0].mxu0
        %2568 = vmatprep.mubr.bf16.mxu0 0
        %2569 = vmatmul.mubr.bf16.gmra.mrb[0].mxu0 %v2471
        %v2570 = vpop.f32.mrb[0].mxu0
        %v2571 = vadd.f32 0.0, %v2570
        %v2572 = vpop.f32.mrb[0].mxu0
        %v2573 = vpop.f32.mrb[0].mxu0
        %v2574 = vadd.f32 0.0, %v2573
        %v2575 = vpop.f32.mrb[0].mxu0
        %2576 = vmatprep.mubr.bf16.mxu0 0
        %2577 = vmatmul.mubr.bf16.gmra.mrb[0].mxu0 %v2474
        %v2578 = vpop.f32.mrb[0].mxu0
        %v2579 = vadd.f32 0.0, %v2578
        %v2580 = vpop.f32.mrb[0].mxu0
        %v2581 = vpop.f32.mrb[0].mxu0
        %v2582 = vadd.f32 0.0, %v2581
        %v2583 = vpop.f32.mrb[0].mxu0
        %2584 = vmatprep.mubr.bf16.mxu0 0
        %2585 = vmatmul.mubr.bf16.gmra.mrb[0].mxu0 %v2477
        %v2586 = vpop.f32.mrb[0].mxu0
        %v2587 = vadd.f32 0.0, %v2586
        %v2588 = vpop.f32.mrb[0].mxu0
        %v2589 = vpop.f32.mrb[0].mxu0
        %v2590 = vadd.f32 0.0, %v2589
        %v2591 = vpop.f32.mrb[0].mxu0
        %2592 = vmatprep.mubr.bf16.mxu0 0
        %2593 = vmatmul.mubr.bf16.gmra.mrb[0].mxu0 %v2480
        %v2594 = vpop.f32.mrb[0].mxu0
        %v2595 = vadd.f32 0.0, %v2594
        %v2596 = vpop.f32.mrb[0].mxu0
        %v2597 = vpop.f32.mrb[0].mxu0
        %v2598 = vadd.f32 0.0, %v2597
        %v2599 = vpop.f32.mrb[0].mxu0
        %2600 = vmatprep.mubr.bf16.mxu0 0
        %2601 = vmatmul.mubr.bf16.gmra.mrb[0].mxu0 %v2483
        %v2602 = vpop.f32.mrb[0].mxu0
        %v2603 = vadd.f32 0.0, %v2602
        %v2604 = vpop.f32.mrb[0].mxu0
        %v2605 = vpop.f32.mrb[0].mxu0
        %v2606 = vadd.f32 0.0, %v2605
        %v2607 = vpop.f32.mrb[0].mxu0
        %2608 = vmatprep.mubr.bf16.mxu0 0
        %2609 = vmatmul.mubr.bf16.gmra.mrb[0].mxu0 %v2486
        %v2610 = vpop.f32.mrb[0].mxu0
        %v2611 = vadd.f32 0.0, %v2610
        %v2612 = vpop.f32.mrb[0].mxu0
        %v2613 = vpop.f32.mrb[0].mxu0
        %v2614 = vadd.f32 0.0, %v2613
        %v2615 = vpop.f32.mrb[0].mxu0
        %2616 = vmatprep.mubr.bf16.mxu0 0
        %2617 = vmatmul.mubr.bf16.gmra.mrb[0].mxu0 %v2489
        %v2618 = vpop.f32.mrb[0].mxu0
        %v2619 = vadd.f32 0.0, %v2618
        %v2620 = vpop.f32.mrb[0].mxu0
        %v2621 = vpop.f32.mrb[0].mxu0
        %v2622 = vadd.f32 0.0, %v2621
        %v2623 = vpop.f32.mrb[0].mxu0
        %2624 = vmatprep.mubr.bf16.mxu0 0
        %2625 = vmatmul.mubr.bf16.gmra.mrb[0].mxu0 %v2492
        %v2626 = vpop.f32.mrb[0].mxu0
        %v2627 = vadd.f32 0.0, %v2626
        %v2628 = vpop.f32.mrb[0].mxu0
        %v2629 = vpop.f32.mrb[0].mxu0
        %v2630 = vadd.f32 0.0, %v2629
        %v2631 = vpop.f32.mrb[0].mxu0
        %2632 = vmatprep.mubr.bf16.mxu0 0
        %2633 = vmatmul.mubr.bf16.gmra.mrb[0].mxu0 %v2495
        %v2634 = vpop.f32.mrb[0].mxu0
        %v2635 = vadd.f32 0.0, %v2634
        %v2636 = vpop.f32.mrb[0].mxu0
        %v2637 = vpop.f32.mrb[0].mxu0
        %v2638 = vadd.f32 0.0, %v2637
        %v2639 = vpop.f32.mrb[0].mxu0
        %2640 = vmatprep.mubr.bf16.mxu0 0
        %2641 = vmatmul.mubr.bf16.gmra.mrb[0].mxu0 %v2498
        %v2642 = vpop.f32.mrb[0].mxu0
        %v2643 = vadd.f32 0.0, %v2642
        %v2644 = vpop.f32.mrb[0].mxu0
        %v2645 = vpop.f32.mrb[0].mxu0
        %v2646 = vadd.f32 0.0, %v2645
        %v2647 = vpop.f32.mrb[0].mxu0
        %2648 = vmatprep.mubr.bf16.mxu0 0
        %2649 = vmatmul.mubr.bf16.gmra.mrb[0].mxu0 %v2501
        %v2650 = vpop.f32.mrb[0].mxu0
        %v2651 = vadd.f32 0.0, %v2650
        %v2652 = vpop.f32.mrb[0].mxu0
        %v2653 = vpop.f32.mrb[0].mxu0
        %v2654 = vadd.f32 0.0, %v2653
        %v2655 = vpop.f32.mrb[0].mxu0
        %2656 = vmatprep.mubr.bf16.mxu0 0
        %2657 = vmatmul.mubr.bf16.gmra.mrb[0].mxu0 %v2504
        %v2658 = vpop.f32.mrb[0].mxu0
        %v2659 = vadd.f32 0.0, %v2658
        %v2660 = vpop.f32.mrb[0].mxu0
        %v2661 = vpop.f32.mrb[0].mxu0
        %v2662 = vadd.f32 0.0, %v2661
        %v2663 = vpop.f32.mrb[0].mxu0
        %2664 = vmatprep.mubr.bf16.mxu0 0
        %2665 = vmatmul.mubr.bf16.gmra.mrb[0].mxu0 %v2507
        %v2666 = vpop.f32.mrb[0].mxu0
        %v2667 = vadd.f32 0.0, %v2666
        %v2668 = vpop.f32.mrb[0].mxu0
        %v2669 = vpop.f32.mrb[0].mxu0
        %v2670 = vadd.f32 0.0, %v2669
        %v2671 = vpop.f32.mrb[0].mxu0
        %2672 = vdwg.mxu0
        %v2673 = vadd.f32 %v2379, %v2547
        %v2674 = vadd.f32 %v2380, %v2550
        %v2675 = vadd.f32 %v2381, %v2555
        %v2676 = vadd.f32 %v2382, %v2558
        %v2677 = vadd.f32 %v2383, %v2563
        %v2678 = vadd.f32 %v2384, %v2566
        %v2679 = vadd.f32 %v2385, %v2571
        %v2680 = vadd.f32 %v2386, %v2574
        %v2681 = vadd.f32 %v2387, %v2579
        %v2682 = vadd.f32 %v2388, %v2582
        %v2683 = vadd.f32 %v2389, %v2587
        %v2684 = vadd.f32 %v2390, %v2590
        %v2685 = vadd.f32 %v2391, %v2595
        %v2686 = vadd.f32 %v2392, %v2598
        %v2687 = vadd.f32 %v2393, %v2603
        %v2688 = vadd.f32 %v2394, %v2606
        %v2689 = vadd.f32 %v2395, %v2611
        %v2690 = vadd.f32 %v2396, %v2614
        %v2691 = vadd.f32 %v2397, %v2619
        %v2692 = vadd.f32 %v2398, %v2622
        %v2693 = vadd.f32 %v2399, %v2627
        %v2694 = vadd.f32 %v2400, %v2630
        %v2695 = vadd.f32 %v2401, %v2635
        %v2696 = vadd.f32 %v2402, %v2638
        %v2697 = vadd.f32 %v2403, %v2643
        %v2698 = vadd.f32 %v2404, %v2646
        %v2699 = vadd.f32 %v2405, %v2651
        %v2700 = vadd.f32 %v2406, %v2654
        %v2701 = vadd.f32 %v2407, %v2659
        %v2702 = vadd.f32 %v2408, %v2662
        %v2703 = vadd.f32 %v2409, %v2667
        %v2704 = vadd.f32 %v2410, %v2670
        %v2705 = vld [vmem:[%s2116 + $0x9] sm:$0xff]
        %v2706 = vld [vmem:[%s2116 + $0x11] sm:$0xff]
        %v2707 = vld [vmem:[%s2116 + $0x29] sm:$0xff]
        %v2708 = vld [vmem:[%s2116 + $0x31] sm:$0xff]
        %v2709 = vld [vmem:[%s2116 + $0x49] sm:$0xff]
        %v2710 = vld [vmem:[%s2116 + $0x51] sm:$0xff]
        %v2711 = vld [vmem:[%s2116 + $0x69] sm:$0xff]
        %v2712 = vld [vmem:[%s2116 + $0x71] sm:$0xff]
        %v2713 = vld [vmem:[%s2116 + $0x89] sm:$0xff]
        %v2714 = vld [vmem:[%s2116 + $0x91] sm:$0xff]
        %v2715 = vld [vmem:[%s2116 + $0xa9] sm:$0xff]
        %v2716 = vld [vmem:[%s2116 + $0xb1] sm:$0xff]
        %v2717 = vld [vmem:[%s2116 + $0xc9] sm:$0xff]
        %v2718 = vld [vmem:[%s2116 + $0xd1] sm:$0xff]
        %v2719 = vld [vmem:[%s2116 + $0xe9] sm:$0xff]
        %v2720 = vld [vmem:[%s2116 + $0xf1] sm:$0xff]
        %v2721 = vld [vmem:[%s2116 + $0x109] sm:$0xff]
        %v2722 = vld [vmem:[%s2116 + $0x111] sm:$0xff]
        %v2723 = vld [vmem:[%s2116 + $0x129] sm:$0xff]
        %v2724 = vld [vmem:[%s2116 + $0x131] sm:$0xff]
        %v2725 = vld [vmem:[%s2116 + $0x149] sm:$0xff]
        %v2726 = vld [vmem:[%s2116 + $0x151] sm:$0xff]
        %v2727 = vld [vmem:[%s2116 + $0x169] sm:$0xff]
        %v2728 = vld [vmem:[%s2116 + $0x171] sm:$0xff]
        %v2729 = vld [vmem:[%s2116 + $0x189] sm:$0xff]
        %v2730 = vld [vmem:[%s2116 + $0x191] sm:$0xff]
        %v2731 = vld [vmem:[%s2116 + $0x1a9] sm:$0xff]
        %v2732 = vld [vmem:[%s2116 + $0x1b1] sm:$0xff]
        %v2733 = vld [vmem:[%s2116 + $0x1c9] sm:$0xff]
        %v2734 = vld [vmem:[%s2116 + $0x1d1] sm:$0xff]
        %v2735 = vld [vmem:[%s2116 + $0x1e9] sm:$0xff]
        %v2736 = vld [vmem:[%s2116 + $0x1f1] sm:$0xff]
        %v2737 = vpack.c.bf16 %v2706, %v2705
        %v2738 = vpack.c.bf16 %v2708, %v2707
        %v2739 = vpack.c.bf16 %v2710, %v2709
        %v2740 = vpack.c.bf16 %v2712, %v2711
        %v2741 = vpack.c.bf16 %v2714, %v2713
        %v2742 = vpack.c.bf16 %v2716, %v2715
        %v2743 = vpack.c.bf16 %v2718, %v2717
        %v2744 = vpack.c.bf16 %v2720, %v2719
        %v2745 = vpack.c.bf16 %v2722, %v2721
        %v2746 = vpack.c.bf16 %v2724, %v2723
        %v2747 = vpack.c.bf16 %v2726, %v2725
        %v2748 = vpack.c.bf16 %v2728, %v2727
        %v2749 = vpack.c.bf16 %v2730, %v2729
        %v2750 = vpack.c.bf16 %v2732, %v2731
        %v2751 = vpack.c.bf16 %v2734, %v2733
        %v2752 = vpack.c.bf16 %v2736, %v2735
        %s2753 = scalar_lea.vmem %s1, 16
        %v2754 = vld [vmem:[%s2753] sm:$0x3]
        %v2756 = vsel %vm278, %v2737, 0
        %v2759 = vsel %vm278, %v2738, 0
        %v2762 = vsel %vm278, %v2739, 0
        %v2765 = vsel %vm278, %v2740, 0
        %v2768 = vsel %vm278, %v2741, 0
        %v2771 = vsel %vm278, %v2742, 0
        %v2774 = vsel %vm278, %v2743, 0
        %v2777 = vsel %vm278, %v2744, 0
        %v2780 = vsel %vm278, %v2745, 0
        %v2783 = vsel %vm278, %v2746, 0
        %v2786 = vsel %vm278, %v2747, 0
        %v2789 = vsel %vm278, %v2748, 0
        %v2792 = vsel %vm278, %v2749, 0
        %v2795 = vsel %vm278, %v2750, 0
        %v2798 = vsel %vm278, %v2751, 0
        %v2801 = vsel %vm278, %v2752, 0
        %v2804 = vsel %vm563, %v2754, 0
        %2806 = vmatprep.subr.bf16.mxu0 0
        %2807 = vmatpush1.bf16.msra.mxu0 %v2804
        %2808 = vmatprep.subr.bf16.mxu0 0
        %2809 = vmatpush1.bf16.msra.mxu0 0
        %2810 = vmatprep.subr.bf16.mxu0 0
        %2811 = vmatpush1.bf16.msra.mxu0 0
        %2812 = vmatprep.subr.bf16.mxu0 0
        %2813 = vmatpush1.bf16.msra.mxu0 0
        %2814 = vmatprep.subr.bf16.mxu0 0
        %2815 = vmatpush1.bf16.msra.mxu0 0
        %2816 = vmatprep.subr.bf16.mxu0 0
        %2817 = vmatpush1.bf16.msra.mxu0 0
        %2818 = vmatprep.subr.bf16.mxu0 0
        %2819 = vmatpush1.bf16.msra.mxu0 0
        %2820 = vmatprep.subr.bf16.mxu0 0
        %2821 = vmatpush1.bf16.msra.mxu0 0
        %2822 = vmatprep.subr.bf16.mxu0 0
        %2823 = vmatpush1.bf16.msra.mxu0 0
        %2824 = vmatprep.subr.bf16.mxu0 0
        %2825 = vmatpush1.bf16.msra.mxu0 0
        %2826 = vmatprep.subr.bf16.mxu0 0
        %2827 = vmatpush1.bf16.msra.mxu0 0
        %2828 = vmatprep.subr.bf16.mxu0 0
        %2829 = vmatpush1.bf16.msra.mxu0 0
        %2830 = vmatprep.subr.bf16.mxu0 0
        %2831 = vmatpush1.bf16.msra.mxu0 0
        %2832 = vmatprep.subr.bf16.mxu0 0
        %2833 = vmatpush1.bf16.msra.mxu0 0
        %2834 = vmatprep.subr.bf16.mxu0 0
        %2835 = vmatpush1.bf16.msra.mxu0 0
        %2836 = vmatprep.subr.bf16.mxu0 0
        %2837 = vmatpush1.bf16.msra.mxu0 0
        %2838 = vmatprep.mubr.bf16.mxu0 0
        %2839 = vmatmul.mubr.bf16.gmra.mrb[0].mxu0 %v2756
        %v2840 = vpop.f32.mrb[0].mxu0
        %v2841 = vadd.f32 0.0, %v2840
        %v2842 = vpop.f32.mrb[0].mxu0
        %v2843 = vpop.f32.mrb[0].mxu0
        %v2844 = vadd.f32 0.0, %v2843
        %v2845 = vpop.f32.mrb[0].mxu0
        %2846 = vmatprep.mubr.bf16.mxu0 0
        %2847 = vmatmul.mubr.bf16.gmra.mrb[0].mxu0 %v2759
        %v2848 = vpop.f32.mrb[0].mxu0
        %v2849 = vadd.f32 0.0, %v2848
        %v2850 = vpop.f32.mrb[0].mxu0
        %v2851 = vpop.f32.mrb[0].mxu0
        %v2852 = vadd.f32 0.0, %v2851
        %v2853 = vpop.f32.mrb[0].mxu0
        %2854 = vmatprep.mubr.bf16.mxu0 0
        %2855 = vmatmul.mubr.bf16.gmra.mrb[0].mxu0 %v2762
        %v2856 = vpop.f32.mrb[0].mxu0
        %v2857 = vadd.f32 0.0, %v2856
        %v2858 = vpop.f32.mrb[0].mxu0
        %v2859 = vpop.f32.mrb[0].mxu0
        %v2860 = vadd.f32 0.0, %v2859
        %v2861 = vpop.f32.mrb[0].mxu0
        %2862 = vmatprep.mubr.bf16.mxu0 0
        %2863 = vmatmul.mubr.bf16.gmra.mrb[0].mxu0 %v2765
        %v2864 = vpop.f32.mrb[0].mxu0
        %v2865 = vadd.f32 0.0, %v2864
        %v2866 = vpop.f32.mrb[0].mxu0
        %v2867 = vpop.f32.mrb[0].mxu0
        %v2868 = vadd.f32 0.0, %v2867
        %v2869 = vpop.f32.mrb[0].mxu0
        %2870 = vmatprep.mubr.bf16.mxu0 0
        %2871 = vmatmul.mubr.bf16.gmra.mrb[0].mxu0 %v2768
        %v2872 = vpop.f32.mrb[0].mxu0
        %v2873 = vadd.f32 0.0, %v2872
        %v2874 = vpop.f32.mrb[0].mxu0
        %v2875 = vpop.f32.mrb[0].mxu0
        %v2876 = vadd.f32 0.0, %v2875
        %v2877 = vpop.f32.mrb[0].mxu0
        %2878 = vmatprep.mubr.bf16.mxu0 0
        %2879 = vmatmul.mubr.bf16.gmra.mrb[0].mxu0 %v2771
        %v2880 = vpop.f32.mrb[0].mxu0
        %v2881 = vadd.f32 0.0, %v2880
        %v2882 = vpop.f32.mrb[0].mxu0
        %v2883 = vpop.f32.mrb[0].mxu0
        %v2884 = vadd.f32 0.0, %v2883
        %v2885 = vpop.f32.mrb[0].mxu0
        %2886 = vmatprep.mubr.bf16.mxu0 0
        %2887 = vmatmul.mubr.bf16.gmra.mrb[0].mxu0 %v2774
        %v2888 = vpop.f32.mrb[0].mxu0
        %v2889 = vadd.f32 0.0, %v2888
        %v2890 = vpop.f32.mrb[0].mxu0
        %v2891 = vpop.f32.mrb[0].mxu0
        %v2892 = vadd.f32 0.0, %v2891
        %v2893 = vpop.f32.mrb[0].mxu0
        %2894 = vmatprep.mubr.bf16.mxu0 0
        %2895 = vmatmul.mubr.bf16.gmra.mrb[0].mxu0 %v2777
        %v2896 = vpop.f32.mrb[0].mxu0
        %v2897 = vadd.f32 0.0, %v2896
        %v2898 = vpop.f32.mrb[0].mxu0
        %v2899 = vpop.f32.mrb[0].mxu0
        %v2900 = vadd.f32 0.0, %v2899
        %v2901 = vpop.f32.mrb[0].mxu0
        %2902 = vmatprep.mubr.bf16.mxu0 0
        %2903 = vmatmul.mubr.bf16.gmra.mrb[0].mxu0 %v2780
        %v2904 = vpop.f32.mrb[0].mxu0
        %v2905 = vadd.f32 0.0, %v2904
        %v2906 = vpop.f32.mrb[0].mxu0
        %v2907 = vpop.f32.mrb[0].mxu0
        %v2908 = vadd.f32 0.0, %v2907
        %v2909 = vpop.f32.mrb[0].mxu0
        %2910 = vmatprep.mubr.bf16.mxu0 0
        %2911 = vmatmul.mubr.bf16.gmra.mrb[0].mxu0 %v2783
        %v2912 = vpop.f32.mrb[0].mxu0
        %v2913 = vadd.f32 0.0, %v2912
        %v2914 = vpop.f32.mrb[0].mxu0
        %v2915 = vpop.f32.mrb[0].mxu0
        %v2916 = vadd.f32 0.0, %v2915
        %v2917 = vpop.f32.mrb[0].mxu0
        %2918 = vmatprep.mubr.bf16.mxu0 0
        %2919 = vmatmul.mubr.bf16.gmra.mrb[0].mxu0 %v2786
        %v2920 = vpop.f32.mrb[0].mxu0
        %v2921 = vadd.f32 0.0, %v2920
        %v2922 = vpop.f32.mrb[0].mxu0
        %v2923 = vpop.f32.mrb[0].mxu0
        %v2924 = vadd.f32 0.0, %v2923
        %v2925 = vpop.f32.mrb[0].mxu0
        %2926 = vmatprep.mubr.bf16.mxu0 0
        %2927 = vmatmul.mubr.bf16.gmra.mrb[0].mxu0 %v2789
        %v2928 = vpop.f32.mrb[0].mxu0
        %v2929 = vadd.f32 0.0, %v2928
        %v2930 = vpop.f32.mrb[0].mxu0
        %v2931 = vpop.f32.mrb[0].mxu0
        %v2932 = vadd.f32 0.0, %v2931
        %v2933 = vpop.f32.mrb[0].mxu0
        %2934 = vmatprep.mubr.bf16.mxu0 0
        %2935 = vmatmul.mubr.bf16.gmra.mrb[0].mxu0 %v2792
        %v2936 = vpop.f32.mrb[0].mxu0
        %v2937 = vadd.f32 0.0, %v2936
        %v2938 = vpop.f32.mrb[0].mxu0
        %v2939 = vpop.f32.mrb[0].mxu0
        %v2940 = vadd.f32 0.0, %v2939
        %v2941 = vpop.f32.mrb[0].mxu0
        %2942 = vmatprep.mubr.bf16.mxu0 0
        %2943 = vmatmul.mubr.bf16.gmra.mrb[0].mxu0 %v2795
        %v2944 = vpop.f32.mrb[0].mxu0
        %v2945 = vadd.f32 0.0, %v2944
        %v2946 = vpop.f32.mrb[0].mxu0
        %v2947 = vpop.f32.mrb[0].mxu0
        %v2948 = vadd.f32 0.0, %v2947
        %v2949 = vpop.f32.mrb[0].mxu0
        %2950 = vmatprep.mubr.bf16.mxu0 0
        %2951 = vmatmul.mubr.bf16.gmra.mrb[0].mxu0 %v2798
        %v2952 = vpop.f32.mrb[0].mxu0
        %v2953 = vadd.f32 0.0, %v2952
        %v2954 = vpop.f32.mrb[0].mxu0
        %v2955 = vpop.f32.mrb[0].mxu0
        %v2956 = vadd.f32 0.0, %v2955
        %v2957 = vpop.f32.mrb[0].mxu0
        %2958 = vmatprep.mubr.bf16.mxu0 0
        %2959 = vmatmul.mubr.bf16.gmra.mrb[0].mxu0 %v2801
        %v2960 = vpop.f32.mrb[0].mxu0
        %v2961 = vadd.f32 0.0, %v2960
        %v2962 = vpop.f32.mrb[0].mxu0
        %v2963 = vpop.f32.mrb[0].mxu0
        %v2964 = vadd.f32 0.0, %v2963
        %v2965 = vpop.f32.mrb[0].mxu0
        %2966 = vdwg.mxu0
        %v2967 = vadd.f32 %v2673, %v2841
        %v2968 = vadd.f32 %v2674, %v2844
        %v2969 = vadd.f32 %v2675, %v2849
        %v2970 = vadd.f32 %v2676, %v2852
        %v2971 = vadd.f32 %v2677, %v2857
        %v2972 = vadd.f32 %v2678, %v2860
        %v2973 = vadd.f32 %v2679, %v2865
        %v2974 = vadd.f32 %v2680, %v2868
        %v2975 = vadd.f32 %v2681, %v2873
        %v2976 = vadd.f32 %v2682, %v2876
        %v2977 = vadd.f32 %v2683, %v2881
        %v2978 = vadd.f32 %v2684, %v2884
        %v2979 = vadd.f32 %v2685, %v2889
        %v2980 = vadd.f32 %v2686, %v2892
        %v2981 = vadd.f32 %v2687, %v2897
        %v2982 = vadd.f32 %v2688, %v2900
        %v2983 = vadd.f32 %v2689, %v2905
        %v2984 = vadd.f32 %v2690, %v2908
        %v2985 = vadd.f32 %v2691, %v2913
        %v2986 = vadd.f32 %v2692, %v2916
        %v2987 = vadd.f32 %v2693, %v2921
        %v2988 = vadd.f32 %v2694, %v2924
        %v2989 = vadd.f32 %v2695, %v2929
        %v2990 = vadd.f32 %v2696, %v2932
        %v2991 = vadd.f32 %v2697, %v2937
        %v2992 = vadd.f32 %v2698, %v2940
        %v2993 = vadd.f32 %v2699, %v2945
        %v2994 = vadd.f32 %v2700, %v2948
        %v2995 = vadd.f32 %v2701, %v2953
        %v2996 = vadd.f32 %v2702, %v2956
        %v2997 = vadd.f32 %v2703, %v2961
        %v2998 = vadd.f32 %v2704, %v2964
        %v2999 = vld [vmem:[%s2] sm:$0x1]
        %v3001 = vlaneseq
        %v3002 = vshrl.u32 %v3001, 7
        %v3003 = vsub.s32 0, %v3002
        %v3004 = vrot.slane %v2999, %v3003
        %v3006 = vadd.f32 %v2967, %v3004
        %v3007 = vadd.f32 %v2968, %v3004
        %v3008 = vadd.f32 %v2969, %v3004
        %v3009 = vadd.f32 %v2970, %v3004
        %v3010 = vadd.f32 %v2971, %v3004
        %v3011 = vadd.f32 %v2972, %v3004
        %v3012 = vadd.f32 %v2973, %v3004
        %v3013 = vadd.f32 %v2974, %v3004
        %v3014 = vadd.f32 %v2975, %v3004
        %v3015 = vadd.f32 %v2976, %v3004
        %v3016 = vadd.f32 %v2977, %v3004
        %v3017 = vadd.f32 %v2978, %v3004
        %v3018 = vadd.f32 %v2979, %v3004
        %v3019 = vadd.f32 %v2980, %v3004
        %v3020 = vadd.f32 %v2981, %v3004
        %v3021 = vadd.f32 %v2982, %v3004
        %v3022 = vadd.f32 %v2983, %v3004
        %v3023 = vadd.f32 %v2984, %v3004
        %v3024 = vadd.f32 %v2985, %v3004
        %v3025 = vadd.f32 %v2986, %v3004
        %v3026 = vadd.f32 %v2987, %v3004
        %v3027 = vadd.f32 %v2988, %v3004
        %v3028 = vadd.f32 %v2989, %v3004
        %v3029 = vadd.f32 %v2990, %v3004
        %v3030 = vadd.f32 %v2991, %v3004
        %v3031 = vadd.f32 %v2992, %v3004
        %v3032 = vadd.f32 %v2993, %v3004
        %v3033 = vadd.f32 %v2994, %v3004
        %v3034 = vadd.f32 %v2995, %v3004
        %v3035 = vadd.f32 %v2996, %v3004
        %v3036 = vadd.f32 %v2997, %v3004
        %v3037 = vadd.f32 %v2998, %v3004
        %vm3038 = vcmp.ge.f32.partialorder %v3006, 0.0
        %vm3039 = vcmp.ge.f32.partialorder %v3007, 0.0
        %vm3040 = vcmp.ge.f32.partialorder %v3008, 0.0
        %vm3041 = vcmp.ge.f32.partialorder %v3009, 0.0
        %vm3042 = vcmp.ge.f32.partialorder %v3010, 0.0
        %vm3043 = vcmp.ge.f32.partialorder %v3011, 0.0
        %vm3044 = vcmp.ge.f32.partialorder %v3012, 0.0
        %vm3045 = vcmp.ge.f32.partialorder %v3013, 0.0
        %vm3046 = vcmp.ge.f32.partialorder %v3014, 0.0
        %vm3047 = vcmp.ge.f32.partialorder %v3015, 0.0
        %vm3048 = vcmp.ge.f32.partialorder %v3016, 0.0
        %vm3049 = vcmp.ge.f32.partialorder %v3017, 0.0
        %vm3050 = vcmp.ge.f32.partialorder %v3018, 0.0
        %vm3051 = vcmp.ge.f32.partialorder %v3019, 0.0
        %vm3052 = vcmp.ge.f32.partialorder %v3020, 0.0
        %vm3053 = vcmp.ge.f32.partialorder %v3021, 0.0
        %vm3054 = vcmp.ge.f32.partialorder %v3022, 0.0
        %vm3055 = vcmp.ge.f32.partialorder %v3023, 0.0
        %vm3056 = vcmp.ge.f32.partialorder %v3024, 0.0
        %vm3057 = vcmp.ge.f32.partialorder %v3025, 0.0
        %vm3058 = vcmp.ge.f32.partialorder %v3026, 0.0
        %vm3059 = vcmp.ge.f32.partialorder %v3027, 0.0
        %vm3060 = vcmp.ge.f32.partialorder %v3028, 0.0
        %vm3061 = vcmp.ge.f32.partialorder %v3029, 0.0
        %vm3062 = vcmp.ge.f32.partialorder %v3030, 0.0
        %vm3063 = vcmp.ge.f32.partialorder %v3031, 0.0
        %vm3064 = vcmp.ge.f32.partialorder %v3032, 0.0
        %vm3065 = vcmp.ge.f32.partialorder %v3033, 0.0
        %vm3066 = vcmp.ge.f32.partialorder %v3034, 0.0
        %vm3067 = vcmp.ge.f32.partialorder %v3035, 0.0
        %vm3068 = vcmp.ge.f32.partialorder %v3036, 0.0
        %vm3069 = vcmp.ge.f32.partialorder %v3037, 0.0
        %v3070 = vmul.f32 %v3006, 0.5
        %v3071 = vmul.f32 %v3007, 0.5
        %v3072 = vmul.f32 %v3008, 0.5
        %v3073 = vmul.f32 %v3009, 0.5
        %v3074 = vmul.f32 %v3010, 0.5
        %v3075 = vmul.f32 %v3011, 0.5
        %v3076 = vmul.f32 %v3012, 0.5
        %v3077 = vmul.f32 %v3013, 0.5
        %v3078 = vmul.f32 %v3014, 0.5
        %v3079 = vmul.f32 %v3015, 0.5
        %v3080 = vmul.f32 %v3016, 0.5
        %v3081 = vmul.f32 %v3017, 0.5
        %v3082 = vmul.f32 %v3018, 0.5
        %v3083 = vmul.f32 %v3019, 0.5
        %v3084 = vmul.f32 %v3020, 0.5
        %v3085 = vmul.f32 %v3021, 0.5
        %v3086 = vmul.f32 %v3022, 0.5
        %v3087 = vmul.f32 %v3023, 0.5
        %v3088 = vmul.f32 %v3024, 0.5
        %v3089 = vmul.f32 %v3025, 0.5
        %v3090 = vmul.f32 %v3026, 0.5
        %v3091 = vmul.f32 %v3027, 0.5
        %v3092 = vmul.f32 %v3028, 0.5
        %v3093 = vmul.f32 %v3029, 0.5
        %v3094 = vmul.f32 %v3030, 0.5
        %v3095 = vmul.f32 %v3031, 0.5
        %v3096 = vmul.f32 %v3032, 0.5
        %v3097 = vmul.f32 %v3033, 0.5
        %v3098 = vmul.f32 %v3034, 0.5
        %v3099 = vmul.f32 %v3035, 0.5
        %v3100 = vmul.f32 %v3036, 0.5
        %v3101 = vmul.f32 %v3037, 0.5
        %v3102 = vsel %vm3038, %v3006, %v3070
        %v3103 = vsel %vm3039, %v3007, %v3071
        %v3104 = vsel %vm3040, %v3008, %v3072
        %v3105 = vsel %vm3041, %v3009, %v3073
        %v3106 = vsel %vm3042, %v3010, %v3074
        %v3107 = vsel %vm3043, %v3011, %v3075
        %v3108 = vsel %vm3044, %v3012, %v3076
        %v3109 = vsel %vm3045, %v3013, %v3077
        %v3110 = vsel %vm3046, %v3014, %v3078
        %v3111 = vsel %vm3047, %v3015, %v3079
        %v3112 = vsel %vm3048, %v3016, %v3080
        %v3113 = vsel %vm3049, %v3017, %v3081
        %v3114 = vsel %vm3050, %v3018, %v3082
        %v3115 = vsel %vm3051, %v3019, %v3083
        %v3116 = vsel %vm3052, %v3020, %v3084
        %v3117 = vsel %vm3053, %v3021, %v3085
        %v3118 = vsel %vm3054, %v3022, %v3086
        %v3119 = vsel %vm3055, %v3023, %v3087
        %v3120 = vsel %vm3056, %v3024, %v3088
        %v3121 = vsel %vm3057, %v3025, %v3089
        %v3122 = vsel %vm3058, %v3026, %v3090
        %v3123 = vsel %vm3059, %v3027, %v3091
        %v3124 = vsel %vm3060, %v3028, %v3092
        %v3125 = vsel %vm3061, %v3029, %v3093
        %v3126 = vsel %vm3062, %v3030, %v3094
        %v3127 = vsel %vm3063, %v3031, %v3095
        %v3128 = vsel %vm3064, %v3032, %v3096
        %v3129 = vsel %vm3065, %v3033, %v3097
        %v3130 = vsel %vm3066, %v3034, %v3098
        %v3131 = vsel %vm3067, %v3035, %v3099
        %v3132 = vsel %vm3068, %v3036, %v3100
        %v3133 = vsel %vm3069, %v3037, %v3101
        %vm3134 = vcmask 523264
        %3135 = vst.msk [vmem:[#allocation3] sm:$0xff] %vm3134, 0.0
        %3136 = vst.msk [vmem:[#allocation3 + $0x8] sm:$0xff] %vm3134, 0.0
        %3137 = vst.msk [vmem:[#allocation3 + $0x10] sm:$0xff] %vm3134, 0.0
        %3138 = vst.msk [vmem:[#allocation3 + $0x18] sm:$0xff] %vm3134, 0.0
        %3139 = vst.msk [vmem:[#allocation3 + $0x20] sm:$0xff] %vm3134, 0.0
        %3140 = vst.msk [vmem:[#allocation3 + $0x28] sm:$0xff] %vm3134, 0.0
        %3141 = vst.msk [vmem:[#allocation3 + $0x30] sm:$0xff] %vm3134, 0.0
        %3142 = vst.msk [vmem:[#allocation3 + $0x38] sm:$0xff] %vm3134, 0.0
        %3143 = vst.msk [vmem:[#allocation3 + $0x40] sm:$0xff] %vm3134, 0.0
        %3144 = vst.msk [vmem:[#allocation3 + $0x48] sm:$0xff] %vm3134, 0.0
        %3145 = vst.msk [vmem:[#allocation3 + $0x50] sm:$0xff] %vm3134, 0.0
        %3146 = vst.msk [vmem:[#allocation3 + $0x58] sm:$0xff] %vm3134, 0.0
        %3147 = vst.msk [vmem:[#allocation3 + $0x60] sm:$0xff] %vm3134, 0.0
        %3148 = vst.msk [vmem:[#allocation3 + $0x68] sm:$0xff] %vm3134, 0.0
        %3149 = vst.msk [vmem:[#allocation3 + $0x70] sm:$0xff] %vm3134, 0.0
        %3150 = vst.msk [vmem:[#allocation3 + $0x78] sm:$0xff] %vm3134, 0.0
        %3151 = vst.msk [vmem:[#allocation3 + $0x80] sm:$0xff] %vm3134, 0.0
        %3152 = vst.msk [vmem:[#allocation3 + $0x88] sm:$0xff] %vm3134, 0.0
        %3153 = vst.msk [vmem:[#allocation3 + $0x90] sm:$0xff] %vm3134, 0.0
        %3154 = vst.msk [vmem:[#allocation3 + $0x98] sm:$0xff] %vm3134, 0.0
        %3155 = vst.msk [vmem:[#allocation3 + $0xa0] sm:$0xff] %vm3134, 0.0
        %3156 = vst.msk [vmem:[#allocation3 + $0xa8] sm:$0xff] %vm3134, 0.0
        %3157 = vst.msk [vmem:[#allocation3 + $0xb0] sm:$0xff] %vm3134, 0.0
        %3158 = vst.msk [vmem:[#allocation3 + $0xb8] sm:$0xff] %vm3134, 0.0
        %3159 = vst.msk [vmem:[#allocation3 + $0xc0] sm:$0xff] %vm3134, 0.0
        %3160 = vst.msk [vmem:[#allocation3 + $0xc8] sm:$0xff] %vm3134, 0.0
        %3161 = vst.msk [vmem:[#allocation3 + $0xd0] sm:$0xff] %vm3134, 0.0
        %3162 = vst.msk [vmem:[#allocation3 + $0xd8] sm:$0xff] %vm3134, 0.0
        %3163 = vst.msk [vmem:[#allocation3 + $0xe0] sm:$0xff] %vm3134, 0.0
        %3164 = vst.msk [vmem:[#allocation3 + $0xe8] sm:$0xff] %vm3134, 0.0
        %3165 = vst.msk [vmem:[#allocation3 + $0xf0] sm:$0xff] %vm3134, 0.0
        %3166 = vst.msk [vmem:[#allocation3 + $0xf8] sm:$0xff] %vm3134, 0.0
        %3167 = vst.msk [vmem:[#allocation3 + $0x100] sm:$0xff] %vm3134, 0.0
        %3168 = vst.msk [vmem:[#allocation3 + $0x108] sm:$0xff] %vm3134, 0.0
        %3169 = vst.msk [vmem:[#allocation3 + $0x110] sm:$0xff] %vm3134, 0.0
        %3170 = vst.msk [vmem:[#allocation3 + $0x118] sm:$0xff] %vm3134, 0.0
        %3171 = vst.msk [vmem:[#allocation3 + $0x120] sm:$0xff] %vm3134, 0.0
        %3172 = vst.msk [vmem:[#allocation3 + $0x128] sm:$0xff] %vm3134, 0.0
        %3173 = vst.msk [vmem:[#allocation3 + $0x130] sm:$0xff] %vm3134, 0.0
        %3174 = vst.msk [vmem:[#allocation3 + $0x138] sm:$0xff] %vm3134, 0.0
        %3175 = vst.msk [vmem:[#allocation3 + $0x140] sm:$0xff] %vm3134, 0.0
        %3176 = vst.msk [vmem:[#allocation3 + $0x148] sm:$0xff] %vm3134, 0.0
        %3177 = vst.msk [vmem:[#allocation3 + $0x150] sm:$0xff] %vm3134, 0.0
        %3178 = vst.msk [vmem:[#allocation3 + $0x158] sm:$0xff] %vm3134, 0.0
        %3179 = vst.msk [vmem:[#allocation3 + $0x160] sm:$0xff] %vm3134, 0.0
        %3180 = vst.msk [vmem:[#allocation3 + $0x168] sm:$0xff] %vm3134, 0.0
        %3181 = vst.msk [vmem:[#allocation3 + $0x170] sm:$0xff] %vm3134, 0.0
        %3182 = vst.msk [vmem:[#allocation3 + $0x178] sm:$0xff] %vm3134, 0.0
        %3183 = vst.msk [vmem:[#allocation3 + $0x180] sm:$0xff] %vm3134, 0.0
        %3184 = vst.msk [vmem:[#allocation3 + $0x188] sm:$0xff] %vm3134, 0.0
        %3185 = vst.msk [vmem:[#allocation3 + $0x190] sm:$0xff] %vm3134, 0.0
        %3186 = vst.msk [vmem:[#allocation3 + $0x198] sm:$0xff] %vm3134, 0.0
        %3187 = vst.msk [vmem:[#allocation3 + $0x1a0] sm:$0xff] %vm3134, 0.0
        %3188 = vst.msk [vmem:[#allocation3 + $0x1a8] sm:$0xff] %vm3134, 0.0
        %3189 = vst.msk [vmem:[#allocation3 + $0x1b0] sm:$0xff] %vm3134, 0.0
        %3190 = vst.msk [vmem:[#allocation3 + $0x1b8] sm:$0xff] %vm3134, 0.0
        %3191 = vst.msk [vmem:[#allocation3 + $0x1c0] sm:$0xff] %vm3134, 0.0
        %3192 = vst.msk [vmem:[#allocation3 + $0x1c8] sm:$0xff] %vm3134, 0.0
        %3193 = vst.msk [vmem:[#allocation3 + $0x1d0] sm:$0xff] %vm3134, 0.0
        %3194 = vst.msk [vmem:[#allocation3 + $0x1d8] sm:$0xff] %vm3134, 0.0
        %3195 = vst.msk [vmem:[#allocation3 + $0x1e0] sm:$0xff] %vm3134, 0.0
        %3196 = vst.msk [vmem:[#allocation3 + $0x1e8] sm:$0xff] %vm3134, 0.0
        %3197 = vst.msk [vmem:[#allocation3 + $0x1f0] sm:$0xff] %vm3134, 0.0
        %3198 = vst.msk [vmem:[#allocation3 + $0x1f8] sm:$0xff] %vm3134, 0.0
        %3199 = vst.msk [vmem:[#allocation3 + $0x200] sm:$0xff] %vm3134, 0.0
        %3200 = vst.msk [vmem:[#allocation3 + $0x208] sm:$0xff] %vm3134, 0.0
        %3201 = vst.msk [vmem:[#allocation3 + $0x210] sm:$0xff] %vm3134, 0.0
        %3202 = vst.msk [vmem:[#allocation3 + $0x218] sm:$0xff] %vm3134, 0.0
        %3203 = vst.msk [vmem:[#allocation3 + $0x220] sm:$0xff] %vm3134, 0.0
        %3204 = vst.msk [vmem:[#allocation3 + $0x228] sm:$0xff] %vm3134, 0.0
        %3205 = vst.msk [vmem:[#allocation3 + $0x230] sm:$0xff] %vm3134, 0.0
        %3206 = vst.msk [vmem:[#allocation3 + $0x238] sm:$0xff] %vm3134, 0.0
        %s3207 = scalar_lea.vmem [#allocation3], 32
        %3208 = vst.msk [vmem:[%s3207 + $0x8] sm:$0xff] %vm3134, %v3102
        %3209 = vst.msk [vmem:[%s3207 + $0x10] sm:$0xff] %vm3134, %v3103
        %3210 = vst.msk [vmem:[%s3207 + $0x28] sm:$0xff] %vm3134, %v3104
        %3211 = vst.msk [vmem:[%s3207 + $0x30] sm:$0xff] %vm3134, %v3105
        %3212 = vst.msk [vmem:[%s3207 + $0x48] sm:$0xff] %vm3134, %v3106
        %3213 = vst.msk [vmem:[%s3207 + $0x50] sm:$0xff] %vm3134, %v3107
        %3214 = vst.msk [vmem:[%s3207 + $0x68] sm:$0xff] %vm3134, %v3108
        %3215 = vst.msk [vmem:[%s3207 + $0x70] sm:$0xff] %vm3134, %v3109
        %3216 = vst.msk [vmem:[%s3207 + $0x88] sm:$0xff] %vm3134, %v3110
        %3217 = vst.msk [vmem:[%s3207 + $0x90] sm:$0xff] %vm3134, %v3111
        %3218 = vst.msk [vmem:[%s3207 + $0xa8] sm:$0xff] %vm3134, %v3112
        %3219 = vst.msk [vmem:[%s3207 + $0xb0] sm:$0xff] %vm3134, %v3113
        %3220 = vst.msk [vmem:[%s3207 + $0xc8] sm:$0xff] %vm3134, %v3114
        %3221 = vst.msk [vmem:[%s3207 + $0xd0] sm:$0xff] %vm3134, %v3115
        %3222 = vst.msk [vmem:[%s3207 + $0xe8] sm:$0xff] %vm3134, %v3116
        %3223 = vst.msk [vmem:[%s3207 + $0xf0] sm:$0xff] %vm3134, %v3117
        %3224 = vst.msk [vmem:[%s3207 + $0x108] sm:$0xff] %vm3134, %v3118
        %3225 = vst.msk [vmem:[%s3207 + $0x110] sm:$0xff] %vm3134, %v3119
        %3226 = vst.msk [vmem:[%s3207 + $0x128] sm:$0xff] %vm3134, %v3120
        %3227 = vst.msk [vmem:[%s3207 + $0x130] sm:$0xff] %vm3134, %v3121
        %3228 = vst.msk [vmem:[%s3207 + $0x148] sm:$0xff] %vm3134, %v3122
        %3229 = vst.msk [vmem:[%s3207 + $0x150] sm:$0xff] %vm3134, %v3123
        %3230 = vst.msk [vmem:[%s3207 + $0x168] sm:$0xff] %vm3134, %v3124
        %3231 = vst.msk [vmem:[%s3207 + $0x170] sm:$0xff] %vm3134, %v3125
        %3232 = vst.msk [vmem:[%s3207 + $0x188] sm:$0xff] %vm3134, %v3126
        %3233 = vst.msk [vmem:[%s3207 + $0x190] sm:$0xff] %vm3134, %v3127
        %3234 = vst.msk [vmem:[%s3207 + $0x1a8] sm:$0xff] %vm3134, %v3128
        %3235 = vst.msk [vmem:[%s3207 + $0x1b0] sm:$0xff] %vm3134, %v3129
        %3236 = vst.msk [vmem:[%s3207 + $0x1c8] sm:$0xff] %vm3134, %v3130
        %3237 = vst.msk [vmem:[%s3207 + $0x1d0] sm:$0xff] %vm3134, %v3131
        %3238 = vst.msk [vmem:[%s3207 + $0x1e8] sm:$0xff] %vm3134, %v3132
        %3239 = vst.msk [vmem:[%s3207 + $0x1f0] sm:$0xff] %vm3134, %v3133
        %v3240 = vld [vmem:[#allocation3 + $0x7] sm:$0xff]
        %v3241 = vld [vmem:[#allocation3 + $0xf] sm:$0xff]
        %v3242 = vld [vmem:[#allocation3 + $0x27] sm:$0xff]
        %v3243 = vld [vmem:[#allocation3 + $0x2f] sm:$0xff]
        %v3244 = vld [vmem:[#allocation3 + $0x47] sm:$0xff]
        %v3245 = vld [vmem:[#allocation3 + $0x4f] sm:$0xff]
        %v3246 = vld [vmem:[#allocation3 + $0x67] sm:$0xff]
        %v3247 = vld [vmem:[#allocation3 + $0x6f] sm:$0xff]
        %v3248 = vld [vmem:[#allocation3 + $0x87] sm:$0xff]
        %v3249 = vld [vmem:[#allocation3 + $0x8f] sm:$0xff]
        %v3250 = vld [vmem:[#allocation3 + $0xa7] sm:$0xff]
        %v3251 = vld [vmem:[#allocation3 + $0xaf] sm:$0xff]
        %v3252 = vld [vmem:[#allocation3 + $0xc7] sm:$0xff]
        %v3253 = vld [vmem:[#allocation3 + $0xcf] sm:$0xff]
        %v3254 = vld [vmem:[#allocation3 + $0xe7] sm:$0xff]
        %v3255 = vld [vmem:[#allocation3 + $0xef] sm:$0xff]
        %v3256 = vld [vmem:[#allocation3 + $0x107] sm:$0xff]
        %v3257 = vld [vmem:[#allocation3 + $0x10f] sm:$0xff]
        %v3258 = vld [vmem:[#allocation3 + $0x127] sm:$0xff]
        %v3259 = vld [vmem:[#allocation3 + $0x12f] sm:$0xff]
        %v3260 = vld [vmem:[#allocation3 + $0x147] sm:$0xff]
        %v3261 = vld [vmem:[#allocation3 + $0x14f] sm:$0xff]
        %v3262 = vld [vmem:[#allocation3 + $0x167] sm:$0xff]
        %v3263 = vld [vmem:[#allocation3 + $0x16f] sm:$0xff]
        %v3264 = vld [vmem:[#allocation3 + $0x187] sm:$0xff]
        %v3265 = vld [vmem:[#allocation3 + $0x18f] sm:$0xff]
        %v3266 = vld [vmem:[#allocation3 + $0x1a7] sm:$0xff]
        %v3267 = vld [vmem:[#allocation3 + $0x1af] sm:$0xff]
        %v3268 = vld [vmem:[#allocation3 + $0x1c7] sm:$0xff]
        %v3269 = vld [vmem:[#allocation3 + $0x1cf] sm:$0xff]
        %v3270 = vld [vmem:[#allocation3 + $0x1e7] sm:$0xff]
        %v3271 = vld [vmem:[#allocation3 + $0x1ef] sm:$0xff]
        %v3272 = vpack.c.bf16 %v3241, %v3240
        %v3273 = vpack.c.bf16 %v3243, %v3242
        %v3274 = vpack.c.bf16 %v3245, %v3244
        %v3275 = vpack.c.bf16 %v3247, %v3246
        %v3276 = vpack.c.bf16 %v3249, %v3248
        %v3277 = vpack.c.bf16 %v3251, %v3250
        %v3278 = vpack.c.bf16 %v3253, %v3252
        %v3279 = vpack.c.bf16 %v3255, %v3254
        %v3280 = vpack.c.bf16 %v3257, %v3256
        %v3281 = vpack.c.bf16 %v3259, %v3258
        %v3282 = vpack.c.bf16 %v3261, %v3260
        %v3283 = vpack.c.bf16 %v3263, %v3262
        %v3284 = vpack.c.bf16 %v3265, %v3264
        %v3285 = vpack.c.bf16 %v3267, %v3266
        %v3286 = vpack.c.bf16 %v3269, %v3268
        %v3287 = vpack.c.bf16 %v3271, %v3270
        %v3288 = vld [vmem:[%s3] sm:$0xf]
        %v3289 = vld [vmem:[%s3 + $0x4] sm:$0xf]
        %v3290 = vld [vmem:[%s3 + $0x8] sm:$0xf]
        %v3291 = vld [vmem:[%s3 + $0xc] sm:$0xf]
        %v3292 = vld [vmem:[%s3 + $0x10] sm:$0xf]
        %v3293 = vld [vmem:[%s3 + $0x14] sm:$0xf]
        %v3294 = vld [vmem:[%s3 + $0x18] sm:$0xf]
        %v3295 = vld [vmem:[%s3 + $0x1c] sm:$0xf]
        %v3296 = vld [vmem:[#allocation3 + $0x8] sm:$0xff]
        %v3297 = vld [vmem:[#allocation3 + $0x10] sm:$0xff]
        %v3298 = vld [vmem:[#allocation3 + $0x28] sm:$0xff]
        %v3299 = vld [vmem:[#allocation3 + $0x30] sm:$0xff]
        %v3300 = vld [vmem:[#allocation3 + $0x48] sm:$0xff]
        %v3301 = vld [vmem:[#allocation3 + $0x50] sm:$0xff]
        %v3302 = vld [vmem:[#allocation3 + $0x68] sm:$0xff]
        %v3303 = vld [vmem:[#allocation3 + $0x70] sm:$0xff]
        %v3304 = vld [vmem:[#allocation3 + $0x88] sm:$0xff]
        %v3305 = vld [vmem:[#allocation3 + $0x90] sm:$0xff]
        %v3306 = vld [vmem:[#allocation3 + $0xa8] sm:$0xff]
        %v3307 = vld [vmem:[#allocation3 + $0xb0] sm:$0xff]
        %v3308 = vld [vmem:[#allocation3 + $0xc8] sm:$0xff]
        %v3309 = vld [vmem:[#allocation3 + $0xd0] sm:$0xff]
        %v3310 = vld [vmem:[#allocation3 + $0xe8] sm:$0xff]
        %v3311 = vld [vmem:[#allocation3 + $0xf0] sm:$0xff]
        %v3312 = vld [vmem:[#allocation3 + $0x108] sm:$0xff]
        %v3313 = vld [vmem:[#allocation3 + $0x110] sm:$0xff]
        %v3314 = vld [vmem:[#allocation3 + $0x128] sm:$0xff]
        %v3315 = vld [vmem:[#allocation3 + $0x130] sm:$0xff]
        %v3316 = vld [vmem:[#allocation3 + $0x148] sm:$0xff]
        %v3317 = vld [vmem:[#allocation3 + $0x150] sm:$0xff]
        %v3318 = vld [vmem:[#allocation3 + $0x168] sm:$0xff]
        %v3319 = vld [vmem:[#allocation3 + $0x170] sm:$0xff]
        %v3320 = vld [vmem:[#allocation3 + $0x188] sm:$0xff]
        %v3321 = vld [vmem:[#allocation3 + $0x190] sm:$0xff]
        %v3322 = vld [vmem:[#allocation3 + $0x1a8] sm:$0xff]
        %v3323 = vld [vmem:[#allocation3 + $0x1b0] sm:$0xff]
        %v3324 = vld [vmem:[#allocation3 + $0x1c8] sm:$0xff]
        %v3325 = vld [vmem:[#allocation3 + $0x1d0] sm:$0xff]
        %v3326 = vld [vmem:[#allocation3 + $0x1e8] sm:$0xff]
        %v3327 = vld [vmem:[#allocation3 + $0x1f0] sm:$0xff]
        %v3328 = vpack.c.bf16 %v3297, %v3296
        %v3329 = vpack.c.bf16 %v3299, %v3298
        %v3330 = vpack.c.bf16 %v3301, %v3300
        %v3331 = vpack.c.bf16 %v3303, %v3302
        %v3332 = vpack.c.bf16 %v3305, %v3304
        %v3333 = vpack.c.bf16 %v3307, %v3306
        %v3334 = vpack.c.bf16 %v3309, %v3308
        %v3335 = vpack.c.bf16 %v3311, %v3310
        %v3336 = vpack.c.bf16 %v3313, %v3312
        %v3337 = vpack.c.bf16 %v3315, %v3314
        %v3338 = vpack.c.bf16 %v3317, %v3316
        %v3339 = vpack.c.bf16 %v3319, %v3318
        %v3340 = vpack.c.bf16 %v3321, %v3320
        %v3341 = vpack.c.bf16 %v3323, %v3322
        %v3342 = vpack.c.bf16 %v3325, %v3324
        %v3343 = vpack.c.bf16 %v3327, %v3326
        %s3344 = scalar_lea.vmem %s3, 32
        %v3345 = vld [vmem:[%s3344] sm:$0xf]
        %v3346 = vld [vmem:[%s3344 + $0x4] sm:$0xf]
        %v3347 = vld [vmem:[%s3344 + $0x8] sm:$0xf]
        %v3348 = vld [vmem:[%s3344 + $0xc] sm:$0xf]
        %v3349 = vld [vmem:[%s3344 + $0x10] sm:$0xf]
        %v3350 = vld [vmem:[%s3344 + $0x14] sm:$0xf]
        %v3351 = vld [vmem:[%s3344 + $0x18] sm:$0xf]
        %v3352 = vld [vmem:[%s3344 + $0x1c] sm:$0xf]
        %v3361 = vunpack.c.l.b16 %v3345
        %v3362 = vunpack.c.l.b16 %v3346
        %v3363 = vunpack.c.l.b16 %v3347
        %v3364 = vunpack.c.l.b16 %v3348
        %v3365 = vunpack.c.l.b16 %v3349
        %v3366 = vunpack.c.l.b16 %v3350
        %v3367 = vunpack.c.l.b16 %v3351
        %v3368 = vunpack.c.l.b16 %v3352
        %v3369 = vpack.c.b16 %v3362, %v3361
        %v3370 = vpack.c.b16 %v3364, %v3363
        %v3371 = vpack.c.b16 %v3366, %v3365
        %v3372 = vpack.c.b16 %v3368, %v3367
        %v3378 = vsel %vm3134, %v3328, 0
        %v3381 = vsel %vm3134, %v3329, 0
        %v3384 = vsel %vm3134, %v3330, 0
        %v3387 = vsel %vm3134, %v3331, 0
        %v3390 = vsel %vm3134, %v3332, 0
        %v3393 = vsel %vm3134, %v3333, 0
        %v3396 = vsel %vm3134, %v3334, 0
        %v3399 = vsel %vm3134, %v3335, 0
        %v3402 = vsel %vm3134, %v3336, 0
        %v3405 = vsel %vm3134, %v3337, 0
        %v3408 = vsel %vm3134, %v3338, 0
        %v3411 = vsel %vm3134, %v3339, 0
        %v3414 = vsel %vm3134, %v3340, 0
        %v3417 = vsel %vm3134, %v3341, 0
        %v3420 = vsel %vm3134, %v3342, 0
        %v3423 = vsel %vm3134, %v3343, 0
        %3425 = vmatprep.subr.bf16.mxu0 0
        %3426 = vmatpush1.bf16.msra.mxu0 %v3369
        %3427 = vmatprep.subr.bf16.mxu0 0
        %3428 = vmatpush1.bf16.msra.mxu0 %v3370
        %3429 = vmatprep.subr.bf16.mxu0 0
        %3430 = vmatpush1.bf16.msra.mxu0 %v3371
        %3431 = vmatprep.subr.bf16.mxu0 0
        %3432 = vmatpush1.bf16.msra.mxu0 %v3372
        %3433 = vmatprep.subr.bf16.mxu0 0
        %3434 = vmatpush1.bf16.msra.mxu0 0
        %3435 = vmatprep.subr.bf16.mxu0 0
        %3436 = vmatpush1.bf16.msra.mxu0 0
        %3437 = vmatprep.subr.bf16.mxu0 0
        %3438 = vmatpush1.bf16.msra.mxu0 0
        %3439 = vmatprep.subr.bf16.mxu0 0
        %3440 = vmatpush1.bf16.msra.mxu0 0
        %3441 = vmatprep.subr.bf16.mxu0 0
        %3442 = vmatpush1.bf16.msra.mxu0 0
        %3443 = vmatprep.subr.bf16.mxu0 0
        %3444 = vmatpush1.bf16.msra.mxu0 0
        %3445 = vmatprep.subr.bf16.mxu0 0
        %3446 = vmatpush1.bf16.msra.mxu0 0
        %3447 = vmatprep.subr.bf16.mxu0 0
        %3448 = vmatpush1.bf16.msra.mxu0 0
        %3449 = vmatprep.subr.bf16.mxu0 0
        %3450 = vmatpush1.bf16.msra.mxu0 0
        %3451 = vmatprep.subr.bf16.mxu0 0
        %3452 = vmatpush1.bf16.msra.mxu0 0
        %3453 = vmatprep.subr.bf16.mxu0 0
        %3454 = vmatpush1.bf16.msra.mxu0 0
        %3455 = vmatprep.subr.bf16.mxu0 0
        %3456 = vmatpush1.bf16.msra.mxu0 0
        %3457 = vmatprep.mubr.bf16.mxu0 0
        %3458 = vmatmul.mubr.bf16.gmra.mrb[0].mxu0 %v3378
        %v3459 = vpop.f32.mrb[0].mxu0
        %v3460 = vadd.f32 0.0, %v3459
        %v3461 = vpop.f32.mrb[0].mxu0
        %v3462 = vpop.f32.mrb[0].mxu0
        %v3463 = vadd.f32 0.0, %v3462
        %v3464 = vpop.f32.mrb[0].mxu0
        %3465 = vmatprep.mubr.bf16.mxu0 0
        %3466 = vmatmul.mubr.bf16.gmra.mrb[0].mxu0 %v3381
        %v3467 = vpop.f32.mrb[0].mxu0
        %v3468 = vadd.f32 0.0, %v3467
        %v3469 = vpop.f32.mrb[0].mxu0
        %v3470 = vpop.f32.mrb[0].mxu0
        %v3471 = vadd.f32 0.0, %v3470
        %v3472 = vpop.f32.mrb[0].mxu0
        %3473 = vmatprep.mubr.bf16.mxu0 0
        %3474 = vmatmul.mubr.bf16.gmra.mrb[0].mxu0 %v3384
        %v3475 = vpop.f32.mrb[0].mxu0
        %v3476 = vadd.f32 0.0, %v3475
        %v3477 = vpop.f32.mrb[0].mxu0
        %v3478 = vpop.f32.mrb[0].mxu0
        %v3479 = vadd.f32 0.0, %v3478
        %v3480 = vpop.f32.mrb[0].mxu0
        %3481 = vmatprep.mubr.bf16.mxu0 0
        %3482 = vmatmul.mubr.bf16.gmra.mrb[0].mxu0 %v3387
        %v3483 = vpop.f32.mrb[0].mxu0
        %v3484 = vadd.f32 0.0, %v3483
        %v3485 = vpop.f32.mrb[0].mxu0
        %v3486 = vpop.f32.mrb[0].mxu0
        %v3487 = vadd.f32 0.0, %v3486
        %v3488 = vpop.f32.mrb[0].mxu0
        %3489 = vmatprep.mubr.bf16.mxu0 0
        %3490 = vmatmul.mubr.bf16.gmra.mrb[0].mxu0 %v3390
        %v3491 = vpop.f32.mrb[0].mxu0
        %v3492 = vadd.f32 0.0, %v3491
        %v3493 = vpop.f32.mrb[0].mxu0
        %v3494 = vpop.f32.mrb[0].mxu0
        %v3495 = vadd.f32 0.0, %v3494
        %v3496 = vpop.f32.mrb[0].mxu0
        %3497 = vmatprep.mubr.bf16.mxu0 0
        %3498 = vmatmul.mubr.bf16.gmra.mrb[0].mxu0 %v3393
        %v3499 = vpop.f32.mrb[0].mxu0
        %v3500 = vadd.f32 0.0, %v3499
        %v3501 = vpop.f32.mrb[0].mxu0
        %v3502 = vpop.f32.mrb[0].mxu0
        %v3503 = vadd.f32 0.0, %v3502
        %v3504 = vpop.f32.mrb[0].mxu0
        %3505 = vmatprep.mubr.bf16.mxu0 0
        %3506 = vmatmul.mubr.bf16.gmra.mrb[0].mxu0 %v3396
        %v3507 = vpop.f32.mrb[0].mxu0
        %v3508 = vadd.f32 0.0, %v3507
        %v3509 = vpop.f32.mrb[0].mxu0
        %v3510 = vpop.f32.mrb[0].mxu0
        %v3511 = vadd.f32 0.0, %v3510
        %v3512 = vpop.f32.mrb[0].mxu0
        %3513 = vmatprep.mubr.bf16.mxu0 0
        %3514 = vmatmul.mubr.bf16.gmra.mrb[0].mxu0 %v3399
        %v3515 = vpop.f32.mrb[0].mxu0
        %v3516 = vadd.f32 0.0, %v3515
        %v3517 = vpop.f32.mrb[0].mxu0
        %v3518 = vpop.f32.mrb[0].mxu0
        %v3519 = vadd.f32 0.0, %v3518
        %v3520 = vpop.f32.mrb[0].mxu0
        %3521 = vmatprep.mubr.bf16.mxu0 0
        %3522 = vmatmul.mubr.bf16.gmra.mrb[0].mxu0 %v3402
        %v3523 = vpop.f32.mrb[0].mxu0
        %v3524 = vadd.f32 0.0, %v3523
        %v3525 = vpop.f32.mrb[0].mxu0
        %v3526 = vpop.f32.mrb[0].mxu0
        %v3527 = vadd.f32 0.0, %v3526
        %v3528 = vpop.f32.mrb[0].mxu0
        %3529 = vmatprep.mubr.bf16.mxu0 0
        %3530 = vmatmul.mubr.bf16.gmra.mrb[0].mxu0 %v3405
        %v3531 = vpop.f32.mrb[0].mxu0
        %v3532 = vadd.f32 0.0, %v3531
        %v3533 = vpop.f32.mrb[0].mxu0
        %v3534 = vpop.f32.mrb[0].mxu0
        %v3535 = vadd.f32 0.0, %v3534
        %v3536 = vpop.f32.mrb[0].mxu0
        %3537 = vmatprep.mubr.bf16.mxu0 0
        %3538 = vmatmul.mubr.bf16.gmra.mrb[0].mxu0 %v3408
        %v3539 = vpop.f32.mrb[0].mxu0
        %v3540 = vadd.f32 0.0, %v3539
        %v3541 = vpop.f32.mrb[0].mxu0
        %v3542 = vpop.f32.mrb[0].mxu0
        %v3543 = vadd.f32 0.0, %v3542
        %v3544 = vpop.f32.mrb[0].mxu0
        %3545 = vmatprep.mubr.bf16.mxu0 0
        %3546 = vmatmul.mubr.bf16.gmra.mrb[0].mxu0 %v3411
        %v3547 = vpop.f32.mrb[0].mxu0
        %v3548 = vadd.f32 0.0, %v3547
        %v3549 = vpop.f32.mrb[0].mxu0
        %v3550 = vpop.f32.mrb[0].mxu0
        %v3551 = vadd.f32 0.0, %v3550
        %v3552 = vpop.f32.mrb[0].mxu0
        %3553 = vmatprep.mubr.bf16.mxu0 0
        %3554 = vmatmul.mubr.bf16.gmra.mrb[0].mxu0 %v3414
        %v3555 = vpop.f32.mrb[0].mxu0
        %v3556 = vadd.f32 0.0, %v3555
        %v3557 = vpop.f32.mrb[0].mxu0
        %v3558 = vpop.f32.mrb[0].mxu0
        %v3559 = vadd.f32 0.0, %v3558
        %v3560 = vpop.f32.mrb[0].mxu0
        %3561 = vmatprep.mubr.bf16.mxu0 0
        %3562 = vmatmul.mubr.bf16.gmra.mrb[0].mxu0 %v3417
        %v3563 = vpop.f32.mrb[0].mxu0
        %v3564 = vadd.f32 0.0, %v3563
        %v3565 = vpop.f32.mrb[0].mxu0
        %v3566 = vpop.f32.mrb[0].mxu0
        %v3567 = vadd.f32 0.0, %v3566
        %v3568 = vpop.f32.mrb[0].mxu0
        %3569 = vmatprep.mubr.bf16.mxu0 0
        %3570 = vmatmul.mubr.bf16.gmra.mrb[0].mxu0 %v3420
        %v3571 = vpop.f32.mrb[0].mxu0
        %v3572 = vadd.f32 0.0, %v3571
        %v3573 = vpop.f32.mrb[0].mxu0
        %v3574 = vpop.f32.mrb[0].mxu0
        %v3575 = vadd.f32 0.0, %v3574
        %v3576 = vpop.f32.mrb[0].mxu0
        %3577 = vmatprep.mubr.bf16.mxu0 0
        %3578 = vmatmul.mubr.bf16.gmra.mrb[0].mxu0 %v3423
        %v3579 = vpop.f32.mrb[0].mxu0
        %v3580 = vadd.f32 0.0, %v3579
        %v3581 = vpop.f32.mrb[0].mxu0
        %v3582 = vpop.f32.mrb[0].mxu0
        %v3583 = vadd.f32 0.0, %v3582
        %v3584 = vpop.f32.mrb[0].mxu0
        %3585 = vdwg.mxu0
        %v3594 = vunpack.c.l.b16 %v3288
        %v3595 = vunpack.c.l.b16 %v3289
        %v3596 = vunpack.c.l.b16 %v3290
        %v3597 = vunpack.c.l.b16 %v3291
        %v3598 = vunpack.c.l.b16 %v3292
        %v3599 = vunpack.c.l.b16 %v3293
        %v3600 = vunpack.c.l.b16 %v3294
        %v3601 = vunpack.c.l.b16 %v3295
        %v3602 = vpack.c.b16 %v3595, %v3594
        %v3603 = vpack.c.b16 %v3597, %v3596
        %v3604 = vpack.c.b16 %v3599, %v3598
        %v3605 = vpack.c.b16 %v3601, %v3600
        %v3611 = vsel %vm3134, %v3272, 0
        %v3614 = vsel %vm3134, %v3273, 0
        %v3617 = vsel %vm3134, %v3274, 0
        %v3620 = vsel %vm3134, %v3275, 0
        %v3623 = vsel %vm3134, %v3276, 0
        %v3626 = vsel %vm3134, %v3277, 0
        %v3629 = vsel %vm3134, %v3278, 0
        %v3632 = vsel %vm3134, %v3279, 0
        %v3635 = vsel %vm3134, %v3280, 0
        %v3638 = vsel %vm3134, %v3281, 0
        %v3641 = vsel %vm3134, %v3282, 0
        %v3644 = vsel %vm3134, %v3283, 0
        %v3647 = vsel %vm3134, %v3284, 0
        %v3650 = vsel %vm3134, %v3285, 0
        %v3653 = vsel %vm3134, %v3286, 0
        %v3656 = vsel %vm3134, %v3287, 0
        %3658 = vmatprep.subr.bf16.mxu0 0
        %3659 = vmatpush1.bf16.msra.mxu0 %v3602
        %3660 = vmatprep.subr.bf16.mxu0 0
        %3661 = vmatpush1.bf16.msra.mxu0 %v3603
        %3662 = vmatprep.subr.bf16.mxu0 0
        %3663 = vmatpush1.bf16.msra.mxu0 %v3604
        %3664 = vmatprep.subr.bf16.mxu0 0
        %3665 = vmatpush1.bf16.msra.mxu0 %v3605
        %3666 = vmatprep.subr.bf16.mxu0 0
        %3667 = vmatpush1.bf16.msra.mxu0 0
        %3668 = vmatprep.subr.bf16.mxu0 0
        %3669 = vmatpush1.bf16.msra.mxu0 0
        %3670 = vmatprep.subr.bf16.mxu0 0
        %3671 = vmatpush1.bf16.msra.mxu0 0
        %3672 = vmatprep.subr.bf16.mxu0 0
        %3673 = vmatpush1.bf16.msra.mxu0 0
        %3674 = vmatprep.subr.bf16.mxu0 0
        %3675 = vmatpush1.bf16.msra.mxu0 0
        %3676 = vmatprep.subr.bf16.mxu0 0
        %3677 = vmatpush1.bf16.msra.mxu0 0
        %3678 = vmatprep.subr.bf16.mxu0 0
        %3679 = vmatpush1.bf16.msra.mxu0 0
        %3680 = vmatprep.subr.bf16.mxu0 0
        %3681 = vmatpush1.bf16.msra.mxu0 0
        %3682 = vmatprep.subr.bf16.mxu0 0
        %3683 = vmatpush1.bf16.msra.mxu0 0
        %3684 = vmatprep.subr.bf16.mxu0 0
        %3685 = vmatpush1.bf16.msra.mxu0 0
        %3686 = vmatprep.subr.bf16.mxu0 0
        %3687 = vmatpush1.bf16.msra.mxu0 0
        %3688 = vmatprep.subr.bf16.mxu0 0
        %3689 = vmatpush1.bf16.msra.mxu0 0
        %3690 = vmatprep.mubr.bf16.mxu0 0
        %3691 = vmatmul.mubr.bf16.gmra.mrb[0].mxu0 %v3611
        %v3692 = vpop.f32.mrb[0].mxu0
        %v3693 = vadd.f32 %v3460, %v3692
        %v3694 = vpop.f32.mrb[0].mxu0
        %v3695 = vpop.f32.mrb[0].mxu0
        %v3696 = vadd.f32 %v3463, %v3695
        %v3697 = vpop.f32.mrb[0].mxu0
        %3698 = vmatprep.mubr.bf16.mxu0 0
        %3699 = vmatmul.mubr.bf16.gmra.mrb[0].mxu0 %v3614
        %v3700 = vpop.f32.mrb[0].mxu0
        %v3701 = vadd.f32 %v3468, %v3700
        %v3702 = vpop.f32.mrb[0].mxu0
        %v3703 = vpop.f32.mrb[0].mxu0
        %v3704 = vadd.f32 %v3471, %v3703
        %v3705 = vpop.f32.mrb[0].mxu0
        %3706 = vmatprep.mubr.bf16.mxu0 0
        %3707 = vmatmul.mubr.bf16.gmra.mrb[0].mxu0 %v3617
        %v3708 = vpop.f32.mrb[0].mxu0
        %v3709 = vadd.f32 %v3476, %v3708
        %v3710 = vpop.f32.mrb[0].mxu0
        %v3711 = vpop.f32.mrb[0].mxu0
        %v3712 = vadd.f32 %v3479, %v3711
        %v3713 = vpop.f32.mrb[0].mxu0
        %3714 = vmatprep.mubr.bf16.mxu0 0
        %3715 = vmatmul.mubr.bf16.gmra.mrb[0].mxu0 %v3620
        %v3716 = vpop.f32.mrb[0].mxu0
        %v3717 = vadd.f32 %v3484, %v3716
        %v3718 = vpop.f32.mrb[0].mxu0
        %v3719 = vpop.f32.mrb[0].mxu0
        %v3720 = vadd.f32 %v3487, %v3719
        %v3721 = vpop.f32.mrb[0].mxu0
        %3722 = vmatprep.mubr.bf16.mxu0 0
        %3723 = vmatmul.mubr.bf16.gmra.mrb[0].mxu0 %v3623
        %v3724 = vpop.f32.mrb[0].mxu0
        %v3725 = vadd.f32 %v3492, %v3724
        %v3726 = vpop.f32.mrb[0].mxu0
        %v3727 = vpop.f32.mrb[0].mxu0
        %v3728 = vadd.f32 %v3495, %v3727
        %v3729 = vpop.f32.mrb[0].mxu0
        %3730 = vmatprep.mubr.bf16.mxu0 0
        %3731 = vmatmul.mubr.bf16.gmra.mrb[0].mxu0 %v3626
        %v3732 = vpop.f32.mrb[0].mxu0
        %v3733 = vadd.f32 %v3500, %v3732
        %v3734 = vpop.f32.mrb[0].mxu0
        %v3735 = vpop.f32.mrb[0].mxu0
        %v3736 = vadd.f32 %v3503, %v3735
        %v3737 = vpop.f32.mrb[0].mxu0
        %3738 = vmatprep.mubr.bf16.mxu0 0
        %3739 = vmatmul.mubr.bf16.gmra.mrb[0].mxu0 %v3629
        %v3740 = vpop.f32.mrb[0].mxu0
        %v3741 = vadd.f32 %v3508, %v3740
        %v3742 = vpop.f32.mrb[0].mxu0
        %v3743 = vpop.f32.mrb[0].mxu0
        %v3744 = vadd.f32 %v3511, %v3743
        %v3745 = vpop.f32.mrb[0].mxu0
        %3746 = vmatprep.mubr.bf16.mxu0 0
        %3747 = vmatmul.mubr.bf16.gmra.mrb[0].mxu0 %v3632
        %v3748 = vpop.f32.mrb[0].mxu0
        %v3749 = vadd.f32 %v3516, %v3748
        %v3750 = vpop.f32.mrb[0].mxu0
        %v3751 = vpop.f32.mrb[0].mxu0
        %v3752 = vadd.f32 %v3519, %v3751
        %v3753 = vpop.f32.mrb[0].mxu0
        %3754 = vmatprep.mubr.bf16.mxu0 0
        %3755 = vmatmul.mubr.bf16.gmra.mrb[0].mxu0 %v3635
        %v3756 = vpop.f32.mrb[0].mxu0
        %v3757 = vadd.f32 %v3524, %v3756
        %v3758 = vpop.f32.mrb[0].mxu0
        %v3759 = vpop.f32.mrb[0].mxu0
        %v3760 = vadd.f32 %v3527, %v3759
        %v3761 = vpop.f32.mrb[0].mxu0
        %3762 = vmatprep.mubr.bf16.mxu0 0
        %3763 = vmatmul.mubr.bf16.gmra.mrb[0].mxu0 %v3638
        %v3764 = vpop.f32.mrb[0].mxu0
        %v3765 = vadd.f32 %v3532, %v3764
        %v3766 = vpop.f32.mrb[0].mxu0
        %v3767 = vpop.f32.mrb[0].mxu0
        %v3768 = vadd.f32 %v3535, %v3767
        %v3769 = vpop.f32.mrb[0].mxu0
        %3770 = vmatprep.mubr.bf16.mxu0 0
        %3771 = vmatmul.mubr.bf16.gmra.mrb[0].mxu0 %v3641
        %v3772 = vpop.f32.mrb[0].mxu0
        %v3773 = vadd.f32 %v3540, %v3772
        %v3774 = vpop.f32.mrb[0].mxu0
        %v3775 = vpop.f32.mrb[0].mxu0
        %v3776 = vadd.f32 %v3543, %v3775
        %v3777 = vpop.f32.mrb[0].mxu0
        %3778 = vmatprep.mubr.bf16.mxu0 0
        %3779 = vmatmul.mubr.bf16.gmra.mrb[0].mxu0 %v3644
        %v3780 = vpop.f32.mrb[0].mxu0
        %v3781 = vadd.f32 %v3548, %v3780
        %v3782 = vpop.f32.mrb[0].mxu0
        %v3783 = vpop.f32.mrb[0].mxu0
        %v3784 = vadd.f32 %v3551, %v3783
        %v3785 = vpop.f32.mrb[0].mxu0
        %3786 = vmatprep.mubr.bf16.mxu0 0
        %3787 = vmatmul.mubr.bf16.gmra.mrb[0].mxu0 %v3647
        %v3788 = vpop.f32.mrb[0].mxu0
        %v3789 = vadd.f32 %v3556, %v3788
        %v3790 = vpop.f32.mrb[0].mxu0
        %v3791 = vpop.f32.mrb[0].mxu0
        %v3792 = vadd.f32 %v3559, %v3791
        %v3793 = vpop.f32.mrb[0].mxu0
        %3794 = vmatprep.mubr.bf16.mxu0 0
        %3795 = vmatmul.mubr.bf16.gmra.mrb[0].mxu0 %v3650
        %v3796 = vpop.f32.mrb[0].mxu0
        %v3797 = vadd.f32 %v3564, %v3796
        %v3798 = vpop.f32.mrb[0].mxu0
        %v3799 = vpop.f32.mrb[0].mxu0
        %v3800 = vadd.f32 %v3567, %v3799
        %v3801 = vpop.f32.mrb[0].mxu0
        %3802 = vmatprep.mubr.bf16.mxu0 0
        %3803 = vmatmul.mubr.bf16.gmra.mrb[0].mxu0 %v3653
        %v3804 = vpop.f32.mrb[0].mxu0
        %v3805 = vadd.f32 %v3572, %v3804
        %v3806 = vpop.f32.mrb[0].mxu0
        %v3807 = vpop.f32.mrb[0].mxu0
        %v3808 = vadd.f32 %v3575, %v3807
        %v3809 = vpop.f32.mrb[0].mxu0
        %3810 = vmatprep.mubr.bf16.mxu0 0
        %3811 = vmatmul.mubr.bf16.gmra.mrb[0].mxu0 %v3656
        %v3812 = vpop.f32.mrb[0].mxu0
        %v3813 = vadd.f32 %v3580, %v3812
        %v3814 = vpop.f32.mrb[0].mxu0
        %v3815 = vpop.f32.mrb[0].mxu0
        %v3816 = vadd.f32 %v3583, %v3815
        %v3817 = vpop.f32.mrb[0].mxu0
        %3818 = vdwg.mxu0
        %v3819 = vld [vmem:[#allocation3 + $0x9] sm:$0xff]
        %v3820 = vld [vmem:[#allocation3 + $0x11] sm:$0xff]
        %v3821 = vld [vmem:[#allocation3 + $0x29] sm:$0xff]
        %v3822 = vld [vmem:[#allocation3 + $0x31] sm:$0xff]
        %v3823 = vld [vmem:[#allocation3 + $0x49] sm:$0xff]
        %v3824 = vld [vmem:[#allocation3 + $0x51] sm:$0xff]
        %v3825 = vld [vmem:[#allocation3 + $0x69] sm:$0xff]
        %v3826 = vld [vmem:[#allocation3 + $0x71] sm:$0xff]
        %v3827 = vld [vmem:[#allocation3 + $0x89] sm:$0xff]
        %v3828 = vld [vmem:[#allocation3 + $0x91] sm:$0xff]
        %v3829 = vld [vmem:[#allocation3 + $0xa9] sm:$0xff]
        %v3830 = vld [vmem:[#allocation3 + $0xb1] sm:$0xff]
        %v3831 = vld [vmem:[#allocation3 + $0xc9] sm:$0xff]
        %v3832 = vld [vmem:[#allocation3 + $0xd1] sm:$0xff]
        %v3833 = vld [vmem:[#allocation3 + $0xe9] sm:$0xff]
        %v3834 = vld [vmem:[#allocation3 + $0xf1] sm:$0xff]
        %v3835 = vld [vmem:[#allocation3 + $0x109] sm:$0xff]
        %v3836 = vld [vmem:[#allocation3 + $0x111] sm:$0xff]
        %v3837 = vld [vmem:[#allocation3 + $0x129] sm:$0xff]
        %v3838 = vld [vmem:[#allocation3 + $0x131] sm:$0xff]
        %v3839 = vld [vmem:[#allocation3 + $0x149] sm:$0xff]
        %v3840 = vld [vmem:[#allocation3 + $0x151] sm:$0xff]
        %v3841 = vld [vmem:[#allocation3 + $0x169] sm:$0xff]
        %v3842 = vld [vmem:[#allocation3 + $0x171] sm:$0xff]
        %v3843 = vld [vmem:[#allocation3 + $0x189] sm:$0xff]
        %v3844 = vld [vmem:[#allocation3 + $0x191] sm:$0xff]
        %v3845 = vld [vmem:[#allocation3 + $0x1a9] sm:$0xff]
        %v3846 = vld [vmem:[#allocation3 + $0x1b1] sm:$0xff]
        %v3847 = vld [vmem:[#allocation3 + $0x1c9] sm:$0xff]
        %v3848 = vld [vmem:[#allocation3 + $0x1d1] sm:$0xff]
        %v3849 = vld [vmem:[#allocation3 + $0x1e9] sm:$0xff]
        %v3850 = vld [vmem:[#allocation3 + $0x1f1] sm:$0xff]
        %v3851 = vpack.c.bf16 %v3820, %v3819
        %v3852 = vpack.c.bf16 %v3822, %v3821
        %v3853 = vpack.c.bf16 %v3824, %v3823
        %v3854 = vpack.c.bf16 %v3826, %v3825
        %v3855 = vpack.c.bf16 %v3828, %v3827
        %v3856 = vpack.c.bf16 %v3830, %v3829
        %v3857 = vpack.c.bf16 %v3832, %v3831
        %v3858 = vpack.c.bf16 %v3834, %v3833
        %v3859 = vpack.c.bf16 %v3836, %v3835
        %v3860 = vpack.c.bf16 %v3838, %v3837
        %v3861 = vpack.c.bf16 %v3840, %v3839
        %v3862 = vpack.c.bf16 %v3842, %v3841
        %v3863 = vpack.c.bf16 %v3844, %v3843
        %v3864 = vpack.c.bf16 %v3846, %v3845
        %v3865 = vpack.c.bf16 %v3848, %v3847
        %v3866 = vpack.c.bf16 %v3850, %v3849
        %s3867 = scalar_lea.vmem %s3, 64
        %v3868 = vld [vmem:[%s3867] sm:$0xf]
        %v3869 = vld [vmem:[%s3867 + $0x4] sm:$0xf]
        %v3870 = vld [vmem:[%s3867 + $0x8] sm:$0xf]
        %v3871 = vld [vmem:[%s3867 + $0xc] sm:$0xf]
        %v3872 = vld [vmem:[%s3867 + $0x10] sm:$0xf]
        %v3873 = vld [vmem:[%s3867 + $0x14] sm:$0xf]
        %v3874 = vld [vmem:[%s3867 + $0x18] sm:$0xf]
        %v3875 = vld [vmem:[%s3867 + $0x1c] sm:$0xf]
        %v3884 = vunpack.c.l.b16 %v3868
        %v3885 = vunpack.c.l.b16 %v3869
        %v3886 = vunpack.c.l.b16 %v3870
        %v3887 = vunpack.c.l.b16 %v3871
        %v3888 = vunpack.c.l.b16 %v3872
        %v3889 = vunpack.c.l.b16 %v3873
        %v3890 = vunpack.c.l.b16 %v3874
        %v3891 = vunpack.c.l.b16 %v3875
        %v3892 = vpack.c.b16 %v3885, %v3884
        %v3893 = vpack.c.b16 %v3887, %v3886
        %v3894 = vpack.c.b16 %v3889, %v3888
        %v3895 = vpack.c.b16 %v3891, %v3890
        %v3901 = vsel %vm3134, %v3851, 0
        %v3904 = vsel %vm3134, %v3852, 0
        %v3907 = vsel %vm3134, %v3853, 0
        %v3910 = vsel %vm3134, %v3854, 0
        %v3913 = vsel %vm3134, %v3855, 0
        %v3916 = vsel %vm3134, %v3856, 0
        %v3919 = vsel %vm3134, %v3857, 0
        %v3922 = vsel %vm3134, %v3858, 0
        %v3925 = vsel %vm3134, %v3859, 0
        %v3928 = vsel %vm3134, %v3860, 0
        %v3931 = vsel %vm3134, %v3861, 0
        %v3934 = vsel %vm3134, %v3862, 0
        %v3937 = vsel %vm3134, %v3863, 0
        %v3940 = vsel %vm3134, %v3864, 0
        %v3943 = vsel %vm3134, %v3865, 0
        %v3946 = vsel %vm3134, %v3866, 0
        %3948 = vmatprep.subr.bf16.mxu0 0
        %3949 = vmatpush1.bf16.msra.mxu0 %v3892
        %3950 = vmatprep.subr.bf16.mxu0 0
        %3951 = vmatpush1.bf16.msra.mxu0 %v3893
        %3952 = vmatprep.subr.bf16.mxu0 0
        %3953 = vmatpush1.bf16.msra.mxu0 %v3894
        %3954 = vmatprep.subr.bf16.mxu0 0
        %3955 = vmatpush1.bf16.msra.mxu0 %v3895
        %3956 = vmatprep.subr.bf16.mxu0 0
        %3957 = vmatpush1.bf16.msra.mxu0 0
        %3958 = vmatprep.subr.bf16.mxu0 0
        %3959 = vmatpush1.bf16.msra.mxu0 0
        %3960 = vmatprep.subr.bf16.mxu0 0
        %3961 = vmatpush1.bf16.msra.mxu0 0
        %3962 = vmatprep.subr.bf16.mxu0 0
        %3963 = vmatpush1.bf16.msra.mxu0 0
        %3964 = vmatprep.subr.bf16.mxu0 0
        %3965 = vmatpush1.bf16.msra.mxu0 0
        %3966 = vmatprep.subr.bf16.mxu0 0
        %3967 = vmatpush1.bf16.msra.mxu0 0
        %3968 = vmatprep.subr.bf16.mxu0 0
        %3969 = vmatpush1.bf16.msra.mxu0 0
        %3970 = vmatprep.subr.bf16.mxu0 0
        %3971 = vmatpush1.bf16.msra.mxu0 0
        %3972 = vmatprep.subr.bf16.mxu0 0
        %3973 = vmatpush1.bf16.msra.mxu0 0
        %3974 = vmatprep.subr.bf16.mxu0 0
        %3975 = vmatpush1.bf16.msra.mxu0 0
        %3976 = vmatprep.subr.bf16.mxu0 0
        %3977 = vmatpush1.bf16.msra.mxu0 0
        %3978 = vmatprep.subr.bf16.mxu0 0
        %3979 = vmatpush1.bf16.msra.mxu0 0
        %3980 = vmatprep.mubr.bf16.mxu0 0
        %3981 = vmatmul.mubr.bf16.gmra.mrb[0].mxu0 %v3901
        %v3982 = vpop.f32.mrb[0].mxu0
        %v3983 = vadd.f32 0.0, %v3982
        %v3984 = vpop.f32.mrb[0].mxu0
        %v3985 = vpop.f32.mrb[0].mxu0
        %v3986 = vadd.f32 0.0, %v3985
        %v3987 = vpop.f32.mrb[0].mxu0
        %3988 = vmatprep.mubr.bf16.mxu0 0
        %3989 = vmatmul.mubr.bf16.gmra.mrb[0].mxu0 %v3904
        %v3990 = vpop.f32.mrb[0].mxu0
        %v3991 = vadd.f32 0.0, %v3990
        %v3992 = vpop.f32.mrb[0].mxu0
        %v3993 = vpop.f32.mrb[0].mxu0
        %v3994 = vadd.f32 0.0, %v3993
        %v3995 = vpop.f32.mrb[0].mxu0
        %3996 = vmatprep.mubr.bf16.mxu0 0
        %3997 = vmatmul.mubr.bf16.gmra.mrb[0].mxu0 %v3907
        %v3998 = vpop.f32.mrb[0].mxu0
        %v3999 = vadd.f32 0.0, %v3998
        %v4000 = vpop.f32.mrb[0].mxu0
        %v4001 = vpop.f32.mrb[0].mxu0
        %v4002 = vadd.f32 0.0, %v4001
        %v4003 = vpop.f32.mrb[0].mxu0
        %4004 = vmatprep.mubr.bf16.mxu0 0
        %4005 = vmatmul.mubr.bf16.gmra.mrb[0].mxu0 %v3910
        %v4006 = vpop.f32.mrb[0].mxu0
        %v4007 = vadd.f32 0.0, %v4006
        %v4008 = vpop.f32.mrb[0].mxu0
        %v4009 = vpop.f32.mrb[0].mxu0
        %v4010 = vadd.f32 0.0, %v4009
        %v4011 = vpop.f32.mrb[0].mxu0
        %4012 = vmatprep.mubr.bf16.mxu0 0
        %4013 = vmatmul.mubr.bf16.gmra.mrb[0].mxu0 %v3913
        %v4014 = vpop.f32.mrb[0].mxu0
        %v4015 = vadd.f32 0.0, %v4014
        %v4016 = vpop.f32.mrb[0].mxu0
        %v4017 = vpop.f32.mrb[0].mxu0
        %v4018 = vadd.f32 0.0, %v4017
        %v4019 = vpop.f32.mrb[0].mxu0
        %4020 = vmatprep.mubr.bf16.mxu0 0
        %4021 = vmatmul.mubr.bf16.gmra.mrb[0].mxu0 %v3916
        %v4022 = vpop.f32.mrb[0].mxu0
        %v4023 = vadd.f32 0.0, %v4022
        %v4024 = vpop.f32.mrb[0].mxu0
        %v4025 = vpop.f32.mrb[0].mxu0
        %v4026 = vadd.f32 0.0, %v4025
        %v4027 = vpop.f32.mrb[0].mxu0
        %4028 = vmatprep.mubr.bf16.mxu0 0
        %4029 = vmatmul.mubr.bf16.gmra.mrb[0].mxu0 %v3919
        %v4030 = vpop.f32.mrb[0].mxu0
        %v4031 = vadd.f32 0.0, %v4030
        %v4032 = vpop.f32.mrb[0].mxu0
        %v4033 = vpop.f32.mrb[0].mxu0
        %v4034 = vadd.f32 0.0, %v4033
        %v4035 = vpop.f32.mrb[0].mxu0
        %4036 = vmatprep.mubr.bf16.mxu0 0
        %4037 = vmatmul.mubr.bf16.gmra.mrb[0].mxu0 %v3922
        %v4038 = vpop.f32.mrb[0].mxu0
        %v4039 = vadd.f32 0.0, %v4038
        %v4040 = vpop.f32.mrb[0].mxu0
        %v4041 = vpop.f32.mrb[0].mxu0
        %v4042 = vadd.f32 0.0, %v4041
        %v4043 = vpop.f32.mrb[0].mxu0
        %4044 = vmatprep.mubr.bf16.mxu0 0
        %4045 = vmatmul.mubr.bf16.gmra.mrb[0].mxu0 %v3925
        %v4046 = vpop.f32.mrb[0].mxu0
        %v4047 = vadd.f32 0.0, %v4046
        %v4048 = vpop.f32.mrb[0].mxu0
        %v4049 = vpop.f32.mrb[0].mxu0
        %v4050 = vadd.f32 0.0, %v4049
        %v4051 = vpop.f32.mrb[0].mxu0
        %4052 = vmatprep.mubr.bf16.mxu0 0
        %4053 = vmatmul.mubr.bf16.gmra.mrb[0].mxu0 %v3928
        %v4054 = vpop.f32.mrb[0].mxu0
        %v4055 = vadd.f32 0.0, %v4054
        %v4056 = vpop.f32.mrb[0].mxu0
        %v4057 = vpop.f32.mrb[0].mxu0
        %v4058 = vadd.f32 0.0, %v4057
        %v4059 = vpop.f32.mrb[0].mxu0
        %4060 = vmatprep.mubr.bf16.mxu0 0
        %4061 = vmatmul.mubr.bf16.gmra.mrb[0].mxu0 %v3931
        %v4062 = vpop.f32.mrb[0].mxu0
        %v4063 = vadd.f32 0.0, %v4062
        %v4064 = vpop.f32.mrb[0].mxu0
        %v4065 = vpop.f32.mrb[0].mxu0
        %v4066 = vadd.f32 0.0, %v4065
        %v4067 = vpop.f32.mrb[0].mxu0
        %4068 = vmatprep.mubr.bf16.mxu0 0
        %4069 = vmatmul.mubr.bf16.gmra.mrb[0].mxu0 %v3934
        %v4070 = vpop.f32.mrb[0].mxu0
        %v4071 = vadd.f32 0.0, %v4070
        %v4072 = vpop.f32.mrb[0].mxu0
        %v4073 = vpop.f32.mrb[0].mxu0
        %v4074 = vadd.f32 0.0, %v4073
        %v4075 = vpop.f32.mrb[0].mxu0
        %4076 = vmatprep.mubr.bf16.mxu0 0
        %4077 = vmatmul.mubr.bf16.gmra.mrb[0].mxu0 %v3937
        %v4078 = vpop.f32.mrb[0].mxu0
        %v4079 = vadd.f32 0.0, %v4078
        %v4080 = vpop.f32.mrb[0].mxu0
        %v4081 = vpop.f32.mrb[0].mxu0
        %v4082 = vadd.f32 0.0, %v4081
        %v4083 = vpop.f32.mrb[0].mxu0
        %4084 = vmatprep.mubr.bf16.mxu0 0
        %4085 = vmatmul.mubr.bf16.gmra.mrb[0].mxu0 %v3940
        %v4086 = vpop.f32.mrb[0].mxu0
        %v4087 = vadd.f32 0.0, %v4086
        %v4088 = vpop.f32.mrb[0].mxu0
        %v4089 = vpop.f32.mrb[0].mxu0
        %v4090 = vadd.f32 0.0, %v4089
        %v4091 = vpop.f32.mrb[0].mxu0
        %4092 = vmatprep.mubr.bf16.mxu0 0
        %4093 = vmatmul.mubr.bf16.gmra.mrb[0].mxu0 %v3943
        %v4094 = vpop.f32.mrb[0].mxu0
        %v4095 = vadd.f32 0.0, %v4094
        %v4096 = vpop.f32.mrb[0].mxu0
        %v4097 = vpop.f32.mrb[0].mxu0
        %v4098 = vadd.f32 0.0, %v4097
        %v4099 = vpop.f32.mrb[0].mxu0
        %4100 = vmatprep.mubr.bf16.mxu0 0
        %4101 = vmatmul.mubr.bf16.gmra.mrb[0].mxu0 %v3946
        %v4102 = vpop.f32.mrb[0].mxu0
        %v4103 = vadd.f32 0.0, %v4102
        %v4104 = vpop.f32.mrb[0].mxu0
        %v4105 = vpop.f32.mrb[0].mxu0
        %v4106 = vadd.f32 0.0, %v4105
        %v4107 = vpop.f32.mrb[0].mxu0
        %4108 = vdwg.mxu0
        %v4109 = vadd.f32 %v3693, %v3983
        %v4110 = vadd.f32 %v3696, %v3986
        %v4111 = vadd.f32 %v3701, %v3991
        %v4112 = vadd.f32 %v3704, %v3994
        %v4113 = vadd.f32 %v3709, %v3999
        %v4114 = vadd.f32 %v3712, %v4002
        %v4115 = vadd.f32 %v3717, %v4007
        %v4116 = vadd.f32 %v3720, %v4010
        %v4117 = vadd.f32 %v3725, %v4015
        %v4118 = vadd.f32 %v3728, %v4018
        %v4119 = vadd.f32 %v3733, %v4023
        %v4120 = vadd.f32 %v3736, %v4026
        %v4121 = vadd.f32 %v3741, %v4031
        %v4122 = vadd.f32 %v3744, %v4034
        %v4123 = vadd.f32 %v3749, %v4039
        %v4124 = vadd.f32 %v3752, %v4042
        %v4125 = vadd.f32 %v3757, %v4047
        %v4126 = vadd.f32 %v3760, %v4050
        %v4127 = vadd.f32 %v3765, %v4055
        %v4128 = vadd.f32 %v3768, %v4058
        %v4129 = vadd.f32 %v3773, %v4063
        %v4130 = vadd.f32 %v3776, %v4066
        %v4131 = vadd.f32 %v3781, %v4071
        %v4132 = vadd.f32 %v3784, %v4074
        %v4133 = vadd.f32 %v3789, %v4079
        %v4134 = vadd.f32 %v3792, %v4082
        %v4135 = vadd.f32 %v3797, %v4087
        %v4136 = vadd.f32 %v3800, %v4090
        %v4137 = vadd.f32 %v3805, %v4095
        %v4138 = vadd.f32 %v3808, %v4098
        %v4139 = vadd.f32 %v3813, %v4103
        %v4140 = vadd.f32 %v3816, %v4106
        %v4141 = vld [vmem:[%s3207 + $0x7] sm:$0xff]
        %v4142 = vld [vmem:[%s3207 + $0xf] sm:$0xff]
        %v4143 = vld [vmem:[%s3207 + $0x27] sm:$0xff]
        %v4144 = vld [vmem:[%s3207 + $0x2f] sm:$0xff]
        %v4145 = vld [vmem:[%s3207 + $0x47] sm:$0xff]
        %v4146 = vld [vmem:[%s3207 + $0x4f] sm:$0xff]
        %v4147 = vld [vmem:[%s3207 + $0x67] sm:$0xff]
        %v4148 = vld [vmem:[%s3207 + $0x6f] sm:$0xff]
        %v4149 = vld [vmem:[%s3207 + $0x87] sm:$0xff]
        %v4150 = vld [vmem:[%s3207 + $0x8f] sm:$0xff]
        %v4151 = vld [vmem:[%s3207 + $0xa7] sm:$0xff]
        %v4152 = vld [vmem:[%s3207 + $0xaf] sm:$0xff]
        %v4153 = vld [vmem:[%s3207 + $0xc7] sm:$0xff]
        %v4154 = vld [vmem:[%s3207 + $0xcf] sm:$0xff]
        %v4155 = vld [vmem:[%s3207 + $0xe7] sm:$0xff]
        %v4156 = vld [vmem:[%s3207 + $0xef] sm:$0xff]
        %v4157 = vld [vmem:[%s3207 + $0x107] sm:$0xff]
        %v4158 = vld [vmem:[%s3207 + $0x10f] sm:$0xff]
        %v4159 = vld [vmem:[%s3207 + $0x127] sm:$0xff]
        %v4160 = vld [vmem:[%s3207 + $0x12f] sm:$0xff]
        %v4161 = vld [vmem:[%s3207 + $0x147] sm:$0xff]
        %v4162 = vld [vmem:[%s3207 + $0x14f] sm:$0xff]
        %v4163 = vld [vmem:[%s3207 + $0x167] sm:$0xff]
        %v4164 = vld [vmem:[%s3207 + $0x16f] sm:$0xff]
        %v4165 = vld [vmem:[%s3207 + $0x187] sm:$0xff]
        %v4166 = vld [vmem:[%s3207 + $0x18f] sm:$0xff]
        %v4167 = vld [vmem:[%s3207 + $0x1a7] sm:$0xff]
        %v4168 = vld [vmem:[%s3207 + $0x1af] sm:$0xff]
        %v4169 = vld [vmem:[%s3207 + $0x1c7] sm:$0xff]
        %v4170 = vld [vmem:[%s3207 + $0x1cf] sm:$0xff]
        %v4171 = vld [vmem:[%s3207 + $0x1e7] sm:$0xff]
        %v4172 = vld [vmem:[%s3207 + $0x1ef] sm:$0xff]
        %v4173 = vpack.c.bf16 %v4142, %v4141
        %v4174 = vpack.c.bf16 %v4144, %v4143
        %v4175 = vpack.c.bf16 %v4146, %v4145
        %v4176 = vpack.c.bf16 %v4148, %v4147
        %v4177 = vpack.c.bf16 %v4150, %v4149
        %v4178 = vpack.c.bf16 %v4152, %v4151
        %v4179 = vpack.c.bf16 %v4154, %v4153
        %v4180 = vpack.c.bf16 %v4156, %v4155
        %v4181 = vpack.c.bf16 %v4158, %v4157
        %v4182 = vpack.c.bf16 %v4160, %v4159
        %v4183 = vpack.c.bf16 %v4162, %v4161
        %v4184 = vpack.c.bf16 %v4164, %v4163
        %v4185 = vpack.c.bf16 %v4166, %v4165
        %v4186 = vpack.c.bf16 %v4168, %v4167
        %v4187 = vpack.c.bf16 %v4170, %v4169
        %v4188 = vpack.c.bf16 %v4172, %v4171
        %s4189 = scalar_lea.vmem %s3, 96
        %v4190 = vld [vmem:[%s4189] sm:$0xf]
        %v4191 = vld [vmem:[%s4189 + $0x4] sm:$0xf]
        %v4192 = vld [vmem:[%s4189 + $0x8] sm:$0xf]
        %v4193 = vld [vmem:[%s4189 + $0xc] sm:$0xf]
        %v4194 = vld [vmem:[%s4189 + $0x10] sm:$0xf]
        %v4195 = vld [vmem:[%s4189 + $0x14] sm:$0xf]
        %v4196 = vld [vmem:[%s4189 + $0x18] sm:$0xf]
        %v4197 = vld [vmem:[%s4189 + $0x1c] sm:$0xf]
        %v4206 = vunpack.c.l.b16 %v4190
        %v4207 = vunpack.c.l.b16 %v4191
        %v4208 = vunpack.c.l.b16 %v4192
        %v4209 = vunpack.c.l.b16 %v4193
        %v4210 = vunpack.c.l.b16 %v4194
        %v4211 = vunpack.c.l.b16 %v4195
        %v4212 = vunpack.c.l.b16 %v4196
        %v4213 = vunpack.c.l.b16 %v4197
        %v4214 = vpack.c.b16 %v4207, %v4206
        %v4215 = vpack.c.b16 %v4209, %v4208
        %v4216 = vpack.c.b16 %v4211, %v4210
        %v4217 = vpack.c.b16 %v4213, %v4212
        %v4223 = vsel %vm3134, %v4173, 0
        %v4226 = vsel %vm3134, %v4174, 0
        %v4229 = vsel %vm3134, %v4175, 0
        %v4232 = vsel %vm3134, %v4176, 0
        %v4235 = vsel %vm3134, %v4177, 0
        %v4238 = vsel %vm3134, %v4178, 0
        %v4241 = vsel %vm3134, %v4179, 0
        %v4244 = vsel %vm3134, %v4180, 0
        %v4247 = vsel %vm3134, %v4181, 0
        %v4250 = vsel %vm3134, %v4182, 0
        %v4253 = vsel %vm3134, %v4183, 0
        %v4256 = vsel %vm3134, %v4184, 0
        %v4259 = vsel %vm3134, %v4185, 0
        %v4262 = vsel %vm3134, %v4186, 0
        %v4265 = vsel %vm3134, %v4187, 0
        %v4268 = vsel %vm3134, %v4188, 0
        %4270 = vmatprep.subr.bf16.mxu0 0
        %4271 = vmatpush1.bf16.msra.mxu0 %v4214
        %4272 = vmatprep.subr.bf16.mxu0 0
        %4273 = vmatpush1.bf16.msra.mxu0 %v4215
        %4274 = vmatprep.subr.bf16.mxu0 0
        %4275 = vmatpush1.bf16.msra.mxu0 %v4216
        %4276 = vmatprep.subr.bf16.mxu0 0
        %4277 = vmatpush1.bf16.msra.mxu0 %v4217
        %4278 = vmatprep.subr.bf16.mxu0 0
        %4279 = vmatpush1.bf16.msra.mxu0 0
        %4280 = vmatprep.subr.bf16.mxu0 0
        %4281 = vmatpush1.bf16.msra.mxu0 0
        %4282 = vmatprep.subr.bf16.mxu0 0
        %4283 = vmatpush1.bf16.msra.mxu0 0
        %4284 = vmatprep.subr.bf16.mxu0 0
        %4285 = vmatpush1.bf16.msra.mxu0 0
        %4286 = vmatprep.subr.bf16.mxu0 0
        %4287 = vmatpush1.bf16.msra.mxu0 0
        %4288 = vmatprep.subr.bf16.mxu0 0
        %4289 = vmatpush1.bf16.msra.mxu0 0
        %4290 = vmatprep.subr.bf16.mxu0 0
        %4291 = vmatpush1.bf16.msra.mxu0 0
        %4292 = vmatprep.subr.bf16.mxu0 0
        %4293 = vmatpush1.bf16.msra.mxu0 0
        %4294 = vmatprep.subr.bf16.mxu0 0
        %4295 = vmatpush1.bf16.msra.mxu0 0
        %4296 = vmatprep.subr.bf16.mxu0 0
        %4297 = vmatpush1.bf16.msra.mxu0 0
        %4298 = vmatprep.subr.bf16.mxu0 0
        %4299 = vmatpush1.bf16.msra.mxu0 0
        %4300 = vmatprep.subr.bf16.mxu0 0
        %4301 = vmatpush1.bf16.msra.mxu0 0
        %4302 = vmatprep.mubr.bf16.mxu0 0
        %4303 = vmatmul.mubr.bf16.gmra.mrb[0].mxu0 %v4223
        %v4304 = vpop.f32.mrb[0].mxu0
        %v4305 = vadd.f32 0.0, %v4304
        %v4306 = vpop.f32.mrb[0].mxu0
        %v4307 = vpop.f32.mrb[0].mxu0
        %v4308 = vadd.f32 0.0, %v4307
        %v4309 = vpop.f32.mrb[0].mxu0
        %4310 = vmatprep.mubr.bf16.mxu0 0
        %4311 = vmatmul.mubr.bf16.gmra.mrb[0].mxu0 %v4226
        %v4312 = vpop.f32.mrb[0].mxu0
        %v4313 = vadd.f32 0.0, %v4312
        %v4314 = vpop.f32.mrb[0].mxu0
        %v4315 = vpop.f32.mrb[0].mxu0
        %v4316 = vadd.f32 0.0, %v4315
        %v4317 = vpop.f32.mrb[0].mxu0
        %4318 = vmatprep.mubr.bf16.mxu0 0
        %4319 = vmatmul.mubr.bf16.gmra.mrb[0].mxu0 %v4229
        %v4320 = vpop.f32.mrb[0].mxu0
        %v4321 = vadd.f32 0.0, %v4320
        %v4322 = vpop.f32.mrb[0].mxu0
        %v4323 = vpop.f32.mrb[0].mxu0
        %v4324 = vadd.f32 0.0, %v4323
        %v4325 = vpop.f32.mrb[0].mxu0
        %4326 = vmatprep.mubr.bf16.mxu0 0
        %4327 = vmatmul.mubr.bf16.gmra.mrb[0].mxu0 %v4232
        %v4328 = vpop.f32.mrb[0].mxu0
        %v4329 = vadd.f32 0.0, %v4328
        %v4330 = vpop.f32.mrb[0].mxu0
        %v4331 = vpop.f32.mrb[0].mxu0
        %v4332 = vadd.f32 0.0, %v4331
        %v4333 = vpop.f32.mrb[0].mxu0
        %4334 = vmatprep.mubr.bf16.mxu0 0
        %4335 = vmatmul.mubr.bf16.gmra.mrb[0].mxu0 %v4235
        %v4336 = vpop.f32.mrb[0].mxu0
        %v4337 = vadd.f32 0.0, %v4336
        %v4338 = vpop.f32.mrb[0].mxu0
        %v4339 = vpop.f32.mrb[0].mxu0
        %v4340 = vadd.f32 0.0, %v4339
        %v4341 = vpop.f32.mrb[0].mxu0
        %4342 = vmatprep.mubr.bf16.mxu0 0
        %4343 = vmatmul.mubr.bf16.gmra.mrb[0].mxu0 %v4238
        %v4344 = vpop.f32.mrb[0].mxu0
        %v4345 = vadd.f32 0.0, %v4344
        %v4346 = vpop.f32.mrb[0].mxu0
        %v4347 = vpop.f32.mrb[0].mxu0
        %v4348 = vadd.f32 0.0, %v4347
        %v4349 = vpop.f32.mrb[0].mxu0
        %4350 = vmatprep.mubr.bf16.mxu0 0
        %4351 = vmatmul.mubr.bf16.gmra.mrb[0].mxu0 %v4241
        %v4352 = vpop.f32.mrb[0].mxu0
        %v4353 = vadd.f32 0.0, %v4352
        %v4354 = vpop.f32.mrb[0].mxu0
        %v4355 = vpop.f32.mrb[0].mxu0
        %v4356 = vadd.f32 0.0, %v4355
        %v4357 = vpop.f32.mrb[0].mxu0
        %4358 = vmatprep.mubr.bf16.mxu0 0
        %4359 = vmatmul.mubr.bf16.gmra.mrb[0].mxu0 %v4244
        %v4360 = vpop.f32.mrb[0].mxu0
        %v4361 = vadd.f32 0.0, %v4360
        %v4362 = vpop.f32.mrb[0].mxu0
        %v4363 = vpop.f32.mrb[0].mxu0
        %v4364 = vadd.f32 0.0, %v4363
        %v4365 = vpop.f32.mrb[0].mxu0
        %4366 = vmatprep.mubr.bf16.mxu0 0
        %4367 = vmatmul.mubr.bf16.gmra.mrb[0].mxu0 %v4247
        %v4368 = vpop.f32.mrb[0].mxu0
        %v4369 = vadd.f32 0.0, %v4368
        %v4370 = vpop.f32.mrb[0].mxu0
        %v4371 = vpop.f32.mrb[0].mxu0
        %v4372 = vadd.f32 0.0, %v4371
        %v4373 = vpop.f32.mrb[0].mxu0
        %4374 = vmatprep.mubr.bf16.mxu0 0
        %4375 = vmatmul.mubr.bf16.gmra.mrb[0].mxu0 %v4250
        %v4376 = vpop.f32.mrb[0].mxu0
        %v4377 = vadd.f32 0.0, %v4376
        %v4378 = vpop.f32.mrb[0].mxu0
        %v4379 = vpop.f32.mrb[0].mxu0
        %v4380 = vadd.f32 0.0, %v4379
        %v4381 = vpop.f32.mrb[0].mxu0
        %4382 = vmatprep.mubr.bf16.mxu0 0
        %4383 = vmatmul.mubr.bf16.gmra.mrb[0].mxu0 %v4253
        %v4384 = vpop.f32.mrb[0].mxu0
        %v4385 = vadd.f32 0.0, %v4384
        %v4386 = vpop.f32.mrb[0].mxu0
        %v4387 = vpop.f32.mrb[0].mxu0
        %v4388 = vadd.f32 0.0, %v4387
        %v4389 = vpop.f32.mrb[0].mxu0
        %4390 = vmatprep.mubr.bf16.mxu0 0
        %4391 = vmatmul.mubr.bf16.gmra.mrb[0].mxu0 %v4256
        %v4392 = vpop.f32.mrb[0].mxu0
        %v4393 = vadd.f32 0.0, %v4392
        %v4394 = vpop.f32.mrb[0].mxu0
        %v4395 = vpop.f32.mrb[0].mxu0
        %v4396 = vadd.f32 0.0, %v4395
        %v4397 = vpop.f32.mrb[0].mxu0
        %4398 = vmatprep.mubr.bf16.mxu0 0
        %4399 = vmatmul.mubr.bf16.gmra.mrb[0].mxu0 %v4259
        %v4400 = vpop.f32.mrb[0].mxu0
        %v4401 = vadd.f32 0.0, %v4400
        %v4402 = vpop.f32.mrb[0].mxu0
        %v4403 = vpop.f32.mrb[0].mxu0
        %v4404 = vadd.f32 0.0, %v4403
        %v4405 = vpop.f32.mrb[0].mxu0
        %4406 = vmatprep.mubr.bf16.mxu0 0
        %4407 = vmatmul.mubr.bf16.gmra.mrb[0].mxu0 %v4262
        %v4408 = vpop.f32.mrb[0].mxu0
        %v4409 = vadd.f32 0.0, %v4408
        %v4410 = vpop.f32.mrb[0].mxu0
        %v4411 = vpop.f32.mrb[0].mxu0
        %v4412 = vadd.f32 0.0, %v4411
        %v4413 = vpop.f32.mrb[0].mxu0
        %4414 = vmatprep.mubr.bf16.mxu0 0
        %4415 = vmatmul.mubr.bf16.gmra.mrb[0].mxu0 %v4265
        %v4416 = vpop.f32.mrb[0].mxu0
        %v4417 = vadd.f32 0.0, %v4416
        %v4418 = vpop.f32.mrb[0].mxu0
        %v4419 = vpop.f32.mrb[0].mxu0
        %v4420 = vadd.f32 0.0, %v4419
        %v4421 = vpop.f32.mrb[0].mxu0
        %4422 = vmatprep.mubr.bf16.mxu0 0
        %4423 = vmatmul.mubr.bf16.gmra.mrb[0].mxu0 %v4268
        %v4424 = vpop.f32.mrb[0].mxu0
        %v4425 = vadd.f32 0.0, %v4424
        %v4426 = vpop.f32.mrb[0].mxu0
        %v4427 = vpop.f32.mrb[0].mxu0
        %v4428 = vadd.f32 0.0, %v4427
        %v4429 = vpop.f32.mrb[0].mxu0
        %4430 = vdwg.mxu0
        %v4431 = vadd.f32 %v4109, %v4305
        %v4432 = vadd.f32 %v4110, %v4308
        %v4433 = vadd.f32 %v4111, %v4313
        %v4434 = vadd.f32 %v4112, %v4316
        %v4435 = vadd.f32 %v4113, %v4321
        %v4436 = vadd.f32 %v4114, %v4324
        %v4437 = vadd.f32 %v4115, %v4329
        %v4438 = vadd.f32 %v4116, %v4332
        %v4439 = vadd.f32 %v4117, %v4337
        %v4440 = vadd.f32 %v4118, %v4340
        %v4441 = vadd.f32 %v4119, %v4345
        %v4442 = vadd.f32 %v4120, %v4348
        %v4443 = vadd.f32 %v4121, %v4353
        %v4444 = vadd.f32 %v4122, %v4356
        %v4445 = vadd.f32 %v4123, %v4361
        %v4446 = vadd.f32 %v4124, %v4364
        %v4447 = vadd.f32 %v4125, %v4369
        %v4448 = vadd.f32 %v4126, %v4372
        %v4449 = vadd.f32 %v4127, %v4377
        %v4450 = vadd.f32 %v4128, %v4380
        %v4451 = vadd.f32 %v4129, %v4385
        %v4452 = vadd.f32 %v4130, %v4388
        %v4453 = vadd.f32 %v4131, %v4393
        %v4454 = vadd.f32 %v4132, %v4396
        %v4455 = vadd.f32 %v4133, %v4401
        %v4456 = vadd.f32 %v4134, %v4404
        %v4457 = vadd.f32 %v4135, %v4409
        %v4458 = vadd.f32 %v4136, %v4412
        %v4459 = vadd.f32 %v4137, %v4417
        %v4460 = vadd.f32 %v4138, %v4420
        %v4461 = vadd.f32 %v4139, %v4425
        %v4462 = vadd.f32 %v4140, %v4428
        %v4463 = vld [vmem:[%s3207 + $0x8] sm:$0xff]
        %v4464 = vld [vmem:[%s3207 + $0x10] sm:$0xff]
        %v4465 = vld [vmem:[%s3207 + $0x28] sm:$0xff]
        %v4466 = vld [vmem:[%s3207 + $0x30] sm:$0xff]
        %v4467 = vld [vmem:[%s3207 + $0x48] sm:$0xff]
        %v4468 = vld [vmem:[%s3207 + $0x50] sm:$0xff]
        %v4469 = vld [vmem:[%s3207 + $0x68] sm:$0xff]
        %v4470 = vld [vmem:[%s3207 + $0x70] sm:$0xff]
        %v4471 = vld [vmem:[%s3207 + $0x88] sm:$0xff]
        %v4472 = vld [vmem:[%s3207 + $0x90] sm:$0xff]
        %v4473 = vld [vmem:[%s3207 + $0xa8] sm:$0xff]
        %v4474 = vld [vmem:[%s3207 + $0xb0] sm:$0xff]
        %v4475 = vld [vmem:[%s3207 + $0xc8] sm:$0xff]
        %v4476 = vld [vmem:[%s3207 + $0xd0] sm:$0xff]
        %v4477 = vld [vmem:[%s3207 + $0xe8] sm:$0xff]
        %v4478 = vld [vmem:[%s3207 + $0xf0] sm:$0xff]
        %v4479 = vld [vmem:[%s3207 + $0x108] sm:$0xff]
        %v4480 = vld [vmem:[%s3207 + $0x110] sm:$0xff]
        %v4481 = vld [vmem:[%s3207 + $0x128] sm:$0xff]
        %v4482 = vld [vmem:[%s3207 + $0x130] sm:$0xff]
        %v4483 = vld [vmem:[%s3207 + $0x148] sm:$0xff]
        %v4484 = vld [vmem:[%s3207 + $0x150] sm:$0xff]
        %v4485 = vld [vmem:[%s3207 + $0x168] sm:$0xff]
        %v4486 = vld [vmem:[%s3207 + $0x170] sm:$0xff]
        %v4487 = vld [vmem:[%s3207 + $0x188] sm:$0xff]
        %v4488 = vld [vmem:[%s3207 + $0x190] sm:$0xff]
        %v4489 = vld [vmem:[%s3207 + $0x1a8] sm:$0xff]
        %v4490 = vld [vmem:[%s3207 + $0x1b0] sm:$0xff]
        %v4491 = vld [vmem:[%s3207 + $0x1c8] sm:$0xff]
        %v4492 = vld [vmem:[%s3207 + $0x1d0] sm:$0xff]
        %v4493 = vld [vmem:[%s3207 + $0x1e8] sm:$0xff]
        %v4494 = vld [vmem:[%s3207 + $0x1f0] sm:$0xff]
        %v4495 = vpack.c.bf16 %v4464, %v4463
        %v4496 = vpack.c.bf16 %v4466, %v4465
        %v4497 = vpack.c.bf16 %v4468, %v4467
        %v4498 = vpack.c.bf16 %v4470, %v4469
        %v4499 = vpack.c.bf16 %v4472, %v4471
        %v4500 = vpack.c.bf16 %v4474, %v4473
        %v4501 = vpack.c.bf16 %v4476, %v4475
        %v4502 = vpack.c.bf16 %v4478, %v4477
        %v4503 = vpack.c.bf16 %v4480, %v4479
        %v4504 = vpack.c.bf16 %v4482, %v4481
        %v4505 = vpack.c.bf16 %v4484, %v4483
        %v4506 = vpack.c.bf16 %v4486, %v4485
        %v4507 = vpack.c.bf16 %v4488, %v4487
        %v4508 = vpack.c.bf16 %v4490, %v4489
        %v4509 = vpack.c.bf16 %v4492, %v4491
        %v4510 = vpack.c.bf16 %v4494, %v4493
        %s4511 = scalar_lea.vmem %s3, 128
        %v4512 = vld [vmem:[%s4511] sm:$0xf]
        %v4513 = vld [vmem:[%s4511 + $0x4] sm:$0xf]
        %v4514 = vld [vmem:[%s4511 + $0x8] sm:$0xf]
        %v4515 = vld [vmem:[%s4511 + $0xc] sm:$0xf]
        %v4516 = vld [vmem:[%s4511 + $0x10] sm:$0xf]
        %v4517 = vld [vmem:[%s4511 + $0x14] sm:$0xf]
        %v4518 = vld [vmem:[%s4511 + $0x18] sm:$0xf]
        %v4519 = vld [vmem:[%s4511 + $0x1c] sm:$0xf]
        %v4528 = vunpack.c.l.b16 %v4512
        %v4529 = vunpack.c.l.b16 %v4513
        %v4530 = vunpack.c.l.b16 %v4514
        %v4531 = vunpack.c.l.b16 %v4515
        %v4532 = vunpack.c.l.b16 %v4516
        %v4533 = vunpack.c.l.b16 %v4517
        %v4534 = vunpack.c.l.b16 %v4518
        %v4535 = vunpack.c.l.b16 %v4519
        %v4536 = vpack.c.b16 %v4529, %v4528
        %v4537 = vpack.c.b16 %v4531, %v4530
        %v4538 = vpack.c.b16 %v4533, %v4532
        %v4539 = vpack.c.b16 %v4535, %v4534
        %v4545 = vsel %vm3134, %v4495, 0
        %v4548 = vsel %vm3134, %v4496, 0
        %v4551 = vsel %vm3134, %v4497, 0
        %v4554 = vsel %vm3134, %v4498, 0
        %v4557 = vsel %vm3134, %v4499, 0
        %v4560 = vsel %vm3134, %v4500, 0
        %v4563 = vsel %vm3134, %v4501, 0
        %v4566 = vsel %vm3134, %v4502, 0
        %v4569 = vsel %vm3134, %v4503, 0
        %v4572 = vsel %vm3134, %v4504, 0
        %v4575 = vsel %vm3134, %v4505, 0
        %v4578 = vsel %vm3134, %v4506, 0
        %v4581 = vsel %vm3134, %v4507, 0
        %v4584 = vsel %vm3134, %v4508, 0
        %v4587 = vsel %vm3134, %v4509, 0
        %v4590 = vsel %vm3134, %v4510, 0
        %4592 = vmatprep.subr.bf16.mxu0 0
        %4593 = vmatpush1.bf16.msra.mxu0 %v4536
        %4594 = vmatprep.subr.bf16.mxu0 0
        %4595 = vmatpush1.bf16.msra.mxu0 %v4537
        %4596 = vmatprep.subr.bf16.mxu0 0
        %4597 = vmatpush1.bf16.msra.mxu0 %v4538
        %4598 = vmatprep.subr.bf16.mxu0 0
        %4599 = vmatpush1.bf16.msra.mxu0 %v4539
        %4600 = vmatprep.subr.bf16.mxu0 0
        %4601 = vmatpush1.bf16.msra.mxu0 0
        %4602 = vmatprep.subr.bf16.mxu0 0
        %4603 = vmatpush1.bf16.msra.mxu0 0
        %4604 = vmatprep.subr.bf16.mxu0 0
        %4605 = vmatpush1.bf16.msra.mxu0 0
        %4606 = vmatprep.subr.bf16.mxu0 0
        %4607 = vmatpush1.bf16.msra.mxu0 0
        %4608 = vmatprep.subr.bf16.mxu0 0
        %4609 = vmatpush1.bf16.msra.mxu0 0
        %4610 = vmatprep.subr.bf16.mxu0 0
        %4611 = vmatpush1.bf16.msra.mxu0 0
        %4612 = vmatprep.subr.bf16.mxu0 0
        %4613 = vmatpush1.bf16.msra.mxu0 0
        %4614 = vmatprep.subr.bf16.mxu0 0
        %4615 = vmatpush1.bf16.msra.mxu0 0
        %4616 = vmatprep.subr.bf16.mxu0 0
        %4617 = vmatpush1.bf16.msra.mxu0 0
        %4618 = vmatprep.subr.bf16.mxu0 0
        %4619 = vmatpush1.bf16.msra.mxu0 0
        %4620 = vmatprep.subr.bf16.mxu0 0
        %4621 = vmatpush1.bf16.msra.mxu0 0
        %4622 = vmatprep.subr.bf16.mxu0 0
        %4623 = vmatpush1.bf16.msra.mxu0 0
        %4624 = vmatprep.mubr.bf16.mxu0 0
        %4625 = vmatmul.mubr.bf16.gmra.mrb[0].mxu0 %v4545
        %v4626 = vpop.f32.mrb[0].mxu0
        %v4627 = vadd.f32 0.0, %v4626
        %v4628 = vpop.f32.mrb[0].mxu0
        %v4629 = vpop.f32.mrb[0].mxu0
        %v4630 = vadd.f32 0.0, %v4629
        %v4631 = vpop.f32.mrb[0].mxu0
        %4632 = vmatprep.mubr.bf16.mxu0 0
        %4633 = vmatmul.mubr.bf16.gmra.mrb[0].mxu0 %v4548
        %v4634 = vpop.f32.mrb[0].mxu0
        %v4635 = vadd.f32 0.0, %v4634
        %v4636 = vpop.f32.mrb[0].mxu0
        %v4637 = vpop.f32.mrb[0].mxu0
        %v4638 = vadd.f32 0.0, %v4637
        %v4639 = vpop.f32.mrb[0].mxu0
        %4640 = vmatprep.mubr.bf16.mxu0 0
        %4641 = vmatmul.mubr.bf16.gmra.mrb[0].mxu0 %v4551
        %v4642 = vpop.f32.mrb[0].mxu0
        %v4643 = vadd.f32 0.0, %v4642
        %v4644 = vpop.f32.mrb[0].mxu0
        %v4645 = vpop.f32.mrb[0].mxu0
        %v4646 = vadd.f32 0.0, %v4645
        %v4647 = vpop.f32.mrb[0].mxu0
        %4648 = vmatprep.mubr.bf16.mxu0 0
        %4649 = vmatmul.mubr.bf16.gmra.mrb[0].mxu0 %v4554
        %v4650 = vpop.f32.mrb[0].mxu0
        %v4651 = vadd.f32 0.0, %v4650
        %v4652 = vpop.f32.mrb[0].mxu0
        %v4653 = vpop.f32.mrb[0].mxu0
        %v4654 = vadd.f32 0.0, %v4653
        %v4655 = vpop.f32.mrb[0].mxu0
        %4656 = vmatprep.mubr.bf16.mxu0 0
        %4657 = vmatmul.mubr.bf16.gmra.mrb[0].mxu0 %v4557
        %v4658 = vpop.f32.mrb[0].mxu0
        %v4659 = vadd.f32 0.0, %v4658
        %v4660 = vpop.f32.mrb[0].mxu0
        %v4661 = vpop.f32.mrb[0].mxu0
        %v4662 = vadd.f32 0.0, %v4661
        %v4663 = vpop.f32.mrb[0].mxu0
        %4664 = vmatprep.mubr.bf16.mxu0 0
        %4665 = vmatmul.mubr.bf16.gmra.mrb[0].mxu0 %v4560
        %v4666 = vpop.f32.mrb[0].mxu0
        %v4667 = vadd.f32 0.0, %v4666
        %v4668 = vpop.f32.mrb[0].mxu0
        %v4669 = vpop.f32.mrb[0].mxu0
        %v4670 = vadd.f32 0.0, %v4669
        %v4671 = vpop.f32.mrb[0].mxu0
        %4672 = vmatprep.mubr.bf16.mxu0 0
        %4673 = vmatmul.mubr.bf16.gmra.mrb[0].mxu0 %v4563
        %v4674 = vpop.f32.mrb[0].mxu0
        %v4675 = vadd.f32 0.0, %v4674
        %v4676 = vpop.f32.mrb[0].mxu0
        %v4677 = vpop.f32.mrb[0].mxu0
        %v4678 = vadd.f32 0.0, %v4677
        %v4679 = vpop.f32.mrb[0].mxu0
        %4680 = vmatprep.mubr.bf16.mxu0 0
        %4681 = vmatmul.mubr.bf16.gmra.mrb[0].mxu0 %v4566
        %v4682 = vpop.f32.mrb[0].mxu0
        %v4683 = vadd.f32 0.0, %v4682
        %v4684 = vpop.f32.mrb[0].mxu0
        %v4685 = vpop.f32.mrb[0].mxu0
        %v4686 = vadd.f32 0.0, %v4685
        %v4687 = vpop.f32.mrb[0].mxu0
        %4688 = vmatprep.mubr.bf16.mxu0 0
        %4689 = vmatmul.mubr.bf16.gmra.mrb[0].mxu0 %v4569
        %v4690 = vpop.f32.mrb[0].mxu0
        %v4691 = vadd.f32 0.0, %v4690
        %v4692 = vpop.f32.mrb[0].mxu0
        %v4693 = vpop.f32.mrb[0].mxu0
        %v4694 = vadd.f32 0.0, %v4693
        %v4695 = vpop.f32.mrb[0].mxu0
        %4696 = vmatprep.mubr.bf16.mxu0 0
        %4697 = vmatmul.mubr.bf16.gmra.mrb[0].mxu0 %v4572
        %v4698 = vpop.f32.mrb[0].mxu0
        %v4699 = vadd.f32 0.0, %v4698
        %v4700 = vpop.f32.mrb[0].mxu0
        %v4701 = vpop.f32.mrb[0].mxu0
        %v4702 = vadd.f32 0.0, %v4701
        %v4703 = vpop.f32.mrb[0].mxu0
        %4704 = vmatprep.mubr.bf16.mxu0 0
        %4705 = vmatmul.mubr.bf16.gmra.mrb[0].mxu0 %v4575
        %v4706 = vpop.f32.mrb[0].mxu0
        %v4707 = vadd.f32 0.0, %v4706
        %v4708 = vpop.f32.mrb[0].mxu0
        %v4709 = vpop.f32.mrb[0].mxu0
        %v4710 = vadd.f32 0.0, %v4709
        %v4711 = vpop.f32.mrb[0].mxu0
        %4712 = vmatprep.mubr.bf16.mxu0 0
        %4713 = vmatmul.mubr.bf16.gmra.mrb[0].mxu0 %v4578
        %v4714 = vpop.f32.mrb[0].mxu0
        %v4715 = vadd.f32 0.0, %v4714
        %v4716 = vpop.f32.mrb[0].mxu0
        %v4717 = vpop.f32.mrb[0].mxu0
        %v4718 = vadd.f32 0.0, %v4717
        %v4719 = vpop.f32.mrb[0].mxu0
        %4720 = vmatprep.mubr.bf16.mxu0 0
        %4721 = vmatmul.mubr.bf16.gmra.mrb[0].mxu0 %v4581
        %v4722 = vpop.f32.mrb[0].mxu0
        %v4723 = vadd.f32 0.0, %v4722
        %v4724 = vpop.f32.mrb[0].mxu0
        %v4725 = vpop.f32.mrb[0].mxu0
        %v4726 = vadd.f32 0.0, %v4725
        %v4727 = vpop.f32.mrb[0].mxu0
        %4728 = vmatprep.mubr.bf16.mxu0 0
        %4729 = vmatmul.mubr.bf16.gmra.mrb[0].mxu0 %v4584
        %v4730 = vpop.f32.mrb[0].mxu0
        %v4731 = vadd.f32 0.0, %v4730
        %v4732 = vpop.f32.mrb[0].mxu0
        %v4733 = vpop.f32.mrb[0].mxu0
        %v4734 = vadd.f32 0.0, %v4733
        %v4735 = vpop.f32.mrb[0].mxu0
        %4736 = vmatprep.mubr.bf16.mxu0 0
        %4737 = vmatmul.mubr.bf16.gmra.mrb[0].mxu0 %v4587
        %v4738 = vpop.f32.mrb[0].mxu0
        %v4739 = vadd.f32 0.0, %v4738
        %v4740 = vpop.f32.mrb[0].mxu0
        %v4741 = vpop.f32.mrb[0].mxu0
        %v4742 = vadd.f32 0.0, %v4741
        %v4743 = vpop.f32.mrb[0].mxu0
        %4744 = vmatprep.mubr.bf16.mxu0 0
        %4745 = vmatmul.mubr.bf16.gmra.mrb[0].mxu0 %v4590
        %v4746 = vpop.f32.mrb[0].mxu0
        %v4747 = vadd.f32 0.0, %v4746
        %v4748 = vpop.f32.mrb[0].mxu0
        %v4749 = vpop.f32.mrb[0].mxu0
        %v4750 = vadd.f32 0.0, %v4749
        %v4751 = vpop.f32.mrb[0].mxu0
        %4752 = vdwg.mxu0
        %v4753 = vadd.f32 %v4431, %v4627
        %v4754 = vadd.f32 %v4432, %v4630
        %v4755 = vadd.f32 %v4433, %v4635
        %v4756 = vadd.f32 %v4434, %v4638
        %v4757 = vadd.f32 %v4435, %v4643
        %v4758 = vadd.f32 %v4436, %v4646
        %v4759 = vadd.f32 %v4437, %v4651
        %v4760 = vadd.f32 %v4438, %v4654
        %v4761 = vadd.f32 %v4439, %v4659
        %v4762 = vadd.f32 %v4440, %v4662
        %v4763 = vadd.f32 %v4441, %v4667
        %v4764 = vadd.f32 %v4442, %v4670
        %v4765 = vadd.f32 %v4443, %v4675
        %v4766 = vadd.f32 %v4444, %v4678
        %v4767 = vadd.f32 %v4445, %v4683
        %v4768 = vadd.f32 %v4446, %v4686
        %v4769 = vadd.f32 %v4447, %v4691
        %v4770 = vadd.f32 %v4448, %v4694
        %v4771 = vadd.f32 %v4449, %v4699
        %v4772 = vadd.f32 %v4450, %v4702
        %v4773 = vadd.f32 %v4451, %v4707
        %v4774 = vadd.f32 %v4452, %v4710
        %v4775 = vadd.f32 %v4453, %v4715
        %v4776 = vadd.f32 %v4454, %v4718
        %v4777 = vadd.f32 %v4455, %v4723
        %v4778 = vadd.f32 %v4456, %v4726
        %v4779 = vadd.f32 %v4457, %v4731
        %v4780 = vadd.f32 %v4458, %v4734
        %v4781 = vadd.f32 %v4459, %v4739
        %v4782 = vadd.f32 %v4460, %v4742
        %v4783 = vadd.f32 %v4461, %v4747
        %v4784 = vadd.f32 %v4462, %v4750
        %v4785 = vld [vmem:[%s3207 + $0x9] sm:$0xff]
        %v4786 = vld [vmem:[%s3207 + $0x11] sm:$0xff]
        %v4787 = vld [vmem:[%s3207 + $0x29] sm:$0xff]
        %v4788 = vld [vmem:[%s3207 + $0x31] sm:$0xff]
        %v4789 = vld [vmem:[%s3207 + $0x49] sm:$0xff]
        %v4790 = vld [vmem:[%s3207 + $0x51] sm:$0xff]
        %v4791 = vld [vmem:[%s3207 + $0x69] sm:$0xff]
        %v4792 = vld [vmem:[%s3207 + $0x71] sm:$0xff]
        %v4793 = vld [vmem:[%s3207 + $0x89] sm:$0xff]
        %v4794 = vld [vmem:[%s3207 + $0x91] sm:$0xff]
        %v4795 = vld [vmem:[%s3207 + $0xa9] sm:$0xff]
        %v4796 = vld [vmem:[%s3207 + $0xb1] sm:$0xff]
        %v4797 = vld [vmem:[%s3207 + $0xc9] sm:$0xff]
        %v4798 = vld [vmem:[%s3207 + $0xd1] sm:$0xff]
        %v4799 = vld [vmem:[%s3207 + $0xe9] sm:$0xff]
        %v4800 = vld [vmem:[%s3207 + $0xf1] sm:$0xff]
        %v4801 = vld [vmem:[%s3207 + $0x109] sm:$0xff]
        %v4802 = vld [vmem:[%s3207 + $0x111] sm:$0xff]
        %v4803 = vld [vmem:[%s3207 + $0x129] sm:$0xff]
        %v4804 = vld [vmem:[%s3207 + $0x131] sm:$0xff]
        %v4805 = vld [vmem:[%s3207 + $0x149] sm:$0xff]
        %v4806 = vld [vmem:[%s3207 + $0x151] sm:$0xff]
        %v4807 = vld [vmem:[%s3207 + $0x169] sm:$0xff]
        %v4808 = vld [vmem:[%s3207 + $0x171] sm:$0xff]
        %v4809 = vld [vmem:[%s3207 + $0x189] sm:$0xff]
        %v4810 = vld [vmem:[%s3207 + $0x191] sm:$0xff]
        %v4811 = vld [vmem:[%s3207 + $0x1a9] sm:$0xff]
        %v4812 = vld [vmem:[%s3207 + $0x1b1] sm:$0xff]
        %v4813 = vld [vmem:[%s3207 + $0x1c9] sm:$0xff]
        %v4814 = vld [vmem:[%s3207 + $0x1d1] sm:$0xff]
        %v4815 = vld [vmem:[%s3207 + $0x1e9] sm:$0xff]
        %v4816 = vld [vmem:[%s3207 + $0x1f1] sm:$0xff]
        %v4817 = vpack.c.bf16 %v4786, %v4785
        %v4818 = vpack.c.bf16 %v4788, %v4787
        %v4819 = vpack.c.bf16 %v4790, %v4789
        %v4820 = vpack.c.bf16 %v4792, %v4791
        %v4821 = vpack.c.bf16 %v4794, %v4793
        %v4822 = vpack.c.bf16 %v4796, %v4795
        %v4823 = vpack.c.bf16 %v4798, %v4797
        %v4824 = vpack.c.bf16 %v4800, %v4799
        %v4825 = vpack.c.bf16 %v4802, %v4801
        %v4826 = vpack.c.bf16 %v4804, %v4803
        %v4827 = vpack.c.bf16 %v4806, %v4805
        %v4828 = vpack.c.bf16 %v4808, %v4807
        %v4829 = vpack.c.bf16 %v4810, %v4809
        %v4830 = vpack.c.bf16 %v4812, %v4811
        %v4831 = vpack.c.bf16 %v4814, %v4813
        %v4832 = vpack.c.bf16 %v4816, %v4815
        %s4833 = scalar_lea.vmem %s3, 160
        %v4834 = vld [vmem:[%s4833] sm:$0xf]
        %v4835 = vld [vmem:[%s4833 + $0x4] sm:$0xf]
        %v4836 = vld [vmem:[%s4833 + $0x8] sm:$0xf]
        %v4837 = vld [vmem:[%s4833 + $0xc] sm:$0xf]
        %v4838 = vld [vmem:[%s4833 + $0x10] sm:$0xf]
        %v4839 = vld [vmem:[%s4833 + $0x14] sm:$0xf]
        %v4840 = vld [vmem:[%s4833 + $0x18] sm:$0xf]
        %v4841 = vld [vmem:[%s4833 + $0x1c] sm:$0xf]
        %v4850 = vunpack.c.l.b16 %v4834
        %v4851 = vunpack.c.l.b16 %v4835
        %v4852 = vunpack.c.l.b16 %v4836
        %v4853 = vunpack.c.l.b16 %v4837
        %v4854 = vunpack.c.l.b16 %v4838
        %v4855 = vunpack.c.l.b16 %v4839
        %v4856 = vunpack.c.l.b16 %v4840
        %v4857 = vunpack.c.l.b16 %v4841
        %v4858 = vpack.c.b16 %v4851, %v4850
        %v4859 = vpack.c.b16 %v4853, %v4852
        %v4860 = vpack.c.b16 %v4855, %v4854
        %v4861 = vpack.c.b16 %v4857, %v4856
        %v4867 = vsel %vm3134, %v4817, 0
        %v4870 = vsel %vm3134, %v4818, 0
        %v4873 = vsel %vm3134, %v4819, 0
        %v4876 = vsel %vm3134, %v4820, 0
        %v4879 = vsel %vm3134, %v4821, 0
        %v4882 = vsel %vm3134, %v4822, 0
        %v4885 = vsel %vm3134, %v4823, 0
        %v4888 = vsel %vm3134, %v4824, 0
        %v4891 = vsel %vm3134, %v4825, 0
        %v4894 = vsel %vm3134, %v4826, 0
        %v4897 = vsel %vm3134, %v4827, 0
        %v4900 = vsel %vm3134, %v4828, 0
        %v4903 = vsel %vm3134, %v4829, 0
        %v4906 = vsel %vm3134, %v4830, 0
        %v4909 = vsel %vm3134, %v4831, 0
        %v4912 = vsel %vm3134, %v4832, 0
        %4914 = vmatprep.subr.bf16.mxu0 0
        %4915 = vmatpush1.bf16.msra.mxu0 %v4858
        %4916 = vmatprep.subr.bf16.mxu0 0
        %4917 = vmatpush1.bf16.msra.mxu0 %v4859
        %4918 = vmatprep.subr.bf16.mxu0 0
        %4919 = vmatpush1.bf16.msra.mxu0 %v4860
        %4920 = vmatprep.subr.bf16.mxu0 0
        %4921 = vmatpush1.bf16.msra.mxu0 %v4861
        %4922 = vmatprep.subr.bf16.mxu0 0
        %4923 = vmatpush1.bf16.msra.mxu0 0
        %4924 = vmatprep.subr.bf16.mxu0 0
        %4925 = vmatpush1.bf16.msra.mxu0 0
        %4926 = vmatprep.subr.bf16.mxu0 0
        %4927 = vmatpush1.bf16.msra.mxu0 0
        %4928 = vmatprep.subr.bf16.mxu0 0
        %4929 = vmatpush1.bf16.msra.mxu0 0
        %4930 = vmatprep.subr.bf16.mxu0 0
        %4931 = vmatpush1.bf16.msra.mxu0 0
        %4932 = vmatprep.subr.bf16.mxu0 0
        %4933 = vmatpush1.bf16.msra.mxu0 0
        %4934 = vmatprep.subr.bf16.mxu0 0
        %4935 = vmatpush1.bf16.msra.mxu0 0
        %4936 = vmatprep.subr.bf16.mxu0 0
        %4937 = vmatpush1.bf16.msra.mxu0 0
        %4938 = vmatprep.subr.bf16.mxu0 0
        %4939 = vmatpush1.bf16.msra.mxu0 0
        %4940 = vmatprep.subr.bf16.mxu0 0
        %4941 = vmatpush1.bf16.msra.mxu0 0
        %4942 = vmatprep.subr.bf16.mxu0 0
        %4943 = vmatpush1.bf16.msra.mxu0 0
        %4944 = vmatprep.subr.bf16.mxu0 0
        %4945 = vmatpush1.bf16.msra.mxu0 0
        %4946 = vmatprep.mubr.bf16.mxu0 0
        %4947 = vmatmul.mubr.bf16.gmra.mrb[0].mxu0 %v4867
        %v4948 = vpop.f32.mrb[0].mxu0
        %v4949 = vadd.f32 0.0, %v4948
        %v4950 = vpop.f32.mrb[0].mxu0
        %v4951 = vpop.f32.mrb[0].mxu0
        %v4952 = vadd.f32 0.0, %v4951
        %v4953 = vpop.f32.mrb[0].mxu0
        %4954 = vmatprep.mubr.bf16.mxu0 0
        %4955 = vmatmul.mubr.bf16.gmra.mrb[0].mxu0 %v4870
        %v4956 = vpop.f32.mrb[0].mxu0
        %v4957 = vadd.f32 0.0, %v4956
        %v4958 = vpop.f32.mrb[0].mxu0
        %v4959 = vpop.f32.mrb[0].mxu0
        %v4960 = vadd.f32 0.0, %v4959
        %v4961 = vpop.f32.mrb[0].mxu0
        %4962 = vmatprep.mubr.bf16.mxu0 0
        %4963 = vmatmul.mubr.bf16.gmra.mrb[0].mxu0 %v4873
        %v4964 = vpop.f32.mrb[0].mxu0
        %v4965 = vadd.f32 0.0, %v4964
        %v4966 = vpop.f32.mrb[0].mxu0
        %v4967 = vpop.f32.mrb[0].mxu0
        %v4968 = vadd.f32 0.0, %v4967
        %v4969 = vpop.f32.mrb[0].mxu0
        %4970 = vmatprep.mubr.bf16.mxu0 0
        %4971 = vmatmul.mubr.bf16.gmra.mrb[0].mxu0 %v4876
        %v4972 = vpop.f32.mrb[0].mxu0
        %v4973 = vadd.f32 0.0, %v4972
        %v4974 = vpop.f32.mrb[0].mxu0
        %v4975 = vpop.f32.mrb[0].mxu0
        %v4976 = vadd.f32 0.0, %v4975
        %v4977 = vpop.f32.mrb[0].mxu0
        %4978 = vmatprep.mubr.bf16.mxu0 0
        %4979 = vmatmul.mubr.bf16.gmra.mrb[0].mxu0 %v4879
        %v4980 = vpop.f32.mrb[0].mxu0
        %v4981 = vadd.f32 0.0, %v4980
        %v4982 = vpop.f32.mrb[0].mxu0
        %v4983 = vpop.f32.mrb[0].mxu0
        %v4984 = vadd.f32 0.0, %v4983
        %v4985 = vpop.f32.mrb[0].mxu0
        %4986 = vmatprep.mubr.bf16.mxu0 0
        %4987 = vmatmul.mubr.bf16.gmra.mrb[0].mxu0 %v4882
        %v4988 = vpop.f32.mrb[0].mxu0
        %v4989 = vadd.f32 0.0, %v4988
        %v4990 = vpop.f32.mrb[0].mxu0
        %v4991 = vpop.f32.mrb[0].mxu0
        %v4992 = vadd.f32 0.0, %v4991
        %v4993 = vpop.f32.mrb[0].mxu0
        %4994 = vmatprep.mubr.bf16.mxu0 0
        %4995 = vmatmul.mubr.bf16.gmra.mrb[0].mxu0 %v4885
        %v4996 = vpop.f32.mrb[0].mxu0
        %v4997 = vadd.f32 0.0, %v4996
        %v4998 = vpop.f32.mrb[0].mxu0
        %v4999 = vpop.f32.mrb[0].mxu0
        %v5000 = vadd.f32 0.0, %v4999
        %v5001 = vpop.f32.mrb[0].mxu0
        %5002 = vmatprep.mubr.bf16.mxu0 0
        %5003 = vmatmul.mubr.bf16.gmra.mrb[0].mxu0 %v4888
        %v5004 = vpop.f32.mrb[0].mxu0
        %v5005 = vadd.f32 0.0, %v5004
        %v5006 = vpop.f32.mrb[0].mxu0
        %v5007 = vpop.f32.mrb[0].mxu0
        %v5008 = vadd.f32 0.0, %v5007
        %v5009 = vpop.f32.mrb[0].mxu0
        %5010 = vmatprep.mubr.bf16.mxu0 0
        %5011 = vmatmul.mubr.bf16.gmra.mrb[0].mxu0 %v4891
        %v5012 = vpop.f32.mrb[0].mxu0
        %v5013 = vadd.f32 0.0, %v5012
        %v5014 = vpop.f32.mrb[0].mxu0
        %v5015 = vpop.f32.mrb[0].mxu0
        %v5016 = vadd.f32 0.0, %v5015
        %v5017 = vpop.f32.mrb[0].mxu0
        %5018 = vmatprep.mubr.bf16.mxu0 0
        %5019 = vmatmul.mubr.bf16.gmra.mrb[0].mxu0 %v4894
        %v5020 = vpop.f32.mrb[0].mxu0
        %v5021 = vadd.f32 0.0, %v5020
        %v5022 = vpop.f32.mrb[0].mxu0
        %v5023 = vpop.f32.mrb[0].mxu0
        %v5024 = vadd.f32 0.0, %v5023
        %v5025 = vpop.f32.mrb[0].mxu0
        %5026 = vmatprep.mubr.bf16.mxu0 0
        %5027 = vmatmul.mubr.bf16.gmra.mrb[0].mxu0 %v4897
        %v5028 = vpop.f32.mrb[0].mxu0
        %v5029 = vadd.f32 0.0, %v5028
        %v5030 = vpop.f32.mrb[0].mxu0
        %v5031 = vpop.f32.mrb[0].mxu0
        %v5032 = vadd.f32 0.0, %v5031
        %v5033 = vpop.f32.mrb[0].mxu0
        %5034 = vmatprep.mubr.bf16.mxu0 0
        %5035 = vmatmul.mubr.bf16.gmra.mrb[0].mxu0 %v4900
        %v5036 = vpop.f32.mrb[0].mxu0
        %v5037 = vadd.f32 0.0, %v5036
        %v5038 = vpop.f32.mrb[0].mxu0
        %v5039 = vpop.f32.mrb[0].mxu0
        %v5040 = vadd.f32 0.0, %v5039
        %v5041 = vpop.f32.mrb[0].mxu0
        %5042 = vmatprep.mubr.bf16.mxu0 0
        %5043 = vmatmul.mubr.bf16.gmra.mrb[0].mxu0 %v4903
        %v5044 = vpop.f32.mrb[0].mxu0
        %v5045 = vadd.f32 0.0, %v5044
        %v5046 = vpop.f32.mrb[0].mxu0
        %v5047 = vpop.f32.mrb[0].mxu0
        %v5048 = vadd.f32 0.0, %v5047
        %v5049 = vpop.f32.mrb[0].mxu0
        %5050 = vmatprep.mubr.bf16.mxu0 0
        %5051 = vmatmul.mubr.bf16.gmra.mrb[0].mxu0 %v4906
        %v5052 = vpop.f32.mrb[0].mxu0
        %v5053 = vadd.f32 0.0, %v5052
        %v5054 = vpop.f32.mrb[0].mxu0
        %v5055 = vpop.f32.mrb[0].mxu0
        %v5056 = vadd.f32 0.0, %v5055
        %v5057 = vpop.f32.mrb[0].mxu0
        %5058 = vmatprep.mubr.bf16.mxu0 0
        %5059 = vmatmul.mubr.bf16.gmra.mrb[0].mxu0 %v4909
        %v5060 = vpop.f32.mrb[0].mxu0
        %v5061 = vadd.f32 0.0, %v5060
        %v5062 = vpop.f32.mrb[0].mxu0
        %v5063 = vpop.f32.mrb[0].mxu0
        %v5064 = vadd.f32 0.0, %v5063
        %v5065 = vpop.f32.mrb[0].mxu0
        %5066 = vmatprep.mubr.bf16.mxu0 0
        %5067 = vmatmul.mubr.bf16.gmra.mrb[0].mxu0 %v4912
        %v5068 = vpop.f32.mrb[0].mxu0
        %v5069 = vadd.f32 0.0, %v5068
        %v5070 = vpop.f32.mrb[0].mxu0
        %v5071 = vpop.f32.mrb[0].mxu0
        %v5072 = vadd.f32 0.0, %v5071
        %v5073 = vpop.f32.mrb[0].mxu0
        %5074 = vdwg.mxu0
        %v5075 = vadd.f32 %v4753, %v4949
        %v5076 = vadd.f32 %v4754, %v4952
        %v5077 = vadd.f32 %v4755, %v4957
        %v5078 = vadd.f32 %v4756, %v4960
        %v5079 = vadd.f32 %v4757, %v4965
        %v5080 = vadd.f32 %v4758, %v4968
        %v5081 = vadd.f32 %v4759, %v4973
        %v5082 = vadd.f32 %v4760, %v4976
        %v5083 = vadd.f32 %v4761, %v4981
        %v5084 = vadd.f32 %v4762, %v4984
        %v5085 = vadd.f32 %v4763, %v4989
        %v5086 = vadd.f32 %v4764, %v4992
        %v5087 = vadd.f32 %v4765, %v4997
        %v5088 = vadd.f32 %v4766, %v5000
        %v5089 = vadd.f32 %v4767, %v5005
        %v5090 = vadd.f32 %v4768, %v5008
        %v5091 = vadd.f32 %v4769, %v5013
        %v5092 = vadd.f32 %v4770, %v5016
        %v5093 = vadd.f32 %v4771, %v5021
        %v5094 = vadd.f32 %v4772, %v5024
        %v5095 = vadd.f32 %v4773, %v5029
        %v5096 = vadd.f32 %v4774, %v5032
        %v5097 = vadd.f32 %v4775, %v5037
        %v5098 = vadd.f32 %v4776, %v5040
        %v5099 = vadd.f32 %v4777, %v5045
        %v5100 = vadd.f32 %v4778, %v5048
        %v5101 = vadd.f32 %v4779, %v5053
        %v5102 = vadd.f32 %v4780, %v5056
        %v5103 = vadd.f32 %v4781, %v5061
        %v5104 = vadd.f32 %v4782, %v5064
        %v5105 = vadd.f32 %v4783, %v5069
        %v5106 = vadd.f32 %v4784, %v5072
        %s5107 = scalar_lea.vmem [#allocation3], 64
        %v5108 = vld [vmem:[%s5107 + $0x7] sm:$0xff]
        %v5109 = vld [vmem:[%s5107 + $0xf] sm:$0xff]
        %v5110 = vld [vmem:[%s5107 + $0x27] sm:$0xff]
        %v5111 = vld [vmem:[%s5107 + $0x2f] sm:$0xff]
        %v5112 = vld [vmem:[%s5107 + $0x47] sm:$0xff]
        %v5113 = vld [vmem:[%s5107 + $0x4f] sm:$0xff]
        %v5114 = vld [vmem:[%s5107 + $0x67] sm:$0xff]
        %v5115 = vld [vmem:[%s5107 + $0x6f] sm:$0xff]
        %v5116 = vld [vmem:[%s5107 + $0x87] sm:$0xff]
        %v5117 = vld [vmem:[%s5107 + $0x8f] sm:$0xff]
        %v5118 = vld [vmem:[%s5107 + $0xa7] sm:$0xff]
        %v5119 = vld [vmem:[%s5107 + $0xaf] sm:$0xff]
        %v5120 = vld [vmem:[%s5107 + $0xc7] sm:$0xff]
        %v5121 = vld [vmem:[%s5107 + $0xcf] sm:$0xff]
        %v5122 = vld [vmem:[%s5107 + $0xe7] sm:$0xff]
        %v5123 = vld [vmem:[%s5107 + $0xef] sm:$0xff]
        %v5124 = vld [vmem:[%s5107 + $0x107] sm:$0xff]
        %v5125 = vld [vmem:[%s5107 + $0x10f] sm:$0xff]
        %v5126 = vld [vmem:[%s5107 + $0x127] sm:$0xff]
        %v5127 = vld [vmem:[%s5107 + $0x12f] sm:$0xff]
        %v5128 = vld [vmem:[%s5107 + $0x147] sm:$0xff]
        %v5129 = vld [vmem:[%s5107 + $0x14f] sm:$0xff]
        %v5130 = vld [vmem:[%s5107 + $0x167] sm:$0xff]
        %v5131 = vld [vmem:[%s5107 + $0x16f] sm:$0xff]
        %v5132 = vld [vmem:[%s5107 + $0x187] sm:$0xff]
        %v5133 = vld [vmem:[%s5107 + $0x18f] sm:$0xff]
        %v5134 = vld [vmem:[%s5107 + $0x1a7] sm:$0xff]
        %v5135 = vld [vmem:[%s5107 + $0x1af] sm:$0xff]
        %v5136 = vld [vmem:[%s5107 + $0x1c7] sm:$0xff]
        %v5137 = vld [vmem:[%s5107 + $0x1cf] sm:$0xff]
        %v5138 = vld [vmem:[%s5107 + $0x1e7] sm:$0xff]
        %v5139 = vld [vmem:[%s5107 + $0x1ef] sm:$0xff]
        %v5140 = vpack.c.bf16 %v5109, %v5108
        %v5141 = vpack.c.bf16 %v5111, %v5110
        %v5142 = vpack.c.bf16 %v5113, %v5112
        %v5143 = vpack.c.bf16 %v5115, %v5114
        %v5144 = vpack.c.bf16 %v5117, %v5116
        %v5145 = vpack.c.bf16 %v5119, %v5118
        %v5146 = vpack.c.bf16 %v5121, %v5120
        %v5147 = vpack.c.bf16 %v5123, %v5122
        %v5148 = vpack.c.bf16 %v5125, %v5124
        %v5149 = vpack.c.bf16 %v5127, %v5126
        %v5150 = vpack.c.bf16 %v5129, %v5128
        %v5151 = vpack.c.bf16 %v5131, %v5130
        %v5152 = vpack.c.bf16 %v5133, %v5132
        %v5153 = vpack.c.bf16 %v5135, %v5134
        %v5154 = vpack.c.bf16 %v5137, %v5136
        %v5155 = vpack.c.bf16 %v5139, %v5138
        %s5156 = scalar_lea.vmem %s3, 192
        %v5157 = vld [vmem:[%s5156] sm:$0xf]
        %v5158 = vld [vmem:[%s5156 + $0x4] sm:$0xf]
        %v5159 = vld [vmem:[%s5156 + $0x8] sm:$0xf]
        %v5160 = vld [vmem:[%s5156 + $0xc] sm:$0xf]
        %v5161 = vld [vmem:[%s5156 + $0x10] sm:$0xf]
        %v5162 = vld [vmem:[%s5156 + $0x14] sm:$0xf]
        %v5163 = vld [vmem:[%s5156 + $0x18] sm:$0xf]
        %v5164 = vld [vmem:[%s5156 + $0x1c] sm:$0xf]
        %v5173 = vunpack.c.l.b16 %v5157
        %v5174 = vunpack.c.l.b16 %v5158
        %v5175 = vunpack.c.l.b16 %v5159
        %v5176 = vunpack.c.l.b16 %v5160
        %v5177 = vunpack.c.l.b16 %v5161
        %v5178 = vunpack.c.l.b16 %v5162
        %v5179 = vunpack.c.l.b16 %v5163
        %v5180 = vunpack.c.l.b16 %v5164
        %v5181 = vpack.c.b16 %v5174, %v5173
        %v5182 = vpack.c.b16 %v5176, %v5175
        %v5183 = vpack.c.b16 %v5178, %v5177
        %v5184 = vpack.c.b16 %v5180, %v5179
        %v5190 = vsel %vm3134, %v5140, 0
        %v5193 = vsel %vm3134, %v5141, 0
        %v5196 = vsel %vm3134, %v5142, 0
        %v5199 = vsel %vm3134, %v5143, 0
        %v5202 = vsel %vm3134, %v5144, 0
        %v5205 = vsel %vm3134, %v5145, 0
        %v5208 = vsel %vm3134, %v5146, 0
        %v5211 = vsel %vm3134, %v5147, 0
        %v5214 = vsel %vm3134, %v5148, 0
        %v5217 = vsel %vm3134, %v5149, 0
        %v5220 = vsel %vm3134, %v5150, 0
        %v5223 = vsel %vm3134, %v5151, 0
        %v5226 = vsel %vm3134, %v5152, 0
        %v5229 = vsel %vm3134, %v5153, 0
        %v5232 = vsel %vm3134, %v5154, 0
        %v5235 = vsel %vm3134, %v5155, 0
        %5237 = vmatprep.subr.bf16.mxu0 0
        %5238 = vmatpush1.bf16.msra.mxu0 %v5181
        %5239 = vmatprep.subr.bf16.mxu0 0
        %5240 = vmatpush1.bf16.msra.mxu0 %v5182
        %5241 = vmatprep.subr.bf16.mxu0 0
        %5242 = vmatpush1.bf16.msra.mxu0 %v5183
        %5243 = vmatprep.subr.bf16.mxu0 0
        %5244 = vmatpush1.bf16.msra.mxu0 %v5184
        %5245 = vmatprep.subr.bf16.mxu0 0
        %5246 = vmatpush1.bf16.msra.mxu0 0
        %5247 = vmatprep.subr.bf16.mxu0 0
        %5248 = vmatpush1.bf16.msra.mxu0 0
        %5249 = vmatprep.subr.bf16.mxu0 0
        %5250 = vmatpush1.bf16.msra.mxu0 0
        %5251 = vmatprep.subr.bf16.mxu0 0
        %5252 = vmatpush1.bf16.msra.mxu0 0
        %5253 = vmatprep.subr.bf16.mxu0 0
        %5254 = vmatpush1.bf16.msra.mxu0 0
        %5255 = vmatprep.subr.bf16.mxu0 0
        %5256 = vmatpush1.bf16.msra.mxu0 0
        %5257 = vmatprep.subr.bf16.mxu0 0
        %5258 = vmatpush1.bf16.msra.mxu0 0
        %5259 = vmatprep.subr.bf16.mxu0 0
        %5260 = vmatpush1.bf16.msra.mxu0 0
        %5261 = vmatprep.subr.bf16.mxu0 0
        %5262 = vmatpush1.bf16.msra.mxu0 0
        %5263 = vmatprep.subr.bf16.mxu0 0
        %5264 = vmatpush1.bf16.msra.mxu0 0
        %5265 = vmatprep.subr.bf16.mxu0 0
        %5266 = vmatpush1.bf16.msra.mxu0 0
        %5267 = vmatprep.subr.bf16.mxu0 0
        %5268 = vmatpush1.bf16.msra.mxu0 0
        %5269 = vmatprep.mubr.bf16.mxu0 0
        %5270 = vmatmul.mubr.bf16.gmra.mrb[0].mxu0 %v5190
        %v5271 = vpop.f32.mrb[0].mxu0
        %v5272 = vadd.f32 0.0, %v5271
        %v5273 = vpop.f32.mrb[0].mxu0
        %v5274 = vpop.f32.mrb[0].mxu0
        %v5275 = vadd.f32 0.0, %v5274
        %v5276 = vpop.f32.mrb[0].mxu0
        %5277 = vmatprep.mubr.bf16.mxu0 0
        %5278 = vmatmul.mubr.bf16.gmra.mrb[0].mxu0 %v5193
        %v5279 = vpop.f32.mrb[0].mxu0
        %v5280 = vadd.f32 0.0, %v5279
        %v5281 = vpop.f32.mrb[0].mxu0
        %v5282 = vpop.f32.mrb[0].mxu0
        %v5283 = vadd.f32 0.0, %v5282
        %v5284 = vpop.f32.mrb[0].mxu0
        %5285 = vmatprep.mubr.bf16.mxu0 0
        %5286 = vmatmul.mubr.bf16.gmra.mrb[0].mxu0 %v5196
        %v5287 = vpop.f32.mrb[0].mxu0
        %v5288 = vadd.f32 0.0, %v5287
        %v5289 = vpop.f32.mrb[0].mxu0
        %v5290 = vpop.f32.mrb[0].mxu0
        %v5291 = vadd.f32 0.0, %v5290
        %v5292 = vpop.f32.mrb[0].mxu0
        %5293 = vmatprep.mubr.bf16.mxu0 0
        %5294 = vmatmul.mubr.bf16.gmra.mrb[0].mxu0 %v5199
        %v5295 = vpop.f32.mrb[0].mxu0
        %v5296 = vadd.f32 0.0, %v5295
        %v5297 = vpop.f32.mrb[0].mxu0
        %v5298 = vpop.f32.mrb[0].mxu0
        %v5299 = vadd.f32 0.0, %v5298
        %v5300 = vpop.f32.mrb[0].mxu0
        %5301 = vmatprep.mubr.bf16.mxu0 0
        %5302 = vmatmul.mubr.bf16.gmra.mrb[0].mxu0 %v5202
        %v5303 = vpop.f32.mrb[0].mxu0
        %v5304 = vadd.f32 0.0, %v5303
        %v5305 = vpop.f32.mrb[0].mxu0
        %v5306 = vpop.f32.mrb[0].mxu0
        %v5307 = vadd.f32 0.0, %v5306
        %v5308 = vpop.f32.mrb[0].mxu0
        %5309 = vmatprep.mubr.bf16.mxu0 0
        %5310 = vmatmul.mubr.bf16.gmra.mrb[0].mxu0 %v5205
        %v5311 = vpop.f32.mrb[0].mxu0
        %v5312 = vadd.f32 0.0, %v5311
        %v5313 = vpop.f32.mrb[0].mxu0
        %v5314 = vpop.f32.mrb[0].mxu0
        %v5315 = vadd.f32 0.0, %v5314
        %v5316 = vpop.f32.mrb[0].mxu0
        %5317 = vmatprep.mubr.bf16.mxu0 0
        %5318 = vmatmul.mubr.bf16.gmra.mrb[0].mxu0 %v5208
        %v5319 = vpop.f32.mrb[0].mxu0
        %v5320 = vadd.f32 0.0, %v5319
        %v5321 = vpop.f32.mrb[0].mxu0
        %v5322 = vpop.f32.mrb[0].mxu0
        %v5323 = vadd.f32 0.0, %v5322
        %v5324 = vpop.f32.mrb[0].mxu0
        %5325 = vmatprep.mubr.bf16.mxu0 0
        %5326 = vmatmul.mubr.bf16.gmra.mrb[0].mxu0 %v5211
        %v5327 = vpop.f32.mrb[0].mxu0
        %v5328 = vadd.f32 0.0, %v5327
        %v5329 = vpop.f32.mrb[0].mxu0
        %v5330 = vpop.f32.mrb[0].mxu0
        %v5331 = vadd.f32 0.0, %v5330
        %v5332 = vpop.f32.mrb[0].mxu0
        %5333 = vmatprep.mubr.bf16.mxu0 0
        %5334 = vmatmul.mubr.bf16.gmra.mrb[0].mxu0 %v5214
        %v5335 = vpop.f32.mrb[0].mxu0
        %v5336 = vadd.f32 0.0, %v5335
        %v5337 = vpop.f32.mrb[0].mxu0
        %v5338 = vpop.f32.mrb[0].mxu0
        %v5339 = vadd.f32 0.0, %v5338
        %v5340 = vpop.f32.mrb[0].mxu0
        %5341 = vmatprep.mubr.bf16.mxu0 0
        %5342 = vmatmul.mubr.bf16.gmra.mrb[0].mxu0 %v5217
        %v5343 = vpop.f32.mrb[0].mxu0
        %v5344 = vadd.f32 0.0, %v5343
        %v5345 = vpop.f32.mrb[0].mxu0
        %v5346 = vpop.f32.mrb[0].mxu0
        %v5347 = vadd.f32 0.0, %v5346
        %v5348 = vpop.f32.mrb[0].mxu0
        %5349 = vmatprep.mubr.bf16.mxu0 0
        %5350 = vmatmul.mubr.bf16.gmra.mrb[0].mxu0 %v5220
        %v5351 = vpop.f32.mrb[0].mxu0
        %v5352 = vadd.f32 0.0, %v5351
        %v5353 = vpop.f32.mrb[0].mxu0
        %v5354 = vpop.f32.mrb[0].mxu0
        %v5355 = vadd.f32 0.0, %v5354
        %v5356 = vpop.f32.mrb[0].mxu0
        %5357 = vmatprep.mubr.bf16.mxu0 0
        %5358 = vmatmul.mubr.bf16.gmra.mrb[0].mxu0 %v5223
        %v5359 = vpop.f32.mrb[0].mxu0
        %v5360 = vadd.f32 0.0, %v5359
        %v5361 = vpop.f32.mrb[0].mxu0
        %v5362 = vpop.f32.mrb[0].mxu0
        %v5363 = vadd.f32 0.0, %v5362
        %v5364 = vpop.f32.mrb[0].mxu0
        %5365 = vmatprep.mubr.bf16.mxu0 0
        %5366 = vmatmul.mubr.bf16.gmra.mrb[0].mxu0 %v5226
        %v5367 = vpop.f32.mrb[0].mxu0
        %v5368 = vadd.f32 0.0, %v5367
        %v5369 = vpop.f32.mrb[0].mxu0
        %v5370 = vpop.f32.mrb[0].mxu0
        %v5371 = vadd.f32 0.0, %v5370
        %v5372 = vpop.f32.mrb[0].mxu0
        %5373 = vmatprep.mubr.bf16.mxu0 0
        %5374 = vmatmul.mubr.bf16.gmra.mrb[0].mxu0 %v5229
        %v5375 = vpop.f32.mrb[0].mxu0
        %v5376 = vadd.f32 0.0, %v5375
        %v5377 = vpop.f32.mrb[0].mxu0
        %v5378 = vpop.f32.mrb[0].mxu0
        %v5379 = vadd.f32 0.0, %v5378
        %v5380 = vpop.f32.mrb[0].mxu0
        %5381 = vmatprep.mubr.bf16.mxu0 0
        %5382 = vmatmul.mubr.bf16.gmra.mrb[0].mxu0 %v5232
        %v5383 = vpop.f32.mrb[0].mxu0
        %v5384 = vadd.f32 0.0, %v5383
        %v5385 = vpop.f32.mrb[0].mxu0
        %v5386 = vpop.f32.mrb[0].mxu0
        %v5387 = vadd.f32 0.0, %v5386
        %v5388 = vpop.f32.mrb[0].mxu0
        %5389 = vmatprep.mubr.bf16.mxu0 0
        %5390 = vmatmul.mubr.bf16.gmra.mrb[0].mxu0 %v5235
        %v5391 = vpop.f32.mrb[0].mxu0
        %v5392 = vadd.f32 0.0, %v5391
        %v5393 = vpop.f32.mrb[0].mxu0
        %v5394 = vpop.f32.mrb[0].mxu0
        %v5395 = vadd.f32 0.0, %v5394
        %v5396 = vpop.f32.mrb[0].mxu0
        %5397 = vdwg.mxu0
        %v5398 = vadd.f32 %v5075, %v5272
        %v5399 = vadd.f32 %v5076, %v5275
        %v5400 = vadd.f32 %v5077, %v5280
        %v5401 = vadd.f32 %v5078, %v5283
        %v5402 = vadd.f32 %v5079, %v5288
        %v5403 = vadd.f32 %v5080, %v5291
        %v5404 = vadd.f32 %v5081, %v5296
        %v5405 = vadd.f32 %v5082, %v5299
        %v5406 = vadd.f32 %v5083, %v5304
        %v5407 = vadd.f32 %v5084, %v5307
        %v5408 = vadd.f32 %v5085, %v5312
        %v5409 = vadd.f32 %v5086, %v5315
        %v5410 = vadd.f32 %v5087, %v5320
        %v5411 = vadd.f32 %v5088, %v5323
        %v5412 = vadd.f32 %v5089, %v5328
        %v5413 = vadd.f32 %v5090, %v5331
        %v5414 = vadd.f32 %v5091, %v5336
        %v5415 = vadd.f32 %v5092, %v5339
        %v5416 = vadd.f32 %v5093, %v5344
        %v5417 = vadd.f32 %v5094, %v5347
        %v5418 = vadd.f32 %v5095, %v5352
        %v5419 = vadd.f32 %v5096, %v5355
        %v5420 = vadd.f32 %v5097, %v5360
        %v5421 = vadd.f32 %v5098, %v5363
        %v5422 = vadd.f32 %v5099, %v5368
        %v5423 = vadd.f32 %v5100, %v5371
        %v5424 = vadd.f32 %v5101, %v5376
        %v5425 = vadd.f32 %v5102, %v5379
        %v5426 = vadd.f32 %v5103, %v5384
        %v5427 = vadd.f32 %v5104, %v5387
        %v5428 = vadd.f32 %v5105, %v5392
        %v5429 = vadd.f32 %v5106, %v5395
        %v5430 = vld [vmem:[%s5107 + $0x8] sm:$0xff]
        %v5431 = vld [vmem:[%s5107 + $0x10] sm:$0xff]
        %v5432 = vld [vmem:[%s5107 + $0x28] sm:$0xff]
        %v5433 = vld [vmem:[%s5107 + $0x30] sm:$0xff]
        %v5434 = vld [vmem:[%s5107 + $0x48] sm:$0xff]
        %v5435 = vld [vmem:[%s5107 + $0x50] sm:$0xff]
        %v5436 = vld [vmem:[%s5107 + $0x68] sm:$0xff]
        %v5437 = vld [vmem:[%s5107 + $0x70] sm:$0xff]
        %v5438 = vld [vmem:[%s5107 + $0x88] sm:$0xff]
        %v5439 = vld [vmem:[%s5107 + $0x90] sm:$0xff]
        %v5440 = vld [vmem:[%s5107 + $0xa8] sm:$0xff]
        %v5441 = vld [vmem:[%s5107 + $0xb0] sm:$0xff]
        %v5442 = vld [vmem:[%s5107 + $0xc8] sm:$0xff]
        %v5443 = vld [vmem:[%s5107 + $0xd0] sm:$0xff]
        %v5444 = vld [vmem:[%s5107 + $0xe8] sm:$0xff]
        %v5445 = vld [vmem:[%s5107 + $0xf0] sm:$0xff]
        %v5446 = vld [vmem:[%s5107 + $0x108] sm:$0xff]
        %v5447 = vld [vmem:[%s5107 + $0x110] sm:$0xff]
        %v5448 = vld [vmem:[%s5107 + $0x128] sm:$0xff]
        %v5449 = vld [vmem:[%s5107 + $0x130] sm:$0xff]
        %v5450 = vld [vmem:[%s5107 + $0x148] sm:$0xff]
        %v5451 = vld [vmem:[%s5107 + $0x150] sm:$0xff]
        %v5452 = vld [vmem:[%s5107 + $0x168] sm:$0xff]
        %v5453 = vld [vmem:[%s5107 + $0x170] sm:$0xff]
        %v5454 = vld [vmem:[%s5107 + $0x188] sm:$0xff]
        %v5455 = vld [vmem:[%s5107 + $0x190] sm:$0xff]
        %v5456 = vld [vmem:[%s5107 + $0x1a8] sm:$0xff]
        %v5457 = vld [vmem:[%s5107 + $0x1b0] sm:$0xff]
        %v5458 = vld [vmem:[%s5107 + $0x1c8] sm:$0xff]
        %v5459 = vld [vmem:[%s5107 + $0x1d0] sm:$0xff]
        %v5460 = vld [vmem:[%s5107 + $0x1e8] sm:$0xff]
        %v5461 = vld [vmem:[%s5107 + $0x1f0] sm:$0xff]
        %v5462 = vpack.c.bf16 %v5431, %v5430
        %v5463 = vpack.c.bf16 %v5433, %v5432
        %v5464 = vpack.c.bf16 %v5435, %v5434
        %v5465 = vpack.c.bf16 %v5437, %v5436
        %v5466 = vpack.c.bf16 %v5439, %v5438
        %v5467 = vpack.c.bf16 %v5441, %v5440
        %v5468 = vpack.c.bf16 %v5443, %v5442
        %v5469 = vpack.c.bf16 %v5445, %v5444
        %v5470 = vpack.c.bf16 %v5447, %v5446
        %v5471 = vpack.c.bf16 %v5449, %v5448
        %v5472 = vpack.c.bf16 %v5451, %v5450
        %v5473 = vpack.c.bf16 %v5453, %v5452
        %v5474 = vpack.c.bf16 %v5455, %v5454
        %v5475 = vpack.c.bf16 %v5457, %v5456
        %v5476 = vpack.c.bf16 %v5459, %v5458
        %v5477 = vpack.c.bf16 %v5461, %v5460
        %s5478 = scalar_lea.vmem %s3, 224
        %v5479 = vld [vmem:[%s5478] sm:$0xf]
        %v5480 = vld [vmem:[%s5478 + $0x4] sm:$0xf]
        %v5481 = vld [vmem:[%s5478 + $0x8] sm:$0xf]
        %v5482 = vld [vmem:[%s5478 + $0xc] sm:$0xf]
        %v5483 = vld [vmem:[%s5478 + $0x10] sm:$0xf]
        %v5484 = vld [vmem:[%s5478 + $0x14] sm:$0xf]
        %v5485 = vld [vmem:[%s5478 + $0x18] sm:$0xf]
        %v5486 = vld [vmem:[%s5478 + $0x1c] sm:$0xf]
        %v5495 = vunpack.c.l.b16 %v5479
        %v5496 = vunpack.c.l.b16 %v5480
        %v5497 = vunpack.c.l.b16 %v5481
        %v5498 = vunpack.c.l.b16 %v5482
        %v5499 = vunpack.c.l.b16 %v5483
        %v5500 = vunpack.c.l.b16 %v5484
        %v5501 = vunpack.c.l.b16 %v5485
        %v5502 = vunpack.c.l.b16 %v5486
        %v5503 = vpack.c.b16 %v5496, %v5495
        %v5504 = vpack.c.b16 %v5498, %v5497
        %v5505 = vpack.c.b16 %v5500, %v5499
        %v5506 = vpack.c.b16 %v5502, %v5501
        %v5512 = vsel %vm3134, %v5462, 0
        %v5515 = vsel %vm3134, %v5463, 0
        %v5518 = vsel %vm3134, %v5464, 0
        %v5521 = vsel %vm3134, %v5465, 0
        %v5524 = vsel %vm3134, %v5466, 0
        %v5527 = vsel %vm3134, %v5467, 0
        %v5530 = vsel %vm3134, %v5468, 0
        %v5533 = vsel %vm3134, %v5469, 0
        %v5536 = vsel %vm3134, %v5470, 0
        %v5539 = vsel %vm3134, %v5471, 0
        %v5542 = vsel %vm3134, %v5472, 0
        %v5545 = vsel %vm3134, %v5473, 0
        %v5548 = vsel %vm3134, %v5474, 0
        %v5551 = vsel %vm3134, %v5475, 0
        %v5554 = vsel %vm3134, %v5476, 0
        %v5557 = vsel %vm3134, %v5477, 0
        %5559 = vmatprep.subr.bf16.mxu0 0
        %5560 = vmatpush1.bf16.msra.mxu0 %v5503
        %5561 = vmatprep.subr.bf16.mxu0 0
        %5562 = vmatpush1.bf16.msra.mxu0 %v5504
        %5563 = vmatprep.subr.bf16.mxu0 0
        %5564 = vmatpush1.bf16.msra.mxu0 %v5505
        %5565 = vmatprep.subr.bf16.mxu0 0
        %5566 = vmatpush1.bf16.msra.mxu0 %v5506
        %5567 = vmatprep.subr.bf16.mxu0 0
        %5568 = vmatpush1.bf16.msra.mxu0 0
        %5569 = vmatprep.subr.bf16.mxu0 0
        %5570 = vmatpush1.bf16.msra.mxu0 0
        %5571 = vmatprep.subr.bf16.mxu0 0
        %5572 = vmatpush1.bf16.msra.mxu0 0
        %5573 = vmatprep.subr.bf16.mxu0 0
        %5574 = vmatpush1.bf16.msra.mxu0 0
        %5575 = vmatprep.subr.bf16.mxu0 0
        %5576 = vmatpush1.bf16.msra.mxu0 0
        %5577 = vmatprep.subr.bf16.mxu0 0
        %5578 = vmatpush1.bf16.msra.mxu0 0
        %5579 = vmatprep.subr.bf16.mxu0 0
        %5580 = vmatpush1.bf16.msra.mxu0 0
        %5581 = vmatprep.subr.bf16.mxu0 0
        %5582 = vmatpush1.bf16.msra.mxu0 0
        %5583 = vmatprep.subr.bf16.mxu0 0
        %5584 = vmatpush1.bf16.msra.mxu0 0
        %5585 = vmatprep.subr.bf16.mxu0 0
        %5586 = vmatpush1.bf16.msra.mxu0 0
        %5587 = vmatprep.subr.bf16.mxu0 0
        %5588 = vmatpush1.bf16.msra.mxu0 0
        %5589 = vmatprep.subr.bf16.mxu0 0
        %5590 = vmatpush1.bf16.msra.mxu0 0
        %5591 = vmatprep.mubr.bf16.mxu0 0
        %5592 = vmatmul.mubr.bf16.gmra.mrb[0].mxu0 %v5512
        %v5593 = vpop.f32.mrb[0].mxu0
        %v5594 = vadd.f32 0.0, %v5593
        %v5595 = vpop.f32.mrb[0].mxu0
        %v5596 = vpop.f32.mrb[0].mxu0
        %v5597 = vadd.f32 0.0, %v5596
        %v5598 = vpop.f32.mrb[0].mxu0
        %5599 = vmatprep.mubr.bf16.mxu0 0
        %5600 = vmatmul.mubr.bf16.gmra.mrb[0].mxu0 %v5515
        %v5601 = vpop.f32.mrb[0].mxu0
        %v5602 = vadd.f32 0.0, %v5601
        %v5603 = vpop.f32.mrb[0].mxu0
        %v5604 = vpop.f32.mrb[0].mxu0
        %v5605 = vadd.f32 0.0, %v5604
        %v5606 = vpop.f32.mrb[0].mxu0
        %5607 = vmatprep.mubr.bf16.mxu0 0
        %5608 = vmatmul.mubr.bf16.gmra.mrb[0].mxu0 %v5518
        %v5609 = vpop.f32.mrb[0].mxu0
        %v5610 = vadd.f32 0.0, %v5609
        %v5611 = vpop.f32.mrb[0].mxu0
        %v5612 = vpop.f32.mrb[0].mxu0
        %v5613 = vadd.f32 0.0, %v5612
        %v5614 = vpop.f32.mrb[0].mxu0
        %5615 = vmatprep.mubr.bf16.mxu0 0
        %5616 = vmatmul.mubr.bf16.gmra.mrb[0].mxu0 %v5521
        %v5617 = vpop.f32.mrb[0].mxu0
        %v5618 = vadd.f32 0.0, %v5617
        %v5619 = vpop.f32.mrb[0].mxu0
        %v5620 = vpop.f32.mrb[0].mxu0
        %v5621 = vadd.f32 0.0, %v5620
        %v5622 = vpop.f32.mrb[0].mxu0
        %5623 = vmatprep.mubr.bf16.mxu0 0
        %5624 = vmatmul.mubr.bf16.gmra.mrb[0].mxu0 %v5524
        %v5625 = vpop.f32.mrb[0].mxu0
        %v5626 = vadd.f32 0.0, %v5625
        %v5627 = vpop.f32.mrb[0].mxu0
        %v5628 = vpop.f32.mrb[0].mxu0
        %v5629 = vadd.f32 0.0, %v5628
        %v5630 = vpop.f32.mrb[0].mxu0
        %5631 = vmatprep.mubr.bf16.mxu0 0
        %5632 = vmatmul.mubr.bf16.gmra.mrb[0].mxu0 %v5527
        %v5633 = vpop.f32.mrb[0].mxu0
        %v5634 = vadd.f32 0.0, %v5633
        %v5635 = vpop.f32.mrb[0].mxu0
        %v5636 = vpop.f32.mrb[0].mxu0
        %v5637 = vadd.f32 0.0, %v5636
        %v5638 = vpop.f32.mrb[0].mxu0
        %5639 = vmatprep.mubr.bf16.mxu0 0
        %5640 = vmatmul.mubr.bf16.gmra.mrb[0].mxu0 %v5530
        %v5641 = vpop.f32.mrb[0].mxu0
        %v5642 = vadd.f32 0.0, %v5641
        %v5643 = vpop.f32.mrb[0].mxu0
        %v5644 = vpop.f32.mrb[0].mxu0
        %v5645 = vadd.f32 0.0, %v5644
        %v5646 = vpop.f32.mrb[0].mxu0
        %5647 = vmatprep.mubr.bf16.mxu0 0
        %5648 = vmatmul.mubr.bf16.gmra.mrb[0].mxu0 %v5533
        %v5649 = vpop.f32.mrb[0].mxu0
        %v5650 = vadd.f32 0.0, %v5649
        %v5651 = vpop.f32.mrb[0].mxu0
        %v5652 = vpop.f32.mrb[0].mxu0
        %v5653 = vadd.f32 0.0, %v5652
        %v5654 = vpop.f32.mrb[0].mxu0
        %5655 = vmatprep.mubr.bf16.mxu0 0
        %5656 = vmatmul.mubr.bf16.gmra.mrb[0].mxu0 %v5536
        %v5657 = vpop.f32.mrb[0].mxu0
        %v5658 = vadd.f32 0.0, %v5657
        %v5659 = vpop.f32.mrb[0].mxu0
        %v5660 = vpop.f32.mrb[0].mxu0
        %v5661 = vadd.f32 0.0, %v5660
        %v5662 = vpop.f32.mrb[0].mxu0
        %5663 = vmatprep.mubr.bf16.mxu0 0
        %5664 = vmatmul.mubr.bf16.gmra.mrb[0].mxu0 %v5539
        %v5665 = vpop.f32.mrb[0].mxu0
        %v5666 = vadd.f32 0.0, %v5665
        %v5667 = vpop.f32.mrb[0].mxu0
        %v5668 = vpop.f32.mrb[0].mxu0
        %v5669 = vadd.f32 0.0, %v5668
        %v5670 = vpop.f32.mrb[0].mxu0
        %5671 = vmatprep.mubr.bf16.mxu0 0
        %5672 = vmatmul.mubr.bf16.gmra.mrb[0].mxu0 %v5542
        %v5673 = vpop.f32.mrb[0].mxu0
        %v5674 = vadd.f32 0.0, %v5673
        %v5675 = vpop.f32.mrb[0].mxu0
        %v5676 = vpop.f32.mrb[0].mxu0
        %v5677 = vadd.f32 0.0, %v5676
        %v5678 = vpop.f32.mrb[0].mxu0
        %5679 = vmatprep.mubr.bf16.mxu0 0
        %5680 = vmatmul.mubr.bf16.gmra.mrb[0].mxu0 %v5545
        %v5681 = vpop.f32.mrb[0].mxu0
        %v5682 = vadd.f32 0.0, %v5681
        %v5683 = vpop.f32.mrb[0].mxu0
        %v5684 = vpop.f32.mrb[0].mxu0
        %v5685 = vadd.f32 0.0, %v5684
        %v5686 = vpop.f32.mrb[0].mxu0
        %5687 = vmatprep.mubr.bf16.mxu0 0
        %5688 = vmatmul.mubr.bf16.gmra.mrb[0].mxu0 %v5548
        %v5689 = vpop.f32.mrb[0].mxu0
        %v5690 = vadd.f32 0.0, %v5689
        %v5691 = vpop.f32.mrb[0].mxu0
        %v5692 = vpop.f32.mrb[0].mxu0
        %v5693 = vadd.f32 0.0, %v5692
        %v5694 = vpop.f32.mrb[0].mxu0
        %5695 = vmatprep.mubr.bf16.mxu0 0
        %5696 = vmatmul.mubr.bf16.gmra.mrb[0].mxu0 %v5551
        %v5697 = vpop.f32.mrb[0].mxu0
        %v5698 = vadd.f32 0.0, %v5697
        %v5699 = vpop.f32.mrb[0].mxu0
        %v5700 = vpop.f32.mrb[0].mxu0
        %v5701 = vadd.f32 0.0, %v5700
        %v5702 = vpop.f32.mrb[0].mxu0
        %5703 = vmatprep.mubr.bf16.mxu0 0
        %5704 = vmatmul.mubr.bf16.gmra.mrb[0].mxu0 %v5554
        %v5705 = vpop.f32.mrb[0].mxu0
        %v5706 = vadd.f32 0.0, %v5705
        %v5707 = vpop.f32.mrb[0].mxu0
        %v5708 = vpop.f32.mrb[0].mxu0
        %v5709 = vadd.f32 0.0, %v5708
        %v5710 = vpop.f32.mrb[0].mxu0
        %5711 = vmatprep.mubr.bf16.mxu0 0
        %5712 = vmatmul.mubr.bf16.gmra.mrb[0].mxu0 %v5557
        %v5713 = vpop.f32.mrb[0].mxu0
        %v5714 = vadd.f32 0.0, %v5713
        %v5715 = vpop.f32.mrb[0].mxu0
        %v5716 = vpop.f32.mrb[0].mxu0
        %v5717 = vadd.f32 0.0, %v5716
        %v5718 = vpop.f32.mrb[0].mxu0
        %5719 = vdwg.mxu0
        %v5720 = vadd.f32 %v5398, %v5594
        %v5721 = vadd.f32 %v5399, %v5597
        %v5722 = vadd.f32 %v5400, %v5602
        %v5723 = vadd.f32 %v5401, %v5605
        %v5724 = vadd.f32 %v5402, %v5610
        %v5725 = vadd.f32 %v5403, %v5613
        %v5726 = vadd.f32 %v5404, %v5618
        %v5727 = vadd.f32 %v5405, %v5621
        %v5728 = vadd.f32 %v5406, %v5626
        %v5729 = vadd.f32 %v5407, %v5629
        %v5730 = vadd.f32 %v5408, %v5634
        %v5731 = vadd.f32 %v5409, %v5637
        %v5732 = vadd.f32 %v5410, %v5642
        %v5733 = vadd.f32 %v5411, %v5645
        %v5734 = vadd.f32 %v5412, %v5650
        %v5735 = vadd.f32 %v5413, %v5653
        %v5736 = vadd.f32 %v5414, %v5658
        %v5737 = vadd.f32 %v5415, %v5661
        %v5738 = vadd.f32 %v5416, %v5666
        %v5739 = vadd.f32 %v5417, %v5669
        %v5740 = vadd.f32 %v5418, %v5674
        %v5741 = vadd.f32 %v5419, %v5677
        %v5742 = vadd.f32 %v5420, %v5682
        %v5743 = vadd.f32 %v5421, %v5685
        %v5744 = vadd.f32 %v5422, %v5690
        %v5745 = vadd.f32 %v5423, %v5693
        %v5746 = vadd.f32 %v5424, %v5698
        %v5747 = vadd.f32 %v5425, %v5701
        %v5748 = vadd.f32 %v5426, %v5706
        %v5749 = vadd.f32 %v5427, %v5709
        %v5750 = vadd.f32 %v5428, %v5714
        %v5751 = vadd.f32 %v5429, %v5717
        %v5752 = vld [vmem:[%s5107 + $0x9] sm:$0xff]
        %v5753 = vld [vmem:[%s5107 + $0x11] sm:$0xff]
        %v5754 = vld [vmem:[%s5107 + $0x29] sm:$0xff]
        %v5755 = vld [vmem:[%s5107 + $0x31] sm:$0xff]
        %v5756 = vld [vmem:[%s5107 + $0x49] sm:$0xff]
        %v5757 = vld [vmem:[%s5107 + $0x51] sm:$0xff]
        %v5758 = vld [vmem:[%s5107 + $0x69] sm:$0xff]
        %v5759 = vld [vmem:[%s5107 + $0x71] sm:$0xff]
        %v5760 = vld [vmem:[%s5107 + $0x89] sm:$0xff]
        %v5761 = vld [vmem:[%s5107 + $0x91] sm:$0xff]
        %v5762 = vld [vmem:[%s5107 + $0xa9] sm:$0xff]
        %v5763 = vld [vmem:[%s5107 + $0xb1] sm:$0xff]
        %v5764 = vld [vmem:[%s5107 + $0xc9] sm:$0xff]
        %v5765 = vld [vmem:[%s5107 + $0xd1] sm:$0xff]
        %v5766 = vld [vmem:[%s5107 + $0xe9] sm:$0xff]
        %v5767 = vld [vmem:[%s5107 + $0xf1] sm:$0xff]
        %v5768 = vld [vmem:[%s5107 + $0x109] sm:$0xff]
        %v5769 = vld [vmem:[%s5107 + $0x111] sm:$0xff]
        %v5770 = vld [vmem:[%s5107 + $0x129] sm:$0xff]
        %v5771 = vld [vmem:[%s5107 + $0x131] sm:$0xff]
        %v5772 = vld [vmem:[%s5107 + $0x149] sm:$0xff]
        %v5773 = vld [vmem:[%s5107 + $0x151] sm:$0xff]
        %v5774 = vld [vmem:[%s5107 + $0x169] sm:$0xff]
        %v5775 = vld [vmem:[%s5107 + $0x171] sm:$0xff]
        %v5776 = vld [vmem:[%s5107 + $0x189] sm:$0xff]
        %v5777 = vld [vmem:[%s5107 + $0x191] sm:$0xff]
        %v5778 = vld [vmem:[%s5107 + $0x1a9] sm:$0xff]
        %v5779 = vld [vmem:[%s5107 + $0x1b1] sm:$0xff]
        %v5780 = vld [vmem:[%s5107 + $0x1c9] sm:$0xff]
        %v5781 = vld [vmem:[%s5107 + $0x1d1] sm:$0xff]
        %v5782 = vld [vmem:[%s5107 + $0x1e9] sm:$0xff]
        %v5783 = vld [vmem:[%s5107 + $0x1f1] sm:$0xff]
        %v5784 = vpack.c.bf16 %v5753, %v5752
        %v5785 = vpack.c.bf16 %v5755, %v5754
        %v5786 = vpack.c.bf16 %v5757, %v5756
        %v5787 = vpack.c.bf16 %v5759, %v5758
        %v5788 = vpack.c.bf16 %v5761, %v5760
        %v5789 = vpack.c.bf16 %v5763, %v5762
        %v5790 = vpack.c.bf16 %v5765, %v5764
        %v5791 = vpack.c.bf16 %v5767, %v5766
        %v5792 = vpack.c.bf16 %v5769, %v5768
        %v5793 = vpack.c.bf16 %v5771, %v5770
        %v5794 = vpack.c.bf16 %v5773, %v5772
        %v5795 = vpack.c.bf16 %v5775, %v5774
        %v5796 = vpack.c.bf16 %v5777, %v5776
        %v5797 = vpack.c.bf16 %v5779, %v5778
        %v5798 = vpack.c.bf16 %v5781, %v5780
        %v5799 = vpack.c.bf16 %v5783, %v5782
        %s5800 = scalar_lea.vmem %s3, 256
        %v5801 = vld [vmem:[%s5800] sm:$0xf]
        %v5802 = vld [vmem:[%s5800 + $0x4] sm:$0xf]
        %v5803 = vld [vmem:[%s5800 + $0x8] sm:$0xf]
        %v5804 = vld [vmem:[%s5800 + $0xc] sm:$0xf]
        %v5805 = vld [vmem:[%s5800 + $0x10] sm:$0xf]
        %v5806 = vld [vmem:[%s5800 + $0x14] sm:$0xf]
        %v5807 = vld [vmem:[%s5800 + $0x18] sm:$0xf]
        %v5808 = vld [vmem:[%s5800 + $0x1c] sm:$0xf]
        %v5817 = vunpack.c.l.b16 %v5801
        %v5818 = vunpack.c.l.b16 %v5802
        %v5819 = vunpack.c.l.b16 %v5803
        %v5820 = vunpack.c.l.b16 %v5804
        %v5821 = vunpack.c.l.b16 %v5805
        %v5822 = vunpack.c.l.b16 %v5806
        %v5823 = vunpack.c.l.b16 %v5807
        %v5824 = vunpack.c.l.b16 %v5808
        %v5825 = vpack.c.b16 %v5818, %v5817
        %v5826 = vpack.c.b16 %v5820, %v5819
        %v5827 = vpack.c.b16 %v5822, %v5821
        %v5828 = vpack.c.b16 %v5824, %v5823
        %v5834 = vsel %vm3134, %v5784, 0
        %v5837 = vsel %vm3134, %v5785, 0
        %v5840 = vsel %vm3134, %v5786, 0
        %v5843 = vsel %vm3134, %v5787, 0
        %v5846 = vsel %vm3134, %v5788, 0
        %v5849 = vsel %vm3134, %v5789, 0
        %v5852 = vsel %vm3134, %v5790, 0
        %v5855 = vsel %vm3134, %v5791, 0
        %v5858 = vsel %vm3134, %v5792, 0
        %v5861 = vsel %vm3134, %v5793, 0
        %v5864 = vsel %vm3134, %v5794, 0
        %v5867 = vsel %vm3134, %v5795, 0
        %v5870 = vsel %vm3134, %v5796, 0
        %v5873 = vsel %vm3134, %v5797, 0
        %v5876 = vsel %vm3134, %v5798, 0
        %v5879 = vsel %vm3134, %v5799, 0
        %5881 = vmatprep.subr.bf16.mxu0 0
        %5882 = vmatpush1.bf16.msra.mxu0 %v5825
        %5883 = vmatprep.subr.bf16.mxu0 0
        %5884 = vmatpush1.bf16.msra.mxu0 %v5826
        %5885 = vmatprep.subr.bf16.mxu0 0
        %5886 = vmatpush1.bf16.msra.mxu0 %v5827
        %5887 = vmatprep.subr.bf16.mxu0 0
        %5888 = vmatpush1.bf16.msra.mxu0 %v5828
        %5889 = vmatprep.subr.bf16.mxu0 0
        %5890 = vmatpush1.bf16.msra.mxu0 0
        %5891 = vmatprep.subr.bf16.mxu0 0
        %5892 = vmatpush1.bf16.msra.mxu0 0
        %5893 = vmatprep.subr.bf16.mxu0 0
        %5894 = vmatpush1.bf16.msra.mxu0 0
        %5895 = vmatprep.subr.bf16.mxu0 0
        %5896 = vmatpush1.bf16.msra.mxu0 0
        %5897 = vmatprep.subr.bf16.mxu0 0
        %5898 = vmatpush1.bf16.msra.mxu0 0
        %5899 = vmatprep.subr.bf16.mxu0 0
        %5900 = vmatpush1.bf16.msra.mxu0 0
        %5901 = vmatprep.subr.bf16.mxu0 0
        %5902 = vmatpush1.bf16.msra.mxu0 0
        %5903 = vmatprep.subr.bf16.mxu0 0
        %5904 = vmatpush1.bf16.msra.mxu0 0
        %5905 = vmatprep.subr.bf16.mxu0 0
        %5906 = vmatpush1.bf16.msra.mxu0 0
        %5907 = vmatprep.subr.bf16.mxu0 0
        %5908 = vmatpush1.bf16.msra.mxu0 0
        %5909 = vmatprep.subr.bf16.mxu0 0
        %5910 = vmatpush1.bf16.msra.mxu0 0
        %5911 = vmatprep.subr.bf16.mxu0 0
        %5912 = vmatpush1.bf16.msra.mxu0 0
        %5913 = vmatprep.mubr.bf16.mxu0 0
        %5914 = vmatmul.mubr.bf16.gmra.mrb[0].mxu0 %v5834
        %v5915 = vpop.f32.mrb[0].mxu0
        %v5916 = vadd.f32 0.0, %v5915
        %v5917 = vpop.f32.mrb[0].mxu0
        %v5918 = vpop.f32.mrb[0].mxu0
        %v5919 = vadd.f32 0.0, %v5918
        %v5920 = vpop.f32.mrb[0].mxu0
        %5921 = vmatprep.mubr.bf16.mxu0 0
        %5922 = vmatmul.mubr.bf16.gmra.mrb[0].mxu0 %v5837
        %v5923 = vpop.f32.mrb[0].mxu0
        %v5924 = vadd.f32 0.0, %v5923
        %v5925 = vpop.f32.mrb[0].mxu0
        %v5926 = vpop.f32.mrb[0].mxu0
        %v5927 = vadd.f32 0.0, %v5926
        %v5928 = vpop.f32.mrb[0].mxu0
        %5929 = vmatprep.mubr.bf16.mxu0 0
        %5930 = vmatmul.mubr.bf16.gmra.mrb[0].mxu0 %v5840
        %v5931 = vpop.f32.mrb[0].mxu0
        %v5932 = vadd.f32 0.0, %v5931
        %v5933 = vpop.f32.mrb[0].mxu0
        %v5934 = vpop.f32.mrb[0].mxu0
        %v5935 = vadd.f32 0.0, %v5934
        %v5936 = vpop.f32.mrb[0].mxu0
        %5937 = vmatprep.mubr.bf16.mxu0 0
        %5938 = vmatmul.mubr.bf16.gmra.mrb[0].mxu0 %v5843
        %v5939 = vpop.f32.mrb[0].mxu0
        %v5940 = vadd.f32 0.0, %v5939
        %v5941 = vpop.f32.mrb[0].mxu0
        %v5942 = vpop.f32.mrb[0].mxu0
        %v5943 = vadd.f32 0.0, %v5942
        %v5944 = vpop.f32.mrb[0].mxu0
        %5945 = vmatprep.mubr.bf16.mxu0 0
        %5946 = vmatmul.mubr.bf16.gmra.mrb[0].mxu0 %v5846
        %v5947 = vpop.f32.mrb[0].mxu0
        %v5948 = vadd.f32 0.0, %v5947
        %v5949 = vpop.f32.mrb[0].mxu0
        %v5950 = vpop.f32.mrb[0].mxu0
        %v5951 = vadd.f32 0.0, %v5950
        %v5952 = vpop.f32.mrb[0].mxu0
        %5953 = vmatprep.mubr.bf16.mxu0 0
        %5954 = vmatmul.mubr.bf16.gmra.mrb[0].mxu0 %v5849
        %v5955 = vpop.f32.mrb[0].mxu0
        %v5956 = vadd.f32 0.0, %v5955
        %v5957 = vpop.f32.mrb[0].mxu0
        %v5958 = vpop.f32.mrb[0].mxu0
        %v5959 = vadd.f32 0.0, %v5958
        %v5960 = vpop.f32.mrb[0].mxu0
        %5961 = vmatprep.mubr.bf16.mxu0 0
        %5962 = vmatmul.mubr.bf16.gmra.mrb[0].mxu0 %v5852
        %v5963 = vpop.f32.mrb[0].mxu0
        %v5964 = vadd.f32 0.0, %v5963
        %v5965 = vpop.f32.mrb[0].mxu0
        %v5966 = vpop.f32.mrb[0].mxu0
        %v5967 = vadd.f32 0.0, %v5966
        %v5968 = vpop.f32.mrb[0].mxu0
        %5969 = vmatprep.mubr.bf16.mxu0 0
        %5970 = vmatmul.mubr.bf16.gmra.mrb[0].mxu0 %v5855
        %v5971 = vpop.f32.mrb[0].mxu0
        %v5972 = vadd.f32 0.0, %v5971
        %v5973 = vpop.f32.mrb[0].mxu0
        %v5974 = vpop.f32.mrb[0].mxu0
        %v5975 = vadd.f32 0.0, %v5974
        %v5976 = vpop.f32.mrb[0].mxu0
        %5977 = vmatprep.mubr.bf16.mxu0 0
        %5978 = vmatmul.mubr.bf16.gmra.mrb[0].mxu0 %v5858
        %v5979 = vpop.f32.mrb[0].mxu0
        %v5980 = vadd.f32 0.0, %v5979
        %v5981 = vpop.f32.mrb[0].mxu0
        %v5982 = vpop.f32.mrb[0].mxu0
        %v5983 = vadd.f32 0.0, %v5982
        %v5984 = vpop.f32.mrb[0].mxu0
        %5985 = vmatprep.mubr.bf16.mxu0 0
        %5986 = vmatmul.mubr.bf16.gmra.mrb[0].mxu0 %v5861
        %v5987 = vpop.f32.mrb[0].mxu0
        %v5988 = vadd.f32 0.0, %v5987
        %v5989 = vpop.f32.mrb[0].mxu0
        %v5990 = vpop.f32.mrb[0].mxu0
        %v5991 = vadd.f32 0.0, %v5990
        %v5992 = vpop.f32.mrb[0].mxu0
        %5993 = vmatprep.mubr.bf16.mxu0 0
        %5994 = vmatmul.mubr.bf16.gmra.mrb[0].mxu0 %v5864
        %v5995 = vpop.f32.mrb[0].mxu0
        %v5996 = vadd.f32 0.0, %v5995
        %v5997 = vpop.f32.mrb[0].mxu0
        %v5998 = vpop.f32.mrb[0].mxu0
        %v5999 = vadd.f32 0.0, %v5998
        %v6000 = vpop.f32.mrb[0].mxu0
        %6001 = vmatprep.mubr.bf16.mxu0 0
        %6002 = vmatmul.mubr.bf16.gmra.mrb[0].mxu0 %v5867
        %v6003 = vpop.f32.mrb[0].mxu0
        %v6004 = vadd.f32 0.0, %v6003
        %v6005 = vpop.f32.mrb[0].mxu0
        %v6006 = vpop.f32.mrb[0].mxu0
        %v6007 = vadd.f32 0.0, %v6006
        %v6008 = vpop.f32.mrb[0].mxu0
        %6009 = vmatprep.mubr.bf16.mxu0 0
        %6010 = vmatmul.mubr.bf16.gmra.mrb[0].mxu0 %v5870
        %v6011 = vpop.f32.mrb[0].mxu0
        %v6012 = vadd.f32 0.0, %v6011
        %v6013 = vpop.f32.mrb[0].mxu0
        %v6014 = vpop.f32.mrb[0].mxu0
        %v6015 = vadd.f32 0.0, %v6014
        %v6016 = vpop.f32.mrb[0].mxu0
        %6017 = vmatprep.mubr.bf16.mxu0 0
        %6018 = vmatmul.mubr.bf16.gmra.mrb[0].mxu0 %v5873
        %v6019 = vpop.f32.mrb[0].mxu0
        %v6020 = vadd.f32 0.0, %v6019
        %v6021 = vpop.f32.mrb[0].mxu0
        %v6022 = vpop.f32.mrb[0].mxu0
        %v6023 = vadd.f32 0.0, %v6022
        %v6024 = vpop.f32.mrb[0].mxu0
        %6025 = vmatprep.mubr.bf16.mxu0 0
        %6026 = vmatmul.mubr.bf16.gmra.mrb[0].mxu0 %v5876
        %v6027 = vpop.f32.mrb[0].mxu0
        %v6028 = vadd.f32 0.0, %v6027
        %v6029 = vpop.f32.mrb[0].mxu0
        %v6030 = vpop.f32.mrb[0].mxu0
        %v6031 = vadd.f32 0.0, %v6030
        %v6032 = vpop.f32.mrb[0].mxu0
        %6033 = vmatprep.mubr.bf16.mxu0 0
        %6034 = vmatmul.mubr.bf16.gmra.mrb[0].mxu0 %v5879
        %v6035 = vpop.f32.mrb[0].mxu0
        %v6036 = vadd.f32 0.0, %v6035
        %v6037 = vpop.f32.mrb[0].mxu0
        %v6038 = vpop.f32.mrb[0].mxu0
        %v6039 = vadd.f32 0.0, %v6038
        %v6040 = vpop.f32.mrb[0].mxu0
        %6041 = vdwg.mxu0
        %v6042 = vadd.f32 %v5720, %v5916
        %v6043 = vadd.f32 %v5721, %v5919
        %v6044 = vadd.f32 %v5722, %v5924
        %v6045 = vadd.f32 %v5723, %v5927
        %v6046 = vadd.f32 %v5724, %v5932
        %v6047 = vadd.f32 %v5725, %v5935
        %v6048 = vadd.f32 %v5726, %v5940
        %v6049 = vadd.f32 %v5727, %v5943
        %v6050 = vadd.f32 %v5728, %v5948
        %v6051 = vadd.f32 %v5729, %v5951
        %v6052 = vadd.f32 %v5730, %v5956
        %v6053 = vadd.f32 %v5731, %v5959
        %v6054 = vadd.f32 %v5732, %v5964
        %v6055 = vadd.f32 %v5733, %v5967
        %v6056 = vadd.f32 %v5734, %v5972
        %v6057 = vadd.f32 %v5735, %v5975
        %v6058 = vadd.f32 %v5736, %v5980
        %v6059 = vadd.f32 %v5737, %v5983
        %v6060 = vadd.f32 %v5738, %v5988
        %v6061 = vadd.f32 %v5739, %v5991
        %v6062 = vadd.f32 %v5740, %v5996
        %v6063 = vadd.f32 %v5741, %v5999
        %v6064 = vadd.f32 %v5742, %v6004
        %v6065 = vadd.f32 %v5743, %v6007
        %v6066 = vadd.f32 %v5744, %v6012
        %v6067 = vadd.f32 %v5745, %v6015
        %v6068 = vadd.f32 %v5746, %v6020
        %v6069 = vadd.f32 %v5747, %v6023
        %v6070 = vadd.f32 %v5748, %v6028
        %v6071 = vadd.f32 %v5749, %v6031
        %v6072 = vadd.f32 %v5750, %v6036
        %v6073 = vadd.f32 %v5751, %v6039
        %v6074 = vld [vmem:[%s4] sm:$0x1]
        %v6076 = vlaneseq
        %v6077 = vshrl.u32 %v6076, 7
        %v6078 = vsub.s32 0, %v6077
        %v6079 = vrot.slane %v6074, %v6078
        %v6081 = vadd.f32 %v6042, %v6079
        %v6082 = vadd.f32 %v6043, %v6079
        %v6083 = vadd.f32 %v6044, %v6079
        %v6084 = vadd.f32 %v6045, %v6079
        %v6085 = vadd.f32 %v6046, %v6079
        %v6086 = vadd.f32 %v6047, %v6079
        %v6087 = vadd.f32 %v6048, %v6079
        %v6088 = vadd.f32 %v6049, %v6079
        %v6089 = vadd.f32 %v6050, %v6079
        %v6090 = vadd.f32 %v6051, %v6079
        %v6091 = vadd.f32 %v6052, %v6079
        %v6092 = vadd.f32 %v6053, %v6079
        %v6093 = vadd.f32 %v6054, %v6079
        %v6094 = vadd.f32 %v6055, %v6079
        %v6095 = vadd.f32 %v6056, %v6079
        %v6096 = vadd.f32 %v6057, %v6079
        %v6097 = vadd.f32 %v6058, %v6079
        %v6098 = vadd.f32 %v6059, %v6079
        %v6099 = vadd.f32 %v6060, %v6079
        %v6100 = vadd.f32 %v6061, %v6079
        %v6101 = vadd.f32 %v6062, %v6079
        %v6102 = vadd.f32 %v6063, %v6079
        %v6103 = vadd.f32 %v6064, %v6079
        %v6104 = vadd.f32 %v6065, %v6079
        %v6105 = vadd.f32 %v6066, %v6079
        %v6106 = vadd.f32 %v6067, %v6079
        %v6107 = vadd.f32 %v6068, %v6079
        %v6108 = vadd.f32 %v6069, %v6079
        %v6109 = vadd.f32 %v6070, %v6079
        %v6110 = vadd.f32 %v6071, %v6079
        %v6111 = vadd.f32 %v6072, %v6079
        %v6112 = vadd.f32 %v6073, %v6079
        %vm6113 = vcmp.ge.f32.partialorder %v6081, 0.0
        %vm6114 = vcmp.ge.f32.partialorder %v6082, 0.0
        %vm6115 = vcmp.ge.f32.partialorder %v6083, 0.0
        %vm6116 = vcmp.ge.f32.partialorder %v6084, 0.0
        %vm6117 = vcmp.ge.f32.partialorder %v6085, 0.0
        %vm6118 = vcmp.ge.f32.partialorder %v6086, 0.0
        %vm6119 = vcmp.ge.f32.partialorder %v6087, 0.0
        %vm6120 = vcmp.ge.f32.partialorder %v6088, 0.0
        %vm6121 = vcmp.ge.f32.partialorder %v6089, 0.0
        %vm6122 = vcmp.ge.f32.partialorder %v6090, 0.0
        %vm6123 = vcmp.ge.f32.partialorder %v6091, 0.0
        %vm6124 = vcmp.ge.f32.partialorder %v6092, 0.0
        %vm6125 = vcmp.ge.f32.partialorder %v6093, 0.0
        %vm6126 = vcmp.ge.f32.partialorder %v6094, 0.0
        %vm6127 = vcmp.ge.f32.partialorder %v6095, 0.0
        %vm6128 = vcmp.ge.f32.partialorder %v6096, 0.0
        %vm6129 = vcmp.ge.f32.partialorder %v6097, 0.0
        %vm6130 = vcmp.ge.f32.partialorder %v6098, 0.0
        %vm6131 = vcmp.ge.f32.partialorder %v6099, 0.0
        %vm6132 = vcmp.ge.f32.partialorder %v6100, 0.0
        %vm6133 = vcmp.ge.f32.partialorder %v6101, 0.0
        %vm6134 = vcmp.ge.f32.partialorder %v6102, 0.0
        %vm6135 = vcmp.ge.f32.partialorder %v6103, 0.0
        %vm6136 = vcmp.ge.f32.partialorder %v6104, 0.0
        %vm6137 = vcmp.ge.f32.partialorder %v6105, 0.0
        %vm6138 = vcmp.ge.f32.partialorder %v6106, 0.0
        %vm6139 = vcmp.ge.f32.partialorder %v6107, 0.0
        %vm6140 = vcmp.ge.f32.partialorder %v6108, 0.0
        %vm6141 = vcmp.ge.f32.partialorder %v6109, 0.0
        %vm6142 = vcmp.ge.f32.partialorder %v6110, 0.0
        %vm6143 = vcmp.ge.f32.partialorder %v6111, 0.0
        %vm6144 = vcmp.ge.f32.partialorder %v6112, 0.0
        %v6145 = vmul.f32 %v6081, 0.5
        %v6146 = vmul.f32 %v6082, 0.5
        %v6147 = vmul.f32 %v6083, 0.5
        %v6148 = vmul.f32 %v6084, 0.5
        %v6149 = vmul.f32 %v6085, 0.5
        %v6150 = vmul.f32 %v6086, 0.5
        %v6151 = vmul.f32 %v6087, 0.5
        %v6152 = vmul.f32 %v6088, 0.5
        %v6153 = vmul.f32 %v6089, 0.5
        %v6154 = vmul.f32 %v6090, 0.5
        %v6155 = vmul.f32 %v6091, 0.5
        %v6156 = vmul.f32 %v6092, 0.5
        %v6157 = vmul.f32 %v6093, 0.5
        %v6158 = vmul.f32 %v6094, 0.5
        %v6159 = vmul.f32 %v6095, 0.5
        %v6160 = vmul.f32 %v6096, 0.5
        %v6161 = vmul.f32 %v6097, 0.5
        %v6162 = vmul.f32 %v6098, 0.5
        %v6163 = vmul.f32 %v6099, 0.5
        %v6164 = vmul.f32 %v6100, 0.5
        %v6165 = vmul.f32 %v6101, 0.5
        %v6166 = vmul.f32 %v6102, 0.5
        %v6167 = vmul.f32 %v6103, 0.5
        %v6168 = vmul.f32 %v6104, 0.5
        %v6169 = vmul.f32 %v6105, 0.5
        %v6170 = vmul.f32 %v6106, 0.5
        %v6171 = vmul.f32 %v6107, 0.5
        %v6172 = vmul.f32 %v6108, 0.5
        %v6173 = vmul.f32 %v6109, 0.5
        %v6174 = vmul.f32 %v6110, 0.5
        %v6175 = vmul.f32 %v6111, 0.5
        %v6176 = vmul.f32 %v6112, 0.5
        %v6177 = vsel %vm6113, %v6081, %v6145
        %v6178 = vsel %vm6114, %v6082, %v6146
        %v6179 = vsel %vm6115, %v6083, %v6147
        %v6180 = vsel %vm6116, %v6084, %v6148
        %v6181 = vsel %vm6117, %v6085, %v6149
        %v6182 = vsel %vm6118, %v6086, %v6150
        %v6183 = vsel %vm6119, %v6087, %v6151
        %v6184 = vsel %vm6120, %v6088, %v6152
        %v6185 = vsel %vm6121, %v6089, %v6153
        %v6186 = vsel %vm6122, %v6090, %v6154
        %v6187 = vsel %vm6123, %v6091, %v6155
        %v6188 = vsel %vm6124, %v6092, %v6156
        %v6189 = vsel %vm6125, %v6093, %v6157
        %v6190 = vsel %vm6126, %v6094, %v6158
        %v6191 = vsel %vm6127, %v6095, %v6159
        %v6192 = vsel %vm6128, %v6096, %v6160
        %v6193 = vsel %vm6129, %v6097, %v6161
        %v6194 = vsel %vm6130, %v6098, %v6162
        %v6195 = vsel %vm6131, %v6099, %v6163
        %v6196 = vsel %vm6132, %v6100, %v6164
        %v6197 = vsel %vm6133, %v6101, %v6165
        %v6198 = vsel %vm6134, %v6102, %v6166
        %v6199 = vsel %vm6135, %v6103, %v6167
        %v6200 = vsel %vm6136, %v6104, %v6168
        %v6201 = vsel %vm6137, %v6105, %v6169
        %v6202 = vsel %vm6138, %v6106, %v6170
        %v6203 = vsel %vm6139, %v6107, %v6171
        %v6204 = vsel %vm6140, %v6108, %v6172
        %v6205 = vsel %vm6141, %v6109, %v6173
        %v6206 = vsel %vm6142, %v6110, %v6174
        %v6207 = vsel %vm6143, %v6111, %v6175
        %v6208 = vsel %vm6144, %v6112, %v6176
        %v6209 = vmax.f32 %v6177, %v6179
        %v6210 = vmax.f32 %v6178, %v6180
        %v6211 = vmax.f32 %v6181, %v6183
        %v6212 = vmax.f32 %v6182, %v6184
        %v6213 = vmax.f32 %v6185, %v6187
        %v6214 = vmax.f32 %v6186, %v6188
        %v6215 = vmax.f32 %v6189, %v6191
        %v6216 = vmax.f32 %v6190, %v6192
        %v6217 = vmax.f32 %v6193, %v6195
        %v6218 = vmax.f32 %v6194, %v6196
        %v6219 = vmax.f32 %v6197, %v6199
        %v6220 = vmax.f32 %v6198, %v6200
        %v6221 = vmax.f32 %v6201, %v6203
        %v6222 = vmax.f32 %v6202, %v6204
        %v6223 = vmax.f32 %v6205, %v6207
        %v6224 = vmax.f32 %v6206, %v6208
        %6225 = vst.msk [vmem:[#allocation4] sm:$0xff] %vm3134, %v6209
        %6226 = vst.msk [vmem:[#allocation4 + $0x8] sm:$0xff] %vm3134, %v6210
        %6227 = vst.msk [vmem:[#allocation4 + $0x10] sm:$0xff] %vm3134, %v6211
        %6228 = vst.msk [vmem:[#allocation4 + $0x18] sm:$0xff] %vm3134, %v6212
        %6229 = vst.msk [vmem:[#allocation4 + $0x20] sm:$0xff] %vm3134, %v6213
        %6230 = vst.msk [vmem:[#allocation4 + $0x28] sm:$0xff] %vm3134, %v6214
        %6231 = vst.msk [vmem:[#allocation4 + $0x30] sm:$0xff] %vm3134, %v6215
        %6232 = vst.msk [vmem:[#allocation4 + $0x38] sm:$0xff] %vm3134, %v6216
        %6233 = vst.msk [vmem:[#allocation4 + $0x40] sm:$0xff] %vm3134, %v6217
        %6234 = vst.msk [vmem:[#allocation4 + $0x48] sm:$0xff] %vm3134, %v6218
        %6235 = vst.msk [vmem:[#allocation4 + $0x50] sm:$0xff] %vm3134, %v6219
        %6236 = vst.msk [vmem:[#allocation4 + $0x58] sm:$0xff] %vm3134, %v6220
        %6237 = vst.msk [vmem:[#allocation4 + $0x60] sm:$0xff] %vm3134, %v6221
        %6238 = vst.msk [vmem:[#allocation4 + $0x68] sm:$0xff] %vm3134, %v6222
        %6239 = vst.msk [vmem:[#allocation4 + $0x70] sm:$0xff] %vm3134, %v6223
        %6240 = vst.msk [vmem:[#allocation4 + $0x78] sm:$0xff] %vm3134, %v6224
        %v6241 = vld [vmem:[#allocation4] ss:$2 sm:$0xff]
        %s6242 = scalar_lea.vmem [#allocation4], 16
        %v6243 = vld [vmem:[%s6242] ss:$2 sm:$0xff]
        %s6244 = scalar_lea.vmem [#allocation4], 32
        %v6245 = vld [vmem:[%s6244] ss:$2 sm:$0xff]
        %s6246 = scalar_lea.vmem [#allocation4], 48
        %v6247 = vld [vmem:[%s6246] ss:$2 sm:$0xff]
        %s6248 = scalar_lea.vmem [#allocation4], 64
        %v6249 = vld [vmem:[%s6248] ss:$2 sm:$0xff]
        %s6250 = scalar_lea.vmem [#allocation4], 80
        %v6251 = vld [vmem:[%s6250] ss:$2 sm:$0xff]
        %s6252 = scalar_lea.vmem [#allocation4], 96
        %v6253 = vld [vmem:[%s6252] ss:$2 sm:$0xff]
        %s6254 = scalar_lea.vmem [#allocation4], 112
        %v6255 = vld [vmem:[%s6254] ss:$2 sm:$0xff]
        %s6256 = scalar_lea.vmem [#allocation4], 1
        %v6257 = vld [vmem:[%s6256] ss:$2 sm:$0xff]
        %s6258 = scalar_lea.vmem [#allocation4], 17
        %v6259 = vld [vmem:[%s6258] ss:$2 sm:$0xff]
        %s6260 = scalar_lea.vmem [#allocation4], 33
        %v6261 = vld [vmem:[%s6260] ss:$2 sm:$0xff]
        %s6262 = scalar_lea.vmem [#allocation4], 49
        %v6263 = vld [vmem:[%s6262] ss:$2 sm:$0xff]
        %s6264 = scalar_lea.vmem [#allocation4], 65
        %v6265 = vld [vmem:[%s6264] ss:$2 sm:$0xff]
        %s6266 = scalar_lea.vmem [#allocation4], 81
        %v6267 = vld [vmem:[%s6266] ss:$2 sm:$0xff]
        %s6268 = scalar_lea.vmem [#allocation4], 97
        %v6269 = vld [vmem:[%s6268] ss:$2 sm:$0xff]
        %s6270 = scalar_lea.vmem [#allocation4], 113
        %v6271 = vld [vmem:[%s6270] ss:$2 sm:$0xff]
        %v6272 = vmax.f32 %v6241, %v6257
        %v6273 = vmax.f32 %v6243, %v6259
        %v6274 = vmax.f32 %v6245, %v6261
        %v6275 = vmax.f32 %v6247, %v6263
        %v6276 = vmax.f32 %v6249, %v6265
        %v6277 = vmax.f32 %v6251, %v6267
        %v6278 = vmax.f32 %v6253, %v6269
        %v6279 = vmax.f32 %v6255, %v6271
        %vm6280 = vcmp.ge.f32.partialorder %v6272, 0.0
        %vm6281 = vcmp.ge.f32.partialorder %v6273, 0.0
        %vm6282 = vcmp.ge.f32.partialorder %v6274, 0.0
        %vm6283 = vcmp.ge.f32.partialorder %v6275, 0.0
        %vm6284 = vcmp.ge.f32.partialorder %v6276, 0.0
        %vm6285 = vcmp.ge.f32.partialorder %v6277, 0.0
        %vm6286 = vcmp.ge.f32.partialorder %v6278, 0.0
        %vm6287 = vcmp.ge.f32.partialorder %v6279, 0.0
        %v6288 = vmul.f32 %v6272, 0.5
        %v6289 = vmul.f32 %v6273, 0.5
        %v6290 = vmul.f32 %v6274, 0.5
        %v6291 = vmul.f32 %v6275, 0.5
        %v6292 = vmul.f32 %v6276, 0.5
        %v6293 = vmul.f32 %v6277, 0.5
        %v6294 = vmul.f32 %v6278, 0.5
        %v6295 = vmul.f32 %v6279, 0.5
        %v6296 = vsel %vm6280, %v6272, %v6288
        %v6297 = vsel %vm6281, %v6273, %v6289
        %v6298 = vsel %vm6282, %v6274, %v6290
        %v6299 = vsel %vm6283, %v6275, %v6291
        %v6300 = vsel %vm6284, %v6276, %v6292
        %v6301 = vsel %vm6285, %v6277, %v6293
        %v6302 = vsel %vm6286, %v6278, %v6294
        %v6303 = vsel %vm6287, %v6279, %v6295
        %6304 = vst.msk [vmem:[#allocation5] sm:$0xff] %vm3134, 0.0
        %6305 = vst.msk [vmem:[#allocation5 + $0x8] sm:$0xff] %vm3134, 0.0
        %6306 = vst.msk [vmem:[#allocation5 + $0x10] sm:$0xff] %vm3134, 0.0
        %6307 = vst.msk [vmem:[#allocation5 + $0x18] sm:$0xff] %vm3134, 0.0
        %6308 = vst.msk [vmem:[#allocation5 + $0x20] sm:$0xff] %vm3134, 0.0
        %6309 = vst.msk [vmem:[#allocation5 + $0x28] sm:$0xff] %vm3134, 0.0
        %6310 = vst.msk [vmem:[#allocation5 + $0x30] sm:$0xff] %vm3134, 0.0
        %6311 = vst.msk [vmem:[#allocation5 + $0x38] sm:$0xff] %vm3134, 0.0
        %6312 = vst.msk [vmem:[#allocation5 + $0x40] sm:$0xff] %vm3134, 0.0
        %6313 = vst.msk [vmem:[#allocation5 + $0x48] sm:$0xff] %vm3134, 0.0
        %6314 = vst.msk [vmem:[#allocation5 + $0x50] sm:$0xff] %vm3134, 0.0
        %6315 = vst.msk [vmem:[#allocation5 + $0x58] sm:$0xff] %vm3134, 0.0
        %6316 = vst.msk [vmem:[#allocation5 + $0x60] sm:$0xff] %vm3134, 0.0
        %6317 = vst.msk [vmem:[#allocation5 + $0x68] sm:$0xff] %vm3134, 0.0
        %6318 = vst.msk [vmem:[#allocation5 + $0x70] sm:$0xff] %vm3134, 0.0
        %6319 = vst.msk [vmem:[#allocation5 + $0x78] sm:$0xff] %vm3134, 0.0
        %6320 = vst.msk [vmem:[#allocation5 + $0x80] sm:$0xff] %vm3134, 0.0
        %6321 = vst.msk [vmem:[#allocation5 + $0x88] sm:$0xff] %vm3134, 0.0
        %6322 = vst.msk [vmem:[#allocation5 + $0x90] sm:$0xff] %vm3134, 0.0
        %6323 = vst.msk [vmem:[#allocation5 + $0x98] sm:$0xff] %vm3134, 0.0
        %6324 = vst.msk [vmem:[#allocation5 + $0xa0] sm:$0xff] %vm3134, 0.0
        %6325 = vst.msk [vmem:[#allocation5 + $0xa8] sm:$0xff] %vm3134, 0.0
        %6326 = vst.msk [vmem:[#allocation5 + $0xb0] sm:$0xff] %vm3134, 0.0
        %6327 = vst.msk [vmem:[#allocation5 + $0xb8] sm:$0xff] %vm3134, 0.0
        %6328 = vst.msk [vmem:[#allocation5 + $0xc0] sm:$0xff] %vm3134, 0.0
        %6329 = vst.msk [vmem:[#allocation5 + $0xc8] sm:$0xff] %vm3134, 0.0
        %6330 = vst.msk [vmem:[#allocation5 + $0xd0] sm:$0xff] %vm3134, 0.0
        %6331 = vst.msk [vmem:[#allocation5 + $0xd8] sm:$0xff] %vm3134, 0.0
        %6332 = vst.msk [vmem:[#allocation5 + $0xe0] sm:$0xff] %vm3134, 0.0
        %6333 = vst.msk [vmem:[#allocation5 + $0xe8] sm:$0xff] %vm3134, 0.0
        %s6334 = scalar_lea.vmem [#allocation5], 24
        %6335 = vst.msk [vmem:[%s6334 + $0x8] sm:$0xff] %vm3134, %v6296
        %6336 = vst.msk [vmem:[%s6334 + $0x20] sm:$0xff] %vm3134, %v6297
        %6337 = vst.msk [vmem:[%s6334 + $0x38] sm:$0xff] %vm3134, %v6298
        %6338 = vst.msk [vmem:[%s6334 + $0x50] sm:$0xff] %vm3134, %v6299
        %6339 = vst.msk [vmem:[%s6334 + $0x68] sm:$0xff] %vm3134, %v6300
        %6340 = vst.msk [vmem:[%s6334 + $0x80] sm:$0xff] %vm3134, %v6301
        %6341 = vst.msk [vmem:[%s6334 + $0x98] sm:$0xff] %vm3134, %v6302
        %6342 = vst.msk [vmem:[%s6334 + $0xb0] sm:$0xff] %vm3134, %v6303
        %v6343 = vld [vmem:[#allocation5 + $0x7] sm:$0xff]
        %v6344 = vld [vmem:[#allocation5 + $0x1f] sm:$0xff]
        %v6345 = vld [vmem:[#allocation5 + $0x37] sm:$0xff]
        %v6346 = vld [vmem:[#allocation5 + $0x4f] sm:$0xff]
        %v6347 = vld [vmem:[#allocation5 + $0x67] sm:$0xff]
        %v6348 = vld [vmem:[#allocation5 + $0x7f] sm:$0xff]
        %v6349 = vld [vmem:[#allocation5 + $0x97] sm:$0xff]
        %v6350 = vld [vmem:[#allocation5 + $0xaf] sm:$0xff]
        %v6351 = vpack.c.bf16 %v6344, %v6343
        %v6352 = vpack.c.bf16 %v6346, %v6345
        %v6353 = vpack.c.bf16 %v6348, %v6347
        %v6354 = vpack.c.bf16 %v6350, %v6349
        %v6355 = vld [vmem:[%s5] sm:$0xf]
        %v6356 = vld [vmem:[%s5 + $0x4] sm:$0xf]
        %v6357 = vld [vmem:[%s5 + $0x8] sm:$0xf]
        %v6358 = vld [vmem:[%s5 + $0xc] sm:$0xf]
        %v6359 = vld [vmem:[%s5 + $0x10] sm:$0xf]
        %v6360 = vld [vmem:[%s5 + $0x14] sm:$0xf]
        %v6361 = vld [vmem:[%s5 + $0x18] sm:$0xf]
        %v6362 = vld [vmem:[%s5 + $0x1c] sm:$0xf]
        %v6363 = vld [vmem:[#allocation5 + $0x8] sm:$0xff]
        %v6364 = vld [vmem:[#allocation5 + $0x20] sm:$0xff]
        %v6365 = vld [vmem:[#allocation5 + $0x38] sm:$0xff]
        %v6366 = vld [vmem:[#allocation5 + $0x50] sm:$0xff]
        %v6367 = vld [vmem:[#allocation5 + $0x68] sm:$0xff]
        %v6368 = vld [vmem:[#allocation5 + $0x80] sm:$0xff]
        %v6369 = vld [vmem:[#allocation5 + $0x98] sm:$0xff]
        %v6370 = vld [vmem:[#allocation5 + $0xb0] sm:$0xff]
        %v6371 = vpack.c.bf16 %v6364, %v6363
        %v6372 = vpack.c.bf16 %v6366, %v6365
        %v6373 = vpack.c.bf16 %v6368, %v6367
        %v6374 = vpack.c.bf16 %v6370, %v6369
        %s6375 = scalar_lea.vmem %s5, 32
        %v6376 = vld [vmem:[%s6375] sm:$0xf]
        %v6377 = vld [vmem:[%s6375 + $0x4] sm:$0xf]
        %v6378 = vld [vmem:[%s6375 + $0x8] sm:$0xf]
        %v6379 = vld [vmem:[%s6375 + $0xc] sm:$0xf]
        %v6380 = vld [vmem:[%s6375 + $0x10] sm:$0xf]
        %v6381 = vld [vmem:[%s6375 + $0x14] sm:$0xf]
        %v6382 = vld [vmem:[%s6375 + $0x18] sm:$0xf]
        %v6383 = vld [vmem:[%s6375 + $0x1c] sm:$0xf]
        %v6392 = vunpack.c.l.b16 %v6376
        %v6393 = vunpack.c.l.b16 %v6377
        %v6394 = vunpack.c.l.b16 %v6378
        %v6395 = vunpack.c.l.b16 %v6379
        %v6396 = vunpack.c.l.b16 %v6380
        %v6397 = vunpack.c.l.b16 %v6381
        %v6398 = vunpack.c.l.b16 %v6382
        %v6399 = vunpack.c.l.b16 %v6383
        %v6400 = vpack.c.b16 %v6393, %v6392
        %v6401 = vpack.c.b16 %v6395, %v6394
        %v6402 = vpack.c.b16 %v6397, %v6396
        %v6403 = vpack.c.b16 %v6399, %v6398
        %v6409 = vsel %vm3134, %v6371, 0
        %v6412 = vsel %vm3134, %v6372, 0
        %v6415 = vsel %vm3134, %v6373, 0
        %v6418 = vsel %vm3134, %v6374, 0
        %6420 = vmatprep.subr.bf16.mxu0 0
        %6421 = vmatpush1.bf16.msra.mxu0 %v6400
        %6422 = vmatprep.subr.bf16.mxu0 0
        %6423 = vmatpush1.bf16.msra.mxu0 %v6401
        %6424 = vmatprep.subr.bf16.mxu0 0
        %6425 = vmatpush1.bf16.msra.mxu0 %v6402
        %6426 = vmatprep.subr.bf16.mxu0 0
        %6427 = vmatpush1.bf16.msra.mxu0 %v6403
        %6428 = vmatprep.subr.bf16.mxu0 0
        %6429 = vmatpush1.bf16.msra.mxu0 0
        %6430 = vmatprep.subr.bf16.mxu0 0
        %6431 = vmatpush1.bf16.msra.mxu0 0
        %6432 = vmatprep.subr.bf16.mxu0 0
        %6433 = vmatpush1.bf16.msra.mxu0 0
        %6434 = vmatprep.subr.bf16.mxu0 0
        %6435 = vmatpush1.bf16.msra.mxu0 0
        %6436 = vmatprep.subr.bf16.mxu0 0
        %6437 = vmatpush1.bf16.msra.mxu0 0
        %6438 = vmatprep.subr.bf16.mxu0 0
        %6439 = vmatpush1.bf16.msra.mxu0 0
        %6440 = vmatprep.subr.bf16.mxu0 0
        %6441 = vmatpush1.bf16.msra.mxu0 0
        %6442 = vmatprep.subr.bf16.mxu0 0
        %6443 = vmatpush1.bf16.msra.mxu0 0
        %6444 = vmatprep.subr.bf16.mxu0 0
        %6445 = vmatpush1.bf16.msra.mxu0 0
        %6446 = vmatprep.subr.bf16.mxu0 0
        %6447 = vmatpush1.bf16.msra.mxu0 0
        %6448 = vmatprep.subr.bf16.mxu0 0
        %6449 = vmatpush1.bf16.msra.mxu0 0
        %6450 = vmatprep.subr.bf16.mxu0 0
        %6451 = vmatpush1.bf16.msra.mxu0 0
        %6452 = vmatprep.mubr.bf16.mxu0 0
        %6453 = vmatmul.mubr.bf16.gmra.mrb[0].mxu0 %v6409
        %v6454 = vpop.f32.mrb[0].mxu0
        %v6455 = vadd.f32 0.0, %v6454
        %v6456 = vpop.f32.mrb[0].mxu0
        %v6457 = vpop.f32.mrb[0].mxu0
        %v6458 = vadd.f32 0.0, %v6457
        %v6459 = vpop.f32.mrb[0].mxu0
        %6460 = vmatprep.mubr.bf16.mxu0 0
        %6461 = vmatmul.mubr.bf16.gmra.mrb[0].mxu0 %v6412
        %v6462 = vpop.f32.mrb[0].mxu0
        %v6463 = vadd.f32 0.0, %v6462
        %v6464 = vpop.f32.mrb[0].mxu0
        %v6465 = vpop.f32.mrb[0].mxu0
        %v6466 = vadd.f32 0.0, %v6465
        %v6467 = vpop.f32.mrb[0].mxu0
        %6468 = vmatprep.mubr.bf16.mxu0 0
        %6469 = vmatmul.mubr.bf16.gmra.mrb[0].mxu0 %v6415
        %v6470 = vpop.f32.mrb[0].mxu0
        %v6471 = vadd.f32 0.0, %v6470
        %v6472 = vpop.f32.mrb[0].mxu0
        %v6473 = vpop.f32.mrb[0].mxu0
        %v6474 = vadd.f32 0.0, %v6473
        %v6475 = vpop.f32.mrb[0].mxu0
        %6476 = vmatprep.mubr.bf16.mxu0 0
        %6477 = vmatmul.mubr.bf16.gmra.mrb[0].mxu0 %v6418
        %v6478 = vpop.f32.mrb[0].mxu0
        %v6479 = vadd.f32 0.0, %v6478
        %v6480 = vpop.f32.mrb[0].mxu0
        %v6481 = vpop.f32.mrb[0].mxu0
        %v6482 = vadd.f32 0.0, %v6481
        %v6483 = vpop.f32.mrb[0].mxu0
        %6484 = vdwg.mxu0
        %v6493 = vunpack.c.l.b16 %v6355
        %v6494 = vunpack.c.l.b16 %v6356
        %v6495 = vunpack.c.l.b16 %v6357
        %v6496 = vunpack.c.l.b16 %v6358
        %v6497 = vunpack.c.l.b16 %v6359
        %v6498 = vunpack.c.l.b16 %v6360
        %v6499 = vunpack.c.l.b16 %v6361
        %v6500 = vunpack.c.l.b16 %v6362
        %v6501 = vpack.c.b16 %v6494, %v6493
        %v6502 = vpack.c.b16 %v6496, %v6495
        %v6503 = vpack.c.b16 %v6498, %v6497
        %v6504 = vpack.c.b16 %v6500, %v6499
        %v6510 = vsel %vm3134, %v6351, 0
        %v6513 = vsel %vm3134, %v6352, 0
        %v6516 = vsel %vm3134, %v6353, 0
        %v6519 = vsel %vm3134, %v6354, 0
        %6521 = vmatprep.subr.bf16.mxu0 0
        %6522 = vmatpush1.bf16.msra.mxu0 %v6501
        %6523 = vmatprep.subr.bf16.mxu0 0
        %6524 = vmatpush1.bf16.msra.mxu0 %v6502
        %6525 = vmatprep.subr.bf16.mxu0 0
        %6526 = vmatpush1.bf16.msra.mxu0 %v6503
        %6527 = vmatprep.subr.bf16.mxu0 0
        %6528 = vmatpush1.bf16.msra.mxu0 %v6504
        %6529 = vmatprep.subr.bf16.mxu0 0
        %6530 = vmatpush1.bf16.msra.mxu0 0
        %6531 = vmatprep.subr.bf16.mxu0 0
        %6532 = vmatpush1.bf16.msra.mxu0 0
        %6533 = vmatprep.subr.bf16.mxu0 0
        %6534 = vmatpush1.bf16.msra.mxu0 0
        %6535 = vmatprep.subr.bf16.mxu0 0
        %6536 = vmatpush1.bf16.msra.mxu0 0
        %6537 = vmatprep.subr.bf16.mxu0 0
        %6538 = vmatpush1.bf16.msra.mxu0 0
        %6539 = vmatprep.subr.bf16.mxu0 0
        %6540 = vmatpush1.bf16.msra.mxu0 0
        %6541 = vmatprep.subr.bf16.mxu0 0
        %6542 = vmatpush1.bf16.msra.mxu0 0
        %6543 = vmatprep.subr.bf16.mxu0 0
        %6544 = vmatpush1.bf16.msra.mxu0 0
        %6545 = vmatprep.subr.bf16.mxu0 0
        %6546 = vmatpush1.bf16.msra.mxu0 0
        %6547 = vmatprep.subr.bf16.mxu0 0
        %6548 = vmatpush1.bf16.msra.mxu0 0
        %6549 = vmatprep.subr.bf16.mxu0 0
        %6550 = vmatpush1.bf16.msra.mxu0 0
        %6551 = vmatprep.subr.bf16.mxu0 0
        %6552 = vmatpush1.bf16.msra.mxu0 0
        %6553 = vmatprep.mubr.bf16.mxu0 0
        %6554 = vmatmul.mubr.bf16.gmra.mrb[0].mxu0 %v6510
        %v6555 = vpop.f32.mrb[0].mxu0
        %v6556 = vadd.f32 %v6455, %v6555
        %v6557 = vpop.f32.mrb[0].mxu0
        %v6558 = vpop.f32.mrb[0].mxu0
        %v6559 = vadd.f32 %v6458, %v6558
        %v6560 = vpop.f32.mrb[0].mxu0
        %6561 = vmatprep.mubr.bf16.mxu0 0
        %6562 = vmatmul.mubr.bf16.gmra.mrb[0].mxu0 %v6513
        %v6563 = vpop.f32.mrb[0].mxu0
        %v6564 = vadd.f32 %v6463, %v6563
        %v6565 = vpop.f32.mrb[0].mxu0
        %v6566 = vpop.f32.mrb[0].mxu0
        %v6567 = vadd.f32 %v6466, %v6566
        %v6568 = vpop.f32.mrb[0].mxu0
        %6569 = vmatprep.mubr.bf16.mxu0 0
        %6570 = vmatmul.mubr.bf16.gmra.mrb[0].mxu0 %v6516
        %v6571 = vpop.f32.mrb[0].mxu0
        %v6572 = vadd.f32 %v6471, %v6571
        %v6573 = vpop.f32.mrb[0].mxu0
        %v6574 = vpop.f32.mrb[0].mxu0
        %v6575 = vadd.f32 %v6474, %v6574
        %v6576 = vpop.f32.mrb[0].mxu0
        %6577 = vmatprep.mubr.bf16.mxu0 0
        %6578 = vmatmul.mubr.bf16.gmra.mrb[0].mxu0 %v6519
        %v6579 = vpop.f32.mrb[0].mxu0
        %v6580 = vadd.f32 %v6479, %v6579
        %v6581 = vpop.f32.mrb[0].mxu0
        %v6582 = vpop.f32.mrb[0].mxu0
        %v6583 = vadd.f32 %v6482, %v6582
        %v6584 = vpop.f32.mrb[0].mxu0
        %6585 = vdwg.mxu0
        %v6586 = vld [vmem:[#allocation5 + $0x9] sm:$0xff]
        %v6587 = vld [vmem:[#allocation5 + $0x21] sm:$0xff]
        %v6588 = vld [vmem:[#allocation5 + $0x39] sm:$0xff]
        %v6589 = vld [vmem:[#allocation5 + $0x51] sm:$0xff]
        %v6590 = vld [vmem:[#allocation5 + $0x69] sm:$0xff]
        %v6591 = vld [vmem:[#allocation5 + $0x81] sm:$0xff]
        %v6592 = vld [vmem:[#allocation5 + $0x99] sm:$0xff]
        %v6593 = vld [vmem:[#allocation5 + $0xb1] sm:$0xff]
        %v6594 = vpack.c.bf16 %v6587, %v6586
        %v6595 = vpack.c.bf16 %v6589, %v6588
        %v6596 = vpack.c.bf16 %v6591, %v6590
        %v6597 = vpack.c.bf16 %v6593, %v6592
        %s6598 = scalar_lea.vmem %s5, 64
        %v6599 = vld [vmem:[%s6598] sm:$0xf]
        %v6600 = vld [vmem:[%s6598 + $0x4] sm:$0xf]
        %v6601 = vld [vmem:[%s6598 + $0x8] sm:$0xf]
        %v6602 = vld [vmem:[%s6598 + $0xc] sm:$0xf]
        %v6603 = vld [vmem:[%s6598 + $0x10] sm:$0xf]
        %v6604 = vld [vmem:[%s6598 + $0x14] sm:$0xf]
        %v6605 = vld [vmem:[%s6598 + $0x18] sm:$0xf]
        %v6606 = vld [vmem:[%s6598 + $0x1c] sm:$0xf]
        %v6615 = vunpack.c.l.b16 %v6599
        %v6616 = vunpack.c.l.b16 %v6600
        %v6617 = vunpack.c.l.b16 %v6601
        %v6618 = vunpack.c.l.b16 %v6602
        %v6619 = vunpack.c.l.b16 %v6603
        %v6620 = vunpack.c.l.b16 %v6604
        %v6621 = vunpack.c.l.b16 %v6605
        %v6622 = vunpack.c.l.b16 %v6606
        %v6623 = vpack.c.b16 %v6616, %v6615
        %v6624 = vpack.c.b16 %v6618, %v6617
        %v6625 = vpack.c.b16 %v6620, %v6619
        %v6626 = vpack.c.b16 %v6622, %v6621
        %v6632 = vsel %vm3134, %v6594, 0
        %v6635 = vsel %vm3134, %v6595, 0
        %v6638 = vsel %vm3134, %v6596, 0
        %v6641 = vsel %vm3134, %v6597, 0
        %6643 = vmatprep.subr.bf16.mxu0 0
        %6644 = vmatpush1.bf16.msra.mxu0 %v6623
        %6645 = vmatprep.subr.bf16.mxu0 0
        %6646 = vmatpush1.bf16.msra.mxu0 %v6624
        %6647 = vmatprep.subr.bf16.mxu0 0
        %6648 = vmatpush1.bf16.msra.mxu0 %v6625
        %6649 = vmatprep.subr.bf16.mxu0 0
        %6650 = vmatpush1.bf16.msra.mxu0 %v6626
        %6651 = vmatprep.subr.bf16.mxu0 0
        %6652 = vmatpush1.bf16.msra.mxu0 0
        %6653 = vmatprep.subr.bf16.mxu0 0
        %6654 = vmatpush1.bf16.msra.mxu0 0
        %6655 = vmatprep.subr.bf16.mxu0 0
        %6656 = vmatpush1.bf16.msra.mxu0 0
        %6657 = vmatprep.subr.bf16.mxu0 0
        %6658 = vmatpush1.bf16.msra.mxu0 0
        %6659 = vmatprep.subr.bf16.mxu0 0
        %6660 = vmatpush1.bf16.msra.mxu0 0
        %6661 = vmatprep.subr.bf16.mxu0 0
        %6662 = vmatpush1.bf16.msra.mxu0 0
        %6663 = vmatprep.subr.bf16.mxu0 0
        %6664 = vmatpush1.bf16.msra.mxu0 0
        %6665 = vmatprep.subr.bf16.mxu0 0
        %6666 = vmatpush1.bf16.msra.mxu0 0
        %6667 = vmatprep.subr.bf16.mxu0 0
        %6668 = vmatpush1.bf16.msra.mxu0 0
        %6669 = vmatprep.subr.bf16.mxu0 0
        %6670 = vmatpush1.bf16.msra.mxu0 0
        %6671 = vmatprep.subr.bf16.mxu0 0
        %6672 = vmatpush1.bf16.msra.mxu0 0
        %6673 = vmatprep.subr.bf16.mxu0 0
        %6674 = vmatpush1.bf16.msra.mxu0 0
        %6675 = vmatprep.mubr.bf16.mxu0 0
        %6676 = vmatmul.mubr.bf16.gmra.mrb[0].mxu0 %v6632
        %v6677 = vpop.f32.mrb[0].mxu0
        %v6678 = vadd.f32 0.0, %v6677
        %v6679 = vpop.f32.mrb[0].mxu0
        %v6680 = vpop.f32.mrb[0].mxu0
        %v6681 = vadd.f32 0.0, %v6680
        %v6682 = vpop.f32.mrb[0].mxu0
        %6683 = vmatprep.mubr.bf16.mxu0 0
        %6684 = vmatmul.mubr.bf16.gmra.mrb[0].mxu0 %v6635
        %v6685 = vpop.f32.mrb[0].mxu0
        %v6686 = vadd.f32 0.0, %v6685
        %v6687 = vpop.f32.mrb[0].mxu0
        %v6688 = vpop.f32.mrb[0].mxu0
        %v6689 = vadd.f32 0.0, %v6688
        %v6690 = vpop.f32.mrb[0].mxu0
        %6691 = vmatprep.mubr.bf16.mxu0 0
        %6692 = vmatmul.mubr.bf16.gmra.mrb[0].mxu0 %v6638
        %v6693 = vpop.f32.mrb[0].mxu0
        %v6694 = vadd.f32 0.0, %v6693
        %v6695 = vpop.f32.mrb[0].mxu0
        %v6696 = vpop.f32.mrb[0].mxu0
        %v6697 = vadd.f32 0.0, %v6696
        %v6698 = vpop.f32.mrb[0].mxu0
        %6699 = vmatprep.mubr.bf16.mxu0 0
        %6700 = vmatmul.mubr.bf16.gmra.mrb[0].mxu0 %v6641
        %v6701 = vpop.f32.mrb[0].mxu0
        %v6702 = vadd.f32 0.0, %v6701
        %v6703 = vpop.f32.mrb[0].mxu0
        %v6704 = vpop.f32.mrb[0].mxu0
        %v6705 = vadd.f32 0.0, %v6704
        %v6706 = vpop.f32.mrb[0].mxu0
        %6707 = vdwg.mxu0
        %v6708 = vadd.f32 %v6556, %v6678
        %v6709 = vadd.f32 %v6559, %v6681
        %v6710 = vadd.f32 %v6564, %v6686
        %v6711 = vadd.f32 %v6567, %v6689
        %v6712 = vadd.f32 %v6572, %v6694
        %v6713 = vadd.f32 %v6575, %v6697
        %v6714 = vadd.f32 %v6580, %v6702
        %v6715 = vadd.f32 %v6583, %v6705
        %v6716 = vld [vmem:[%s6334 + $0x7] sm:$0xff]
        %v6717 = vld [vmem:[%s6334 + $0x1f] sm:$0xff]
        %v6718 = vld [vmem:[%s6334 + $0x37] sm:$0xff]
        %v6719 = vld [vmem:[%s6334 + $0x4f] sm:$0xff]
        %v6720 = vld [vmem:[%s6334 + $0x67] sm:$0xff]
        %v6721 = vld [vmem:[%s6334 + $0x7f] sm:$0xff]
        %v6722 = vld [vmem:[%s6334 + $0x97] sm:$0xff]
        %v6723 = vld [vmem:[%s6334 + $0xaf] sm:$0xff]
        %v6724 = vpack.c.bf16 %v6717, %v6716
        %v6725 = vpack.c.bf16 %v6719, %v6718
        %v6726 = vpack.c.bf16 %v6721, %v6720
        %v6727 = vpack.c.bf16 %v6723, %v6722
        %s6728 = scalar_lea.vmem %s5, 96
        %v6729 = vld [vmem:[%s6728] sm:$0xf]
        %v6730 = vld [vmem:[%s6728 + $0x4] sm:$0xf]
        %v6731 = vld [vmem:[%s6728 + $0x8] sm:$0xf]
        %v6732 = vld [vmem:[%s6728 + $0xc] sm:$0xf]
        %v6733 = vld [vmem:[%s6728 + $0x10] sm:$0xf]
        %v6734 = vld [vmem:[%s6728 + $0x14] sm:$0xf]
        %v6735 = vld [vmem:[%s6728 + $0x18] sm:$0xf]
        %v6736 = vld [vmem:[%s6728 + $0x1c] sm:$0xf]
        %v6745 = vunpack.c.l.b16 %v6729
        %v6746 = vunpack.c.l.b16 %v6730
        %v6747 = vunpack.c.l.b16 %v6731
        %v6748 = vunpack.c.l.b16 %v6732
        %v6749 = vunpack.c.l.b16 %v6733
        %v6750 = vunpack.c.l.b16 %v6734
        %v6751 = vunpack.c.l.b16 %v6735
        %v6752 = vunpack.c.l.b16 %v6736
        %v6753 = vpack.c.b16 %v6746, %v6745
        %v6754 = vpack.c.b16 %v6748, %v6747
        %v6755 = vpack.c.b16 %v6750, %v6749
        %v6756 = vpack.c.b16 %v6752, %v6751
        %v6762 = vsel %vm3134, %v6724, 0
        %v6765 = vsel %vm3134, %v6725, 0
        %v6768 = vsel %vm3134, %v6726, 0
        %v6771 = vsel %vm3134, %v6727, 0
        %6773 = vmatprep.subr.bf16.mxu0 0
        %6774 = vmatpush1.bf16.msra.mxu0 %v6753
        %6775 = vmatprep.subr.bf16.mxu0 0
        %6776 = vmatpush1.bf16.msra.mxu0 %v6754
        %6777 = vmatprep.subr.bf16.mxu0 0
        %6778 = vmatpush1.bf16.msra.mxu0 %v6755
        %6779 = vmatprep.subr.bf16.mxu0 0
        %6780 = vmatpush1.bf16.msra.mxu0 %v6756
        %6781 = vmatprep.subr.bf16.mxu0 0
        %6782 = vmatpush1.bf16.msra.mxu0 0
        %6783 = vmatprep.subr.bf16.mxu0 0
        %6784 = vmatpush1.bf16.msra.mxu0 0
        %6785 = vmatprep.subr.bf16.mxu0 0
        %6786 = vmatpush1.bf16.msra.mxu0 0
        %6787 = vmatprep.subr.bf16.mxu0 0
        %6788 = vmatpush1.bf16.msra.mxu0 0
        %6789 = vmatprep.subr.bf16.mxu0 0
        %6790 = vmatpush1.bf16.msra.mxu0 0
        %6791 = vmatprep.subr.bf16.mxu0 0
        %6792 = vmatpush1.bf16.msra.mxu0 0
        %6793 = vmatprep.subr.bf16.mxu0 0
        %6794 = vmatpush1.bf16.msra.mxu0 0
        %6795 = vmatprep.subr.bf16.mxu0 0
        %6796 = vmatpush1.bf16.msra.mxu0 0
        %6797 = vmatprep.subr.bf16.mxu0 0
        %6798 = vmatpush1.bf16.msra.mxu0 0
        %6799 = vmatprep.subr.bf16.mxu0 0
        %6800 = vmatpush1.bf16.msra.mxu0 0
        %6801 = vmatprep.subr.bf16.mxu0 0
        %6802 = vmatpush1.bf16.msra.mxu0 0
        %6803 = vmatprep.subr.bf16.mxu0 0
        %6804 = vmatpush1.bf16.msra.mxu0 0
        %6805 = vmatprep.mubr.bf16.mxu0 0
        %6806 = vmatmul.mubr.bf16.gmra.mrb[0].mxu0 %v6762
        %v6807 = vpop.f32.mrb[0].mxu0
        %v6808 = vadd.f32 0.0, %v6807
        %v6809 = vpop.f32.mrb[0].mxu0
        %v6810 = vpop.f32.mrb[0].mxu0
        %v6811 = vadd.f32 0.0, %v6810
        %v6812 = vpop.f32.mrb[0].mxu0
        %6813 = vmatprep.mubr.bf16.mxu0 0
        %6814 = vmatmul.mubr.bf16.gmra.mrb[0].mxu0 %v6765
        %v6815 = vpop.f32.mrb[0].mxu0
        %v6816 = vadd.f32 0.0, %v6815
        %v6817 = vpop.f32.mrb[0].mxu0
        %v6818 = vpop.f32.mrb[0].mxu0
        %v6819 = vadd.f32 0.0, %v6818
        %v6820 = vpop.f32.mrb[0].mxu0
        %6821 = vmatprep.mubr.bf16.mxu0 0
        %6822 = vmatmul.mubr.bf16.gmra.mrb[0].mxu0 %v6768
        %v6823 = vpop.f32.mrb[0].mxu0
        %v6824 = vadd.f32 0.0, %v6823
        %v6825 = vpop.f32.mrb[0].mxu0
        %v6826 = vpop.f32.mrb[0].mxu0
        %v6827 = vadd.f32 0.0, %v6826
        %v6828 = vpop.f32.mrb[0].mxu0
        %6829 = vmatprep.mubr.bf16.mxu0 0
        %6830 = vmatmul.mubr.bf16.gmra.mrb[0].mxu0 %v6771
        %v6831 = vpop.f32.mrb[0].mxu0
        %v6832 = vadd.f32 0.0, %v6831
        %v6833 = vpop.f32.mrb[0].mxu0
        %v6834 = vpop.f32.mrb[0].mxu0
        %v6835 = vadd.f32 0.0, %v6834
        %v6836 = vpop.f32.mrb[0].mxu0
        %6837 = vdwg.mxu0
        %v6838 = vadd.f32 %v6708, %v6808
        %v6839 = vadd.f32 %v6709, %v6811
        %v6840 = vadd.f32 %v6710, %v6816
        %v6841 = vadd.f32 %v6711, %v6819
        %v6842 = vadd.f32 %v6712, %v6824
        %v6843 = vadd.f32 %v6713, %v6827
        %v6844 = vadd.f32 %v6714, %v6832
        %v6845 = vadd.f32 %v6715, %v6835
        %v6846 = vld [vmem:[%s6334 + $0x8] sm:$0xff]
        %v6847 = vld [vmem:[%s6334 + $0x20] sm:$0xff]
        %v6848 = vld [vmem:[%s6334 + $0x38] sm:$0xff]
        %v6849 = vld [vmem:[%s6334 + $0x50] sm:$0xff]
        %v6850 = vld [vmem:[%s6334 + $0x68] sm:$0xff]
        %v6851 = vld [vmem:[%s6334 + $0x80] sm:$0xff]
        %v6852 = vld [vmem:[%s6334 + $0x98] sm:$0xff]
        %v6853 = vld [vmem:[%s6334 + $0xb0] sm:$0xff]
        %v6854 = vpack.c.bf16 %v6847, %v6846
        %v6855 = vpack.c.bf16 %v6849, %v6848
        %v6856 = vpack.c.bf16 %v6851, %v6850
        %v6857 = vpack.c.bf16 %v6853, %v6852
        %s6858 = scalar_lea.vmem %s5, 128
        %v6859 = vld [vmem:[%s6858] sm:$0xf]
        %v6860 = vld [vmem:[%s6858 + $0x4] sm:$0xf]
        %v6861 = vld [vmem:[%s6858 + $0x8] sm:$0xf]
        %v6862 = vld [vmem:[%s6858 + $0xc] sm:$0xf]
        %v6863 = vld [vmem:[%s6858 + $0x10] sm:$0xf]
        %v6864 = vld [vmem:[%s6858 + $0x14] sm:$0xf]
        %v6865 = vld [vmem:[%s6858 + $0x18] sm:$0xf]
        %v6866 = vld [vmem:[%s6858 + $0x1c] sm:$0xf]
        %v6875 = vunpack.c.l.b16 %v6859
        %v6876 = vunpack.c.l.b16 %v6860
        %v6877 = vunpack.c.l.b16 %v6861
        %v6878 = vunpack.c.l.b16 %v6862
        %v6879 = vunpack.c.l.b16 %v6863
        %v6880 = vunpack.c.l.b16 %v6864
        %v6881 = vunpack.c.l.b16 %v6865
        %v6882 = vunpack.c.l.b16 %v6866
        %v6883 = vpack.c.b16 %v6876, %v6875
        %v6884 = vpack.c.b16 %v6878, %v6877
        %v6885 = vpack.c.b16 %v6880, %v6879
        %v6886 = vpack.c.b16 %v6882, %v6881
        %v6892 = vsel %vm3134, %v6854, 0
        %v6895 = vsel %vm3134, %v6855, 0
        %v6898 = vsel %vm3134, %v6856, 0
        %v6901 = vsel %vm3134, %v6857, 0
        %6903 = vmatprep.subr.bf16.mxu0 0
        %6904 = vmatpush1.bf16.msra.mxu0 %v6883
        %6905 = vmatprep.subr.bf16.mxu0 0
        %6906 = vmatpush1.bf16.msra.mxu0 %v6884
        %6907 = vmatprep.subr.bf16.mxu0 0
        %6908 = vmatpush1.bf16.msra.mxu0 %v6885
        %6909 = vmatprep.subr.bf16.mxu0 0
        %6910 = vmatpush1.bf16.msra.mxu0 %v6886
        %6911 = vmatprep.subr.bf16.mxu0 0
        %6912 = vmatpush1.bf16.msra.mxu0 0
        %6913 = vmatprep.subr.bf16.mxu0 0
        %6914 = vmatpush1.bf16.msra.mxu0 0
        %6915 = vmatprep.subr.bf16.mxu0 0
        %6916 = vmatpush1.bf16.msra.mxu0 0
        %6917 = vmatprep.subr.bf16.mxu0 0
        %6918 = vmatpush1.bf16.msra.mxu0 0
        %6919 = vmatprep.subr.bf16.mxu0 0
        %6920 = vmatpush1.bf16.msra.mxu0 0
        %6921 = vmatprep.subr.bf16.mxu0 0
        %6922 = vmatpush1.bf16.msra.mxu0 0
        %6923 = vmatprep.subr.bf16.mxu0 0
        %6924 = vmatpush1.bf16.msra.mxu0 0
        %6925 = vmatprep.subr.bf16.mxu0 0
        %6926 = vmatpush1.bf16.msra.mxu0 0
        %6927 = vmatprep.subr.bf16.mxu0 0
        %6928 = vmatpush1.bf16.msra.mxu0 0
        %6929 = vmatprep.subr.bf16.mxu0 0
        %6930 = vmatpush1.bf16.msra.mxu0 0
        %6931 = vmatprep.subr.bf16.mxu0 0
        %6932 = vmatpush1.bf16.msra.mxu0 0
        %6933 = vmatprep.subr.bf16.mxu0 0
        %6934 = vmatpush1.bf16.msra.mxu0 0
        %6935 = vmatprep.mubr.bf16.mxu0 0
        %6936 = vmatmul.mubr.bf16.gmra.mrb[0].mxu0 %v6892
        %v6937 = vpop.f32.mrb[0].mxu0
        %v6938 = vadd.f32 0.0, %v6937
        %v6939 = vpop.f32.mrb[0].mxu0
        %v6940 = vpop.f32.mrb[0].mxu0
        %v6941 = vadd.f32 0.0, %v6940
        %v6942 = vpop.f32.mrb[0].mxu0
        %6943 = vmatprep.mubr.bf16.mxu0 0
        %6944 = vmatmul.mubr.bf16.gmra.mrb[0].mxu0 %v6895
        %v6945 = vpop.f32.mrb[0].mxu0
        %v6946 = vadd.f32 0.0, %v6945
        %v6947 = vpop.f32.mrb[0].mxu0
        %v6948 = vpop.f32.mrb[0].mxu0
        %v6949 = vadd.f32 0.0, %v6948
        %v6950 = vpop.f32.mrb[0].mxu0
        %6951 = vmatprep.mubr.bf16.mxu0 0
        %6952 = vmatmul.mubr.bf16.gmra.mrb[0].mxu0 %v6898
        %v6953 = vpop.f32.mrb[0].mxu0
        %v6954 = vadd.f32 0.0, %v6953
        %v6955 = vpop.f32.mrb[0].mxu0
        %v6956 = vpop.f32.mrb[0].mxu0
        %v6957 = vadd.f32 0.0, %v6956
        %v6958 = vpop.f32.mrb[0].mxu0
        %6959 = vmatprep.mubr.bf16.mxu0 0
        %6960 = vmatmul.mubr.bf16.gmra.mrb[0].mxu0 %v6901
        %v6961 = vpop.f32.mrb[0].mxu0
        %v6962 = vadd.f32 0.0, %v6961
        %v6963 = vpop.f32.mrb[0].mxu0
        %v6964 = vpop.f32.mrb[0].mxu0
        %v6965 = vadd.f32 0.0, %v6964
        %v6966 = vpop.f32.mrb[0].mxu0
        %6967 = vdwg.mxu0
        %v6968 = vadd.f32 %v6838, %v6938
        %v6969 = vadd.f32 %v6839, %v6941
        %v6970 = vadd.f32 %v6840, %v6946
        %v6971 = vadd.f32 %v6841, %v6949
        %v6972 = vadd.f32 %v6842, %v6954
        %v6973 = vadd.f32 %v6843, %v6957
        %v6974 = vadd.f32 %v6844, %v6962
        %v6975 = vadd.f32 %v6845, %v6965
        %v6976 = vld [vmem:[%s6334 + $0x9] sm:$0xff]
        %v6977 = vld [vmem:[%s6334 + $0x21] sm:$0xff]
        %v6978 = vld [vmem:[%s6334 + $0x39] sm:$0xff]
        %v6979 = vld [vmem:[%s6334 + $0x51] sm:$0xff]
        %v6980 = vld [vmem:[%s6334 + $0x69] sm:$0xff]
        %v6981 = vld [vmem:[%s6334 + $0x81] sm:$0xff]
        %v6982 = vld [vmem:[%s6334 + $0x99] sm:$0xff]
        %v6983 = vld [vmem:[%s6334 + $0xb1] sm:$0xff]
        %v6984 = vpack.c.bf16 %v6977, %v6976
        %v6985 = vpack.c.bf16 %v6979, %v6978
        %v6986 = vpack.c.bf16 %v6981, %v6980
        %v6987 = vpack.c.bf16 %v6983, %v6982
        %s6988 = scalar_lea.vmem %s5, 160
        %v6989 = vld [vmem:[%s6988] sm:$0xf]
        %v6990 = vld [vmem:[%s6988 + $0x4] sm:$0xf]
        %v6991 = vld [vmem:[%s6988 + $0x8] sm:$0xf]
        %v6992 = vld [vmem:[%s6988 + $0xc] sm:$0xf]
        %v6993 = vld [vmem:[%s6988 + $0x10] sm:$0xf]
        %v6994 = vld [vmem:[%s6988 + $0x14] sm:$0xf]
        %v6995 = vld [vmem:[%s6988 + $0x18] sm:$0xf]
        %v6996 = vld [vmem:[%s6988 + $0x1c] sm:$0xf]
        %v7005 = vunpack.c.l.b16 %v6989
        %v7006 = vunpack.c.l.b16 %v6990
        %v7007 = vunpack.c.l.b16 %v6991
        %v7008 = vunpack.c.l.b16 %v6992
        %v7009 = vunpack.c.l.b16 %v6993
        %v7010 = vunpack.c.l.b16 %v6994
        %v7011 = vunpack.c.l.b16 %v6995
        %v7012 = vunpack.c.l.b16 %v6996
        %v7013 = vpack.c.b16 %v7006, %v7005
        %v7014 = vpack.c.b16 %v7008, %v7007
        %v7015 = vpack.c.b16 %v7010, %v7009
        %v7016 = vpack.c.b16 %v7012, %v7011
        %v7022 = vsel %vm3134, %v6984, 0
        %v7025 = vsel %vm3134, %v6985, 0
        %v7028 = vsel %vm3134, %v6986, 0
        %v7031 = vsel %vm3134, %v6987, 0
        %7033 = vmatprep.subr.bf16.mxu0 0
        %7034 = vmatpush1.bf16.msra.mxu0 %v7013
        %7035 = vmatprep.subr.bf16.mxu0 0
        %7036 = vmatpush1.bf16.msra.mxu0 %v7014
        %7037 = vmatprep.subr.bf16.mxu0 0
        %7038 = vmatpush1.bf16.msra.mxu0 %v7015
        %7039 = vmatprep.subr.bf16.mxu0 0
        %7040 = vmatpush1.bf16.msra.mxu0 %v7016
        %7041 = vmatprep.subr.bf16.mxu0 0
        %7042 = vmatpush1.bf16.msra.mxu0 0
        %7043 = vmatprep.subr.bf16.mxu0 0
        %7044 = vmatpush1.bf16.msra.mxu0 0
        %7045 = vmatprep.subr.bf16.mxu0 0
        %7046 = vmatpush1.bf16.msra.mxu0 0
        %7047 = vmatprep.subr.bf16.mxu0 0
        %7048 = vmatpush1.bf16.msra.mxu0 0
        %7049 = vmatprep.subr.bf16.mxu0 0
        %7050 = vmatpush1.bf16.msra.mxu0 0
        %7051 = vmatprep.subr.bf16.mxu0 0
        %7052 = vmatpush1.bf16.msra.mxu0 0
        %7053 = vmatprep.subr.bf16.mxu0 0
        %7054 = vmatpush1.bf16.msra.mxu0 0
        %7055 = vmatprep.subr.bf16.mxu0 0
        %7056 = vmatpush1.bf16.msra.mxu0 0
        %7057 = vmatprep.subr.bf16.mxu0 0
        %7058 = vmatpush1.bf16.msra.mxu0 0
        %7059 = vmatprep.subr.bf16.mxu0 0
        %7060 = vmatpush1.bf16.msra.mxu0 0
        %7061 = vmatprep.subr.bf16.mxu0 0
        %7062 = vmatpush1.bf16.msra.mxu0 0
        %7063 = vmatprep.subr.bf16.mxu0 0
        %7064 = vmatpush1.bf16.msra.mxu0 0
        %7065 = vmatprep.mubr.bf16.mxu0 0
        %7066 = vmatmul.mubr.bf16.gmra.mrb[0].mxu0 %v7022
        %v7067 = vpop.f32.mrb[0].mxu0
        %v7068 = vadd.f32 0.0, %v7067
        %v7069 = vpop.f32.mrb[0].mxu0
        %v7070 = vpop.f32.mrb[0].mxu0
        %v7071 = vadd.f32 0.0, %v7070
        %v7072 = vpop.f32.mrb[0].mxu0
        %7073 = vmatprep.mubr.bf16.mxu0 0
        %7074 = vmatmul.mubr.bf16.gmra.mrb[0].mxu0 %v7025
        %v7075 = vpop.f32.mrb[0].mxu0
        %v7076 = vadd.f32 0.0, %v7075
        %v7077 = vpop.f32.mrb[0].mxu0
        %v7078 = vpop.f32.mrb[0].mxu0
        %v7079 = vadd.f32 0.0, %v7078
        %v7080 = vpop.f32.mrb[0].mxu0
        %7081 = vmatprep.mubr.bf16.mxu0 0
        %7082 = vmatmul.mubr.bf16.gmra.mrb[0].mxu0 %v7028
        %v7083 = vpop.f32.mrb[0].mxu0
        %v7084 = vadd.f32 0.0, %v7083
        %v7085 = vpop.f32.mrb[0].mxu0
        %v7086 = vpop.f32.mrb[0].mxu0
        %v7087 = vadd.f32 0.0, %v7086
        %v7088 = vpop.f32.mrb[0].mxu0
        %7089 = vmatprep.mubr.bf16.mxu0 0
        %7090 = vmatmul.mubr.bf16.gmra.mrb[0].mxu0 %v7031
        %v7091 = vpop.f32.mrb[0].mxu0
        %v7092 = vadd.f32 0.0, %v7091
        %v7093 = vpop.f32.mrb[0].mxu0
        %v7094 = vpop.f32.mrb[0].mxu0
        %v7095 = vadd.f32 0.0, %v7094
        %v7096 = vpop.f32.mrb[0].mxu0
        %7097 = vdwg.mxu0
        %v7098 = vadd.f32 %v6968, %v7068
        %v7099 = vadd.f32 %v6969, %v7071
        %v7100 = vadd.f32 %v6970, %v7076
        %v7101 = vadd.f32 %v6971, %v7079
        %v7102 = vadd.f32 %v6972, %v7084
        %v7103 = vadd.f32 %v6973, %v7087
        %v7104 = vadd.f32 %v6974, %v7092
        %v7105 = vadd.f32 %v6975, %v7095
        %s7106 = scalar_lea.vmem [#allocation5], 48
        %v7107 = vld [vmem:[%s7106 + $0x7] sm:$0xff]
        %v7108 = vld [vmem:[%s7106 + $0x1f] sm:$0xff]
        %v7109 = vld [vmem:[%s7106 + $0x37] sm:$0xff]
        %v7110 = vld [vmem:[%s7106 + $0x4f] sm:$0xff]
        %v7111 = vld [vmem:[%s7106 + $0x67] sm:$0xff]
        %v7112 = vld [vmem:[%s7106 + $0x7f] sm:$0xff]
        %v7113 = vld [vmem:[%s7106 + $0x97] sm:$0xff]
        %v7114 = vld [vmem:[%s7106 + $0xaf] sm:$0xff]
        %v7115 = vpack.c.bf16 %v7108, %v7107
        %v7116 = vpack.c.bf16 %v7110, %v7109
        %v7117 = vpack.c.bf16 %v7112, %v7111
        %v7118 = vpack.c.bf16 %v7114, %v7113
        %s7119 = scalar_lea.vmem %s5, 192
        %v7120 = vld [vmem:[%s7119] sm:$0xf]
        %v7121 = vld [vmem:[%s7119 + $0x4] sm:$0xf]
        %v7122 = vld [vmem:[%s7119 + $0x8] sm:$0xf]
        %v7123 = vld [vmem:[%s7119 + $0xc] sm:$0xf]
        %v7124 = vld [vmem:[%s7119 + $0x10] sm:$0xf]
        %v7125 = vld [vmem:[%s7119 + $0x14] sm:$0xf]
        %v7126 = vld [vmem:[%s7119 + $0x18] sm:$0xf]
        %v7127 = vld [vmem:[%s7119 + $0x1c] sm:$0xf]
        %v7136 = vunpack.c.l.b16 %v7120
        %v7137 = vunpack.c.l.b16 %v7121
        %v7138 = vunpack.c.l.b16 %v7122
        %v7139 = vunpack.c.l.b16 %v7123
        %v7140 = vunpack.c.l.b16 %v7124
        %v7141 = vunpack.c.l.b16 %v7125
        %v7142 = vunpack.c.l.b16 %v7126
        %v7143 = vunpack.c.l.b16 %v7127
        %v7144 = vpack.c.b16 %v7137, %v7136
        %v7145 = vpack.c.b16 %v7139, %v7138
        %v7146 = vpack.c.b16 %v7141, %v7140
        %v7147 = vpack.c.b16 %v7143, %v7142
        %v7153 = vsel %vm3134, %v7115, 0
        %v7156 = vsel %vm3134, %v7116, 0
        %v7159 = vsel %vm3134, %v7117, 0
        %v7162 = vsel %vm3134, %v7118, 0
        %7164 = vmatprep.subr.bf16.mxu0 0
        %7165 = vmatpush1.bf16.msra.mxu0 %v7144
        %7166 = vmatprep.subr.bf16.mxu0 0
        %7167 = vmatpush1.bf16.msra.mxu0 %v7145
        %7168 = vmatprep.subr.bf16.mxu0 0
        %7169 = vmatpush1.bf16.msra.mxu0 %v7146
        %7170 = vmatprep.subr.bf16.mxu0 0
        %7171 = vmatpush1.bf16.msra.mxu0 %v7147
        %7172 = vmatprep.subr.bf16.mxu0 0
        %7173 = vmatpush1.bf16.msra.mxu0 0
        %7174 = vmatprep.subr.bf16.mxu0 0
        %7175 = vmatpush1.bf16.msra.mxu0 0
        %7176 = vmatprep.subr.bf16.mxu0 0
        %7177 = vmatpush1.bf16.msra.mxu0 0
        %7178 = vmatprep.subr.bf16.mxu0 0
        %7179 = vmatpush1.bf16.msra.mxu0 0
        %7180 = vmatprep.subr.bf16.mxu0 0
        %7181 = vmatpush1.bf16.msra.mxu0 0
        %7182 = vmatprep.subr.bf16.mxu0 0
        %7183 = vmatpush1.bf16.msra.mxu0 0
        %7184 = vmatprep.subr.bf16.mxu0 0
        %7185 = vmatpush1.bf16.msra.mxu0 0
        %7186 = vmatprep.subr.bf16.mxu0 0
        %7187 = vmatpush1.bf16.msra.mxu0 0
        %7188 = vmatprep.subr.bf16.mxu0 0
        %7189 = vmatpush1.bf16.msra.mxu0 0
        %7190 = vmatprep.subr.bf16.mxu0 0
        %7191 = vmatpush1.bf16.msra.mxu0 0
        %7192 = vmatprep.subr.bf16.mxu0 0
        %7193 = vmatpush1.bf16.msra.mxu0 0
        %7194 = vmatprep.subr.bf16.mxu0 0
        %7195 = vmatpush1.bf16.msra.mxu0 0
        %7196 = vmatprep.mubr.bf16.mxu0 0
        %7197 = vmatmul.mubr.bf16.gmra.mrb[0].mxu0 %v7153
        %v7198 = vpop.f32.mrb[0].mxu0
        %v7199 = vadd.f32 0.0, %v7198
        %v7200 = vpop.f32.mrb[0].mxu0
        %v7201 = vpop.f32.mrb[0].mxu0
        %v7202 = vadd.f32 0.0, %v7201
        %v7203 = vpop.f32.mrb[0].mxu0
        %7204 = vmatprep.mubr.bf16.mxu0 0
        %7205 = vmatmul.mubr.bf16.gmra.mrb[0].mxu0 %v7156
        %v7206 = vpop.f32.mrb[0].mxu0
        %v7207 = vadd.f32 0.0, %v7206
        %v7208 = vpop.f32.mrb[0].mxu0
        %v7209 = vpop.f32.mrb[0].mxu0
        %v7210 = vadd.f32 0.0, %v7209
        %v7211 = vpop.f32.mrb[0].mxu0
        %7212 = vmatprep.mubr.bf16.mxu0 0
        %7213 = vmatmul.mubr.bf16.gmra.mrb[0].mxu0 %v7159
        %v7214 = vpop.f32.mrb[0].mxu0
        %v7215 = vadd.f32 0.0, %v7214
        %v7216 = vpop.f32.mrb[0].mxu0
        %v7217 = vpop.f32.mrb[0].mxu0
        %v7218 = vadd.f32 0.0, %v7217
        %v7219 = vpop.f32.mrb[0].mxu0
        %7220 = vmatprep.mubr.bf16.mxu0 0
        %7221 = vmatmul.mubr.bf16.gmra.mrb[0].mxu0 %v7162
        %v7222 = vpop.f32.mrb[0].mxu0
        %v7223 = vadd.f32 0.0, %v7222
        %v7224 = vpop.f32.mrb[0].mxu0
        %v7225 = vpop.f32.mrb[0].mxu0
        %v7226 = vadd.f32 0.0, %v7225
        %v7227 = vpop.f32.mrb[0].mxu0
        %7228 = vdwg.mxu0
        %v7229 = vadd.f32 %v7098, %v7199
        %v7230 = vadd.f32 %v7099, %v7202
        %v7231 = vadd.f32 %v7100, %v7207
        %v7232 = vadd.f32 %v7101, %v7210
        %v7233 = vadd.f32 %v7102, %v7215
        %v7234 = vadd.f32 %v7103, %v7218
        %v7235 = vadd.f32 %v7104, %v7223
        %v7236 = vadd.f32 %v7105, %v7226
        %v7237 = vld [vmem:[%s7106 + $0x8] sm:$0xff]
        %v7238 = vld [vmem:[%s7106 + $0x20] sm:$0xff]
        %v7239 = vld [vmem:[%s7106 + $0x38] sm:$0xff]
        %v7240 = vld [vmem:[%s7106 + $0x50] sm:$0xff]
        %v7241 = vld [vmem:[%s7106 + $0x68] sm:$0xff]
        %v7242 = vld [vmem:[%s7106 + $0x80] sm:$0xff]
        %v7243 = vld [vmem:[%s7106 + $0x98] sm:$0xff]
        %v7244 = vld [vmem:[%s7106 + $0xb0] sm:$0xff]
        %v7245 = vpack.c.bf16 %v7238, %v7237
        %v7246 = vpack.c.bf16 %v7240, %v7239
        %v7247 = vpack.c.bf16 %v7242, %v7241
        %v7248 = vpack.c.bf16 %v7244, %v7243
        %s7249 = scalar_lea.vmem %s5, 224
        %v7250 = vld [vmem:[%s7249] sm:$0xf]
        %v7251 = vld [vmem:[%s7249 + $0x4] sm:$0xf]
        %v7252 = vld [vmem:[%s7249 + $0x8] sm:$0xf]
        %v7253 = vld [vmem:[%s7249 + $0xc] sm:$0xf]
        %v7254 = vld [vmem:[%s7249 + $0x10] sm:$0xf]
        %v7255 = vld [vmem:[%s7249 + $0x14] sm:$0xf]
        %v7256 = vld [vmem:[%s7249 + $0x18] sm:$0xf]
        %v7257 = vld [vmem:[%s7249 + $0x1c] sm:$0xf]
        %v7266 = vunpack.c.l.b16 %v7250
        %v7267 = vunpack.c.l.b16 %v7251
        %v7268 = vunpack.c.l.b16 %v7252
        %v7269 = vunpack.c.l.b16 %v7253
        %v7270 = vunpack.c.l.b16 %v7254
        %v7271 = vunpack.c.l.b16 %v7255
        %v7272 = vunpack.c.l.b16 %v7256
        %v7273 = vunpack.c.l.b16 %v7257
        %v7274 = vpack.c.b16 %v7267, %v7266
        %v7275 = vpack.c.b16 %v7269, %v7268
        %v7276 = vpack.c.b16 %v7271, %v7270
        %v7277 = vpack.c.b16 %v7273, %v7272
        %v7283 = vsel %vm3134, %v7245, 0
        %v7286 = vsel %vm3134, %v7246, 0
        %v7289 = vsel %vm3134, %v7247, 0
        %v7292 = vsel %vm3134, %v7248, 0
        %7294 = vmatprep.subr.bf16.mxu0 0
        %7295 = vmatpush1.bf16.msra.mxu0 %v7274
        %7296 = vmatprep.subr.bf16.mxu0 0
        %7297 = vmatpush1.bf16.msra.mxu0 %v7275
        %7298 = vmatprep.subr.bf16.mxu0 0
        %7299 = vmatpush1.bf16.msra.mxu0 %v7276
        %7300 = vmatprep.subr.bf16.mxu0 0
        %7301 = vmatpush1.bf16.msra.mxu0 %v7277
        %7302 = vmatprep.subr.bf16.mxu0 0
        %7303 = vmatpush1.bf16.msra.mxu0 0
        %7304 = vmatprep.subr.bf16.mxu0 0
        %7305 = vmatpush1.bf16.msra.mxu0 0
        %7306 = vmatprep.subr.bf16.mxu0 0
        %7307 = vmatpush1.bf16.msra.mxu0 0
        %7308 = vmatprep.subr.bf16.mxu0 0
        %7309 = vmatpush1.bf16.msra.mxu0 0
        %7310 = vmatprep.subr.bf16.mxu0 0
        %7311 = vmatpush1.bf16.msra.mxu0 0
        %7312 = vmatprep.subr.bf16.mxu0 0
        %7313 = vmatpush1.bf16.msra.mxu0 0
        %7314 = vmatprep.subr.bf16.mxu0 0
        %7315 = vmatpush1.bf16.msra.mxu0 0
        %7316 = vmatprep.subr.bf16.mxu0 0
        %7317 = vmatpush1.bf16.msra.mxu0 0
        %7318 = vmatprep.subr.bf16.mxu0 0
        %7319 = vmatpush1.bf16.msra.mxu0 0
        %7320 = vmatprep.subr.bf16.mxu0 0
        %7321 = vmatpush1.bf16.msra.mxu0 0
        %7322 = vmatprep.subr.bf16.mxu0 0
        %7323 = vmatpush1.bf16.msra.mxu0 0
        %7324 = vmatprep.subr.bf16.mxu0 0
        %7325 = vmatpush1.bf16.msra.mxu0 0
        %7326 = vmatprep.mubr.bf16.mxu0 0
        %7327 = vmatmul.mubr.bf16.gmra.mrb[0].mxu0 %v7283
        %v7328 = vpop.f32.mrb[0].mxu0
        %v7329 = vadd.f32 0.0, %v7328
        %v7330 = vpop.f32.mrb[0].mxu0
        %v7331 = vpop.f32.mrb[0].mxu0
        %v7332 = vadd.f32 0.0, %v7331
        %v7333 = vpop.f32.mrb[0].mxu0
        %7334 = vmatprep.mubr.bf16.mxu0 0
        %7335 = vmatmul.mubr.bf16.gmra.mrb[0].mxu0 %v7286
        %v7336 = vpop.f32.mrb[0].mxu0
        %v7337 = vadd.f32 0.0, %v7336
        %v7338 = vpop.f32.mrb[0].mxu0
        %v7339 = vpop.f32.mrb[0].mxu0
        %v7340 = vadd.f32 0.0, %v7339
        %v7341 = vpop.f32.mrb[0].mxu0
        %7342 = vmatprep.mubr.bf16.mxu0 0
        %7343 = vmatmul.mubr.bf16.gmra.mrb[0].mxu0 %v7289
        %v7344 = vpop.f32.mrb[0].mxu0
        %v7345 = vadd.f32 0.0, %v7344
        %v7346 = vpop.f32.mrb[0].mxu0
        %v7347 = vpop.f32.mrb[0].mxu0
        %v7348 = vadd.f32 0.0, %v7347
        %v7349 = vpop.f32.mrb[0].mxu0
        %7350 = vmatprep.mubr.bf16.mxu0 0
        %7351 = vmatmul.mubr.bf16.gmra.mrb[0].mxu0 %v7292
        %v7352 = vpop.f32.mrb[0].mxu0
        %v7353 = vadd.f32 0.0, %v7352
        %v7354 = vpop.f32.mrb[0].mxu0
        %v7355 = vpop.f32.mrb[0].mxu0
        %v7356 = vadd.f32 0.0, %v7355
        %v7357 = vpop.f32.mrb[0].mxu0
        %7358 = vdwg.mxu0
        %v7359 = vadd.f32 %v7229, %v7329
        %v7360 = vadd.f32 %v7230, %v7332
        %v7361 = vadd.f32 %v7231, %v7337
        %v7362 = vadd.f32 %v7232, %v7340
        %v7363 = vadd.f32 %v7233, %v7345
        %v7364 = vadd.f32 %v7234, %v7348
        %v7365 = vadd.f32 %v7235, %v7353
        %v7366 = vadd.f32 %v7236, %v7356
        %v7367 = vld [vmem:[%s7106 + $0x9] sm:$0xff]
        %v7368 = vld [vmem:[%s7106 + $0x21] sm:$0xff]
        %v7369 = vld [vmem:[%s7106 + $0x39] sm:$0xff]
        %v7370 = vld [vmem:[%s7106 + $0x51] sm:$0xff]
        %v7371 = vld [vmem:[%s7106 + $0x69] sm:$0xff]
        %v7372 = vld [vmem:[%s7106 + $0x81] sm:$0xff]
        %v7373 = vld [vmem:[%s7106 + $0x99] sm:$0xff]
        %v7374 = vld [vmem:[%s7106 + $0xb1] sm:$0xff]
        %v7375 = vpack.c.bf16 %v7368, %v7367
        %v7376 = vpack.c.bf16 %v7370, %v7369
        %v7377 = vpack.c.bf16 %v7372, %v7371
        %v7378 = vpack.c.bf16 %v7374, %v7373
        %s7379 = scalar_lea.vmem %s5, 256
        %v7380 = vld [vmem:[%s7379] sm:$0xf]
        %v7381 = vld [vmem:[%s7379 + $0x4] sm:$0xf]
        %v7382 = vld [vmem:[%s7379 + $0x8] sm:$0xf]
        %v7383 = vld [vmem:[%s7379 + $0xc] sm:$0xf]
        %v7384 = vld [vmem:[%s7379 + $0x10] sm:$0xf]
        %v7385 = vld [vmem:[%s7379 + $0x14] sm:$0xf]
        %v7386 = vld [vmem:[%s7379 + $0x18] sm:$0xf]
        %v7387 = vld [vmem:[%s7379 + $0x1c] sm:$0xf]
        %v7396 = vunpack.c.l.b16 %v7380
        %v7397 = vunpack.c.l.b16 %v7381
        %v7398 = vunpack.c.l.b16 %v7382
        %v7399 = vunpack.c.l.b16 %v7383
        %v7400 = vunpack.c.l.b16 %v7384
        %v7401 = vunpack.c.l.b16 %v7385
        %v7402 = vunpack.c.l.b16 %v7386
        %v7403 = vunpack.c.l.b16 %v7387
        %v7404 = vpack.c.b16 %v7397, %v7396
        %v7405 = vpack.c.b16 %v7399, %v7398
        %v7406 = vpack.c.b16 %v7401, %v7400
        %v7407 = vpack.c.b16 %v7403, %v7402
        %v7413 = vsel %vm3134, %v7375, 0
        %v7416 = vsel %vm3134, %v7376, 0
        %v7419 = vsel %vm3134, %v7377, 0
        %v7422 = vsel %vm3134, %v7378, 0
        %7424 = vmatprep.subr.bf16.mxu0 0
        %7425 = vmatpush1.bf16.msra.mxu0 %v7404
        %7426 = vmatprep.subr.bf16.mxu0 0
        %7427 = vmatpush1.bf16.msra.mxu0 %v7405
        %7428 = vmatprep.subr.bf16.mxu0 0
        %7429 = vmatpush1.bf16.msra.mxu0 %v7406
        %7430 = vmatprep.subr.bf16.mxu0 0
        %7431 = vmatpush1.bf16.msra.mxu0 %v7407
        %7432 = vmatprep.subr.bf16.mxu0 0
        %7433 = vmatpush1.bf16.msra.mxu0 0
        %7434 = vmatprep.subr.bf16.mxu0 0
        %7435 = vmatpush1.bf16.msra.mxu0 0
        %7436 = vmatprep.subr.bf16.mxu0 0
        %7437 = vmatpush1.bf16.msra.mxu0 0
        %7438 = vmatprep.subr.bf16.mxu0 0
        %7439 = vmatpush1.bf16.msra.mxu0 0
        %7440 = vmatprep.subr.bf16.mxu0 0
        %7441 = vmatpush1.bf16.msra.mxu0 0
        %7442 = vmatprep.subr.bf16.mxu0 0
        %7443 = vmatpush1.bf16.msra.mxu0 0
        %7444 = vmatprep.subr.bf16.mxu0 0
        %7445 = vmatpush1.bf16.msra.mxu0 0
        %7446 = vmatprep.subr.bf16.mxu0 0
        %7447 = vmatpush1.bf16.msra.mxu0 0
        %7448 = vmatprep.subr.bf16.mxu0 0
        %7449 = vmatpush1.bf16.msra.mxu0 0
        %7450 = vmatprep.subr.bf16.mxu0 0
        %7451 = vmatpush1.bf16.msra.mxu0 0
        %7452 = vmatprep.subr.bf16.mxu0 0
        %7453 = vmatpush1.bf16.msra.mxu0 0
        %7454 = vmatprep.subr.bf16.mxu0 0
        %7455 = vmatpush1.bf16.msra.mxu0 0
        %7456 = vmatprep.mubr.bf16.mxu0 0
        %7457 = vmatmul.mubr.bf16.gmra.mrb[0].mxu0 %v7413
        %v7458 = vpop.f32.mrb[0].mxu0
        %v7459 = vadd.f32 0.0, %v7458
        %v7460 = vpop.f32.mrb[0].mxu0
        %v7461 = vpop.f32.mrb[0].mxu0
        %v7462 = vadd.f32 0.0, %v7461
        %v7463 = vpop.f32.mrb[0].mxu0
        %7464 = vmatprep.mubr.bf16.mxu0 0
        %7465 = vmatmul.mubr.bf16.gmra.mrb[0].mxu0 %v7416
        %v7466 = vpop.f32.mrb[0].mxu0
        %v7467 = vadd.f32 0.0, %v7466
        %v7468 = vpop.f32.mrb[0].mxu0
        %v7469 = vpop.f32.mrb[0].mxu0
        %v7470 = vadd.f32 0.0, %v7469
        %v7471 = vpop.f32.mrb[0].mxu0
        %7472 = vmatprep.mubr.bf16.mxu0 0
        %7473 = vmatmul.mubr.bf16.gmra.mrb[0].mxu0 %v7419
        %v7474 = vpop.f32.mrb[0].mxu0
        %v7475 = vadd.f32 0.0, %v7474
        %v7476 = vpop.f32.mrb[0].mxu0
        %v7477 = vpop.f32.mrb[0].mxu0
        %v7478 = vadd.f32 0.0, %v7477
        %v7479 = vpop.f32.mrb[0].mxu0
        %7480 = vmatprep.mubr.bf16.mxu0 0
        %7481 = vmatmul.mubr.bf16.gmra.mrb[0].mxu0 %v7422
        %v7482 = vpop.f32.mrb[0].mxu0
        %v7483 = vadd.f32 0.0, %v7482
        %v7484 = vpop.f32.mrb[0].mxu0
        %v7485 = vpop.f32.mrb[0].mxu0
        %v7486 = vadd.f32 0.0, %v7485
        %v7487 = vpop.f32.mrb[0].mxu0
        %7488 = vdwg.mxu0
        %v7489 = vadd.f32 %v7359, %v7459
        %v7490 = vadd.f32 %v7360, %v7462
        %v7491 = vadd.f32 %v7361, %v7467
        %v7492 = vadd.f32 %v7362, %v7470
        %v7493 = vadd.f32 %v7363, %v7475
        %v7494 = vadd.f32 %v7364, %v7478
        %v7495 = vadd.f32 %v7365, %v7483
        %v7496 = vadd.f32 %v7366, %v7486
        %v7497 = vld [vmem:[%s6] sm:$0x1]
        %v7499 = vlaneseq
        %v7500 = vshrl.u32 %v7499, 7
        %v7501 = vsub.s32 0, %v7500
        %v7502 = vrot.slane %v7497, %v7501
        %v7504 = vadd.f32 %v7489, %v7502
        %v7505 = vadd.f32 %v7490, %v7502
        %v7506 = vadd.f32 %v7491, %v7502
        %v7507 = vadd.f32 %v7492, %v7502
        %v7508 = vadd.f32 %v7493, %v7502
        %v7509 = vadd.f32 %v7494, %v7502
        %v7510 = vadd.f32 %v7495, %v7502
        %v7511 = vadd.f32 %v7496, %v7502
        %vm7512 = vcmp.ge.f32.partialorder %v7504, 0.0
        %vm7513 = vcmp.ge.f32.partialorder %v7505, 0.0
        %vm7514 = vcmp.ge.f32.partialorder %v7506, 0.0
        %vm7515 = vcmp.ge.f32.partialorder %v7507, 0.0
        %vm7516 = vcmp.ge.f32.partialorder %v7508, 0.0
        %vm7517 = vcmp.ge.f32.partialorder %v7509, 0.0
        %vm7518 = vcmp.ge.f32.partialorder %v7510, 0.0
        %vm7519 = vcmp.ge.f32.partialorder %v7511, 0.0
        %v7520 = vmul.f32 %v7504, 0.5
        %v7521 = vmul.f32 %v7505, 0.5
        %v7522 = vmul.f32 %v7506, 0.5
        %v7523 = vmul.f32 %v7507, 0.5
        %v7524 = vmul.f32 %v7508, 0.5
        %v7525 = vmul.f32 %v7509, 0.5
        %v7526 = vmul.f32 %v7510, 0.5
        %v7527 = vmul.f32 %v7511, 0.5
        %v7528 = vsel %vm7512, %v7504, %v7520
        %v7529 = vsel %vm7513, %v7505, %v7521
        %v7530 = vsel %vm7514, %v7506, %v7522
        %v7531 = vsel %vm7515, %v7507, %v7523
        %v7532 = vsel %vm7516, %v7508, %v7524
        %v7533 = vsel %vm7517, %v7509, %v7525
        %v7534 = vsel %vm7518, %v7510, %v7526
        %v7535 = vsel %vm7519, %v7511, %v7527
        %7536 = vst [vmem:[%s271] sm:$0xff] %v7528
        %7537 = vst [vmem:[%s271 + $0x8] sm:$0xff] %v7529
        %7538 = vst [vmem:[%s271 + $0x10] sm:$0xff] %v7530
        %7539 = vst [vmem:[%s271 + $0x18] sm:$0xff] %v7531
        %7540 = vst [vmem:[%s271 + $0x20] sm:$0xff] %v7532
        %7541 = vst [vmem:[%s271 + $0x28] sm:$0xff] %v7533
        %7542 = vst [vmem:[%s271 + $0x30] sm:$0xff] %v7534
        %7543 = vst [vmem:[%s271 + $0x38] sm:$0xff] %v7535
        %s7544 = sand.u32 %s181, 1
        %s7545 = scalar_lea.sflag [#allocation7], %s7544
        %s7546 = sand.u32 %s181, 1
        %s7547 = smul.addr %s7546, 64
        %s7548 = scalar_lea.vmem [#allocation6], %s7547
        // Predicated region
        $region49: #{ex_net_forward.1} parent=47 // pred_check
          %p7549 = pneg %p191
        $region50: #{ex_net_forward.1} parent=47 // pred_check_branch
          %7551 = sbr.rel (%p7549) target = $region52
        $region51: #{ex_net_forward.1} parent=47 // pred_region
          %s7553 = ssub.s32 1024, 1024
          %7554 = vsyncadd %s7545, %s7553
          %s7555 = smul.addr %s21, 8
          %s7556 = smul.addr %s7555, 128
          %s7557 = scalar_lea.hbm %s7, %s7556
          %s7558 = sshll.u32 %s7548, 4
          %s7559 = int_to_ptr.vmem [resolvable:$true] %s7558
          %7564 = dma.vmem_to_hbm [thread:$0]  %s7559, 1024, %s7557, %s7545, 128, 128, 8
        $region52: #{ex_net_forward.1} parent=47 // pred_fallthru
          _
      $region48: #{ex_net_forward.1} parent=5 // pred_fallthru
        _
      %p7565 = scmp.le.s32.totalorder 2, %s16
      // Predicated region
      $region53: #{ex_net_forward.1} parent=5 // pred_check
        %p7566 = pneg %p7565
      $region54: #{ex_net_forward.1} parent=5 // pred_check_branch
        %7568 = sbr.rel (%p7566) target = $region56
      $region55: #{ex_net_forward.1} parent=5 // pred_region
        %s7569 = ssub.s32 %s16, 2
        // Predicated region
        $region57: #{ex_net_forward.1} parent=55 // pred_check
          %p7570 = pneg %p197
        $region58: #{ex_net_forward.1} parent=55 // pred_check_branch
          %7572 = sbr.rel (%p7570) target = $region60
        $region59: #{ex_net_forward.1} parent=55 // pred_region
          %s7573 = sand.u32 %s182, 1
          %s7574 = scalar_lea.sflag [#allocation7], %s7573
          %s7575 = sand.u32 %s182, 1
          %s7576 = smul.addr %s7575, 64
          %s7577 = scalar_lea.vmem [#allocation6], %s7576
          %7578 = dma.done %s7574, 1024
        $region60: #{ex_net_forward.1} parent=55 // pred_fallthru
          _
      $region56: #{ex_net_forward.1} parent=5 // pred_fallthru
        _
    $region6: #{ex_net_forward.1} parent=1 // loop_footer
      %s20 = sadd.s32 1, %s16
    $region7: #{ex_net_forward.1} parent=1 // loop_footer_branch
      %15 = sbr.rel target = $region3
    $region8: #{ex_net_forward.1} parent=1 // loop_exit
      _
    %7579 = vsyncpa [#allocation7], 1
    %s7580 = scalar_lea.sflag [#allocation7], 1
    %7581 = vsyncpa %s7580, 1

</llo_original>
